<compile_context>
chip_gen: v7x
topology: tpu7x:2x2x1
jax: 0.10.0
libtpu: 0.0.40
codegen_flags: <defaults>
</compile_context>

<pallas_src>
import functools

import jax
import jax.numpy as jnp
from jax.experimental import pallas as pl
from jax.experimental.pallas import tpu as pltpu


def _silu(y):
    # y * sigmoid(y); jax.nn.sigmoid lowers to the EUP logistic (free slot in
    # the matmul epilogue).
    return y * jax.nn.sigmoid(y)


def _round_up(x, m):
    return -(-x // m) * m


# ---------------------------------------------------------------------------
# Generation-aware VMEM budgets
# ---------------------------------------------------------------------------
def _vmem_params():
    """Returns (vmem_limit_bytes, per-tile VMEM budget) for the local TPU."""
    try:
        cap = int(getattr(pltpu.get_tpu_info(), "vmem_capacity_bytes", 64 << 20))
    except Exception:  # non-TPU / query unavailable: assume the smallest (v7x)
        cap = 64 << 20
    cap = max(cap, 32 << 20)
    limit = min(cap * 3 // 4, 96 << 20)   # 48 MiB on v7x, 96 MiB on v5e/v6e
    budget = max(2 << 20, cap // 16)      # ~4 MiB on v7x, ~8 MiB on v5e/v6e
    return limit, budget


def _row_tile(n_rows, n_cols, budget_bytes, itemsize):
    """Row-tile size: as big as the budget allows, prefer exact divisors of
    n_rows (no padded HBM copy) and >=4 grid steps (2 per v7x TensorCore)."""
    cap = max(8, min(8192, (budget_bytes // (itemsize * max(n_cols, 1))) // 8 * 8))
    if n_rows <= cap:
        for parts in (4, 2):
            blk = n_rows // parts
            if blk and n_rows % parts == 0 and blk % 8 == 0:
                return blk, 0
        return n_rows, 0                  # full-extent block (8-rule exempt)
    lo = max(8, cap // 8)
    for cand in range(cap, lo, -8):       # largest mult-of-8 divisor
        if n_rows % cand == 0:
            return cand, 0
    return cap, (-n_rows) % cap           # fall back: big tile + padded tail


def _band_height(H, n_imgs, W, Cp, itemsize, budget):
    """Rows per 3x3-conv band: largest divisor of H whose VMEM footprint fits
    the budget, preferring >=4 total grid steps (v7x megacore + pipelining)."""
    P = _round_up(W + 2, 8)               # sublane-aligned row pitch

    def foot(bh):
        return ((bh + 2) * W * Cp * itemsize          # `a` halo slab scratch
                + bh * P * Cp * 4                      # f32 accumulator scratch
                + 4 * (bh + 2) * P * Cp * itemsize     # wide plane + shifted copies
                + 4 * bh * W * Cp * itemsize)          # output block (double buffered)

    divs = [d for d in range(1, H + 1) if H % d == 0]
    fits = [d for d in divs if foot(d) <= budget]
    if not fits:
        return 1, P
    for d in sorted(fits, reverse=True):
        if n_imgs * (H // d) >= 4 and d >= min(8, H):
            return d, P
    return max(fits), P


# ---------------------------------------------------------------------------
# Kernel 1: fused 1x1 conv + folded-BN affine + optional SiLU
# ---------------------------------------------------------------------------
def _pw_kernel(x_ref, w_ref, s_ref, t_ref, o_ref, *, act):
    y = jnp.dot(x_ref[...], w_ref[...], preferred_element_type=jnp.float32)
    y = y * s_ref[...] + t_ref[...]
    if act:
        y = _silu(y)
    o_ref[...] = y.astype(o_ref.dtype)


def _pointwise(x2d, w, scale, shift, *, act, vmem_limit, budget):
    R, cin = x2d.shape
    cout = w.shape[1]
    itemsize = jnp.dtype(x2d.dtype).itemsize
    tm, pad = _row_tile(R, cin + cout, budget, itemsize)
    if pad:
        x2d = jnp.pad(x2d, ((0, pad), (0, 0)))
    Rp = R + pad
    row = lambda i: (i, 0)
    rep = lambda i: (0, 0)
    out = pl.pallas_call(
        functools.partial(_pw_kernel, act=act),
        out_shape=jax.ShapeDtypeStruct((Rp, cout), x2d.dtype),
        grid_spec=pltpu.PrefetchScalarGridSpec(
            num_scalar_prefetch=0,
            grid=(Rp // tm,),
            in_specs=[
                pl.BlockSpec((tm, cin), row),
                pl.BlockSpec((cin, cout), rep),
                pl.BlockSpec((1, cout), rep),
                pl.BlockSpec((1, cout), rep),
            ],
            out_specs=pl.BlockSpec((tm, cout), row),
        ),
        compiler_params=pltpu.CompilerParams(
            dimension_semantics=("parallel",), vmem_limit_bytes=vmem_limit),
    )(x2d, w, scale, shift)
    return out[:R] if pad else out


# ---------------------------------------------------------------------------
# Kernel 2: fully fused Bottleneck (1x1 CBS + 3x3 CBS + residual), per H-band
# ---------------------------------------------------------------------------
def _bneck_kernel(a_any, w1_ref, s1_ref, t1_ref, w3_ref, s2_ref, t2_ref,
                  o_ref, slab, acc, *, H, W, bh, P, shortcut):
    ni = pl.program_id(0)                 # image
    bi = pl.program_id(1)                 # H band
    nb = pl.num_programs(1)
    Cp = o_ref.shape[-1]

    # --- in-kernel DMA of the (bh + 2)-row halo slab of `a` -----------------
    # TODO(synk): double-buffer the slab across grid steps to hide this DMA.
    row0 = bi * bh
    pltpu.sync_copy(a_any.at[ni, pl.ds(row0, bh)], slab.at[pl.ds(1, bh)])

    @pl.when(bi > 0)
    def _():
        pltpu.sync_copy(a_any.at[ni, pl.ds(row0 - 1, 1)], slab.at[pl.ds(0, 1)])

    @pl.when(bi < nb - 1)
    def _():
        pltpu.sync_copy(a_any.at[ni, pl.ds(row0 + bh, 1)],
                        slab.at[pl.ds(bh + 1, 1)])

    a_slab = slab[...]                                        # (bh+2, W, Cp)

    # --- bottleneck cv1: 1x1 conv + BN + SiLU on core + halo rows -----------
    bflat = jnp.dot(a_slab.reshape((bh + 2) * W, Cp), w1_ref[...],
                    preferred_element_type=jnp.float32)
    bflat = _silu(bflat * s1_ref[...] + t1_ref[...])
    bmat = bflat.reshape(bh + 2, W, Cp).astype(a_slab.dtype)

    # halo rows outside the image are the 3x3 conv's zero padding; the
    # NaN-safe select also neutralises stale scratch rows on skipped DMAs.
    zrow = jnp.zeros((1, W, Cp), bmat.dtype)
    top = jnp.where(bi > 0, bmat[0:1], zrow)
    bot = jnp.where(bi < nb - 1, bmat[bh + 1:bh + 2], zrow)
    bmat = jnp.concatenate([top, bmat[1:bh + 1], bot], axis=0)

    # --- embed into a pitch-P (multiple of 8) zero-haloed wide plane --------
    zl = jnp.zeros((bh + 2, 1, Cp), bmat.dtype)
    zr = jnp.zeros((bh + 2, P - W - 1, Cp), bmat.dtype)
    wide = jnp.concatenate([zl, bmat, zr], axis=1).reshape((bh + 2) * P, Cp)
    wide = jnp.concatenate([wide, jnp.zeros((8, Cp), bmat.dtype)], axis=0)
    Lp = (bh + 2) * P
    # kx sub-offsets as two precomputed shifted planes, reused across ky, so
    # every tap below is a sublane-aligned (ky*P) slice.
    planes = (wide[:Lp], wide[1:1 + Lp], wide[2:2 + Lp])

    # --- 3x3 conv: 9 shifted-row matmuls into an f32 VMEM accumulator -------
    L = bh * P
    first = True
    for ky in range(3):
        for kx in range(3):
            tap = planes[kx][ky * P: ky * P + L]
            contrib = jnp.dot(tap, w3_ref[ky, kx],
                              preferred_element_type=jnp.float32)
            if first:
                acc[...] = contrib
                first = False
            else:
                acc[...] += contrib

    # --- BN + SiLU epilogue, strip pitch padding, fused residual, store -----
    y = _silu(acc[...] * s2_ref[...] + t2_ref[...])
    y = y.reshape(bh, P, Cp)[:, :W, :]
    if shortcut:
        y = y + a_slab[1:bh + 1].astype(jnp.float32)
    o_ref[0] = y.astype(o_ref.dtype)


def _bottleneck(a_nhwc, blk, *, shortcut, vmem_limit, budget):
    (w1, s1, t1, w3, s2, t2) = blk
    N, H, W, Cp = a_nhwc.shape
    itemsize = jnp.dtype(a_nhwc.dtype).itemsize
    bh, P = _band_height(H, N, W, Cp, itemsize, budget)
    nb = H // bh
    rep2 = lambda n, b: (0, 0)
    return pl.pallas_call(
        functools.partial(_bneck_kernel, H=H, W=W, bh=bh, P=P,
                          shortcut=shortcut),
        out_shape=jax.ShapeDtypeStruct((N, H, W, Cp), a_nhwc.dtype),
        grid_spec=pltpu.PrefetchScalarGridSpec(
            num_scalar_prefetch=0,
            grid=(N, nb),
            in_specs=[
                pl.BlockSpec(memory_space=pl.ANY),          # full `a`, manual halo DMA
                pl.BlockSpec((Cp, Cp), rep2),               # bottleneck cv1 weight
                pl.BlockSpec((1, Cp), rep2),                # cv1 BN scale
                pl.BlockSpec((1, Cp), rep2),                # cv1 BN shift
                pl.BlockSpec((3, 3, Cp, Cp), lambda n, b: (0, 0, 0, 0)),
                pl.BlockSpec((1, Cp), rep2),                # cv2 BN scale
                pl.BlockSpec((1, Cp), rep2),                # cv2 BN shift
            ],
            out_specs=pl.BlockSpec((1, bh, W, Cp), lambda n, b: (n, b, 0, 0)),
            scratch_shapes=[
                pltpu.VMEM((bh + 2, W, Cp), a_nhwc.dtype),  # halo slab of `a`
                pltpu.VMEM((bh * P, Cp), jnp.float32),      # conv accumulator
            ],
        ),
        compiler_params=pltpu.CompilerParams(
            dimension_semantics=("parallel", "parallel"),
            vmem_limit_bytes=vmem_limit),
    )(a_nhwc, w1, s1, t1, w3, s2, t2)


# ---------------------------------------------------------------------------
# Kernel 3: fused CSP head  (cv3, cv2, concat+BN+SiLU, cv4 conv+BN+SiLU)
# ---------------------------------------------------------------------------
def _csp_head_kernel(a_ref, x_ref, w3_ref, w2_ref, s1_ref, t1_ref,
                     s2_ref, t2_ref, w4_ref, s4_ref, t4_ref, o_ref):
    y1 = jnp.dot(a_ref[...], w3_ref[...], preferred_element_type=jnp.float32)
    y2 = jnp.dot(x_ref[...], w2_ref[...], preferred_element_type=jnp.float32)
    z1 = _silu(y1 * s1_ref[...] + t1_ref[...])                # BN+SiLU, cat[:c_]
    z2 = _silu(y2 * s2_ref[...] + t2_ref[...])                # BN+SiLU, cat[c_:]
    # lane concat -> one K = 2*c_ matmul (fills the 256-deep MXU on v6e/v7x)
    z = jnp.concatenate([z1, z2], axis=1).astype(a_ref.dtype)
    o = jnp.dot(z, w4_ref[...], preferred_element_type=jnp.float32)
    o_ref[...] = _silu(o * s4_ref[...] + t4_ref[...]).astype(o_ref.dtype)


def _csp_head(a2d, x2d, head, *, vmem_limit, budget):
    (w_cv3, w_cv2, s1, t1, s2, t2, w4, s4, t4) = head
    R, c_p = a2d.shape
    c1p = x2d.shape[1]
    c2p = w4.shape[1]
    itemsize = jnp.dtype(a2d.dtype).itemsize
    tm, pad = _row_tile(R, c1p + 3 * c_p + c2p, budget, itemsize)
    if pad:
        a2d = jnp.pad(a2d, ((0, pad), (0, 0)))
        x2d = jnp.pad(x2d, ((0, pad), (0, 0)))
    Rp = R + pad
    row = lambda i: (i, 0)
    rep = lambda i: (0, 0)
    out = pl.pallas_call(
        _csp_head_kernel,
        out_shape=jax.ShapeDtypeStruct((Rp, c2p), a2d.dtype),
        grid_spec=pltpu.PrefetchScalarGridSpec(
            num_scalar_prefetch=0,
            grid=(Rp // tm,),
            in_specs=[
                pl.BlockSpec((tm, c_p), row),
                pl.BlockSpec((tm, c1p), row),
                pl.BlockSpec((c_p, c_p), rep),
                pl.BlockSpec((c1p, c_p), rep),
                pl.BlockSpec((1, c_p), rep),
                pl.BlockSpec((1, c_p), rep),
                pl.BlockSpec((1, c_p), rep),
                pl.BlockSpec((1, c_p), rep),
                pl.BlockSpec((2 * c_p, c2p), rep),
                pl.BlockSpec((1, c2p), rep),
                pl.BlockSpec((1, c2p), rep),
            ],
            out_specs=pl.BlockSpec((tm, c2p), row),
        ),
        compiler_params=pltpu.CompilerParams(
            dimension_semantics=("parallel",), vmem_limit_bytes=vmem_limit),
    )(a2d, x2d, w_cv3, w_cv2, s1, t1, s2, t2, w4, s4, t4)
    return out[:R] if pad else out


# ---------------------------------------------------------------------------
# Module forward + parameter preparation
# ---------------------------------------------------------------------------
def bottleneck_csp_forward(x_nchw, params, *, c2, shortcut=True):
    """BottleneckCSP forward (inference / eval-mode BatchNorm semantics)."""
    N, c1, H, W = x_nchw.shape
    w_cv1, s1, t1 = params["cv1"]
    c1p, c_p = w_cv1.shape
    cdtype = w_cv1.dtype
    vmem_limit, budget = _vmem_params()

    # Single boundary relayout: NCHW -> channels-on-lanes NHWC, zero-padded to
    # the lane multiple and cast to the (bf16) MXU compute dtype.
    x = jnp.transpose(x_nchw, (0, 2, 3, 1))
    if c1p > c1:
        x = jnp.pad(x, ((0, 0), (0, 0), (0, 0), (0, c1p - c1)))
    x = x.astype(cdtype)
    R = N * H * W
    x2d = x.reshape(R, c1p)

    a2d = _pointwise(x2d, w_cv1, s1, t1, act=True,
                     vmem_limit=vmem_limit, budget=budget)          # CSP cv1
    a = a2d.reshape(N, H, W, c_p)
    for blk in params["m"]:                                          # Bottlenecks
        a = _bottleneck(a, blk, shortcut=shortcut,
                        vmem_limit=vmem_limit, budget=budget)
    out2d = _csp_head(a.reshape(R, c_p), x2d, params["head"],
                      vmem_limit=vmem_limit, budget=budget)          # cv3/cv2/cat/cv4
    out = out2d[:, :c2].astype(x_nchw.dtype).reshape(N, H, W, c2)
    return jnp.transpose(out, (0, 3, 1, 2))


def prepare_params(tp, *, eps=1e-5, compute_dtype=jnp.bfloat16, lane_multiple=128):
    """Fold PyTorch conv weights + eval-mode BatchNorm into kernel params.
    Channel dims are zero-padded to `lane_multiple` (lane-dense stores) and
    weights are cast once to `compute_dtype` (bf16 MXU operands)."""
    cd = compute_dtype
    rup = lambda c: _round_up(c, lane_multiple)

    def pw(w, cinp, coutp):                   # (O, I, 1, 1) -> padded (I, O)
        m = jnp.transpose(w[:, :, 0, 0], (1, 0))
        m = jnp.pad(m, ((0, cinp - m.shape[0]), (0, coutp - m.shape[1])))
        return m.astype(cd)

    def fold(bn, coutp):                      # eval BN -> per-channel scale/shift
        g, b, m, v = bn
        s = g * jax.lax.rsqrt(v + eps)
        t = b - m * s
        s = jnp.pad(s, (0, coutp - s.shape[0]))
        t = jnp.pad(t, (0, coutp - t.shape[0]))
        return (s.reshape(1, -1).astype(jnp.float32),
                t.reshape(1, -1).astype(jnp.float32))

    c_, c1 = tp["cv1_w"].shape[0], tp["cv1_w"].shape[1]
    c2 = tp["cv4_w"].shape[0]
    c1p, c_p, c2p = rup(c1), rup(c_), rup(c2)

    s1, t1 = fold(tp["cv1_bn"], c_p)

    m_params = []
    for (w1, bn1, w2, bn2) in tp["m"]:
        sb1, tb1 = fold(bn1, c_p)
        sb2, tb2 = fold(bn2, c_p)
        # TODO(synk): grouped 3x3 conv (g > 1) is not implemented (g=1 default).
        w3 = jnp.transpose(w2, (2, 3, 1, 0))                   # (3, 3, I, O)
        w3 = jnp.pad(w3, ((0, 0), (0, 0),
                          (0, c_p - w3.shape[2]), (0, c_p - w3.shape[3])))
        m_params.append((pw(w1, c_p, c_p), sb1, tb1, w3.astype(cd), sb2, tb2))

    # concat-BN split into the y1 / y2 halves, each lane-padded
    g, b, m, v = tp["bn_cat"]
    s_cat = g * jax.lax.rsqrt(v + eps)
    t_cat = b - m * s_cat
    padv = lambda z: jnp.pad(z, (0, c_p - z.shape[0])).reshape(1, -1).astype(jnp.float32)
    s_c1, t_c1, s_c2, t_c2 = padv(s_cat[:c_]), padv(t_cat[:c_]), padv(s_cat[c_:]), padv(t_cat[c_:])

    # cv4 weight rows reordered to the padded [y1 | y2] lane layout
    w4 = jnp.transpose(tp["cv4_w"][:, :, 0, 0], (1, 0))        # (2*c_, c2)
    w4a = jnp.pad(w4[:c_], ((0, c_p - c_), (0, c2p - c2)))
    w4b = jnp.pad(w4[c_:], ((0, c_p - c_), (0, c2p - c2)))
    w4p = jnp.concatenate([w4a, w4b], axis=0).astype(cd)       # (2*c_p, c2p)
    s4, t4 = fold(tp["cv4_bn"], c2p)

    return {
        "cv1": (pw(tp["cv1_w"], c1p, c_p), s1, t1),
        "m": m_params,
        "head": (pw(tp["cv3_w"], c_p, c_p), pw(tp["cv2_w"], c1p, c_p),
                 s_c1, t_c1, s_c2, t_c2, w4p, s4, t4),
    }


# ---------------------------------------------------------------------------
# Pure-JAX reference mirroring the PyTorch module (eval mode)
# ---------------------------------------------------------------------------
def _reference(x, tp, *, shortcut=True, eps=1e-5):
    def conv(x, w, pad):
        return jax.lax.conv_general_dilated(
            x, w, (1, 1), ((pad, pad), (pad, pad)),
            dimension_numbers=("NCHW", "OIHW", "NCHW"))

    def bn(x, p):
        g, b, m, v = p
        inv = 1.0 / jnp.sqrt(v + eps)
        return ((x - m[None, :, None, None]) * inv[None, :, None, None]
                * g[None, :, None, None] + b[None, :, None, None])

    def cbs(x, w, p, pad):
        y = bn(conv(x, w, pad), p)
        return y * jax.nn.sigmoid(y)

    a = cbs(x, tp["cv1_w"], tp["cv1_bn"], 0)
    for (w1, bn1, w2, bn2) in tp["m"]:
        b = cbs(a, w1, bn1, 0)
        c = cbs(b, w2, bn2, 1)
        a = a + c if shortcut else c
    y1 = conv(a, tp["cv3_w"], 0)
    y2 = conv(x, tp["cv2_w"], 0)
    z = jnp.concatenate([y1, y2], axis=1)
    z = bn(z, tp["bn_cat"])
    z = z * jax.nn.sigmoid(z)
    return cbs(z, tp["cv4_w"], tp["cv4_bn"], 0)


if __name__ == "__main__":
    key = jax.random.PRNGKey(0)
    _k = iter(jax.random.split(key, 64))

    def rnd(shape, scale=0.5):
        return scale * jax.random.normal(next(_k), shape, dtype=jnp.float32)

    def rnd_bn(c):
        return (1.0 + 0.1 * jax.random.normal(next(_k), (c,), jnp.float32),      # gamma
                0.1 * jax.random.normal(next(_k), (c,), jnp.float32),            # beta
                0.1 * jax.random.normal(next(_k), (c,), jnp.float32),            # run mean
                0.5 + jnp.abs(jax.random.normal(next(_k), (c,), jnp.float32)))   # run var

    # BottleneckCSP(c1=4, c2=4, n=2, shortcut=True, g=1, e=0.5) -> c_ = 2
    c1, c2, n, shortcut, e = 4, 4, 2, True, 0.5
    c_ = int(c2 * e)
    N, H, W = 2, 16, 16
    eps = 1e-5  # nn.BatchNorm2d default

    torch_params = {
        "cv1_w": rnd((c_, c1, 1, 1)), "cv1_bn": rnd_bn(c_),
        "cv2_w": rnd((c_, c1, 1, 1)),
        "cv3_w": rnd((c_, c_, 1, 1)),
        "cv4_w": rnd((c2, 2 * c_, 1, 1)), "cv4_bn": rnd_bn(c2),
        "bn_cat": rnd_bn(2 * c_),
        "m": [(rnd((c_, c_, 1, 1)), rnd_bn(c_),
               rnd((c_, c_, 3, 3)), rnd_bn(c_)) for _ in range(n)],
    }
    x = rnd((N, c1, H, W), 1.0)

    y_ref = _reference(x, torch_params, shortcut=shortcut, eps=eps)
    ref_mag = float(jnp.max(jnp.abs(y_ref)))

    # 1) float32-compute build: tight numerical check of the kernel structure.
    # 2) bf16-compute build: the recommended MXU path, looser tolerance.
    checks = ((jnp.float32, 2e-3 + 1e-3 * ref_mag),
              (jnp.bfloat16, 3e-2 + 6e-2 * ref_mag))
    for cdtype, tol in checks:
        kp = prepare_params(torch_params, eps=eps, compute_dtype=cdtype)
        fwd = jax.jit(functools.partial(bottleneck_csp_forward,
                                        c2=c2, shortcut=shortcut))
        y = jax.block_until_ready(fwd(x, kp))
        assert y.shape == (N, c2, H, W), y.shape
        err = float(jnp.max(jnp.abs(y.astype(jnp.float32) - y_ref)))
        assert err < tol, f"{cdtype.__name__} max abs err {err} (tol {tol})"

    print("KERNEL_OK")
</pallas_src>

<mosaic_0001>
module attributes {stable_mosaic.version = 11 : i64} {
  func.func @_pw_kernel(%arg0: i32, %arg1: memref<128x128xf32, #tpu.memory_space<vmem>>, %arg2: memref<128x128xf32, #tpu.memory_space<vmem>>, %arg3: memref<1x128xf32, #tpu.memory_space<vmem>>, %arg4: memref<1x128xf32, #tpu.memory_space<vmem>>, %arg5: memref<128x128xf32, #tpu.memory_space<vmem>>) attributes {dimension_semantics = [#tpu.dimension_semantics<parallel>], iteration_bounds = array<i64: 4>, scalar_prefetch = 0 : i64, scratch_operands = 0 : i64, tpu.core_type = #tpu.core_type<tc>, window_params = [{transform_indices = @transform_0, window_bounds = array<i64: 128, 128>}, {pipeline_mode = #tpu.pipeline_mode<synchronous>, transform_indices = @transform_1, window_bounds = array<i64: 128, 128>}, {pipeline_mode = #tpu.pipeline_mode<synchronous>, transform_indices = @transform_2, window_bounds = array<i64: 1, 128>}, {pipeline_mode = #tpu.pipeline_mode<synchronous>, transform_indices = @transform_3, window_bounds = array<i64: 1, 128>}, {transform_indices = @transform_4, window_bounds = array<i64: 128, 128>}]} {
    %c0 = arith.constant 0 : index
    %c0_0 = arith.constant 0 : index
    %0 = vector.load %arg1[%c0, %c0_0] : memref<128x128xf32, #tpu.memory_space<vmem>>, vector<128x128xf32>
    %c0_1 = arith.constant 0 : index
    %c0_2 = arith.constant 0 : index
    %1 = vector.load %arg2[%c0_1, %c0_2] : memref<128x128xf32, #tpu.memory_space<vmem>>, vector<128x128xf32>
    %cst = arith.constant dense<0.000000e+00> : vector<128x128xf32>
    %2 = tpu.matmul %0, %1, %cst {dimension_numbers = #tpu.dot_dimension_numbers<[1], [0], [0], [1], [0, 0, 1, 1], [], []>} : vector<128x128xf32>, vector<128x128xf32>, vector<128x128xf32> -> vector<128x128xf32>
    %c0_3 = arith.constant 0 : index
    %c0_4 = arith.constant 0 : index
    %3 = vector.load %arg3[%c0_3, %c0_4] : memref<1x128xf32, #tpu.memory_space<vmem>>, vector<1x128xf32>
    %4 = vector.broadcast %3 : vector<1x128xf32> to vector<128x128xf32>
    %5 = arith.mulf %2, %4 : vector<128x128xf32>
    %c0_5 = arith.constant 0 : index
    %c0_6 = arith.constant 0 : index
    %6 = vector.load %arg4[%c0_5, %c0_6] : memref<1x128xf32, #tpu.memory_space<vmem>>, vector<1x128xf32>
    %7 = vector.broadcast %6 : vector<1x128xf32> to vector<128x128xf32>
    %8 = arith.addf %5, %7 : vector<128x128xf32>
    %9 = arith.negf %8 : vector<128x128xf32>
    %10 = math.exp %9 : vector<128x128xf32>
    %cst_7 = arith.constant 1.000000e+00 : f32
    %11 = vector.broadcast %cst_7 : f32 to vector<128x128xf32>
    %12 = arith.addf %11, %10 : vector<128x128xf32>
    %13 = arith.divf %11, %12 : vector<128x128xf32>
    %14 = arith.mulf %8, %13 : vector<128x128xf32>
    %c0_8 = arith.constant 0 : index
    %c0_9 = arith.constant 0 : index
    %15 = vector.load %arg5[%c0_8, %c0_9] : memref<128x128xf32, #tpu.memory_space<vmem>>, vector<128x128xf32>
    tpu.vector_store %arg5[%c0_8, %c0_9], %14 {strides = array<i32>} : memref<128x128xf32, #tpu.memory_space<vmem>>, vector<128x128xf32>,
    return
  }
  func.func @transform_0(%arg0: i32) -> (i32, i32) {
    %c0_i32 = arith.constant 0 : i32
    %c0_i32_0 = arith.constant 0 : i32
    return %arg0, %c0_i32 : i32, i32
  }
  func.func @transform_1(%arg0: i32) -> (i32, i32) {
    %c0_i32 = arith.constant 0 : i32
    %c0_i32_0 = arith.constant 0 : i32
    %c0_i32_1 = arith.constant 0 : i32
    return %c0_i32, %c0_i32_0 : i32, i32
  }
  func.func @transform_2(%arg0: i32) -> (i32, i32) {
    %c0_i32 = arith.constant 0 : i32
    %c0_i32_0 = arith.constant 0 : i32
    %c0_i32_1 = arith.constant 0 : i32
    return %c0_i32, %c0_i32_0 : i32, i32
  }
  func.func @transform_3(%arg0: i32) -> (i32, i32) {
    %c0_i32 = arith.constant 0 : i32
    %c0_i32_0 = arith.constant 0 : i32
    %c0_i32_1 = arith.constant 0 : i32
    return %c0_i32, %c0_i32_0 : i32, i32
  }
  func.func @transform_4(%arg0: i32) -> (i32, i32) {
    %c0_i32 = arith.constant 0 : i32
    %c0_i32_0 = arith.constant 0 : i32
    return %arg0, %c0_i32 : i32, i32
  }
}

module attributes {stable_mosaic.version = 11 : i64} {
  func.func @_bneck_kernel(%arg0: i32, %arg1: i32, %arg2: memref<2x16x16x128xf32, #tpu.memory_space<any>>, %arg3: memref<128x128xf32, #tpu.memory_space<vmem>>, %arg4: memref<1x128xf32, #tpu.memory_space<vmem>>, %arg5: memref<1x128xf32, #tpu.memory_space<vmem>>, %arg6: memref<3x3x128x128xf32, #tpu.memory_space<vmem>>, %arg7: memref<1x128xf32, #tpu.memory_space<vmem>>, %arg8: memref<1x128xf32, #tpu.memory_space<vmem>>, %arg9: memref<1x8x16x128xf32, #tpu.memory_space<vmem>>, %arg10: memref<10x16x128xf32, #tpu.memory_space<vmem>>, %arg11: memref<192x128xf32, #tpu.memory_space<vmem>>) attributes {dimension_semantics = [#tpu.dimension_semantics<parallel>, #tpu.dimension_semantics<parallel>], iteration_bounds = array<i64: 2, 2>, scalar_prefetch = 0 : i64, scratch_operands = 2 : i64, tpu.core_type = #tpu.core_type<tc>, window_params = [{}, {pipeline_mode = #tpu.pipeline_mode<synchronous>, transform_indices = @transform_1, window_bounds = array<i64: 128, 128>}, {pipeline_mode = #tpu.pipeline_mode<synchronous>, transform_indices = @transform_2, window_bounds = array<i64: 1, 128>}, {pipeline_mode = #tpu.pipeline_mode<synchronous>, transform_indices = @transform_3, window_bounds = array<i64: 1, 128>}, {pipeline_mode = #tpu.pipeline_mode<synchronous>, transform_indices = @transform_4, window_bounds = array<i64: 3, 3, 128, 128>}, {pipeline_mode = #tpu.pipeline_mode<synchronous>, transform_indices = @transform_5, window_bounds = array<i64: 1, 128>}, {pipeline_mode = #tpu.pipeline_mode<synchronous>, transform_indices = @transform_6, window_bounds = array<i64: 1, 128>}, {transform_indices = @transform_7, window_bounds = array<i64: 1, 8, 16, 128>}]} {
    %c8_i32 = arith.constant 8 : i32
    %0 = arith.muli %arg1, %c8_i32 : i32
    "tpu.region"() ({
      %123 = tpu.sem_alloc : memref<!tpu.dma_semaphore, #tpu.memory_space<semaphore_mem>>
      %c0_i32_105 = arith.constant 0 : i32
      %c0_i32_106 = arith.constant 0 : i32
      %124 = tpu.memref_slice %arg2[%arg0, %0, %c0_i32_105, %c0_i32_106] : memref<2x16x16x128xf32, #tpu.memory_space<any>> -> memref<1x8x16x128xf32, #tpu.memory_space<any>>
      %125 = tpu.memref_squeeze %124 : memref<1x8x16x128xf32, #tpu.memory_space<any>> -> memref<8x16x128xf32, #tpu.memory_space<any>>
      %c1_i32_107 = arith.constant 1 : i32
      %c0_i32_108 = arith.constant 0 : i32
      %c0_i32_109 = arith.constant 0 : i32
      %126 = tpu.memref_slice %arg10[%c1_i32_107, %c0_i32_108, %c0_i32_109] : memref<10x16x128xf32, #tpu.memory_space<vmem>> -> memref<8x16x128xf32, #tpu.memory_space<vmem>>
      tpu.enqueue_dma source(%125 : memref<8x16x128xf32, #tpu.memory_space<any>>) target(%126 : memref<8x16x128xf32, #tpu.memory_space<vmem>>) target_semaphore(%123 : memref<!tpu.dma_semaphore, #tpu.memory_space<semaphore_mem>>)
      %c0_i32_110 = arith.constant 0 : i32
      %c0_i32_111 = arith.constant 0 : i32
      %127 = tpu.memref_slice %arg2[%arg0, %0, %c0_i32_110, %c0_i32_111] : memref<2x16x16x128xf32, #tpu.memory_space<any>> -> memref<1x8x16x128xf32, #tpu.memory_space<any>>
      %128 = tpu.memref_squeeze %127 : memref<1x8x16x128xf32, #tpu.memory_space<any>> -> memref<8x16x128xf32, #tpu.memory_space<any>>
      %c1_i32_112 = arith.constant 1 : i32
      %c0_i32_113 = arith.constant 0 : i32
      %c0_i32_114 = arith.constant 0 : i32
      %129 = tpu.memref_slice %arg10[%c1_i32_112, %c0_i32_113, %c0_i32_114] : memref<10x16x128xf32, #tpu.memory_space<vmem>> -> memref<8x16x128xf32, #tpu.memory_space<vmem>>
      tpu.wait_dma2 semaphore(%123 : memref<!tpu.dma_semaphore, #tpu.memory_space<semaphore_mem>>) src(%128 : memref<8x16x128xf32, #tpu.memory_space<any>>) dst(%129 : memref<8x16x128xf32, #tpu.memory_space<vmem>>)
      tpu.yield
    }) : () -> ()
    %c0_i32 = arith.constant 0 : i32
    %1 = arith.cmpi sgt, %arg1, %c0_i32 : i32
    %2 = arith.extui %1 : i1 to i32
    %c0_i32_0 = arith.constant 0 : i32
    %3 = arith.cmpi ne, %2, %c0_i32_0 : i32
    scf.if %3 {
      %c1_i32_105 = arith.constant 1 : i32
      %123 = arith.subi %0, %c1_i32_105 : i32
      "tpu.region"() ({
        %124 = tpu.sem_alloc : memref<!tpu.dma_semaphore, #tpu.memory_space<semaphore_mem>>
        %c0_i32_106 = arith.constant 0 : i32
        %c0_i32_107 = arith.constant 0 : i32
        %125 = tpu.memref_slice %arg2[%arg0, %123, %c0_i32_106, %c0_i32_107] : memref<2x16x16x128xf32, #tpu.memory_space<any>> -> memref<1x1x16x128xf32, #tpu.memory_space<any>>
        %126 = tpu.memref_squeeze %125 : memref<1x1x16x128xf32, #tpu.memory_space<any>> -> memref<1x16x128xf32, #tpu.memory_space<any>>
        %c0_i32_108 = arith.constant 0 : i32
        %c0_i32_109 = arith.constant 0 : i32
        %c0_i32_110 = arith.constant 0 : i32
        %127 = tpu.memref_slice %arg10[%c0_i32_108, %c0_i32_109, %c0_i32_110] : memref<10x16x128xf32, #tpu.memory_space<vmem>> -> memref<1x16x128xf32, #tpu.memory_space<vmem>>
        tpu.enqueue_dma source(%126 : memref<1x16x128xf32, #tpu.memory_space<any>>) target(%127 : memref<1x16x128xf32, #tpu.memory_space<vmem>>) target_semaphore(%124 : memref<!tpu.dma_semaphore, #tpu.memory_space<semaphore_mem>>)
        %c0_i32_111 = arith.constant 0 : i32
        %c0_i32_112 = arith.constant 0 : i32
        %128 = tpu.memref_slice %arg2[%arg0, %123, %c0_i32_111, %c0_i32_112] : memref<2x16x16x128xf32, #tpu.memory_space<any>> -> memref<1x1x16x128xf32, #tpu.memory_space<any>>
        %129 = tpu.memref_squeeze %128 : memref<1x1x16x128xf32, #tpu.memory_space<any>> -> memref<1x16x128xf32, #tpu.memory_space<any>>
        %c0_i32_113 = arith.constant 0 : i32
        %c0_i32_114 = arith.constant 0 : i32
        %c0_i32_115 = arith.constant 0 : i32
        %130 = tpu.memref_slice %arg10[%c0_i32_113, %c0_i32_114, %c0_i32_115] : memref<10x16x128xf32, #tpu.memory_space<vmem>> -> memref<1x16x128xf32, #tpu.memory_space<vmem>>
        tpu.wait_dma2 semaphore(%124 : memref<!tpu.dma_semaphore, #tpu.memory_space<semaphore_mem>>) src(%129 : memref<1x16x128xf32, #tpu.memory_space<any>>) dst(%130 : memref<1x16x128xf32, #tpu.memory_space<vmem>>)
        tpu.yield
      }) : () -> ()
    } else {
    }
    %c1_i32 = arith.constant 1 : i32
    %4 = arith.cmpi slt, %arg1, %c1_i32 : i32
    %5 = arith.extui %4 : i1 to i32
    %c0_i32_1 = arith.constant 0 : i32
    %6 = arith.cmpi ne, %5, %c0_i32_1 : i32
    scf.if %6 {
      %c8_i32_105 = arith.constant 8 : i32
      %123 = arith.addi %0, %c8_i32_105 : i32
      "tpu.region"() ({
        %124 = tpu.sem_alloc : memref<!tpu.dma_semaphore, #tpu.memory_space<semaphore_mem>>
        %c0_i32_106 = arith.constant 0 : i32
        %c0_i32_107 = arith.constant 0 : i32
        %125 = tpu.memref_slice %arg2[%arg0, %123, %c0_i32_106, %c0_i32_107] : memref<2x16x16x128xf32, #tpu.memory_space<any>> -> memref<1x1x16x128xf32, #tpu.memory_space<any>>
        %126 = tpu.memref_squeeze %125 : memref<1x1x16x128xf32, #tpu.memory_space<any>> -> memref<1x16x128xf32, #tpu.memory_space<any>>
        %c9_i32 = arith.constant 9 : i32
        %c0_i32_108 = arith.constant 0 : i32
        %c0_i32_109 = arith.constant 0 : i32
        %127 = tpu.memref_slice %arg10[%c9_i32, %c0_i32_108, %c0_i32_109] : memref<10x16x128xf32, #tpu.memory_space<vmem>> -> memref<1x16x128xf32, #tpu.memory_space<vmem>>
        tpu.enqueue_dma source(%126 : memref<1x16x128xf32, #tpu.memory_space<any>>) target(%127 : memref<1x16x128xf32, #tpu.memory_space<vmem>>) target_semaphore(%124 : memref<!tpu.dma_semaphore, #tpu.memory_space<semaphore_mem>>)
        %c0_i32_110 = arith.constant 0 : i32
        %c0_i32_111 = arith.constant 0 : i32
        %128 = tpu.memref_slice %arg2[%arg0, %123, %c0_i32_110, %c0_i32_111] : memref<2x16x16x128xf32, #tpu.memory_space<any>> -> memref<1x1x16x128xf32, #tpu.memory_space<any>>
        %129 = tpu.memref_squeeze %128 : memref<1x1x16x128xf32, #tpu.memory_space<any>> -> memref<1x16x128xf32, #tpu.memory_space<any>>
        %c9_i32_112 = arith.constant 9 : i32
        %c0_i32_113 = arith.constant 0 : i32
        %c0_i32_114 = arith.constant 0 : i32
        %130 = tpu.memref_slice %arg10[%c9_i32_112, %c0_i32_113, %c0_i32_114] : memref<10x16x128xf32, #tpu.memory_space<vmem>> -> memref<1x16x128xf32, #tpu.memory_space<vmem>>
        tpu.wait_dma2 semaphore(%124 : memref<!tpu.dma_semaphore, #tpu.memory_space<semaphore_mem>>) src(%129 : memref<1x16x128xf32, #tpu.memory_space<any>>) dst(%130 : memref<1x16x128xf32, #tpu.memory_space<vmem>>)
        tpu.yield
      }) : () -> ()
    } else {
    }
    %c0 = arith.constant 0 : index
    %c0_2 = arith.constant 0 : index
    %c0_3 = arith.constant 0 : index
    %7 = vector.load %arg10[%c0, %c0_2, %c0_3] : memref<10x16x128xf32, #tpu.memory_space<vmem>>, vector<10x16x128xf32>
    %8 = vector.shape_cast %7 : vector<10x16x128xf32> to vector<160x128xf32>
    %c0_4 = arith.constant 0 : index
    %c0_5 = arith.constant 0 : index
    %9 = vector.load %arg3[%c0_4, %c0_5] : memref<128x128xf32, #tpu.memory_space<vmem>>, vector<128x128xf32>
    %cst = arith.constant dense<0.000000e+00> : vector<160x128xf32>
    %10 = tpu.matmul %8, %9, %cst {dimension_numbers = #tpu.dot_dimension_numbers<[1], [0], [0], [1], [0, 0, 1, 1], [], []>} : vector<160x128xf32>, vector<128x128xf32>, vector<160x128xf32> -> vector<160x128xf32>
    %c0_6 = arith.constant 0 : index
    %c0_7 = arith.constant 0 : index
    %11 = vector.load %arg4[%c0_6, %c0_7] : memref<1x128xf32, #tpu.memory_space<vmem>>, vector<1x128xf32>
    %12 = vector.broadcast %11 : vector<1x128xf32> to vector<160x128xf32>
    %13 = arith.mulf %10, %12 : vector<160x128xf32>
    %c0_8 = arith.constant 0 : index
    %c0_9 = arith.constant 0 : index
    %14 = vector.load %arg5[%c0_8, %c0_9] : memref<1x128xf32, #tpu.memory_space<vmem>>, vector<1x128xf32>
    %15 = vector.broadcast %14 : vector<1x128xf32> to vector<160x128xf32>
    %16 = arith.addf %13, %15 : vector<160x128xf32>
    %17 = arith.negf %16 : vector<160x128xf32>
    %18 = math.exp %17 : vector<160x128xf32>
    %cst_10 = arith.constant 1.000000e+00 : f32
    %19 = vector.broadcast %cst_10 : f32 to vector<160x128xf32>
    %20 = arith.addf %19, %18 : vector<160x128xf32>
    %21 = arith.divf %19, %20 : vector<160x128xf32>
    %22 = arith.mulf %16, %21 : vector<160x128xf32>
    %23 = vector.shape_cast %22 : vector<160x128xf32> to vector<10x16x128xf32>
    %cst_11 = arith.constant 0.000000e+00 : f32
    %24 = vector.broadcast %cst_11 : f32 to vector<1x16x128xf32>
    %c0_i32_12 = arith.constant 0 : i32
    %25 = arith.cmpi sgt, %arg1, %c0_i32_12 : i32
    %26 = vector.extract_strided_slice %23 {offsets = [0, 0, 0], sizes = [1, 16, 128], strides = [1, 1, 1]} : vector<10x16x128xf32> to vector<1x16x128xf32>
    %27 = arith.select %25, %26, %24 : vector<1x16x128xf32>
    %c1_i32_13 = arith.constant 1 : i32
    %28 = arith.cmpi slt, %arg1, %c1_i32_13 : i32
    %29 = vector.extract_strided_slice %23 {offsets = [9, 0, 0], sizes = [1, 16, 128], strides = [1, 1, 1]} : vector<10x16x128xf32> to vector<1x16x128xf32>
    %30 = arith.select %28, %29, %24 : vector<1x16x128xf32>
    %31 = vector.extract_strided_slice %23 {offsets = [1, 0, 0], sizes = [8, 16, 128], strides = [1, 1, 1]} : vector<10x16x128xf32> to vector<8x16x128xf32>
    %32 = tpu.concatenate %27, %31, %30 in 0 : vector<1x16x128xf32>, vector<8x16x128xf32>, vector<1x16x128xf32> -> vector<10x16x128xf32>
    %cst_14 = arith.constant 0.000000e+00 : f32
    %33 = vector.broadcast %cst_14 : f32 to vector<10x1x128xf32>
    %cst_15 = arith.constant 0.000000e+00 : f32
    %34 = vector.broadcast %cst_15 : f32 to vector<10x7x128xf32>
    %35 = tpu.concatenate %33, %32, %34 in 1 : vector<10x1x128xf32>, vector<10x16x128xf32>, vector<10x7x128xf32> -> vector<10x24x128xf32>
    %36 = vector.shape_cast %35 : vector<10x24x128xf32> to vector<240x128xf32>
    %cst_16 = arith.constant 0.000000e+00 : f32
    %37 = vector.broadcast %cst_16 : f32 to vector<8x128xf32>
    %38 = tpu.concatenate %36, %37 in 0 : vector<240x128xf32>, vector<8x128xf32> -> vector<248x128xf32>
    %39 = vector.extract_strided_slice %38 {offsets = [0, 0], sizes = [240, 128], strides = [1, 1]} : vector<248x128xf32> to vector<240x128xf32>
    %40 = vector.extract_strided_slice %38 {offsets = [1, 0], sizes = [240, 128], strides = [1, 1]} : vector<248x128xf32> to vector<240x128xf32>
    %41 = vector.extract_strided_slice %38 {offsets = [2, 0], sizes = [240, 128], strides = [1, 1]} : vector<248x128xf32> to vector<240x128xf32>
    %42 = vector.extract_strided_slice %39 {offsets = [0, 0], sizes = [192, 128], strides = [1, 1]} : vector<240x128xf32> to vector<192x128xf32>
    %c0_17 = arith.constant 0 : index
    %c0_18 = arith.constant 0 : index
    %c0_19 = arith.constant 0 : index
    %c0_20 = arith.constant 0 : index
    %43 = vector.load %arg6[%c0_17, %c0_18, %c0_19, %c0_20] : memref<3x3x128x128xf32, #tpu.memory_space<vmem>>, vector<1x1x128x128xf32>
    %44 = vector.shape_cast %43 : vector<1x1x128x128xf32> to vector<128x128xf32>
    %cst_21 = arith.constant dense<0.000000e+00> : vector<192x128xf32>
    %45 = tpu.matmul %42, %44, %cst_21 {dimension_numbers = #tpu.dot_dimension_numbers<[1], [0], [0], [1], [0, 0, 1, 1], [], []>} : vector<192x128xf32>, vector<128x128xf32>, vector<192x128xf32> -> vector<192x128xf32>
    %c0_22 = arith.constant 0 : index
    %c0_23 = arith.constant 0 : index
    %46 = vector.load %arg11[%c0_22, %c0_23] : memref<192x128xf32, #tpu.memory_space<vmem>>, vector<192x128xf32>
    tpu.vector_store %arg11[%c0_22, %c0_23], %45 {strides = array<i32>} : memref<192x128xf32, #tpu.memory_space<vmem>>, vector<192x128xf32>,
    %47 = vector.extract_strided_slice %40 {offsets = [0, 0], sizes = [192, 128], strides = [1, 1]} : vector<240x128xf32> to vector<192x128xf32>
    %c0_24 = arith.constant 0 : index
    %c1 = arith.constant 1 : index
    %c0_25 = arith.constant 0 : index
    %c0_26 = arith.constant 0 : index
    %48 = vector.load %arg6[%c0_24, %c1, %c0_25, %c0_26] : memref<3x3x128x128xf32, #tpu.memory_space<vmem>>, vector<1x1x128x128xf32>
    %49 = vector.shape_cast %48 : vector<1x1x128x128xf32> to vector<128x128xf32>
    %cst_27 = arith.constant dense<0.000000e+00> : vector<192x128xf32>
    %50 = tpu.matmul %47, %49, %cst_27 {dimension_numbers = #tpu.dot_dimension_numbers<[1], [0], [0], [1], [0, 0, 1, 1], [], []>} : vector<192x128xf32>, vector<128x128xf32>, vector<192x128xf32> -> vector<192x128xf32>
    %c0_28 = arith.constant 0 : index
    %c0_29 = arith.constant 0 : index
    %51 = vector.load %arg11[%c0_28, %c0_29] : memref<192x128xf32, #tpu.memory_space<vmem>>, vector<192x128xf32>
    %52 = arith.addf %51, %50 : vector<192x128xf32>
    %c0_30 = arith.constant 0 : index
    %c0_31 = arith.constant 0 : index
    %53 = vector.load %arg11[%c0_30, %c0_31] : memref<192x128xf32, #tpu.memory_space<vmem>>, vector<192x128xf32>
    tpu.vector_store %arg11[%c0_30, %c0_31], %52 {strides = array<i32>} : memref<192x128xf32, #tpu.memory_space<vmem>>, vector<192x128xf32>,
    %54 = vector.extract_strided_slice %41 {offsets = [0, 0], sizes = [192, 128], strides = [1, 1]} : vector<240x128xf32> to vector<192x128xf32>
    %c0_32 = arith.constant 0 : index
    %c2 = arith.constant 2 : index
    %c0_33 = arith.constant 0 : index
    %c0_34 = arith.constant 0 : index
    %55 = vector.load %arg6[%c0_32, %c2, %c0_33, %c0_34] : memref<3x3x128x128xf32, #tpu.memory_space<vmem>>, vector<1x1x128x128xf32>
    %56 = vector.shape_cast %55 : vector<1x1x128x128xf32> to vector<128x128xf32>
    %cst_35 = arith.constant dense<0.000000e+00> : vector<192x128xf32>
    %57 = tpu.matmul %54, %56, %cst_35 {dimension_numbers = #tpu.dot_dimension_numbers<[1], [0], [0], [1], [0, 0, 1, 1], [], []>} : vector<192x128xf32>, vector<128x128xf32>, vector<192x128xf32> -> vector<192x128xf32>
    %c0_36 = arith.constant 0 : index
    %c0_37 = arith.constant 0 : index
    %58 = vector.load %arg11[%c0_36, %c0_37] : memref<192x128xf32, #tpu.memory_space<vmem>>, vector<192x128xf32>
    %59 = arith.addf %58, %57 : vector<192x128xf32>
    %c0_38 = arith.constant 0 : index
    %c0_39 = arith.constant 0 : index
    %60 = vector.load %arg11[%c0_38, %c0_39] : memref<192x128xf32, #tpu.memory_space<vmem>>, vector<192x128xf32>
    tpu.vector_store %arg11[%c0_38, %c0_39], %59 {strides = array<i32>} : memref<192x128xf32, #tpu.memory_space<vmem>>, vector<192x128xf32>,
    %61 = vector.extract_strided_slice %39 {offsets = [24, 0], sizes = [192, 128], strides = [1, 1]} : vector<240x128xf32> to vector<192x128xf32>
    %c1_40 = arith.constant 1 : index
    %c0_41 = arith.constant 0 : index
    %c0_42 = arith.constant 0 : index
    %c0_43 = arith.constant 0 : index
    %62 = vector.load %arg6[%c1_40, %c0_41, %c0_42, %c0_43] : memref<3x3x128x128xf32, #tpu.memory_space<vmem>>, vector<1x1x128x128xf32>
    %63 = vector.shape_cast %62 : vector<1x1x128x128xf32> to vector<128x128xf32>
    %cst_44 = arith.constant dense<0.000000e+00> : vector<192x128xf32>
    %64 = tpu.matmul %61, %63, %cst_44 {dimension_numbers = #tpu.dot_dimension_numbers<[1], [0], [0], [1], [0, 0, 1, 1], [], []>} : vector<192x128xf32>, vector<128x128xf32>, vector<192x128xf32> -> vector<192x128xf32>
    %c0_45 = arith.constant 0 : index
    %c0_46 = arith.constant 0 : index
    %65 = vector.load %arg11[%c0_45, %c0_46] : memref<192x128xf32, #tpu.memory_space<vmem>>, vector<192x128xf32>
    %66 = arith.addf %65, %64 : vector<192x128xf32>
    %c0_47 = arith.constant 0 : index
    %c0_48 = arith.constant 0 : index
    %67 = vector.load %arg11[%c0_47, %c0_48] : memref<192x128xf32, #tpu.memory_space<vmem>>, vector<192x128xf32>
    tpu.vector_store %arg11[%c0_47, %c0_48], %66 {strides = array<i32>} : memref<192x128xf32, #tpu.memory_space<vmem>>, vector<192x128xf32>,
    %68 = vector.extract_strided_slice %40 {offsets = [24, 0], sizes = [192, 128], strides = [1, 1]} : vector<240x128xf32> to vector<192x128xf32>
    %c1_49 = arith.constant 1 : index
    %c1_50 = arith.constant 1 : index
    %c0_51 = arith.constant 0 : index
    %c0_52 = arith.constant 0 : index
    %69 = vector.load %arg6[%c1_49, %c1_50, %c0_51, %c0_52] : memref<3x3x128x128xf32, #tpu.memory_space<vmem>>, vector<1x1x128x128xf32>
    %70 = vector.shape_cast %69 : vector<1x1x128x128xf32> to vector<128x128xf32>
    %cst_53 = arith.constant dense<0.000000e+00> : vector<192x128xf32>
    %71 = tpu.matmul %68, %70, %cst_53 {dimension_numbers = #tpu.dot_dimension_numbers<[1], [0], [0], [1], [0, 0, 1, 1], [], []>} : vector<192x128xf32>, vector<128x128xf32>, vector<192x128xf32> -> vector<192x128xf32>
    %c0_54 = arith.constant 0 : index
    %c0_55 = arith.constant 0 : index
    %72 = vector.load %arg11[%c0_54, %c0_55] : memref<192x128xf32, #tpu.memory_space<vmem>>, vector<192x128xf32>
    %73 = arith.addf %72, %71 : vector<192x128xf32>
    %c0_56 = arith.constant 0 : index
    %c0_57 = arith.constant 0 : index
    %74 = vector.load %arg11[%c0_56, %c0_57] : memref<192x128xf32, #tpu.memory_space<vmem>>, vector<192x128xf32>
    tpu.vector_store %arg11[%c0_56, %c0_57], %73 {strides = array<i32>} : memref<192x128xf32, #tpu.memory_space<vmem>>, vector<192x128xf32>,
    %75 = vector.extract_strided_slice %41 {offsets = [24, 0], sizes = [192, 128], strides = [1, 1]} : vector<240x128xf32> to vector<192x128xf32>
    %c1_58 = arith.constant 1 : index
    %c2_59 = arith.constant 2 : index
    %c0_60 = arith.constant 0 : index
    %c0_61 = arith.constant 0 : index
    %76 = vector.load %arg6[%c1_58, %c2_59, %c0_60, %c0_61] : memref<3x3x128x128xf32, #tpu.memory_space<vmem>>, vector<1x1x128x128xf32>
    %77 = vector.shape_cast %76 : vector<1x1x128x128xf32> to vector<128x128xf32>
    %cst_62 = arith.constant dense<0.000000e+00> : vector<192x128xf32>
    %78 = tpu.matmul %75, %77, %cst_62 {dimension_numbers = #tpu.dot_dimension_numbers<[1], [0], [0], [1], [0, 0, 1, 1], [], []>} : vector<192x128xf32>, vector<128x128xf32>, vector<192x128xf32> -> vector<192x128xf32>
    %c0_63 = arith.constant 0 : index
    %c0_64 = arith.constant 0 : index
    %79 = vector.load %arg11[%c0_63, %c0_64] : memref<192x128xf32, #tpu.memory_space<vmem>>, vector<192x128xf32>
    %80 = arith.addf %79, %78 : vector<192x128xf32>
    %c0_65 = arith.constant 0 : index
    %c0_66 = arith.constant 0 : index
    %81 = vector.load %arg11[%c0_65, %c0_66] : memref<192x128xf32, #tpu.memory_space<vmem>>, vector<192x128xf32>
    tpu.vector_store %arg11[%c0_65, %c0_66], %80 {strides = array<i32>} : memref<192x128xf32, #tpu.memory_space<vmem>>, vector<192x128xf32>,
    %82 = vector.extract_strided_slice %39 {offsets = [48, 0], sizes = [192, 128], strides = [1, 1]} : vector<240x128xf32> to vector<192x128xf32>
    %c2_67 = arith.constant 2 : index
    %c0_68 = arith.constant 0 : index
    %c0_69 = arith.constant 0 : index
    %c0_70 = arith.constant 0 : index
    %83 = vector.load %arg6[%c2_67, %c0_68, %c0_69, %c0_70] : memref<3x3x128x128xf32, #tpu.memory_space<vmem>>, vector<1x1x128x128xf32>
    %84 = vector.shape_cast %83 : vector<1x1x128x128xf32> to vector<128x128xf32>
    %cst_71 = arith.constant dense<0.000000e+00> : vector<192x128xf32>
    %85 = tpu.matmul %82, %84, %cst_71 {dimension_numbers = #tpu.dot_dimension_numbers<[1], [0], [0], [1], [0, 0, 1, 1], [], []>} : vector<192x128xf32>, vector<128x128xf32>, vector<192x128xf32> -> vector<192x128xf32>
    %c0_72 = arith.constant 0 : index
    %c0_73 = arith.constant 0 : index
    %86 = vector.load %arg11[%c0_72, %c0_73] : memref<192x128xf32, #tpu.memory_space<vmem>>, vector<192x128xf32>
    %87 = arith.addf %86, %85 : vector<192x128xf32>
    %c0_74 = arith.constant 0 : index
    %c0_75 = arith.constant 0 : index
    %88 = vector.load %arg11[%c0_74, %c0_75] : memref<192x128xf32, #tpu.memory_space<vmem>>, vector<192x128xf32>
    tpu.vector_store %arg11[%c0_74, %c0_75], %87 {strides = array<i32>} : memref<192x128xf32, #tpu.memory_space<vmem>>, vector<192x128xf32>,
    %89 = vector.extract_strided_slice %40 {offsets = [48, 0], sizes = [192, 128], strides = [1, 1]} : vector<240x128xf32> to vector<192x128xf32>
    %c2_76 = arith.constant 2 : index
    %c1_77 = arith.constant 1 : index
    %c0_78 = arith.constant 0 : index
    %c0_79 = arith.constant 0 : index
    %90 = vector.load %arg6[%c2_76, %c1_77, %c0_78, %c0_79] : memref<3x3x128x128xf32, #tpu.memory_space<vmem>>, vector<1x1x128x128xf32>
    %91 = vector.shape_cast %90 : vector<1x1x128x128xf32> to vector<128x128xf32>
    %cst_80 = arith.constant dense<0.000000e+00> : vector<192x128xf32>
    %92 = tpu.matmul %89, %91, %cst_80 {dimension_numbers = #tpu.dot_dimension_numbers<[1], [0], [0], [1], [0, 0, 1, 1], [], []>} : vector<192x128xf32>, vector<128x128xf32>, vector<192x128xf32> -> vector<192x128xf32>
    %c0_81 = arith.constant 0 : index
    %c0_82 = arith.constant 0 : index
    %93 = vector.load %arg11[%c0_81, %c0_82] : memref<192x128xf32, #tpu.memory_space<vmem>>, vector<192x128xf32>
    %94 = arith.addf %93, %92 : vector<192x128xf32>
    %c0_83 = arith.constant 0 : index
    %c0_84 = arith.constant 0 : index
    %95 = vector.load %arg11[%c0_83, %c0_84] : memref<192x128xf32, #tpu.memory_space<vmem>>, vector<192x128xf32>
    tpu.vector_store %arg11[%c0_83, %c0_84], %94 {strides = array<i32>} : memref<192x128xf32, #tpu.memory_space<vmem>>, vector<192x128xf32>,
    %96 = vector.extract_strided_slice %41 {offsets = [48, 0], sizes = [192, 128], strides = [1, 1]} : vector<240x128xf32> to vector<192x128xf32>
    %c2_85 = arith.constant 2 : index
    %c2_86 = arith.constant 2 : index
    %c0_87 = arith.constant 0 : index
    %c0_88 = arith.constant 0 : index
    %97 = vector.load %arg6[%c2_85, %c2_86, %c0_87, %c0_88] : memref<3x3x128x128xf32, #tpu.memory_space<vmem>>, vector<1x1x128x128xf32>
    %98 = vector.shape_cast %97 : vector<1x1x128x128xf32> to vector<128x128xf32>
    %cst_89 = arith.constant dense<0.000000e+00> : vector<192x128xf32>
    %99 = tpu.matmul %96, %98, %cst_89 {dimension_numbers = #tpu.dot_dimension_numbers<[1], [0], [0], [1], [0, 0, 1, 1], [], []>} : vector<192x128xf32>, vector<128x128xf32>, vector<192x128xf32> -> vector<192x128xf32>
    %c0_90 = arith.constant 0 : index
    %c0_91 = arith.constant 0 : index
    %100 = vector.load %arg11[%c0_90, %c0_91] : memref<192x128xf32, #tpu.memory_space<vmem>>, vector<192x128xf32>
    %101 = arith.addf %100, %99 : vector<192x128xf32>
    %c0_92 = arith.constant 0 : index
    %c0_93 = arith.constant 0 : index
    %102 = vector.load %arg11[%c0_92, %c0_93] : memref<192x128xf32, #tpu.memory_space<vmem>>, vector<192x128xf32>
    tpu.vector_store %arg11[%c0_92, %c0_93], %101 {strides = array<i32>} : memref<192x128xf32, #tpu.memory_space<vmem>>, vector<192x128xf32>,
    %c0_94 = arith.constant 0 : index
    %c0_95 = arith.constant 0 : index
    %103 = vector.load %arg11[%c0_94, %c0_95] : memref<192x128xf32, #tpu.memory_space<vmem>>, vector<192x128xf32>
    %c0_96 = arith.constant 0 : index
    %c0_97 = arith.constant 0 : index
    %104 = vector.load %arg7[%c0_96, %c0_97] : memref<1x128xf32, #tpu.memory_space<vmem>>, vector<1x128xf32>
    %105 = vector.broadcast %104 : vector<1x128xf32> to vector<192x128xf32>
    %106 = arith.mulf %103, %105 : vector<192x128xf32>
    %c0_98 = arith.constant 0 : index
    %c0_99 = arith.constant 0 : index
    %107 = vector.load %arg8[%c0_98, %c0_99] : memref<1x128xf32, #tpu.memory_space<vmem>>, vector<1x128xf32>
    %108 = vector.broadcast %107 : vector<1x128xf32> to vector<192x128xf32>
    %109 = arith.addf %106, %108 : vector<192x128xf32>
    %110 = arith.negf %109 : vector<192x128xf32>
    %111 = math.exp %110 : vector<192x128xf32>
    %cst_100 = arith.constant 1.000000e+00 : f32
    %112 = vector.broadcast %cst_100 : f32 to vector<192x128xf32>
    %113 = arith.addf %112, %111 : vector<192x128xf32>
    %114 = arith.divf %112, %113 : vector<192x128xf32>
    %115 = arith.mulf %109, %114 : vector<192x128xf32>
    %116 = vector.shape_cast %115 : vector<192x128xf32> to vector<8x24x128xf32>
    %117 = vector.extract_strided_slice %116 {offsets = [0, 0, 0], sizes = [8, 16, 128], strides = [1, 1, 1]} : vector<8x24x128xf32> to vector<8x16x128xf32>
    %118 = vector.extract_strided_slice %7 {offsets = [1, 0, 0], sizes = [8, 16, 128], strides = [1, 1, 1]} : vector<10x16x128xf32> to vector<8x16x128xf32>
    %119 = arith.addf %117, %118 : vector<8x16x128xf32>
    %c0_101 = arith.constant 0 : index
    %c0_102 = arith.constant 0 : index
    %c0_103 = arith.constant 0 : index
    %c0_104 = arith.constant 0 : index
    %120 = vector.load %arg9[%c0_101, %c0_102, %c0_103, %c0_104] : memref<1x8x16x128xf32, #tpu.memory_space<vmem>>, vector<1x8x16x128xf32>
    %121 = vector.shape_cast %120 : vector<1x8x16x128xf32> to vector<8x16x128xf32>
    %122 = vector.shape_cast %119 : vector<8x16x128xf32> to vector<1x8x16x128xf32>
    tpu.vector_store %arg9[%c0_101, %c0_102, %c0_103, %c0_104], %122 {strides = array<i32>} : memref<1x8x16x128xf32, #tpu.memory_space<vmem>>, vector<1x8x16x128xf32>,
    return
  }
  func.func @transform_1(%arg0: i32, %arg1: i32) -> (i32, i32) {
    %c0_i32 = arith.constant 0 : i32
    %c0_i32_0 = arith.constant 0 : i32
    %c0_i32_1 = arith.constant 0 : i32
    return %c0_i32, %c0_i32_0 : i32, i32
  }
  func.func @transform_2(%arg0: i32, %arg1: i32) -> (i32, i32) {
    %c0_i32 = arith.constant 0 : i32
    %c0_i32_0 = arith.constant 0 : i32
    %c0_i32_1 = arith.constant 0 : i32
    return %c0_i32, %c0_i32_0 : i32, i32
  }
  func.func @transform_3(%arg0: i32, %arg1: i32) -> (i32, i32) {
    %c0_i32 = arith.constant 0 : i32
    %c0_i32_0 = arith.constant 0 : i32
    %c0_i32_1 = arith.constant 0 : i32
    return %c0_i32, %c0_i32_0 : i32, i32
  }
  func.func @transform_4(%arg0: i32, %arg1: i32) -> (i32, i32, i32, i32) {
    %c0_i32 = arith.constant 0 : i32
    %c0_i32_0 = arith.constant 0 : i32
    %c0_i32_1 = arith.constant 0 : i32
    %c0_i32_2 = arith.constant 0 : i32
    %c0_i32_3 = arith.constant 0 : i32
    return %c0_i32, %c0_i32_0, %c0_i32_1, %c0_i32_2 : i32, i32, i32, i32
  }
  func.func @transform_5(%arg0: i32, %arg1: i32) -> (i32, i32) {
    %c0_i32 = arith.constant 0 : i32
    %c0_i32_0 = arith.constant 0 : i32
    %c0_i32_1 = arith.constant 0 : i32
    return %c0_i32, %c0_i32_0 : i32, i32
  }
  func.func @transform_6(%arg0: i32, %arg1: i32) -> (i32, i32) {
    %c0_i32 = arith.constant 0 : i32
    %c0_i32_0 = arith.constant 0 : i32
    %c0_i32_1 = arith.constant 0 : i32
    return %c0_i32, %c0_i32_0 : i32, i32
  }
  func.func @transform_7(%arg0: i32, %arg1: i32) -> (i32, i32, i32, i32) {
    %c0_i32 = arith.constant 0 : i32
    %c0_i32_0 = arith.constant 0 : i32
    %c0_i32_1 = arith.constant 0 : i32
    return %arg0, %arg1, %c0_i32, %c0_i32_0 : i32, i32, i32, i32
  }
}

module attributes {stable_mosaic.version = 11 : i64} {
  func.func @_csp_head_kernel(%arg0: i32, %arg1: memref<128x128xf32, #tpu.memory_space<vmem>>, %arg2: memref<128x128xf32, #tpu.memory_space<vmem>>, %arg3: memref<128x128xf32, #tpu.memory_space<vmem>>, %arg4: memref<128x128xf32, #tpu.memory_space<vmem>>, %arg5: memref<1x128xf32, #tpu.memory_space<vmem>>, %arg6: memref<1x128xf32, #tpu.memory_space<vmem>>, %arg7: memref<1x128xf32, #tpu.memory_space<vmem>>, %arg8: memref<1x128xf32, #tpu.memory_space<vmem>>, %arg9: memref<256x128xf32, #tpu.memory_space<vmem>>, %arg10: memref<1x128xf32, #tpu.memory_space<vmem>>, %arg11: memref<1x128xf32, #tpu.memory_space<vmem>>, %arg12: memref<128x128xf32, #tpu.memory_space<vmem>>) attributes {dimension_semantics = [#tpu.dimension_semantics<parallel>], iteration_bounds = array<i64: 4>, scalar_prefetch = 0 : i64, scratch_operands = 0 : i64, tpu.core_type = #tpu.core_type<tc>, window_params = [{transform_indices = @transform_0, window_bounds = array<i64: 128, 128>}, {transform_indices = @transform_1, window_bounds = array<i64: 128, 128>}, {pipeline_mode = #tpu.pipeline_mode<synchronous>, transform_indices = @transform_2, window_bounds = array<i64: 128, 128>}, {pipeline_mode = #tpu.pipeline_mode<synchronous>, transform_indices = @transform_3, window_bounds = array<i64: 128, 128>}, {pipeline_mode = #tpu.pipeline_mode<synchronous>, transform_indices = @transform_4, window_bounds = array<i64: 1, 128>}, {pipeline_mode = #tpu.pipeline_mode<synchronous>, transform_indices = @transform_5, window_bounds = array<i64: 1, 128>}, {pipeline_mode = #tpu.pipeline_mode<synchronous>, transform_indices = @transform_6, window_bounds = array<i64: 1, 128>}, {pipeline_mode = #tpu.pipeline_mode<synchronous>, transform_indices = @transform_7, window_bounds = array<i64: 1, 128>}, {pipeline_mode = #tpu.pipeline_mode<synchronous>, transform_indices = @transform_8, window_bounds = array<i64: 256, 128>}, {pipeline_mode = #tpu.pipeline_mode<synchronous>, transform_indices = @transform_9, window_bounds = array<i64: 1, 128>}, {pipeline_mode = #tpu.pipeline_mode<synchronous>, transform_indices = @transform_10, window_bounds = array<i64: 1, 128>}, {transform_indices = @transform_11, window_bounds = array<i64: 128, 128>}]} {
    %c0 = arith.constant 0 : index
    %c0_0 = arith.constant 0 : index
    %0 = vector.load %arg1[%c0, %c0_0] : memref<128x128xf32, #tpu.memory_space<vmem>>, vector<128x128xf32>
    %c0_1 = arith.constant 0 : index
    %c0_2 = arith.constant 0 : index
    %1 = vector.load %arg3[%c0_1, %c0_2] : memref<128x128xf32, #tpu.memory_space<vmem>>, vector<128x128xf32>
    %cst = arith.constant dense<0.000000e+00> : vector<128x128xf32>
    %2 = tpu.matmul %0, %1, %cst {dimension_numbers = #tpu.dot_dimension_numbers<[1], [0], [0], [1], [0, 0, 1, 1], [], []>} : vector<128x128xf32>, vector<128x128xf32>, vector<128x128xf32> -> vector<128x128xf32>
    %c0_3 = arith.constant 0 : index
    %c0_4 = arith.constant 0 : index
    %3 = vector.load %arg2[%c0_3, %c0_4] : memref<128x128xf32, #tpu.memory_space<vmem>>, vector<128x128xf32>
    %c0_5 = arith.constant 0 : index
    %c0_6 = arith.constant 0 : index
    %4 = vector.load %arg4[%c0_5, %c0_6] : memref<128x128xf32, #tpu.memory_space<vmem>>, vector<128x128xf32>
    %cst_7 = arith.constant dense<0.000000e+00> : vector<128x128xf32>
    %5 = tpu.matmul %3, %4, %cst_7 {dimension_numbers = #tpu.dot_dimension_numbers<[1], [0], [0], [1], [0, 0, 1, 1], [], []>} : vector<128x128xf32>, vector<128x128xf32>, vector<128x128xf32> -> vector<128x128xf32>
    %c0_8 = arith.constant 0 : index
    %c0_9 = arith.constant 0 : index
    %6 = vector.load %arg5[%c0_8, %c0_9] : memref<1x128xf32, #tpu.memory_space<vmem>>, vector<1x128xf32>
    %7 = vector.broadcast %6 : vector<1x128xf32> to vector<128x128xf32>
    %8 = arith.mulf %2, %7 : vector<128x128xf32>
    %c0_10 = arith.constant 0 : index
    %c0_11 = arith.constant 0 : index
    %9 = vector.load %arg6[%c0_10, %c0_11] : memref<1x128xf32, #tpu.memory_space<vmem>>, vector<1x128xf32>
    %10 = vector.broadcast %9 : vector<1x128xf32> to vector<128x128xf32>
    %11 = arith.addf %8, %10 : vector<128x128xf32>
    %12 = arith.negf %11 : vector<128x128xf32>
    %13 = math.exp %12 : vector<128x128xf32>
    %cst_12 = arith.constant 1.000000e+00 : f32
    %14 = vector.broadcast %cst_12 : f32 to vector<128x128xf32>
    %15 = arith.addf %14, %13 : vector<128x128xf32>
    %16 = arith.divf %14, %15 : vector<128x128xf32>
    %17 = arith.mulf %11, %16 : vector<128x128xf32>
    %c0_13 = arith.constant 0 : index
    %c0_14 = arith.constant 0 : index
    %18 = vector.load %arg7[%c0_13, %c0_14] : memref<1x128xf32, #tpu.memory_space<vmem>>, vector<1x128xf32>
    %19 = vector.broadcast %18 : vector<1x128xf32> to vector<128x128xf32>
    %20 = arith.mulf %5, %19 : vector<128x128xf32>
    %c0_15 = arith.constant 0 : index
    %c0_16 = arith.constant 0 : index
    %21 = vector.load %arg8[%c0_15, %c0_16] : memref<1x128xf32, #tpu.memory_space<vmem>>, vector<1x128xf32>
    %22 = vector.broadcast %21 : vector<1x128xf32> to vector<128x128xf32>
    %23 = arith.addf %20, %22 : vector<128x128xf32>
    %24 = arith.negf %23 : vector<128x128xf32>
    %25 = math.exp %24 : vector<128x128xf32>
    %cst_17 = arith.constant 1.000000e+00 : f32
    %26 = vector.broadcast %cst_17 : f32 to vector<128x128xf32>
    %27 = arith.addf %26, %25 : vector<128x128xf32>
    %28 = arith.divf %26, %27 : vector<128x128xf32>
    %29 = arith.mulf %23, %28 : vector<128x128xf32>
    %30 = tpu.concatenate %17, %29 in 1 : vector<128x128xf32>, vector<128x128xf32> -> vector<128x256xf32>
    %c0_18 = arith.constant 0 : index
    %c0_19 = arith.constant 0 : index
    %31 = vector.load %arg9[%c0_18, %c0_19] : memref<256x128xf32, #tpu.memory_space<vmem>>, vector<256x128xf32>
    %cst_20 = arith.constant dense<0.000000e+00> : vector<128x128xf32>
    %32 = tpu.matmul %30, %31, %cst_20 {dimension_numbers = #tpu.dot_dimension_numbers<[1], [0], [0], [1], [0, 0, 1, 1], [], []>} : vector<128x256xf32>, vector<256x128xf32>, vector<128x128xf32> -> vector<128x128xf32>
    %c0_21 = arith.constant 0 : index
    %c0_22 = arith.constant 0 : index
    %33 = vector.load %arg10[%c0_21, %c0_22] : memref<1x128xf32, #tpu.memory_space<vmem>>, vector<1x128xf32>
    %34 = vector.broadcast %33 : vector<1x128xf32> to vector<128x128xf32>
    %35 = arith.mulf %32, %34 : vector<128x128xf32>
    %c0_23 = arith.constant 0 : index
    %c0_24 = arith.constant 0 : index
    %36 = vector.load %arg11[%c0_23, %c0_24] : memref<1x128xf32, #tpu.memory_space<vmem>>, vector<1x128xf32>
    %37 = vector.broadcast %36 : vector<1x128xf32> to vector<128x128xf32>
    %38 = arith.addf %35, %37 : vector<128x128xf32>
    %39 = arith.negf %38 : vector<128x128xf32>
    %40 = math.exp %39 : vector<128x128xf32>
    %cst_25 = arith.constant 1.000000e+00 : f32
    %41 = vector.broadcast %cst_25 : f32 to vector<128x128xf32>
    %42 = arith.addf %41, %40 : vector<128x128xf32>
    %43 = arith.divf %41, %42 : vector<128x128xf32>
    %44 = arith.mulf %38, %43 : vector<128x128xf32>
    %c0_26 = arith.constant 0 : index
    %c0_27 = arith.constant 0 : index
    %45 = vector.load %arg12[%c0_26, %c0_27] : memref<128x128xf32, #tpu.memory_space<vmem>>, vector<128x128xf32>
    tpu.vector_store %arg12[%c0_26, %c0_27], %44 {strides = array<i32>} : memref<128x128xf32, #tpu.memory_space<vmem>>, vector<128x128xf32>,
    return
  }
  func.func @transform_0(%arg0: i32) -> (i32, i32) {
    %c0_i32 = arith.constant 0 : i32
    %c0_i32_0 = arith.constant 0 : i32
    return %arg0, %c0_i32 : i32, i32
  }
  func.func @transform_1(%arg0: i32) -> (i32, i32) {
    %c0_i32 = arith.constant 0 : i32
    %c0_i32_0 = arith.constant 0 : i32
    return %arg0, %c0_i32 : i32, i32
  }
  func.func @transform_2(%arg0: i32) -> (i32, i32) {
    %c0_i32 = arith.constant 0 : i32
    %c0_i32_0 = arith.constant 0 : i32
    %c0_i32_1 = arith.constant 0 : i32
    return %c0_i32, %c0_i32_0 : i32, i32
  }
  func.func @transform_3(%arg0: i32) -> (i32, i32) {
    %c0_i32 = arith.constant 0 : i32
    %c0_i32_0 = arith.constant 0 : i32
    %c0_i32_1 = arith.constant 0 : i32
    return %c0_i32, %c0_i32_0 : i32, i32
  }
  func.func @transform_4(%arg0: i32) -> (i32, i32) {
    %c0_i32 = arith.constant 0 : i32
    %c0_i32_0 = arith.constant 0 : i32
    %c0_i32_1 = arith.constant 0 : i32
    return %c0_i32, %c0_i32_0 : i32, i32
  }
  func.func @transform_5(%arg0: i32) -> (i32, i32) {
    %c0_i32 = arith.constant 0 : i32
    %c0_i32_0 = arith.constant 0 : i32
    %c0_i32_1 = arith.constant 0 : i32
    return %c0_i32, %c0_i32_0 : i32, i32
  }
  func.func @transform_6(%arg0: i32) -> (i32, i32) {
    %c0_i32 = arith.constant 0 : i32
    %c0_i32_0 = arith.constant 0 : i32
    %c0_i32_1 = arith.constant 0 : i32
    return %c0_i32, %c0_i32_0 : i32, i32
  }
  func.func @transform_7(%arg0: i32) -> (i32, i32) {
    %c0_i32 = arith.constant 0 : i32
    %c0_i32_0 = arith.constant 0 : i32
    %c0_i32_1 = arith.constant 0 : i32
    return %c0_i32, %c0_i32_0 : i32, i32
  }
  func.func @transform_8(%arg0: i32) -> (i32, i32) {
    %c0_i32 = arith.constant 0 : i32
    %c0_i32_0 = arith.constant 0 : i32
    %c0_i32_1 = arith.constant 0 : i32
    return %c0_i32, %c0_i32_0 : i32, i32
  }
  func.func @transform_9(%arg0: i32) -> (i32, i32) {
    %c0_i32 = arith.constant 0 : i32
    %c0_i32_0 = arith.constant 0 : i32
    %c0_i32_1 = arith.constant 0 : i32
    return %c0_i32, %c0_i32_0 : i32, i32
  }
  func.func @transform_10(%arg0: i32) -> (i32, i32) {
    %c0_i32 = arith.constant 0 : i32
    %c0_i32_0 = arith.constant 0 : i32
    %c0_i32_1 = arith.constant 0 : i32
    return %c0_i32, %c0_i32_0 : i32, i32
  }
  func.func @transform_11(%arg0: i32) -> (i32, i32) {
    %c0_i32 = arith.constant 0 : i32
    %c0_i32_0 = arith.constant 0 : i32
    return %arg0, %c0_i32 : i32, i32
  }
}

</mosaic_0001>

<llo_original>
// kernel: bottleneck_csp_forward.4
$region0: #{bottleneck_csp_forward.4}
  #allocation0 [shape = 'u32[]', space=smem, size = 0x4, offset = 0x4, fixed_abs, tag = 'smem constant byte address 0x4 - core index']
  #allocation1 [shape = 'u32[144,128]{1,0:T(1,128)}', space=vmem, size = 0x12000, scoped, tag = 'internal scratch']
  %s0 = inlined_call_operand.vmem [shape: f32[512,128], index: 0, kind: input, shape index: {}]
  %s1 = inlined_call_operand.vmem [shape: f32[128,128], index: 1, kind: input, shape index: {}]
  %s2 = inlined_call_operand.vmem [shape: f32[1,128], index: 2, kind: input, shape index: {}]
  %s3 = inlined_call_operand.vmem [shape: f32[1,128], index: 3, kind: input, shape index: {}]
  %s4 = inlined_call_operand.vmem [shape: f32[512,128], index: 4, kind: output, shape index: {}]
  %s5 = sld [smem:[#allocation0]]
  $region49: #{bottleneck_csp_forward.4} parent=0
    _
  %s7 = ssub.s32 1, %s5
  %s8 = scalar_select 0, %s7, %s5
  loop: start=0, step=1, limit=6
  $region2: #{bottleneck_csp_forward.4} parent=0 // loop_pre_header
    _
  $region3: #{bottleneck_csp_forward.4} parent=0 // loop_header
    %s10 = sphi 0, %s14
    %p11 = scmp.ge.s32.totalorder %s10, 6
    %s20 = sphi 0, %s22
    %s23 = sphi 0, %s20
    %s24 = sphi 0, %s23
    %s40 = sphi 0, %s24
    %s44 = sphi 0, %s44
    %s46 = sphi 0, %s44
    %s47 = sphi 0, %s46
    %s61 = sphi 0, %s47
    %s65 = sphi 0, %s65
    %s67 = sphi 0, %s65
    %s68 = sphi 0, %s67
    %s82 = sphi 0, %s68
    %s86 = sphi 0, %s86
    %s88 = sphi 0, %s86
    %s89 = sphi 0, %s88
    %s103 = sphi 0, %s89
    %s109 = sphi 0, %s111
    %s112 = sphi 0, %s109
    %s113 = sphi 0, %s112
    %s129 = sphi 0, %s113
  $region4: #{bottleneck_csp_forward.4} parent=0 // loop_header_branch
    %13 = sbr.rel (%p11) target = $region8
  $region5: #{bottleneck_csp_forward.4} parent=0 // loop_body
    %s15 = ssub.s32 %s10, 1
    %s16 = ssub.s32 %s10, 2
    %s17 = sadd.s32 %s10, 1
    %s18 = ssub.s32 %s10, %s17
    %p19 = scmp.eq.s32.totalorder %s18, 0
    %s21 = sadd.s32 %s20, 1
    %s22 = scalar_select %p19, %s20, %s21
    %p25 = pneg %p19
    %p26 = scmp.eq.s32.totalorder %s10, 3
    %p27 = por %p25, %p26
    %p28 = scmp.ne.s32.totalorder %s20, %s23
    %p29 = scmp.eq.s32.totalorder %s10, 0
    %p30 = por %p28, %p29
    %p31 = scmp.ne.s32.totalorder %s20, %s23
    %p32 = scmp.eq.s32.totalorder %s15, 3
    %p33 = por %p31, %p32
    %p34 = scmp.ne.s32.totalorder %s23, %s24
    %p35 = scmp.eq.s32.totalorder %s15, 0
    %p36 = por %p34, %p35
    %p37 = scmp.ne.s32.totalorder %s23, %s24
    %p38 = scmp.eq.s32.totalorder %s16, 3
    %p39 = por %p37, %p38
    %p41 = scmp.ne.s32.totalorder %s24, %s40
    %p42 = scmp.eq.s32.totalorder %s16, 0
    %p43 = por %p41, %p42
    %s45 = sadd.s32 %s44, 1
    %p48 = scmp.eq.s32.totalorder %s10, 3
    %p49 = scmp.ne.s32.totalorder %s44, %s46
    %p50 = scmp.eq.s32.totalorder %s10, 0
    %p51 = por %p49, %p50
    %p52 = scmp.ne.s32.totalorder %s44, %s46
    %p53 = scmp.eq.s32.totalorder %s15, 3
    %p54 = por %p52, %p53
    %p55 = scmp.ne.s32.totalorder %s46, %s47
    %p56 = scmp.eq.s32.totalorder %s15, 0
    %p57 = por %p55, %p56
    %p58 = scmp.ne.s32.totalorder %s46, %s47
    %p59 = scmp.eq.s32.totalorder %s16, 3
    %p60 = por %p58, %p59
    %p62 = scmp.ne.s32.totalorder %s47, %s61
    %p63 = scmp.eq.s32.totalorder %s16, 0
    %p64 = por %p62, %p63
    %s66 = sadd.s32 %s65, 1
    %p69 = scmp.eq.s32.totalorder %s10, 3
    %p70 = scmp.ne.s32.totalorder %s65, %s67
    %p71 = scmp.eq.s32.totalorder %s10, 0
    %p72 = por %p70, %p71
    %p73 = scmp.ne.s32.totalorder %s65, %s67
    %p74 = scmp.eq.s32.totalorder %s15, 3
    %p75 = por %p73, %p74
    %p76 = scmp.ne.s32.totalorder %s67, %s68
    %p77 = scmp.eq.s32.totalorder %s15, 0
    %p78 = por %p76, %p77
    %p79 = scmp.ne.s32.totalorder %s67, %s68
    %p80 = scmp.eq.s32.totalorder %s16, 3
    %p81 = por %p79, %p80
    %p83 = scmp.ne.s32.totalorder %s68, %s82
    %p84 = scmp.eq.s32.totalorder %s16, 0
    %p85 = por %p83, %p84
    %s87 = sadd.s32 %s86, 1
    %p90 = scmp.eq.s32.totalorder %s10, 3
    %p91 = scmp.ne.s32.totalorder %s86, %s88
    %p92 = scmp.eq.s32.totalorder %s10, 0
    %p93 = por %p91, %p92
    %p94 = scmp.ne.s32.totalorder %s86, %s88
    %p95 = scmp.eq.s32.totalorder %s15, 3
    %p96 = por %p94, %p95
    %p97 = scmp.ne.s32.totalorder %s88, %s89
    %p98 = scmp.eq.s32.totalorder %s15, 0
    %p99 = por %p97, %p98
    %p100 = scmp.ne.s32.totalorder %s88, %s89
    %p101 = scmp.eq.s32.totalorder %s16, 3
    %p102 = por %p100, %p101
    %p104 = scmp.ne.s32.totalorder %s89, %s103
    %p105 = scmp.eq.s32.totalorder %s16, 0
    %p106 = por %p104, %p105
    %s107 = ssub.s32 %s10, %s17
    %p108 = scmp.eq.s32.totalorder %s107, 0
    %s110 = sadd.s32 %s109, 1
    %s111 = scalar_select %p108, %s109, %s110
    %p114 = pneg %p108
    %p115 = scmp.eq.s32.totalorder %s10, 3
    %p116 = por %p114, %p115
    %p117 = scmp.ne.s32.totalorder %s109, %s112
    %p118 = scmp.eq.s32.totalorder %s10, 0
    %p119 = por %p117, %p118
    %p120 = scmp.ne.s32.totalorder %s109, %s112
    %p121 = scmp.eq.s32.totalorder %s15, 3
    %p122 = por %p120, %p121
    %p123 = scmp.ne.s32.totalorder %s112, %s113
    %p124 = scmp.eq.s32.totalorder %s15, 0
    %p125 = por %p123, %p124
    %p126 = scmp.ne.s32.totalorder %s112, %s113
    %p127 = scmp.eq.s32.totalorder %s16, 3
    %p128 = por %p126, %p127
    %p130 = scmp.ne.s32.totalorder %s113, %s129
    %p131 = scmp.eq.s32.totalorder %s16, 0
    %p132 = por %p130, %p131
    %p133 = scmp.le.s32.totalorder 1, %s10
    %p134 = scmp.lt.s32.totalorder %s10, 5
    %p135 = pnand %p133, %p134
    %p136 = pneg %p135
    // Predicated region
    $region9: #{bottleneck_csp_forward.4} parent=5 // pred_check
      _
    $region10: #{bottleneck_csp_forward.4} parent=5 // pred_check_branch
      %138 = sbr.rel (%p135) target = $region12
    $region11: #{bottleneck_csp_forward.4} parent=5 // pred_region
      %s139 = ssub.s32 %s10, 1
      // Predicated region
      $region13: #{bottleneck_csp_forward.4} parent=11 // pred_check
        %p140 = pneg %p57
      $region14: #{bottleneck_csp_forward.4} parent=11 // pred_check_branch
        %142 = sbr.rel (%p140) target = $region16
      $region15: #{bottleneck_csp_forward.4} parent=11 // pred_region
        _
      $region16: #{bottleneck_csp_forward.4} parent=11 // pred_fallthru
        _
      // Predicated region
      $region17: #{bottleneck_csp_forward.4} parent=11 // pred_check
        %p143 = pneg %p78
      $region18: #{bottleneck_csp_forward.4} parent=11 // pred_check_branch
        %145 = sbr.rel (%p143) target = $region20
      $region19: #{bottleneck_csp_forward.4} parent=11 // pred_region
        _
      $region20: #{bottleneck_csp_forward.4} parent=11 // pred_fallthru
        _
      // Predicated region
      $region21: #{bottleneck_csp_forward.4} parent=11 // pred_check
        %p146 = pneg %p99
      $region22: #{bottleneck_csp_forward.4} parent=11 // pred_check_branch
        %148 = sbr.rel (%p146) target = $region24
      $region23: #{bottleneck_csp_forward.4} parent=11 // pred_region
        _
      $region24: #{bottleneck_csp_forward.4} parent=11 // pred_fallthru
        _
    $region12: #{bottleneck_csp_forward.4} parent=5 // pred_fallthru
      _
    %p149 = scmp.lt.s32.totalorder %s10, 4
    // Predicated region
    $region25: #{bottleneck_csp_forward.4} parent=5 // pred_check
      %p150 = pneg %p149
    $region26: #{bottleneck_csp_forward.4} parent=5 // pred_check_branch
      %152 = sbr.rel (%p150) target = $region28
    $region27: #{bottleneck_csp_forward.4} parent=5 // pred_region
      // Predicated region
      $region29: #{bottleneck_csp_forward.4} parent=27 // pred_check
        %p153 = pneg %p30
      $region30: #{bottleneck_csp_forward.4} parent=27 // pred_check_branch
        %155 = sbr.rel (%p153) target = $region32
      $region31: #{bottleneck_csp_forward.4} parent=27 // pred_region
        %s156 = smul.u32 16, %s10
        %p157 = scmp.lt.s32.totalorder %s156, 63
        %s158 = scalar_select %p157, %s156, 63
        %s159 = smul.addr %s158, 8
        %s160 = scalar_lea.vmem %s0, %s159
        %s161 = smul.u32 16, %s10
      $region32: #{bottleneck_csp_forward.4} parent=27 // pred_fallthru
        _
    $region28: #{bottleneck_csp_forward.4} parent=5 // pred_fallthru
      _
    %p162 = scmp.le.s32.totalorder 1, %s10
    %p163 = scmp.lt.s32.totalorder %s10, 5
    %p164 = pnand %p162, %p163
    %p165 = pneg %p164
    // Predicated region
    $region33: #{bottleneck_csp_forward.4} parent=5 // pred_check
      _
    $region34: #{bottleneck_csp_forward.4} parent=5 // pred_check_branch
      %167 = sbr.rel (%p164) target = $region36
    $region35: #{bottleneck_csp_forward.4} parent=5 // pred_region
      %s168 = ssub.s32 %s10, 1
      %s169 = smul.u32 16, %s15
      %p170 = scmp.lt.s32.totalorder %s169, 63
      %s171 = scalar_select %p170, %s169, 63
      %s172 = smul.addr %s171, 8
      %s173 = scalar_lea.vmem %s0, %s172
      %p174 = pneg %p36
      %p175 = pneg %p33
      %p176 = pneg %p57
      %p177 = pneg %p54
      %p178 = pneg %p78
      %p179 = pneg %p75
      %p180 = pneg %p99
      %p181 = pneg %p96
      %p182 = pneg %p125
      %p183 = pneg %p122
      %s184 = smul.u32 16, %s15
      %p185 = scmp.lt.s32.totalorder %s184, 63
      %s186 = scalar_select %p185, %s184, 63
      %s187 = smul.addr %s186, 8
      %s188 = scalar_lea.vmem %s4, %s187
      %s189 = smul.u32 16, %s15
      %p190 = scmp.lt.s32.totalorder %s189, 63
      %s191 = scalar_select %p190, %s189, 63
      %s192 = smul.addr %s191, 8
      %s193 = scalar_lea.vmem %s0, %s192
      %s194 = smul.u32 16, %s15
      %s195 = smul.u32 16, %s15
      %p196 = scmp.lt.s32.totalorder %s195, 63
      %s197 = scalar_select %p196, %s195, 63
      %s198 = smul.addr %s197, 8
      %s199 = scalar_lea.vmem %s4, %s198
      %s200 = smul.u32 16, %s15
      %v201 = vld [vmem:[%s193] sm:$0xff]
      %v202 = vld [vmem:[%s193 + $0x8] sm:$0xff]
      %v203 = vld [vmem:[%s193 + $0x10] sm:$0xff]
      %v204 = vld [vmem:[%s193 + $0x18] sm:$0xff]
      %v205 = vld [vmem:[%s193 + $0x20] sm:$0xff]
      %v206 = vld [vmem:[%s193 + $0x28] sm:$0xff]
      %v207 = vld [vmem:[%s193 + $0x30] sm:$0xff]
      %v208 = vld [vmem:[%s193 + $0x38] sm:$0xff]
      %v209 = vld [vmem:[%s193 + $0x40] sm:$0xff]
      %v210 = vld [vmem:[%s193 + $0x48] sm:$0xff]
      %v211 = vld [vmem:[%s193 + $0x50] sm:$0xff]
      %v212 = vld [vmem:[%s193 + $0x58] sm:$0xff]
      %v213 = vld [vmem:[%s193 + $0x60] sm:$0xff]
      %v214 = vld [vmem:[%s193 + $0x68] sm:$0xff]
      %v215 = vld [vmem:[%s193 + $0x70] sm:$0xff]
      %v216 = vld [vmem:[%s193 + $0x78] sm:$0xff]
      %v217 = vld [vmem:[%s1] sm:$0xff]
      %v218 = vld [vmem:[%s1 + $0x8] sm:$0xff]
      %v219 = vld [vmem:[%s1 + $0x10] sm:$0xff]
      %v220 = vld [vmem:[%s1 + $0x18] sm:$0xff]
      %v221 = vld [vmem:[%s1 + $0x20] sm:$0xff]
      %v222 = vld [vmem:[%s1 + $0x28] sm:$0xff]
      %v223 = vld [vmem:[%s1 + $0x30] sm:$0xff]
      %v224 = vld [vmem:[%s1 + $0x38] sm:$0xff]
      %v225 = vld [vmem:[%s1 + $0x40] sm:$0xff]
      %v226 = vld [vmem:[%s1 + $0x48] sm:$0xff]
      %v227 = vld [vmem:[%s1 + $0x50] sm:$0xff]
      %v228 = vld [vmem:[%s1 + $0x58] sm:$0xff]
      %v229 = vld [vmem:[%s1 + $0x60] sm:$0xff]
      %v230 = vld [vmem:[%s1 + $0x68] sm:$0xff]
      %v231 = vld [vmem:[%s1 + $0x70] sm:$0xff]
      %v232 = vld [vmem:[%s1 + $0x78] sm:$0xff]
      %233 = vmatprep.subr.mxu0 0.0
      %234 = vmatpush1.msra.mxu0 %v217
      %235 = vmatprep.subr.mxu0 0.0
      %236 = vmatpush1.msra.mxu0 %v218
      %237 = vmatprep.subr.mxu0 0.0
      %238 = vmatpush1.msra.mxu0 %v219
      %239 = vmatprep.subr.mxu0 0.0
      %240 = vmatpush1.msra.mxu0 %v220
      %241 = vmatprep.subr.mxu0 0.0
      %242 = vmatpush1.msra.mxu0 %v221
      %243 = vmatprep.subr.mxu0 0.0
      %244 = vmatpush1.msra.mxu0 %v222
      %245 = vmatprep.subr.mxu0 0.0
      %246 = vmatpush1.msra.mxu0 %v223
      %247 = vmatprep.subr.mxu0 0.0
      %248 = vmatpush1.msra.mxu0 %v224
      %249 = vmatprep.subr.mxu0 0.0
      %250 = vmatpush1.msra.mxu0 %v225
      %251 = vmatprep.subr.mxu0 0.0
      %252 = vmatpush1.msra.mxu0 %v226
      %253 = vmatprep.subr.mxu0 0.0
      %254 = vmatpush1.msra.mxu0 %v227
      %255 = vmatprep.subr.mxu0 0.0
      %256 = vmatpush1.msra.mxu0 %v228
      %257 = vmatprep.subr.mxu0 0.0
      %258 = vmatpush1.msra.mxu0 %v229
      %259 = vmatprep.subr.mxu0 0.0
      %260 = vmatpush1.msra.mxu0 %v230
      %261 = vmatprep.subr.mxu0 0.0
      %262 = vmatpush1.msra.mxu0 %v231
      %263 = vmatprep.subr.mxu0 0.0
      %264 = vmatpush1.msra.mxu0 %v232
      %265 = vmatprep.subr.mxu0 0.0
      %266 = vmatpush1.msra.mxu0 0.0
      %267 = vmatprep.subr.mxu0 0.0
      %268 = vmatpush1.msra.mxu0 0.0
      %269 = vmatprep.subr.mxu0 0.0
      %270 = vmatpush1.msra.mxu0 0.0
      %271 = vmatprep.subr.mxu0 0.0
      %272 = vmatpush1.msra.mxu0 0.0
      %273 = vmatprep.subr.mxu0 0.0
      %274 = vmatpush1.msra.mxu0 0.0
      %275 = vmatprep.subr.mxu0 0.0
      %276 = vmatpush1.msra.mxu0 0.0
      %277 = vmatprep.subr.mxu0 0.0
      %278 = vmatpush1.msra.mxu0 0.0
      %279 = vmatprep.subr.mxu0 0.0
      %280 = vmatpush1.msra.mxu0 0.0
      %281 = vmatprep.subr.mxu0 0.0
      %282 = vmatpush1.msra.mxu0 0.0
      %283 = vmatprep.subr.mxu0 0.0
      %284 = vmatpush1.msra.mxu0 0.0
      %285 = vmatprep.subr.mxu0 0.0
      %286 = vmatpush1.msra.mxu0 0.0
      %287 = vmatprep.subr.mxu0 0.0
      %288 = vmatpush1.msra.mxu0 0.0
      %289 = vmatprep.subr.mxu0 0.0
      %290 = vmatpush1.msra.mxu0 0.0
      %291 = vmatprep.subr.mxu0 0.0
      %292 = vmatpush1.msra.mxu0 0.0
      %293 = vmatprep.subr.mxu0 0.0
      %294 = vmatpush1.msra.mxu0 0.0
      %295 = vmatprep.subr.mxu0 0.0
      %296 = vmatpush1.msra.mxu0 0.0
      %297 = vmatprep.mubr.f32.mxu0 0.0
      %298 = vmatmul.mubr.f32.gmra.mrb[0].mxu0 %v201
      %v299 = vpop.f32.mrb[0].mxu0
      %v300 = vadd.f32 0.0, %v299
      %v301 = vpop.f32.mrb[0].mxu0
      %302 = vmatprep.mubr.f32.mxu0 0.0
      %303 = vmatmul.mubr.f32.gmra.mrb[0].mxu0 %v202
      %v304 = vpop.f32.mrb[0].mxu0
      %v305 = vadd.f32 0.0, %v304
      %v306 = vpop.f32.mrb[0].mxu0
      %307 = vmatprep.mubr.f32.mxu0 0.0
      %308 = vmatmul.mubr.f32.gmra.mrb[0].mxu0 %v203
      %v309 = vpop.f32.mrb[0].mxu0
      %v310 = vadd.f32 0.0, %v309
      %v311 = vpop.f32.mrb[0].mxu0
      %312 = vmatprep.mubr.f32.mxu0 0.0
      %313 = vmatmul.mubr.f32.gmra.mrb[0].mxu0 %v204
      %v314 = vpop.f32.mrb[0].mxu0
      %v315 = vadd.f32 0.0, %v314
      %v316 = vpop.f32.mrb[0].mxu0
      %317 = vmatprep.mubr.f32.mxu0 0.0
      %318 = vmatmul.mubr.f32.gmra.mrb[0].mxu0 %v205
      %v319 = vpop.f32.mrb[0].mxu0
      %v320 = vadd.f32 0.0, %v319
      %v321 = vpop.f32.mrb[0].mxu0
      %322 = vmatprep.mubr.f32.mxu0 0.0
      %323 = vmatmul.mubr.f32.gmra.mrb[0].mxu0 %v206
      %v324 = vpop.f32.mrb[0].mxu0
      %v325 = vadd.f32 0.0, %v324
      %v326 = vpop.f32.mrb[0].mxu0
      %327 = vmatprep.mubr.f32.mxu0 0.0
      %328 = vmatmul.mubr.f32.gmra.mrb[0].mxu0 %v207
      %v329 = vpop.f32.mrb[0].mxu0
      %v330 = vadd.f32 0.0, %v329
      %v331 = vpop.f32.mrb[0].mxu0
      %332 = vmatprep.mubr.f32.mxu0 0.0
      %333 = vmatmul.mubr.f32.gmra.mrb[0].mxu0 %v208
      %v334 = vpop.f32.mrb[0].mxu0
      %v335 = vadd.f32 0.0, %v334
      %v336 = vpop.f32.mrb[0].mxu0
      %337 = vmatprep.mubr.f32.mxu0 0.0
      %338 = vmatmul.mubr.f32.gmra.mrb[0].mxu0 %v209
      %v339 = vpop.f32.mrb[0].mxu0
      %v340 = vadd.f32 0.0, %v339
      %v341 = vpop.f32.mrb[0].mxu0
      %342 = vmatprep.mubr.f32.mxu0 0.0
      %343 = vmatmul.mubr.f32.gmra.mrb[0].mxu0 %v210
      %v344 = vpop.f32.mrb[0].mxu0
      %v345 = vadd.f32 0.0, %v344
      %v346 = vpop.f32.mrb[0].mxu0
      %347 = vmatprep.mubr.f32.mxu0 0.0
      %348 = vmatmul.mubr.f32.gmra.mrb[0].mxu0 %v211
      %v349 = vpop.f32.mrb[0].mxu0
      %v350 = vadd.f32 0.0, %v349
      %v351 = vpop.f32.mrb[0].mxu0
      %352 = vmatprep.mubr.f32.mxu0 0.0
      %353 = vmatmul.mubr.f32.gmra.mrb[0].mxu0 %v212
      %v354 = vpop.f32.mrb[0].mxu0
      %v355 = vadd.f32 0.0, %v354
      %v356 = vpop.f32.mrb[0].mxu0
      %357 = vmatprep.mubr.f32.mxu0 0.0
      %358 = vmatmul.mubr.f32.gmra.mrb[0].mxu0 %v213
      %v359 = vpop.f32.mrb[0].mxu0
      %v360 = vadd.f32 0.0, %v359
      %v361 = vpop.f32.mrb[0].mxu0
      %362 = vmatprep.mubr.f32.mxu0 0.0
      %363 = vmatmul.mubr.f32.gmra.mrb[0].mxu0 %v214
      %v364 = vpop.f32.mrb[0].mxu0
      %v365 = vadd.f32 0.0, %v364
      %v366 = vpop.f32.mrb[0].mxu0
      %367 = vmatprep.mubr.f32.mxu0 0.0
      %368 = vmatmul.mubr.f32.gmra.mrb[0].mxu0 %v215
      %v369 = vpop.f32.mrb[0].mxu0
      %v370 = vadd.f32 0.0, %v369
      %v371 = vpop.f32.mrb[0].mxu0
      %372 = vmatprep.mubr.f32.mxu0 0.0
      %373 = vmatmul.mubr.f32.gmra.mrb[0].mxu0 %v216
      %v374 = vpop.f32.mrb[0].mxu0
      %v375 = vadd.f32 0.0, %v374
      %v376 = vpop.f32.mrb[0].mxu0
      %377 = vdwg.mxu0
      %v378 = vld [vmem:[%s2] sm:$0x1]
      %v380 = vlaneseq
      %v381 = vshrl.u32 %v380, 7
      %v382 = vsub.s32 0, %v381
      %v383 = vrot.slane %v378, %v382
      %v385 = vmul.f32 %v300, %v383
      %v386 = vmul.f32 %v305, %v383
      %v387 = vmul.f32 %v310, %v383
      %v388 = vmul.f32 %v315, %v383
      %v389 = vmul.f32 %v320, %v383
      %v390 = vmul.f32 %v325, %v383
      %v391 = vmul.f32 %v330, %v383
      %v392 = vmul.f32 %v335, %v383
      %v393 = vmul.f32 %v340, %v383
      %v394 = vmul.f32 %v345, %v383
      %v395 = vmul.f32 %v350, %v383
      %v396 = vmul.f32 %v355, %v383
      %v397 = vmul.f32 %v360, %v383
      %v398 = vmul.f32 %v365, %v383
      %v399 = vmul.f32 %v370, %v383
      %v400 = vmul.f32 %v375, %v383
      %v401 = vld [vmem:[%s3] sm:$0x1]
      %v403 = vlaneseq
      %v404 = vshrl.u32 %v403, 7
      %v405 = vsub.s32 0, %v404
      %v406 = vrot.slane %v401, %v405
      %v408 = vadd.f32 %v385, %v406
      %v409 = vadd.f32 %v386, %v406
      %v410 = vadd.f32 %v387, %v406
      %v411 = vadd.f32 %v388, %v406
      %v412 = vadd.f32 %v389, %v406
      %v413 = vadd.f32 %v390, %v406
      %v414 = vadd.f32 %v391, %v406
      %v415 = vadd.f32 %v392, %v406
      %v416 = vadd.f32 %v393, %v406
      %v417 = vadd.f32 %v394, %v406
      %v418 = vadd.f32 %v395, %v406
      %v419 = vadd.f32 %v396, %v406
      %v420 = vadd.f32 %v397, %v406
      %v421 = vadd.f32 %v398, %v406
      %v422 = vadd.f32 %v399, %v406
      %v423 = vadd.f32 %v400, %v406
      %v424 = vxor.u32 %v408, 2147483648
      %v425 = vxor.u32 %v409, 2147483648
      %v426 = vxor.u32 %v410, 2147483648
      %v427 = vxor.u32 %v411, 2147483648
      %v428 = vxor.u32 %v412, 2147483648
      %v429 = vxor.u32 %v413, 2147483648
      %v430 = vxor.u32 %v414, 2147483648
      %v431 = vxor.u32 %v415, 2147483648
      %v432 = vxor.u32 %v416, 2147483648
      %v433 = vxor.u32 %v417, 2147483648
      %v434 = vxor.u32 %v418, 2147483648
      %v435 = vxor.u32 %v419, 2147483648
      %v436 = vxor.u32 %v420, 2147483648
      %v437 = vxor.u32 %v421, 2147483648
      %v438 = vxor.u32 %v422, 2147483648
      %v439 = vxor.u32 %v423, 2147483648
      %v440 = vmul.f32 %v424, 1.442695
      %v441 = vpow.pop %v440
      %v442 = vmul.f32 %v425, 1.442695
      %v443 = vpow.pop %v442
      %v444 = vmul.f32 %v426, 1.442695
      %v445 = vpow.pop %v444
      %v446 = vmul.f32 %v427, 1.442695
      %v447 = vpow.pop %v446
      %v448 = vmul.f32 %v428, 1.442695
      %v449 = vpow.pop %v448
      %v450 = vmul.f32 %v429, 1.442695
      %v451 = vpow.pop %v450
      %v452 = vmul.f32 %v430, 1.442695
      %v453 = vpow.pop %v452
      %v454 = vmul.f32 %v431, 1.442695
      %v455 = vpow.pop %v454
      %v456 = vmul.f32 %v432, 1.442695
      %v457 = vpow.pop %v456
      %v458 = vmul.f32 %v433, 1.442695
      %v459 = vpow.pop %v458
      %v460 = vmul.f32 %v434, 1.442695
      %v461 = vpow.pop %v460
      %v462 = vmul.f32 %v435, 1.442695
      %v463 = vpow.pop %v462
      %v464 = vmul.f32 %v436, 1.442695
      %v465 = vpow.pop %v464
      %v466 = vmul.f32 %v437, 1.442695
      %v467 = vpow.pop %v466
      %v468 = vmul.f32 %v438, 1.442695
      %v469 = vpow.pop %v468
      %v470 = vmul.f32 %v439, 1.442695
      %v471 = vpow.pop %v470
      %v472 = vadd.f32 %v441, 1.0
      %v473 = vadd.f32 %v443, 1.0
      %v474 = vadd.f32 %v445, 1.0
      %v475 = vadd.f32 %v447, 1.0
      %v476 = vadd.f32 %v449, 1.0
      %v477 = vadd.f32 %v451, 1.0
      %v478 = vadd.f32 %v453, 1.0
      %v479 = vadd.f32 %v455, 1.0
      %v480 = vadd.f32 %v457, 1.0
      %v481 = vadd.f32 %v459, 1.0
      %v482 = vadd.f32 %v461, 1.0
      %v483 = vadd.f32 %v463, 1.0
      %v484 = vadd.f32 %v465, 1.0
      %v485 = vadd.f32 %v467, 1.0
      %v486 = vadd.f32 %v469, 1.0
      %v487 = vadd.f32 %v471, 1.0
      %v488 = vrcp.pop %v472
      %v489 = vmul.f32 1.0, %v488
      %v490 = vrcp.pop %v473
      %v491 = vmul.f32 1.0, %v490
      %v492 = vrcp.pop %v474
      %v493 = vmul.f32 1.0, %v492
      %v494 = vrcp.pop %v475
      %v495 = vmul.f32 1.0, %v494
      %v496 = vrcp.pop %v476
      %v497 = vmul.f32 1.0, %v496
      %v498 = vrcp.pop %v477
      %v499 = vmul.f32 1.0, %v498
      %v500 = vrcp.pop %v478
      %v501 = vmul.f32 1.0, %v500
      %v502 = vrcp.pop %v479
      %v503 = vmul.f32 1.0, %v502
      %v504 = vrcp.pop %v480
      %v505 = vmul.f32 1.0, %v504
      %v506 = vrcp.pop %v481
      %v507 = vmul.f32 1.0, %v506
      %v508 = vrcp.pop %v482
      %v509 = vmul.f32 1.0, %v508
      %v510 = vrcp.pop %v483
      %v511 = vmul.f32 1.0, %v510
      %v512 = vrcp.pop %v484
      %v513 = vmul.f32 1.0, %v512
      %v514 = vrcp.pop %v485
      %v515 = vmul.f32 1.0, %v514
      %v516 = vrcp.pop %v486
      %v517 = vmul.f32 1.0, %v516
      %v518 = vrcp.pop %v487
      %v519 = vmul.f32 1.0, %v518
      %v520 = vmul.f32 %v408, %v489
      %v521 = vmul.f32 %v409, %v491
      %v522 = vmul.f32 %v410, %v493
      %v523 = vmul.f32 %v411, %v495
      %v524 = vmul.f32 %v412, %v497
      %v525 = vmul.f32 %v413, %v499
      %v526 = vmul.f32 %v414, %v501
      %v527 = vmul.f32 %v415, %v503
      %v528 = vmul.f32 %v416, %v505
      %v529 = vmul.f32 %v417, %v507
      %v530 = vmul.f32 %v418, %v509
      %v531 = vmul.f32 %v419, %v511
      %v532 = vmul.f32 %v420, %v513
      %v533 = vmul.f32 %v421, %v515
      %v534 = vmul.f32 %v422, %v517
      %v535 = vmul.f32 %v423, %v519
      %536 = vst [vmem:[%s199] sm:$0xff] %v520
      %537 = vst [vmem:[%s199 + $0x8] sm:$0xff] %v521
      %538 = vst [vmem:[%s199 + $0x10] sm:$0xff] %v522
      %539 = vst [vmem:[%s199 + $0x18] sm:$0xff] %v523
      %540 = vst [vmem:[%s199 + $0x20] sm:$0xff] %v524
      %541 = vst [vmem:[%s199 + $0x28] sm:$0xff] %v525
      %542 = vst [vmem:[%s199 + $0x30] sm:$0xff] %v526
      %543 = vst [vmem:[%s199 + $0x38] sm:$0xff] %v527
      %544 = vst [vmem:[%s199 + $0x40] sm:$0xff] %v528
      %545 = vst [vmem:[%s199 + $0x48] sm:$0xff] %v529
      %546 = vst [vmem:[%s199 + $0x50] sm:$0xff] %v530
      %547 = vst [vmem:[%s199 + $0x58] sm:$0xff] %v531
      %548 = vst [vmem:[%s199 + $0x60] sm:$0xff] %v532
      %549 = vst [vmem:[%s199 + $0x68] sm:$0xff] %v533
      %550 = vst [vmem:[%s199 + $0x70] sm:$0xff] %v534
      %551 = vst [vmem:[%s199 + $0x78] sm:$0xff] %v535
      %s552 = smul.u32 16, %s15
      %p553 = scmp.lt.s32.totalorder %s552, 63
      %s554 = scalar_select %p553, %s552, 63
      %s555 = smul.addr %s554, 8
      %s556 = scalar_lea.vmem %s4, %s555
      // Predicated region
      $region37: #{bottleneck_csp_forward.4} parent=35 // pred_check
        %p557 = pneg %p122
      $region38: #{bottleneck_csp_forward.4} parent=35 // pred_check_branch
        %559 = sbr.rel (%p557) target = $region40
      $region39: #{bottleneck_csp_forward.4} parent=35 // pred_region
        %s560 = smul.u32 16, %s15
      $region40: #{bottleneck_csp_forward.4} parent=35 // pred_fallthru
        _
    $region36: #{bottleneck_csp_forward.4} parent=5 // pred_fallthru
      _
    %p561 = scmp.le.s32.totalorder 2, %s10
    // Predicated region
    $region41: #{bottleneck_csp_forward.4} parent=5 // pred_check
      %p562 = pneg %p561
    $region42: #{bottleneck_csp_forward.4} parent=5 // pred_check_branch
      %564 = sbr.rel (%p562) target = $region44
    $region43: #{bottleneck_csp_forward.4} parent=5 // pred_region
      %s565 = ssub.s32 %s10, 2
      // Predicated region
      $region45: #{bottleneck_csp_forward.4} parent=43 // pred_check
        %p566 = pneg %p128
      $region46: #{bottleneck_csp_forward.4} parent=43 // pred_check_branch
        %568 = sbr.rel (%p566) target = $region48
      $region47: #{bottleneck_csp_forward.4} parent=43 // pred_region
        %s569 = smul.u32 16, %s16
        %p570 = scmp.lt.s32.totalorder %s569, 63
        %s571 = scalar_select %p570, %s569, 63
        %s572 = smul.addr %s571, 8
        %s573 = scalar_lea.vmem %s4, %s572
      $region48: #{bottleneck_csp_forward.4} parent=43 // pred_fallthru
        _
    $region44: #{bottleneck_csp_forward.4} parent=5 // pred_fallthru
      _
  $region6: #{bottleneck_csp_forward.4} parent=0 // loop_footer
    %s14 = sadd.s32 1, %s10
  $region7: #{bottleneck_csp_forward.4} parent=0 // loop_footer_branch
    %9 = sbr.rel target = $region3
  $region8: #{bottleneck_csp_forward.4} parent=0 // loop_exit
    _

// kernel: bottleneck_csp_forward.7
$region0: #{bottleneck_csp_forward.7}
  #allocation0 [shape = 'u32[]', space=smem, size = 0x4, offset = 0x4, fixed_abs, tag = 'smem constant byte address 0x4 - core index']
  #allocation1 [shape = 'u32[144,128]{1,0:T(1,128)}', space=vmem, size = 0x12000, scoped, tag = 'internal scratch']
  %s0 = inlined_call_operand.vmem [shape: f32[512,128], index: 0, kind: input, shape index: {}]
  %s1 = inlined_call_operand.vmem [shape: f32[512,128], index: 1, kind: input, shape index: {}]
  %s2 = inlined_call_operand.vmem [shape: f32[128,128], index: 2, kind: input, shape index: {}]
  %s3 = inlined_call_operand.vmem [shape: f32[128,128], index: 3, kind: input, shape index: {}]
  %s4 = inlined_call_operand.vmem [shape: f32[1,128], index: 4, kind: input, shape index: {}]
  %s5 = inlined_call_operand.vmem [shape: f32[1,128], index: 5, kind: input, shape index: {}]
  %s6 = inlined_call_operand.vmem [shape: f32[1,128], index: 6, kind: input, shape index: {}]
  %s7 = inlined_call_operand.vmem [shape: f32[1,128], index: 7, kind: input, shape index: {}]
  %s8 = inlined_call_operand.vmem [shape: f32[256,128], index: 8, kind: input, shape index: {}]
  %s9 = inlined_call_operand.vmem [shape: f32[1,128], index: 9, kind: input, shape index: {}]
  %s10 = inlined_call_operand.vmem [shape: f32[1,128], index: 10, kind: input, shape index: {}]
  %s11 = inlined_call_operand.vmem [shape: f32[512,128], index: 11, kind: output, shape index: {}]
  %s12 = sld [smem:[#allocation0]]
  $region77: #{bottleneck_csp_forward.7} parent=0
    _
  %s14 = ssub.s32 1, %s12
  %s15 = scalar_select 0, %s14, %s12
  loop: start=0, step=1, limit=6
  $region2: #{bottleneck_csp_forward.7} parent=0 // loop_pre_header
    _
  $region3: #{bottleneck_csp_forward.7} parent=0 // loop_header
    %s17 = sphi 0, %s21
    %p18 = scmp.ge.s32.totalorder %s17, 6
    %s27 = sphi 0, %s29
    %s30 = sphi 0, %s27
    %s31 = sphi 0, %s30
    %s47 = sphi 0, %s31
    %s53 = sphi 0, %s55
    %s56 = sphi 0, %s53
    %s57 = sphi 0, %s56
    %s73 = sphi 0, %s57
    %s77 = sphi 0, %s77
    %s79 = sphi 0, %s77
    %s80 = sphi 0, %s79
    %s94 = sphi 0, %s80
    %s98 = sphi 0, %s98
    %s100 = sphi 0, %s98
    %s101 = sphi 0, %s100
    %s115 = sphi 0, %s101
    %s119 = sphi 0, %s119
    %s121 = sphi 0, %s119
    %s122 = sphi 0, %s121
    %s136 = sphi 0, %s122
    %s140 = sphi 0, %s140
    %s142 = sphi 0, %s140
    %s143 = sphi 0, %s142
    %s157 = sphi 0, %s143
    %s161 = sphi 0, %s161
    %s163 = sphi 0, %s161
    %s164 = sphi 0, %s163
    %s178 = sphi 0, %s164
    %s182 = sphi 0, %s182
    %s184 = sphi 0, %s182
    %s185 = sphi 0, %s184
    %s199 = sphi 0, %s185
    %s203 = sphi 0, %s203
    %s205 = sphi 0, %s203
    %s206 = sphi 0, %s205
    %s220 = sphi 0, %s206
    %s224 = sphi 0, %s224
    %s226 = sphi 0, %s224
    %s227 = sphi 0, %s226
    %s241 = sphi 0, %s227
    %s245 = sphi 0, %s245
    %s247 = sphi 0, %s245
    %s248 = sphi 0, %s247
    %s262 = sphi 0, %s248
    %s268 = sphi 0, %s270
    %s271 = sphi 0, %s268
    %s272 = sphi 0, %s271
    %s288 = sphi 0, %s272
  $region4: #{bottleneck_csp_forward.7} parent=0 // loop_header_branch
    %20 = sbr.rel (%p18) target = $region8
  $region5: #{bottleneck_csp_forward.7} parent=0 // loop_body
    %s22 = ssub.s32 %s17, 1
    %s23 = ssub.s32 %s17, 2
    %s24 = sadd.s32 %s17, 1
    %s25 = ssub.s32 %s17, %s24
    %p26 = scmp.eq.s32.totalorder %s25, 0
    %s28 = sadd.s32 %s27, 1
    %s29 = scalar_select %p26, %s27, %s28
    %p32 = pneg %p26
    %p33 = scmp.eq.s32.totalorder %s17, 3
    %p34 = por %p32, %p33
    %p35 = scmp.ne.s32.totalorder %s27, %s30
    %p36 = scmp.eq.s32.totalorder %s17, 0
    %p37 = por %p35, %p36
    %p38 = scmp.ne.s32.totalorder %s27, %s30
    %p39 = scmp.eq.s32.totalorder %s22, 3
    %p40 = por %p38, %p39
    %p41 = scmp.ne.s32.totalorder %s30, %s31
    %p42 = scmp.eq.s32.totalorder %s22, 0
    %p43 = por %p41, %p42
    %p44 = scmp.ne.s32.totalorder %s30, %s31
    %p45 = scmp.eq.s32.totalorder %s23, 3
    %p46 = por %p44, %p45
    %p48 = scmp.ne.s32.totalorder %s31, %s47
    %p49 = scmp.eq.s32.totalorder %s23, 0
    %p50 = por %p48, %p49
    %s51 = ssub.s32 %s17, %s24
    %p52 = scmp.eq.s32.totalorder %s51, 0
    %s54 = sadd.s32 %s53, 1
    %s55 = scalar_select %p52, %s53, %s54
    %p58 = pneg %p52
    %p59 = scmp.eq.s32.totalorder %s17, 3
    %p60 = por %p58, %p59
    %p61 = scmp.ne.s32.totalorder %s53, %s56
    %p62 = scmp.eq.s32.totalorder %s17, 0
    %p63 = por %p61, %p62
    %p64 = scmp.ne.s32.totalorder %s53, %s56
    %p65 = scmp.eq.s32.totalorder %s22, 3
    %p66 = por %p64, %p65
    %p67 = scmp.ne.s32.totalorder %s56, %s57
    %p68 = scmp.eq.s32.totalorder %s22, 0
    %p69 = por %p67, %p68
    %p70 = scmp.ne.s32.totalorder %s56, %s57
    %p71 = scmp.eq.s32.totalorder %s23, 3
    %p72 = por %p70, %p71
    %p74 = scmp.ne.s32.totalorder %s57, %s73
    %p75 = scmp.eq.s32.totalorder %s23, 0
    %p76 = por %p74, %p75
    %s78 = sadd.s32 %s77, 1
    %p81 = scmp.eq.s32.totalorder %s17, 3
    %p82 = scmp.ne.s32.totalorder %s77, %s79
    %p83 = scmp.eq.s32.totalorder %s17, 0
    %p84 = por %p82, %p83
    %p85 = scmp.ne.s32.totalorder %s77, %s79
    %p86 = scmp.eq.s32.totalorder %s22, 3
    %p87 = por %p85, %p86
    %p88 = scmp.ne.s32.totalorder %s79, %s80
    %p89 = scmp.eq.s32.totalorder %s22, 0
    %p90 = por %p88, %p89
    %p91 = scmp.ne.s32.totalorder %s79, %s80
    %p92 = scmp.eq.s32.totalorder %s23, 3
    %p93 = por %p91, %p92
    %p95 = scmp.ne.s32.totalorder %s80, %s94
    %p96 = scmp.eq.s32.totalorder %s23, 0
    %p97 = por %p95, %p96
    %s99 = sadd.s32 %s98, 1
    %p102 = scmp.eq.s32.totalorder %s17, 3
    %p103 = scmp.ne.s32.totalorder %s98, %s100
    %p104 = scmp.eq.s32.totalorder %s17, 0
    %p105 = por %p103, %p104
    %p106 = scmp.ne.s32.totalorder %s98, %s100
    %p107 = scmp.eq.s32.totalorder %s22, 3
    %p108 = por %p106, %p107
    %p109 = scmp.ne.s32.totalorder %s100, %s101
    %p110 = scmp.eq.s32.totalorder %s22, 0
    %p111 = por %p109, %p110
    %p112 = scmp.ne.s32.totalorder %s100, %s101
    %p113 = scmp.eq.s32.totalorder %s23, 3
    %p114 = por %p112, %p113
    %p116 = scmp.ne.s32.totalorder %s101, %s115
    %p117 = scmp.eq.s32.totalorder %s23, 0
    %p118 = por %p116, %p117
    %s120 = sadd.s32 %s119, 1
    %p123 = scmp.eq.s32.totalorder %s17, 3
    %p124 = scmp.ne.s32.totalorder %s119, %s121
    %p125 = scmp.eq.s32.totalorder %s17, 0
    %p126 = por %p124, %p125
    %p127 = scmp.ne.s32.totalorder %s119, %s121
    %p128 = scmp.eq.s32.totalorder %s22, 3
    %p129 = por %p127, %p128
    %p130 = scmp.ne.s32.totalorder %s121, %s122
    %p131 = scmp.eq.s32.totalorder %s22, 0
    %p132 = por %p130, %p131
    %p133 = scmp.ne.s32.totalorder %s121, %s122
    %p134 = scmp.eq.s32.totalorder %s23, 3
    %p135 = por %p133, %p134
    %p137 = scmp.ne.s32.totalorder %s122, %s136
    %p138 = scmp.eq.s32.totalorder %s23, 0
    %p139 = por %p137, %p138
    %s141 = sadd.s32 %s140, 1
    %p144 = scmp.eq.s32.totalorder %s17, 3
    %p145 = scmp.ne.s32.totalorder %s140, %s142
    %p146 = scmp.eq.s32.totalorder %s17, 0
    %p147 = por %p145, %p146
    %p148 = scmp.ne.s32.totalorder %s140, %s142
    %p149 = scmp.eq.s32.totalorder %s22, 3
    %p150 = por %p148, %p149
    %p151 = scmp.ne.s32.totalorder %s142, %s143
    %p152 = scmp.eq.s32.totalorder %s22, 0
    %p153 = por %p151, %p152
    %p154 = scmp.ne.s32.totalorder %s142, %s143
    %p155 = scmp.eq.s32.totalorder %s23, 3
    %p156 = por %p154, %p155
    %p158 = scmp.ne.s32.totalorder %s143, %s157
    %p159 = scmp.eq.s32.totalorder %s23, 0
    %p160 = por %p158, %p159
    %s162 = sadd.s32 %s161, 1
    %p165 = scmp.eq.s32.totalorder %s17, 3
    %p166 = scmp.ne.s32.totalorder %s161, %s163
    %p167 = scmp.eq.s32.totalorder %s17, 0
    %p168 = por %p166, %p167
    %p169 = scmp.ne.s32.totalorder %s161, %s163
    %p170 = scmp.eq.s32.totalorder %s22, 3
    %p171 = por %p169, %p170
    %p172 = scmp.ne.s32.totalorder %s163, %s164
    %p173 = scmp.eq.s32.totalorder %s22, 0
    %p174 = por %p172, %p173
    %p175 = scmp.ne.s32.totalorder %s163, %s164
    %p176 = scmp.eq.s32.totalorder %s23, 3
    %p177 = por %p175, %p176
    %p179 = scmp.ne.s32.totalorder %s164, %s178
    %p180 = scmp.eq.s32.totalorder %s23, 0
    %p181 = por %p179, %p180
    %s183 = sadd.s32 %s182, 1
    %p186 = scmp.eq.s32.totalorder %s17, 3
    %p187 = scmp.ne.s32.totalorder %s182, %s184
    %p188 = scmp.eq.s32.totalorder %s17, 0
    %p189 = por %p187, %p188
    %p190 = scmp.ne.s32.totalorder %s182, %s184
    %p191 = scmp.eq.s32.totalorder %s22, 3
    %p192 = por %p190, %p191
    %p193 = scmp.ne.s32.totalorder %s184, %s185
    %p194 = scmp.eq.s32.totalorder %s22, 0
    %p195 = por %p193, %p194
    %p196 = scmp.ne.s32.totalorder %s184, %s185
    %p197 = scmp.eq.s32.totalorder %s23, 3
    %p198 = por %p196, %p197
    %p200 = scmp.ne.s32.totalorder %s185, %s199
    %p201 = scmp.eq.s32.totalorder %s23, 0
    %p202 = por %p200, %p201
    %s204 = sadd.s32 %s203, 1
    %p207 = scmp.eq.s32.totalorder %s17, 3
    %p208 = scmp.ne.s32.totalorder %s203, %s205
    %p209 = scmp.eq.s32.totalorder %s17, 0
    %p210 = por %p208, %p209
    %p211 = scmp.ne.s32.totalorder %s203, %s205
    %p212 = scmp.eq.s32.totalorder %s22, 3
    %p213 = por %p211, %p212
    %p214 = scmp.ne.s32.totalorder %s205, %s206
    %p215 = scmp.eq.s32.totalorder %s22, 0
    %p216 = por %p214, %p215
    %p217 = scmp.ne.s32.totalorder %s205, %s206
    %p218 = scmp.eq.s32.totalorder %s23, 3
    %p219 = por %p217, %p218
    %p221 = scmp.ne.s32.totalorder %s206, %s220
    %p222 = scmp.eq.s32.totalorder %s23, 0
    %p223 = por %p221, %p222
    %s225 = sadd.s32 %s224, 1
    %p228 = scmp.eq.s32.totalorder %s17, 3
    %p229 = scmp.ne.s32.totalorder %s224, %s226
    %p230 = scmp.eq.s32.totalorder %s17, 0
    %p231 = por %p229, %p230
    %p232 = scmp.ne.s32.totalorder %s224, %s226
    %p233 = scmp.eq.s32.totalorder %s22, 3
    %p234 = por %p232, %p233
    %p235 = scmp.ne.s32.totalorder %s226, %s227
    %p236 = scmp.eq.s32.totalorder %s22, 0
    %p237 = por %p235, %p236
    %p238 = scmp.ne.s32.totalorder %s226, %s227
    %p239 = scmp.eq.s32.totalorder %s23, 3
    %p240 = por %p238, %p239
    %p242 = scmp.ne.s32.totalorder %s227, %s241
    %p243 = scmp.eq.s32.totalorder %s23, 0
    %p244 = por %p242, %p243
    %s246 = sadd.s32 %s245, 1
    %p249 = scmp.eq.s32.totalorder %s17, 3
    %p250 = scmp.ne.s32.totalorder %s245, %s247
    %p251 = scmp.eq.s32.totalorder %s17, 0
    %p252 = por %p250, %p251
    %p253 = scmp.ne.s32.totalorder %s245, %s247
    %p254 = scmp.eq.s32.totalorder %s22, 3
    %p255 = por %p253, %p254
    %p256 = scmp.ne.s32.totalorder %s247, %s248
    %p257 = scmp.eq.s32.totalorder %s22, 0
    %p258 = por %p256, %p257
    %p259 = scmp.ne.s32.totalorder %s247, %s248
    %p260 = scmp.eq.s32.totalorder %s23, 3
    %p261 = por %p259, %p260
    %p263 = scmp.ne.s32.totalorder %s248, %s262
    %p264 = scmp.eq.s32.totalorder %s23, 0
    %p265 = por %p263, %p264
    %s266 = ssub.s32 %s17, %s24
    %p267 = scmp.eq.s32.totalorder %s266, 0
    %s269 = sadd.s32 %s268, 1
    %s270 = scalar_select %p267, %s268, %s269
    %p273 = pneg %p267
    %p274 = scmp.eq.s32.totalorder %s17, 3
    %p275 = por %p273, %p274
    %p276 = scmp.ne.s32.totalorder %s268, %s271
    %p277 = scmp.eq.s32.totalorder %s17, 0
    %p278 = por %p276, %p277
    %p279 = scmp.ne.s32.totalorder %s268, %s271
    %p280 = scmp.eq.s32.totalorder %s22, 3
    %p281 = por %p279, %p280
    %p282 = scmp.ne.s32.totalorder %s271, %s272
    %p283 = scmp.eq.s32.totalorder %s22, 0
    %p284 = por %p282, %p283
    %p285 = scmp.ne.s32.totalorder %s271, %s272
    %p286 = scmp.eq.s32.totalorder %s23, 3
    %p287 = por %p285, %p286
    %p289 = scmp.ne.s32.totalorder %s272, %s288
    %p290 = scmp.eq.s32.totalorder %s23, 0
    %p291 = por %p289, %p290
    %p292 = scmp.le.s32.totalorder 1, %s17
    %p293 = scmp.lt.s32.totalorder %s17, 5
    %p294 = pnand %p292, %p293
    %p295 = pneg %p294
    // Predicated region
    $region9: #{bottleneck_csp_forward.7} parent=5 // pred_check
      _
    $region10: #{bottleneck_csp_forward.7} parent=5 // pred_check_branch
      %297 = sbr.rel (%p294) target = $region12
    $region11: #{bottleneck_csp_forward.7} parent=5 // pred_region
      %s298 = ssub.s32 %s17, 1
      // Predicated region
      $region13: #{bottleneck_csp_forward.7} parent=11 // pred_check
        %p299 = pneg %p90
      $region14: #{bottleneck_csp_forward.7} parent=11 // pred_check_branch
        %301 = sbr.rel (%p299) target = $region16
      $region15: #{bottleneck_csp_forward.7} parent=11 // pred_region
        _
      $region16: #{bottleneck_csp_forward.7} parent=11 // pred_fallthru
        _
      // Predicated region
      $region17: #{bottleneck_csp_forward.7} parent=11 // pred_check
        %p302 = pneg %p111
      $region18: #{bottleneck_csp_forward.7} parent=11 // pred_check_branch
        %304 = sbr.rel (%p302) target = $region20
      $region19: #{bottleneck_csp_forward.7} parent=11 // pred_region
        _
      $region20: #{bottleneck_csp_forward.7} parent=11 // pred_fallthru
        _
      // Predicated region
      $region21: #{bottleneck_csp_forward.7} parent=11 // pred_check
        %p305 = pneg %p132
      $region22: #{bottleneck_csp_forward.7} parent=11 // pred_check_branch
        %307 = sbr.rel (%p305) target = $region24
      $region23: #{bottleneck_csp_forward.7} parent=11 // pred_region
        _
      $region24: #{bottleneck_csp_forward.7} parent=11 // pred_fallthru
        _
      // Predicated region
      $region25: #{bottleneck_csp_forward.7} parent=11 // pred_check
        %p308 = pneg %p153
      $region26: #{bottleneck_csp_forward.7} parent=11 // pred_check_branch
        %310 = sbr.rel (%p308) target = $region28
      $region27: #{bottleneck_csp_forward.7} parent=11 // pred_region
        _
      $region28: #{bottleneck_csp_forward.7} parent=11 // pred_fallthru
        _
      // Predicated region
      $region29: #{bottleneck_csp_forward.7} parent=11 // pred_check
        %p311 = pneg %p174
      $region30: #{bottleneck_csp_forward.7} parent=11 // pred_check_branch
        %313 = sbr.rel (%p311) target = $region32
      $region31: #{bottleneck_csp_forward.7} parent=11 // pred_region
        _
      $region32: #{bottleneck_csp_forward.7} parent=11 // pred_fallthru
        _
      // Predicated region
      $region33: #{bottleneck_csp_forward.7} parent=11 // pred_check
        %p314 = pneg %p195
      $region34: #{bottleneck_csp_forward.7} parent=11 // pred_check_branch
        %316 = sbr.rel (%p314) target = $region36
      $region35: #{bottleneck_csp_forward.7} parent=11 // pred_region
        _
      $region36: #{bottleneck_csp_forward.7} parent=11 // pred_fallthru
        _
      // Predicated region
      $region37: #{bottleneck_csp_forward.7} parent=11 // pred_check
        %p317 = pneg %p216
      $region38: #{bottleneck_csp_forward.7} parent=11 // pred_check_branch
        %319 = sbr.rel (%p317) target = $region40
      $region39: #{bottleneck_csp_forward.7} parent=11 // pred_region
        _
      $region40: #{bottleneck_csp_forward.7} parent=11 // pred_fallthru
        _
      // Predicated region
      $region41: #{bottleneck_csp_forward.7} parent=11 // pred_check
        %p320 = pneg %p237
      $region42: #{bottleneck_csp_forward.7} parent=11 // pred_check_branch
        %322 = sbr.rel (%p320) target = $region44
      $region43: #{bottleneck_csp_forward.7} parent=11 // pred_region
        _
      $region44: #{bottleneck_csp_forward.7} parent=11 // pred_fallthru
        _
      // Predicated region
      $region45: #{bottleneck_csp_forward.7} parent=11 // pred_check
        %p323 = pneg %p258
      $region46: #{bottleneck_csp_forward.7} parent=11 // pred_check_branch
        %325 = sbr.rel (%p323) target = $region48
      $region47: #{bottleneck_csp_forward.7} parent=11 // pred_region
        _
      $region48: #{bottleneck_csp_forward.7} parent=11 // pred_fallthru
        _
    $region12: #{bottleneck_csp_forward.7} parent=5 // pred_fallthru
      _
    %p326 = scmp.lt.s32.totalorder %s17, 4
    // Predicated region
    $region49: #{bottleneck_csp_forward.7} parent=5 // pred_check
      %p327 = pneg %p326
    $region50: #{bottleneck_csp_forward.7} parent=5 // pred_check_branch
      %329 = sbr.rel (%p327) target = $region52
    $region51: #{bottleneck_csp_forward.7} parent=5 // pred_region
      // Predicated region
      $region53: #{bottleneck_csp_forward.7} parent=51 // pred_check
        %p330 = pneg %p37
      $region54: #{bottleneck_csp_forward.7} parent=51 // pred_check_branch
        %332 = sbr.rel (%p330) target = $region56
      $region55: #{bottleneck_csp_forward.7} parent=51 // pred_region
        %s333 = smul.u32 16, %s17
        %p334 = scmp.lt.s32.totalorder %s333, 63
        %s335 = scalar_select %p334, %s333, 63
        %s336 = smul.addr %s335, 8
        %s337 = scalar_lea.vmem %s0, %s336
        %s338 = smul.u32 16, %s17
      $region56: #{bottleneck_csp_forward.7} parent=51 // pred_fallthru
        _
      // Predicated region
      $region57: #{bottleneck_csp_forward.7} parent=51 // pred_check
        %p339 = pneg %p63
      $region58: #{bottleneck_csp_forward.7} parent=51 // pred_check_branch
        %341 = sbr.rel (%p339) target = $region60
      $region59: #{bottleneck_csp_forward.7} parent=51 // pred_region
        %s342 = smul.u32 16, %s17
        %p343 = scmp.lt.s32.totalorder %s342, 63
        %s344 = scalar_select %p343, %s342, 63
        %s345 = smul.addr %s344, 8
        %s346 = scalar_lea.vmem %s1, %s345
        %s347 = smul.u32 16, %s17
      $region60: #{bottleneck_csp_forward.7} parent=51 // pred_fallthru
        _
    $region52: #{bottleneck_csp_forward.7} parent=5 // pred_fallthru
      _
    %p348 = scmp.le.s32.totalorder 1, %s17
    %p349 = scmp.lt.s32.totalorder %s17, 5
    %p350 = pnand %p348, %p349
    %p351 = pneg %p350
    // Predicated region
    $region61: #{bottleneck_csp_forward.7} parent=5 // pred_check
      _
    $region62: #{bottleneck_csp_forward.7} parent=5 // pred_check_branch
      %353 = sbr.rel (%p350) target = $region64
    $region63: #{bottleneck_csp_forward.7} parent=5 // pred_region
      %s354 = ssub.s32 %s17, 1
      %s355 = smul.u32 16, %s22
      %p356 = scmp.lt.s32.totalorder %s355, 63
      %s357 = scalar_select %p356, %s355, 63
      %s358 = smul.addr %s357, 8
      %s359 = scalar_lea.vmem %s0, %s358
      %p360 = pneg %p43
      %p361 = pneg %p40
      %s362 = smul.u32 16, %s22
      %p363 = scmp.lt.s32.totalorder %s362, 63
      %s364 = scalar_select %p363, %s362, 63
      %s365 = smul.addr %s364, 8
      %s366 = scalar_lea.vmem %s1, %s365
      %p367 = pneg %p69
      %p368 = pneg %p66
      %p369 = pneg %p90
      %p370 = pneg %p87
      %p371 = pneg %p111
      %p372 = pneg %p108
      %p373 = pneg %p132
      %p374 = pneg %p129
      %p375 = pneg %p153
      %p376 = pneg %p150
      %p377 = pneg %p174
      %p378 = pneg %p171
      %p379 = pneg %p195
      %p380 = pneg %p192
      %p381 = pneg %p216
      %p382 = pneg %p213
      %p383 = pneg %p237
      %p384 = pneg %p234
      %p385 = pneg %p258
      %p386 = pneg %p255
      %p387 = pneg %p284
      %p388 = pneg %p281
      %s389 = smul.u32 16, %s22
      %p390 = scmp.lt.s32.totalorder %s389, 63
      %s391 = scalar_select %p390, %s389, 63
      %s392 = smul.addr %s391, 8
      %s393 = scalar_lea.vmem %s11, %s392
      %s394 = smul.u32 16, %s22
      %p395 = scmp.lt.s32.totalorder %s394, 63
      %s396 = scalar_select %p395, %s394, 63
      %s397 = smul.addr %s396, 8
      %s398 = scalar_lea.vmem %s0, %s397
      %s399 = smul.u32 16, %s22
      %s400 = smul.u32 16, %s22
      %p401 = scmp.lt.s32.totalorder %s400, 63
      %s402 = scalar_select %p401, %s400, 63
      %s403 = smul.addr %s402, 8
      %s404 = scalar_lea.vmem %s1, %s403
      %s405 = smul.u32 16, %s22
      %s406 = smul.u32 16, %s22
      %p407 = scmp.lt.s32.totalorder %s406, 63
      %s408 = scalar_select %p407, %s406, 63
      %s409 = smul.addr %s408, 8
      %s410 = scalar_lea.vmem %s11, %s409
      %s411 = smul.u32 16, %s22
      %v412 = vld [vmem:[%s398] sm:$0xff]
      %v413 = vld [vmem:[%s398 + $0x8] sm:$0xff]
      %v414 = vld [vmem:[%s398 + $0x10] sm:$0xff]
      %v415 = vld [vmem:[%s398 + $0x18] sm:$0xff]
      %v416 = vld [vmem:[%s398 + $0x20] sm:$0xff]
      %v417 = vld [vmem:[%s398 + $0x28] sm:$0xff]
      %v418 = vld [vmem:[%s398 + $0x30] sm:$0xff]
      %v419 = vld [vmem:[%s398 + $0x38] sm:$0xff]
      %v420 = vld [vmem:[%s398 + $0x40] sm:$0xff]
      %v421 = vld [vmem:[%s398 + $0x48] sm:$0xff]
      %v422 = vld [vmem:[%s398 + $0x50] sm:$0xff]
      %v423 = vld [vmem:[%s398 + $0x58] sm:$0xff]
      %v424 = vld [vmem:[%s398 + $0x60] sm:$0xff]
      %v425 = vld [vmem:[%s398 + $0x68] sm:$0xff]
      %v426 = vld [vmem:[%s398 + $0x70] sm:$0xff]
      %v427 = vld [vmem:[%s398 + $0x78] sm:$0xff]
      %v428 = vld [vmem:[%s2] sm:$0xff]
      %v429 = vld [vmem:[%s2 + $0x8] sm:$0xff]
      %v430 = vld [vmem:[%s2 + $0x10] sm:$0xff]
      %v431 = vld [vmem:[%s2 + $0x18] sm:$0xff]
      %v432 = vld [vmem:[%s2 + $0x20] sm:$0xff]
      %v433 = vld [vmem:[%s2 + $0x28] sm:$0xff]
      %v434 = vld [vmem:[%s2 + $0x30] sm:$0xff]
      %v435 = vld [vmem:[%s2 + $0x38] sm:$0xff]
      %v436 = vld [vmem:[%s2 + $0x40] sm:$0xff]
      %v437 = vld [vmem:[%s2 + $0x48] sm:$0xff]
      %v438 = vld [vmem:[%s2 + $0x50] sm:$0xff]
      %v439 = vld [vmem:[%s2 + $0x58] sm:$0xff]
      %v440 = vld [vmem:[%s2 + $0x60] sm:$0xff]
      %v441 = vld [vmem:[%s2 + $0x68] sm:$0xff]
      %v442 = vld [vmem:[%s2 + $0x70] sm:$0xff]
      %v443 = vld [vmem:[%s2 + $0x78] sm:$0xff]
      %444 = vmatprep.subr.mxu0 0.0
      %445 = vmatpush1.msra.mxu0 %v428
      %446 = vmatprep.subr.mxu0 0.0
      %447 = vmatpush1.msra.mxu0 %v429
      %448 = vmatprep.subr.mxu0 0.0
      %449 = vmatpush1.msra.mxu0 %v430
      %450 = vmatprep.subr.mxu0 0.0
      %451 = vmatpush1.msra.mxu0 %v431
      %452 = vmatprep.subr.mxu0 0.0
      %453 = vmatpush1.msra.mxu0 %v432
      %454 = vmatprep.subr.mxu0 0.0
      %455 = vmatpush1.msra.mxu0 %v433
      %456 = vmatprep.subr.mxu0 0.0
      %457 = vmatpush1.msra.mxu0 %v434
      %458 = vmatprep.subr.mxu0 0.0
      %459 = vmatpush1.msra.mxu0 %v435
      %460 = vmatprep.subr.mxu0 0.0
      %461 = vmatpush1.msra.mxu0 %v436
      %462 = vmatprep.subr.mxu0 0.0
      %463 = vmatpush1.msra.mxu0 %v437
      %464 = vmatprep.subr.mxu0 0.0
      %465 = vmatpush1.msra.mxu0 %v438
      %466 = vmatprep.subr.mxu0 0.0
      %467 = vmatpush1.msra.mxu0 %v439
      %468 = vmatprep.subr.mxu0 0.0
      %469 = vmatpush1.msra.mxu0 %v440
      %470 = vmatprep.subr.mxu0 0.0
      %471 = vmatpush1.msra.mxu0 %v441
      %472 = vmatprep.subr.mxu0 0.0
      %473 = vmatpush1.msra.mxu0 %v442
      %474 = vmatprep.subr.mxu0 0.0
      %475 = vmatpush1.msra.mxu0 %v443
      %476 = vmatprep.subr.mxu0 0.0
      %477 = vmatpush1.msra.mxu0 0.0
      %478 = vmatprep.subr.mxu0 0.0
      %479 = vmatpush1.msra.mxu0 0.0
      %480 = vmatprep.subr.mxu0 0.0
      %481 = vmatpush1.msra.mxu0 0.0
      %482 = vmatprep.subr.mxu0 0.0
      %483 = vmatpush1.msra.mxu0 0.0
      %484 = vmatprep.subr.mxu0 0.0
      %485 = vmatpush1.msra.mxu0 0.0
      %486 = vmatprep.subr.mxu0 0.0
      %487 = vmatpush1.msra.mxu0 0.0
      %488 = vmatprep.subr.mxu0 0.0
      %489 = vmatpush1.msra.mxu0 0.0
      %490 = vmatprep.subr.mxu0 0.0
      %491 = vmatpush1.msra.mxu0 0.0
      %492 = vmatprep.subr.mxu0 0.0
      %493 = vmatpush1.msra.mxu0 0.0
      %494 = vmatprep.subr.mxu0 0.0
      %495 = vmatpush1.msra.mxu0 0.0
      %496 = vmatprep.subr.mxu0 0.0
      %497 = vmatpush1.msra.mxu0 0.0
      %498 = vmatprep.subr.mxu0 0.0
      %499 = vmatpush1.msra.mxu0 0.0
      %500 = vmatprep.subr.mxu0 0.0
      %501 = vmatpush1.msra.mxu0 0.0
      %502 = vmatprep.subr.mxu0 0.0
      %503 = vmatpush1.msra.mxu0 0.0
      %504 = vmatprep.subr.mxu0 0.0
      %505 = vmatpush1.msra.mxu0 0.0
      %506 = vmatprep.subr.mxu0 0.0
      %507 = vmatpush1.msra.mxu0 0.0
      %508 = vmatprep.mubr.f32.mxu0 0.0
      %509 = vmatmul.mubr.f32.gmra.mrb[0].mxu0 %v412
      %v510 = vpop.f32.mrb[0].mxu0
      %v511 = vadd.f32 0.0, %v510
      %v512 = vpop.f32.mrb[0].mxu0
      %513 = vmatprep.mubr.f32.mxu0 0.0
      %514 = vmatmul.mubr.f32.gmra.mrb[0].mxu0 %v413
      %v515 = vpop.f32.mrb[0].mxu0
      %v516 = vadd.f32 0.0, %v515
      %v517 = vpop.f32.mrb[0].mxu0
      %518 = vmatprep.mubr.f32.mxu0 0.0
      %519 = vmatmul.mubr.f32.gmra.mrb[0].mxu0 %v414
      %v520 = vpop.f32.mrb[0].mxu0
      %v521 = vadd.f32 0.0, %v520
      %v522 = vpop.f32.mrb[0].mxu0
      %523 = vmatprep.mubr.f32.mxu0 0.0
      %524 = vmatmul.mubr.f32.gmra.mrb[0].mxu0 %v415
      %v525 = vpop.f32.mrb[0].mxu0
      %v526 = vadd.f32 0.0, %v525
      %v527 = vpop.f32.mrb[0].mxu0
      %528 = vmatprep.mubr.f32.mxu0 0.0
      %529 = vmatmul.mubr.f32.gmra.mrb[0].mxu0 %v416
      %v530 = vpop.f32.mrb[0].mxu0
      %v531 = vadd.f32 0.0, %v530
      %v532 = vpop.f32.mrb[0].mxu0
      %533 = vmatprep.mubr.f32.mxu0 0.0
      %534 = vmatmul.mubr.f32.gmra.mrb[0].mxu0 %v417
      %v535 = vpop.f32.mrb[0].mxu0
      %v536 = vadd.f32 0.0, %v535
      %v537 = vpop.f32.mrb[0].mxu0
      %538 = vmatprep.mubr.f32.mxu0 0.0
      %539 = vmatmul.mubr.f32.gmra.mrb[0].mxu0 %v418
      %v540 = vpop.f32.mrb[0].mxu0
      %v541 = vadd.f32 0.0, %v540
      %v542 = vpop.f32.mrb[0].mxu0
      %543 = vmatprep.mubr.f32.mxu0 0.0
      %544 = vmatmul.mubr.f32.gmra.mrb[0].mxu0 %v419
      %v545 = vpop.f32.mrb[0].mxu0
      %v546 = vadd.f32 0.0, %v545
      %v547 = vpop.f32.mrb[0].mxu0
      %548 = vmatprep.mubr.f32.mxu0 0.0
      %549 = vmatmul.mubr.f32.gmra.mrb[0].mxu0 %v420
      %v550 = vpop.f32.mrb[0].mxu0
      %v551 = vadd.f32 0.0, %v550
      %v552 = vpop.f32.mrb[0].mxu0
      %553 = vmatprep.mubr.f32.mxu0 0.0
      %554 = vmatmul.mubr.f32.gmra.mrb[0].mxu0 %v421
      %v555 = vpop.f32.mrb[0].mxu0
      %v556 = vadd.f32 0.0, %v555
      %v557 = vpop.f32.mrb[0].mxu0
      %558 = vmatprep.mubr.f32.mxu0 0.0
      %559 = vmatmul.mubr.f32.gmra.mrb[0].mxu0 %v422
      %v560 = vpop.f32.mrb[0].mxu0
      %v561 = vadd.f32 0.0, %v560
      %v562 = vpop.f32.mrb[0].mxu0
      %563 = vmatprep.mubr.f32.mxu0 0.0
      %564 = vmatmul.mubr.f32.gmra.mrb[0].mxu0 %v423
      %v565 = vpop.f32.mrb[0].mxu0
      %v566 = vadd.f32 0.0, %v565
      %v567 = vpop.f32.mrb[0].mxu0
      %568 = vmatprep.mubr.f32.mxu0 0.0
      %569 = vmatmul.mubr.f32.gmra.mrb[0].mxu0 %v424
      %v570 = vpop.f32.mrb[0].mxu0
      %v571 = vadd.f32 0.0, %v570
      %v572 = vpop.f32.mrb[0].mxu0
      %573 = vmatprep.mubr.f32.mxu0 0.0
      %574 = vmatmul.mubr.f32.gmra.mrb[0].mxu0 %v425
      %v575 = vpop.f32.mrb[0].mxu0
      %v576 = vadd.f32 0.0, %v575
      %v577 = vpop.f32.mrb[0].mxu0
      %578 = vmatprep.mubr.f32.mxu0 0.0
      %579 = vmatmul.mubr.f32.gmra.mrb[0].mxu0 %v426
      %v580 = vpop.f32.mrb[0].mxu0
      %v581 = vadd.f32 0.0, %v580
      %v582 = vpop.f32.mrb[0].mxu0
      %583 = vmatprep.mubr.f32.mxu0 0.0
      %584 = vmatmul.mubr.f32.gmra.mrb[0].mxu0 %v427
      %v585 = vpop.f32.mrb[0].mxu0
      %v586 = vadd.f32 0.0, %v585
      %v587 = vpop.f32.mrb[0].mxu0
      %588 = vdwg.mxu0
      %v589 = vld [vmem:[%s404] sm:$0xff]
      %v590 = vld [vmem:[%s404 + $0x8] sm:$0xff]
      %v591 = vld [vmem:[%s404 + $0x10] sm:$0xff]
      %v592 = vld [vmem:[%s404 + $0x18] sm:$0xff]
      %v593 = vld [vmem:[%s404 + $0x20] sm:$0xff]
      %v594 = vld [vmem:[%s404 + $0x28] sm:$0xff]
      %v595 = vld [vmem:[%s404 + $0x30] sm:$0xff]
      %v596 = vld [vmem:[%s404 + $0x38] sm:$0xff]
      %v597 = vld [vmem:[%s404 + $0x40] sm:$0xff]
      %v598 = vld [vmem:[%s404 + $0x48] sm:$0xff]
      %v599 = vld [vmem:[%s404 + $0x50] sm:$0xff]
      %v600 = vld [vmem:[%s404 + $0x58] sm:$0xff]
      %v601 = vld [vmem:[%s404 + $0x60] sm:$0xff]
      %v602 = vld [vmem:[%s404 + $0x68] sm:$0xff]
      %v603 = vld [vmem:[%s404 + $0x70] sm:$0xff]
      %v604 = vld [vmem:[%s404 + $0x78] sm:$0xff]
      %v605 = vld [vmem:[%s3] sm:$0xff]
      %v606 = vld [vmem:[%s3 + $0x8] sm:$0xff]
      %v607 = vld [vmem:[%s3 + $0x10] sm:$0xff]
      %v608 = vld [vmem:[%s3 + $0x18] sm:$0xff]
      %v609 = vld [vmem:[%s3 + $0x20] sm:$0xff]
      %v610 = vld [vmem:[%s3 + $0x28] sm:$0xff]
      %v611 = vld [vmem:[%s3 + $0x30] sm:$0xff]
      %v612 = vld [vmem:[%s3 + $0x38] sm:$0xff]
      %v613 = vld [vmem:[%s3 + $0x40] sm:$0xff]
      %v614 = vld [vmem:[%s3 + $0x48] sm:$0xff]
      %v615 = vld [vmem:[%s3 + $0x50] sm:$0xff]
      %v616 = vld [vmem:[%s3 + $0x58] sm:$0xff]
      %v617 = vld [vmem:[%s3 + $0x60] sm:$0xff]
      %v618 = vld [vmem:[%s3 + $0x68] sm:$0xff]
      %v619 = vld [vmem:[%s3 + $0x70] sm:$0xff]
      %v620 = vld [vmem:[%s3 + $0x78] sm:$0xff]
      %621 = vmatprep.subr.mxu0 0.0
      %622 = vmatpush1.msra.mxu0 %v605
      %623 = vmatprep.subr.mxu0 0.0
      %624 = vmatpush1.msra.mxu0 %v606
      %625 = vmatprep.subr.mxu0 0.0
      %626 = vmatpush1.msra.mxu0 %v607
      %627 = vmatprep.subr.mxu0 0.0
      %628 = vmatpush1.msra.mxu0 %v608
      %629 = vmatprep.subr.mxu0 0.0
      %630 = vmatpush1.msra.mxu0 %v609
      %631 = vmatprep.subr.mxu0 0.0
      %632 = vmatpush1.msra.mxu0 %v610
      %633 = vmatprep.subr.mxu0 0.0
      %634 = vmatpush1.msra.mxu0 %v611
      %635 = vmatprep.subr.mxu0 0.0
      %636 = vmatpush1.msra.mxu0 %v612
      %637 = vmatprep.subr.mxu0 0.0
      %638 = vmatpush1.msra.mxu0 %v613
      %639 = vmatprep.subr.mxu0 0.0
      %640 = vmatpush1.msra.mxu0 %v614
      %641 = vmatprep.subr.mxu0 0.0
      %642 = vmatpush1.msra.mxu0 %v615
      %643 = vmatprep.subr.mxu0 0.0
      %644 = vmatpush1.msra.mxu0 %v616
      %645 = vmatprep.subr.mxu0 0.0
      %646 = vmatpush1.msra.mxu0 %v617
      %647 = vmatprep.subr.mxu0 0.0
      %648 = vmatpush1.msra.mxu0 %v618
      %649 = vmatprep.subr.mxu0 0.0
      %650 = vmatpush1.msra.mxu0 %v619
      %651 = vmatprep.subr.mxu0 0.0
      %652 = vmatpush1.msra.mxu0 %v620
      %653 = vmatprep.subr.mxu0 0.0
      %654 = vmatpush1.msra.mxu0 0.0
      %655 = vmatprep.subr.mxu0 0.0
      %656 = vmatpush1.msra.mxu0 0.0
      %657 = vmatprep.subr.mxu0 0.0
      %658 = vmatpush1.msra.mxu0 0.0
      %659 = vmatprep.subr.mxu0 0.0
      %660 = vmatpush1.msra.mxu0 0.0
      %661 = vmatprep.subr.mxu0 0.0
      %662 = vmatpush1.msra.mxu0 0.0
      %663 = vmatprep.subr.mxu0 0.0
      %664 = vmatpush1.msra.mxu0 0.0
      %665 = vmatprep.subr.mxu0 0.0
      %666 = vmatpush1.msra.mxu0 0.0
      %667 = vmatprep.subr.mxu0 0.0
      %668 = vmatpush1.msra.mxu0 0.0
      %669 = vmatprep.subr.mxu0 0.0
      %670 = vmatpush1.msra.mxu0 0.0
      %671 = vmatprep.subr.mxu0 0.0
      %672 = vmatpush1.msra.mxu0 0.0
      %673 = vmatprep.subr.mxu0 0.0
      %674 = vmatpush1.msra.mxu0 0.0
      %675 = vmatprep.subr.mxu0 0.0
      %676 = vmatpush1.msra.mxu0 0.0
      %677 = vmatprep.subr.mxu0 0.0
      %678 = vmatpush1.msra.mxu0 0.0
      %679 = vmatprep.subr.mxu0 0.0
      %680 = vmatpush1.msra.mxu0 0.0
      %681 = vmatprep.subr.mxu0 0.0
      %682 = vmatpush1.msra.mxu0 0.0
      %683 = vmatprep.subr.mxu0 0.0
      %684 = vmatpush1.msra.mxu0 0.0
      %685 = vmatprep.mubr.f32.mxu0 0.0
      %686 = vmatmul.mubr.f32.gmra.mrb[0].mxu0 %v589
      %v687 = vpop.f32.mrb[0].mxu0
      %v688 = vadd.f32 0.0, %v687
      %v689 = vpop.f32.mrb[0].mxu0
      %690 = vmatprep.mubr.f32.mxu0 0.0
      %691 = vmatmul.mubr.f32.gmra.mrb[0].mxu0 %v590
      %v692 = vpop.f32.mrb[0].mxu0
      %v693 = vadd.f32 0.0, %v692
      %v694 = vpop.f32.mrb[0].mxu0
      %695 = vmatprep.mubr.f32.mxu0 0.0
      %696 = vmatmul.mubr.f32.gmra.mrb[0].mxu0 %v591
      %v697 = vpop.f32.mrb[0].mxu0
      %v698 = vadd.f32 0.0, %v697
      %v699 = vpop.f32.mrb[0].mxu0
      %700 = vmatprep.mubr.f32.mxu0 0.0
      %701 = vmatmul.mubr.f32.gmra.mrb[0].mxu0 %v592
      %v702 = vpop.f32.mrb[0].mxu0
      %v703 = vadd.f32 0.0, %v702
      %v704 = vpop.f32.mrb[0].mxu0
      %705 = vmatprep.mubr.f32.mxu0 0.0
      %706 = vmatmul.mubr.f32.gmra.mrb[0].mxu0 %v593
      %v707 = vpop.f32.mrb[0].mxu0
      %v708 = vadd.f32 0.0, %v707
      %v709 = vpop.f32.mrb[0].mxu0
      %710 = vmatprep.mubr.f32.mxu0 0.0
      %711 = vmatmul.mubr.f32.gmra.mrb[0].mxu0 %v594
      %v712 = vpop.f32.mrb[0].mxu0
      %v713 = vadd.f32 0.0, %v712
      %v714 = vpop.f32.mrb[0].mxu0
      %715 = vmatprep.mubr.f32.mxu0 0.0
      %716 = vmatmul.mubr.f32.gmra.mrb[0].mxu0 %v595
      %v717 = vpop.f32.mrb[0].mxu0
      %v718 = vadd.f32 0.0, %v717
      %v719 = vpop.f32.mrb[0].mxu0
      %720 = vmatprep.mubr.f32.mxu0 0.0
      %721 = vmatmul.mubr.f32.gmra.mrb[0].mxu0 %v596
      %v722 = vpop.f32.mrb[0].mxu0
      %v723 = vadd.f32 0.0, %v722
      %v724 = vpop.f32.mrb[0].mxu0
      %725 = vmatprep.mubr.f32.mxu0 0.0
      %726 = vmatmul.mubr.f32.gmra.mrb[0].mxu0 %v597
      %v727 = vpop.f32.mrb[0].mxu0
      %v728 = vadd.f32 0.0, %v727
      %v729 = vpop.f32.mrb[0].mxu0
      %730 = vmatprep.mubr.f32.mxu0 0.0
      %731 = vmatmul.mubr.f32.gmra.mrb[0].mxu0 %v598
      %v732 = vpop.f32.mrb[0].mxu0
      %v733 = vadd.f32 0.0, %v732
      %v734 = vpop.f32.mrb[0].mxu0
      %735 = vmatprep.mubr.f32.mxu0 0.0
      %736 = vmatmul.mubr.f32.gmra.mrb[0].mxu0 %v599
      %v737 = vpop.f32.mrb[0].mxu0
      %v738 = vadd.f32 0.0, %v737
      %v739 = vpop.f32.mrb[0].mxu0
      %740 = vmatprep.mubr.f32.mxu0 0.0
      %741 = vmatmul.mubr.f32.gmra.mrb[0].mxu0 %v600
      %v742 = vpop.f32.mrb[0].mxu0
      %v743 = vadd.f32 0.0, %v742
      %v744 = vpop.f32.mrb[0].mxu0
      %745 = vmatprep.mubr.f32.mxu0 0.0
      %746 = vmatmul.mubr.f32.gmra.mrb[0].mxu0 %v601
      %v747 = vpop.f32.mrb[0].mxu0
      %v748 = vadd.f32 0.0, %v747
      %v749 = vpop.f32.mrb[0].mxu0
      %750 = vmatprep.mubr.f32.mxu0 0.0
      %751 = vmatmul.mubr.f32.gmra.mrb[0].mxu0 %v602
      %v752 = vpop.f32.mrb[0].mxu0
      %v753 = vadd.f32 0.0, %v752
      %v754 = vpop.f32.mrb[0].mxu0
      %755 = vmatprep.mubr.f32.mxu0 0.0
      %756 = vmatmul.mubr.f32.gmra.mrb[0].mxu0 %v603
      %v757 = vpop.f32.mrb[0].mxu0
      %v758 = vadd.f32 0.0, %v757
      %v759 = vpop.f32.mrb[0].mxu0
      %760 = vmatprep.mubr.f32.mxu0 0.0
      %761 = vmatmul.mubr.f32.gmra.mrb[0].mxu0 %v604
      %v762 = vpop.f32.mrb[0].mxu0
      %v763 = vadd.f32 0.0, %v762
      %v764 = vpop.f32.mrb[0].mxu0
      %765 = vdwg.mxu0
      %v766 = vld [vmem:[%s4] sm:$0x1]
      %v768 = vlaneseq
      %v769 = vshrl.u32 %v768, 7
      %v770 = vsub.s32 0, %v769
      %v771 = vrot.slane %v766, %v770
      %v773 = vmul.f32 %v511, %v771
      %v774 = vmul.f32 %v516, %v771
      %v775 = vmul.f32 %v521, %v771
      %v776 = vmul.f32 %v526, %v771
      %v777 = vmul.f32 %v531, %v771
      %v778 = vmul.f32 %v536, %v771
      %v779 = vmul.f32 %v541, %v771
      %v780 = vmul.f32 %v546, %v771
      %v781 = vmul.f32 %v551, %v771
      %v782 = vmul.f32 %v556, %v771
      %v783 = vmul.f32 %v561, %v771
      %v784 = vmul.f32 %v566, %v771
      %v785 = vmul.f32 %v571, %v771
      %v786 = vmul.f32 %v576, %v771
      %v787 = vmul.f32 %v581, %v771
      %v788 = vmul.f32 %v586, %v771
      %v789 = vld [vmem:[%s5] sm:$0x1]
      %v791 = vlaneseq
      %v792 = vshrl.u32 %v791, 7
      %v793 = vsub.s32 0, %v792
      %v794 = vrot.slane %v789, %v793
      %v796 = vadd.f32 %v773, %v794
      %v797 = vadd.f32 %v774, %v794
      %v798 = vadd.f32 %v775, %v794
      %v799 = vadd.f32 %v776, %v794
      %v800 = vadd.f32 %v777, %v794
      %v801 = vadd.f32 %v778, %v794
      %v802 = vadd.f32 %v779, %v794
      %v803 = vadd.f32 %v780, %v794
      %v804 = vadd.f32 %v781, %v794
      %v805 = vadd.f32 %v782, %v794
      %v806 = vadd.f32 %v783, %v794
      %v807 = vadd.f32 %v784, %v794
      %v808 = vadd.f32 %v785, %v794
      %v809 = vadd.f32 %v786, %v794
      %v810 = vadd.f32 %v787, %v794
      %v811 = vadd.f32 %v788, %v794
      %v812 = vxor.u32 %v796, 2147483648
      %v813 = vxor.u32 %v797, 2147483648
      %v814 = vxor.u32 %v798, 2147483648
      %v815 = vxor.u32 %v799, 2147483648
      %v816 = vxor.u32 %v800, 2147483648
      %v817 = vxor.u32 %v801, 2147483648
      %v818 = vxor.u32 %v802, 2147483648
      %v819 = vxor.u32 %v803, 2147483648
      %v820 = vxor.u32 %v804, 2147483648
      %v821 = vxor.u32 %v805, 2147483648
      %v822 = vxor.u32 %v806, 2147483648
      %v823 = vxor.u32 %v807, 2147483648
      %v824 = vxor.u32 %v808, 2147483648
      %v825 = vxor.u32 %v809, 2147483648
      %v826 = vxor.u32 %v810, 2147483648
      %v827 = vxor.u32 %v811, 2147483648
      %v828 = vmul.f32 %v812, 1.442695
      %v829 = vpow.pop %v828
      %v830 = vmul.f32 %v813, 1.442695
      %v831 = vpow.pop %v830
      %v832 = vmul.f32 %v814, 1.442695
      %v833 = vpow.pop %v832
      %v834 = vmul.f32 %v815, 1.442695
      %v835 = vpow.pop %v834
      %v836 = vmul.f32 %v816, 1.442695
      %v837 = vpow.pop %v836
      %v838 = vmul.f32 %v817, 1.442695
      %v839 = vpow.pop %v838
      %v840 = vmul.f32 %v818, 1.442695
      %v841 = vpow.pop %v840
      %v842 = vmul.f32 %v819, 1.442695
      %v843 = vpow.pop %v842
      %v844 = vmul.f32 %v820, 1.442695
      %v845 = vpow.pop %v844
      %v846 = vmul.f32 %v821, 1.442695
      %v847 = vpow.pop %v846
      %v848 = vmul.f32 %v822, 1.442695
      %v849 = vpow.pop %v848
      %v850 = vmul.f32 %v823, 1.442695
      %v851 = vpow.pop %v850
      %v852 = vmul.f32 %v824, 1.442695
      %v853 = vpow.pop %v852
      %v854 = vmul.f32 %v825, 1.442695
      %v855 = vpow.pop %v854
      %v856 = vmul.f32 %v826, 1.442695
      %v857 = vpow.pop %v856
      %v858 = vmul.f32 %v827, 1.442695
      %v859 = vpow.pop %v858
      %v860 = vadd.f32 %v829, 1.0
      %v861 = vadd.f32 %v831, 1.0
      %v862 = vadd.f32 %v833, 1.0
      %v863 = vadd.f32 %v835, 1.0
      %v864 = vadd.f32 %v837, 1.0
      %v865 = vadd.f32 %v839, 1.0
      %v866 = vadd.f32 %v841, 1.0
      %v867 = vadd.f32 %v843, 1.0
      %v868 = vadd.f32 %v845, 1.0
      %v869 = vadd.f32 %v847, 1.0
      %v870 = vadd.f32 %v849, 1.0
      %v871 = vadd.f32 %v851, 1.0
      %v872 = vadd.f32 %v853, 1.0
      %v873 = vadd.f32 %v855, 1.0
      %v874 = vadd.f32 %v857, 1.0
      %v875 = vadd.f32 %v859, 1.0
      %v876 = vrcp.pop %v860
      %v877 = vmul.f32 1.0, %v876
      %v878 = vrcp.pop %v861
      %v879 = vmul.f32 1.0, %v878
      %v880 = vrcp.pop %v862
      %v881 = vmul.f32 1.0, %v880
      %v882 = vrcp.pop %v863
      %v883 = vmul.f32 1.0, %v882
      %v884 = vrcp.pop %v864
      %v885 = vmul.f32 1.0, %v884
      %v886 = vrcp.pop %v865
      %v887 = vmul.f32 1.0, %v886
      %v888 = vrcp.pop %v866
      %v889 = vmul.f32 1.0, %v888
      %v890 = vrcp.pop %v867
      %v891 = vmul.f32 1.0, %v890
      %v892 = vrcp.pop %v868
      %v893 = vmul.f32 1.0, %v892
      %v894 = vrcp.pop %v869
      %v895 = vmul.f32 1.0, %v894
      %v896 = vrcp.pop %v870
      %v897 = vmul.f32 1.0, %v896
      %v898 = vrcp.pop %v871
      %v899 = vmul.f32 1.0, %v898
      %v900 = vrcp.pop %v872
      %v901 = vmul.f32 1.0, %v900
      %v902 = vrcp.pop %v873
      %v903 = vmul.f32 1.0, %v902
      %v904 = vrcp.pop %v874
      %v905 = vmul.f32 1.0, %v904
      %v906 = vrcp.pop %v875
      %v907 = vmul.f32 1.0, %v906
      %v908 = vmul.f32 %v796, %v877
      %v909 = vmul.f32 %v797, %v879
      %v910 = vmul.f32 %v798, %v881
      %v911 = vmul.f32 %v799, %v883
      %v912 = vmul.f32 %v800, %v885
      %v913 = vmul.f32 %v801, %v887
      %v914 = vmul.f32 %v802, %v889
      %v915 = vmul.f32 %v803, %v891
      %v916 = vmul.f32 %v804, %v893
      %v917 = vmul.f32 %v805, %v895
      %v918 = vmul.f32 %v806, %v897
      %v919 = vmul.f32 %v807, %v899
      %v920 = vmul.f32 %v808, %v901
      %v921 = vmul.f32 %v809, %v903
      %v922 = vmul.f32 %v810, %v905
      %v923 = vmul.f32 %v811, %v907
      %v924 = vld [vmem:[%s6] sm:$0x1]
      %v926 = vlaneseq
      %v927 = vshrl.u32 %v926, 7
      %v928 = vsub.s32 0, %v927
      %v929 = vrot.slane %v924, %v928
      %v931 = vmul.f32 %v688, %v929
      %v932 = vmul.f32 %v693, %v929
      %v933 = vmul.f32 %v698, %v929
      %v934 = vmul.f32 %v703, %v929
      %v935 = vmul.f32 %v708, %v929
      %v936 = vmul.f32 %v713, %v929
      %v937 = vmul.f32 %v718, %v929
      %v938 = vmul.f32 %v723, %v929
      %v939 = vmul.f32 %v728, %v929
      %v940 = vmul.f32 %v733, %v929
      %v941 = vmul.f32 %v738, %v929
      %v942 = vmul.f32 %v743, %v929
      %v943 = vmul.f32 %v748, %v929
      %v944 = vmul.f32 %v753, %v929
      %v945 = vmul.f32 %v758, %v929
      %v946 = vmul.f32 %v763, %v929
      %v947 = vld [vmem:[%s7] sm:$0x1]
      %v949 = vlaneseq
      %v950 = vshrl.u32 %v949, 7
      %v951 = vsub.s32 0, %v950
      %v952 = vrot.slane %v947, %v951
      %v954 = vadd.f32 %v931, %v952
      %v955 = vadd.f32 %v932, %v952
      %v956 = vadd.f32 %v933, %v952
      %v957 = vadd.f32 %v934, %v952
      %v958 = vadd.f32 %v935, %v952
      %v959 = vadd.f32 %v936, %v952
      %v960 = vadd.f32 %v937, %v952
      %v961 = vadd.f32 %v938, %v952
      %v962 = vadd.f32 %v939, %v952
      %v963 = vadd.f32 %v940, %v952
      %v964 = vadd.f32 %v941, %v952
      %v965 = vadd.f32 %v942, %v952
      %v966 = vadd.f32 %v943, %v952
      %v967 = vadd.f32 %v944, %v952
      %v968 = vadd.f32 %v945, %v952
      %v969 = vadd.f32 %v946, %v952
      %v970 = vxor.u32 %v954, 2147483648
      %v971 = vxor.u32 %v955, 2147483648
      %v972 = vxor.u32 %v956, 2147483648
      %v973 = vxor.u32 %v957, 2147483648
      %v974 = vxor.u32 %v958, 2147483648
      %v975 = vxor.u32 %v959, 2147483648
      %v976 = vxor.u32 %v960, 2147483648
      %v977 = vxor.u32 %v961, 2147483648
      %v978 = vxor.u32 %v962, 2147483648
      %v979 = vxor.u32 %v963, 2147483648
      %v980 = vxor.u32 %v964, 2147483648
      %v981 = vxor.u32 %v965, 2147483648
      %v982 = vxor.u32 %v966, 2147483648
      %v983 = vxor.u32 %v967, 2147483648
      %v984 = vxor.u32 %v968, 2147483648
      %v985 = vxor.u32 %v969, 2147483648
      %v986 = vmul.f32 %v970, 1.442695
      %v987 = vpow.pop %v986
      %v988 = vmul.f32 %v971, 1.442695
      %v989 = vpow.pop %v988
      %v990 = vmul.f32 %v972, 1.442695
      %v991 = vpow.pop %v990
      %v992 = vmul.f32 %v973, 1.442695
      %v993 = vpow.pop %v992
      %v994 = vmul.f32 %v974, 1.442695
      %v995 = vpow.pop %v994
      %v996 = vmul.f32 %v975, 1.442695
      %v997 = vpow.pop %v996
      %v998 = vmul.f32 %v976, 1.442695
      %v999 = vpow.pop %v998
      %v1000 = vmul.f32 %v977, 1.442695
      %v1001 = vpow.pop %v1000
      %v1002 = vmul.f32 %v978, 1.442695
      %v1003 = vpow.pop %v1002
      %v1004 = vmul.f32 %v979, 1.442695
      %v1005 = vpow.pop %v1004
      %v1006 = vmul.f32 %v980, 1.442695
      %v1007 = vpow.pop %v1006
      %v1008 = vmul.f32 %v981, 1.442695
      %v1009 = vpow.pop %v1008
      %v1010 = vmul.f32 %v982, 1.442695
      %v1011 = vpow.pop %v1010
      %v1012 = vmul.f32 %v983, 1.442695
      %v1013 = vpow.pop %v1012
      %v1014 = vmul.f32 %v984, 1.442695
      %v1015 = vpow.pop %v1014
      %v1016 = vmul.f32 %v985, 1.442695
      %v1017 = vpow.pop %v1016
      %v1018 = vadd.f32 %v987, 1.0
      %v1019 = vadd.f32 %v989, 1.0
      %v1020 = vadd.f32 %v991, 1.0
      %v1021 = vadd.f32 %v993, 1.0
      %v1022 = vadd.f32 %v995, 1.0
      %v1023 = vadd.f32 %v997, 1.0
      %v1024 = vadd.f32 %v999, 1.0
      %v1025 = vadd.f32 %v1001, 1.0
      %v1026 = vadd.f32 %v1003, 1.0
      %v1027 = vadd.f32 %v1005, 1.0
      %v1028 = vadd.f32 %v1007, 1.0
      %v1029 = vadd.f32 %v1009, 1.0
      %v1030 = vadd.f32 %v1011, 1.0
      %v1031 = vadd.f32 %v1013, 1.0
      %v1032 = vadd.f32 %v1015, 1.0
      %v1033 = vadd.f32 %v1017, 1.0
      %v1034 = vrcp.pop %v1018
      %v1035 = vmul.f32 1.0, %v1034
      %v1036 = vrcp.pop %v1019
      %v1037 = vmul.f32 1.0, %v1036
      %v1038 = vrcp.pop %v1020
      %v1039 = vmul.f32 1.0, %v1038
      %v1040 = vrcp.pop %v1021
      %v1041 = vmul.f32 1.0, %v1040
      %v1042 = vrcp.pop %v1022
      %v1043 = vmul.f32 1.0, %v1042
      %v1044 = vrcp.pop %v1023
      %v1045 = vmul.f32 1.0, %v1044
      %v1046 = vrcp.pop %v1024
      %v1047 = vmul.f32 1.0, %v1046
      %v1048 = vrcp.pop %v1025
      %v1049 = vmul.f32 1.0, %v1048
      %v1050 = vrcp.pop %v1026
      %v1051 = vmul.f32 1.0, %v1050
      %v1052 = vrcp.pop %v1027
      %v1053 = vmul.f32 1.0, %v1052
      %v1054 = vrcp.pop %v1028
      %v1055 = vmul.f32 1.0, %v1054
      %v1056 = vrcp.pop %v1029
      %v1057 = vmul.f32 1.0, %v1056
      %v1058 = vrcp.pop %v1030
      %v1059 = vmul.f32 1.0, %v1058
      %v1060 = vrcp.pop %v1031
      %v1061 = vmul.f32 1.0, %v1060
      %v1062 = vrcp.pop %v1032
      %v1063 = vmul.f32 1.0, %v1062
      %v1064 = vrcp.pop %v1033
      %v1065 = vmul.f32 1.0, %v1064
      %v1066 = vmul.f32 %v954, %v1035
      %v1067 = vmul.f32 %v955, %v1037
      %v1068 = vmul.f32 %v956, %v1039
      %v1069 = vmul.f32 %v957, %v1041
      %v1070 = vmul.f32 %v958, %v1043
      %v1071 = vmul.f32 %v959, %v1045
      %v1072 = vmul.f32 %v960, %v1047
      %v1073 = vmul.f32 %v961, %v1049
      %v1074 = vmul.f32 %v962, %v1051
      %v1075 = vmul.f32 %v963, %v1053
      %v1076 = vmul.f32 %v964, %v1055
      %v1077 = vmul.f32 %v965, %v1057
      %v1078 = vmul.f32 %v966, %v1059
      %v1079 = vmul.f32 %v967, %v1061
      %v1080 = vmul.f32 %v968, %v1063
      %v1081 = vmul.f32 %v969, %v1065
      %v1082 = vld [vmem:[%s8] sm:$0xff]
      %v1083 = vld [vmem:[%s8 + $0x8] sm:$0xff]
      %v1084 = vld [vmem:[%s8 + $0x10] sm:$0xff]
      %v1085 = vld [vmem:[%s8 + $0x18] sm:$0xff]
      %v1086 = vld [vmem:[%s8 + $0x20] sm:$0xff]
      %v1087 = vld [vmem:[%s8 + $0x28] sm:$0xff]
      %v1088 = vld [vmem:[%s8 + $0x30] sm:$0xff]
      %v1089 = vld [vmem:[%s8 + $0x38] sm:$0xff]
      %v1090 = vld [vmem:[%s8 + $0x40] sm:$0xff]
      %v1091 = vld [vmem:[%s8 + $0x48] sm:$0xff]
      %v1092 = vld [vmem:[%s8 + $0x50] sm:$0xff]
      %v1093 = vld [vmem:[%s8 + $0x58] sm:$0xff]
      %v1094 = vld [vmem:[%s8 + $0x60] sm:$0xff]
      %v1095 = vld [vmem:[%s8 + $0x68] sm:$0xff]
      %v1096 = vld [vmem:[%s8 + $0x70] sm:$0xff]
      %v1097 = vld [vmem:[%s8 + $0x78] sm:$0xff]
      %v1098 = vld [vmem:[%s8 + $0x80] sm:$0xff]
      %v1099 = vld [vmem:[%s8 + $0x88] sm:$0xff]
      %v1100 = vld [vmem:[%s8 + $0x90] sm:$0xff]
      %v1101 = vld [vmem:[%s8 + $0x98] sm:$0xff]
      %v1102 = vld [vmem:[%s8 + $0xa0] sm:$0xff]
      %v1103 = vld [vmem:[%s8 + $0xa8] sm:$0xff]
      %v1104 = vld [vmem:[%s8 + $0xb0] sm:$0xff]
      %v1105 = vld [vmem:[%s8 + $0xb8] sm:$0xff]
      %v1106 = vld [vmem:[%s8 + $0xc0] sm:$0xff]
      %v1107 = vld [vmem:[%s8 + $0xc8] sm:$0xff]
      %v1108 = vld [vmem:[%s8 + $0xd0] sm:$0xff]
      %v1109 = vld [vmem:[%s8 + $0xd8] sm:$0xff]
      %v1110 = vld [vmem:[%s8 + $0xe0] sm:$0xff]
      %v1111 = vld [vmem:[%s8 + $0xe8] sm:$0xff]
      %v1112 = vld [vmem:[%s8 + $0xf0] sm:$0xff]
      %v1113 = vld [vmem:[%s8 + $0xf8] sm:$0xff]
      %1114 = vmatprep.subr.mxu0 0.0
      %1115 = vmatpush1.msra.mxu0 %v1082
      %1116 = vmatprep.subr.mxu0 0.0
      %1117 = vmatpush1.msra.mxu0 %v1083
      %1118 = vmatprep.subr.mxu0 0.0
      %1119 = vmatpush1.msra.mxu0 %v1084
      %1120 = vmatprep.subr.mxu0 0.0
      %1121 = vmatpush1.msra.mxu0 %v1085
      %1122 = vmatprep.subr.mxu0 0.0
      %1123 = vmatpush1.msra.mxu0 %v1086
      %1124 = vmatprep.subr.mxu0 0.0
      %1125 = vmatpush1.msra.mxu0 %v1087
      %1126 = vmatprep.subr.mxu0 0.0
      %1127 = vmatpush1.msra.mxu0 %v1088
      %1128 = vmatprep.subr.mxu0 0.0
      %1129 = vmatpush1.msra.mxu0 %v1089
      %1130 = vmatprep.subr.mxu0 0.0
      %1131 = vmatpush1.msra.mxu0 %v1090
      %1132 = vmatprep.subr.mxu0 0.0
      %1133 = vmatpush1.msra.mxu0 %v1091
      %1134 = vmatprep.subr.mxu0 0.0
      %1135 = vmatpush1.msra.mxu0 %v1092
      %1136 = vmatprep.subr.mxu0 0.0
      %1137 = vmatpush1.msra.mxu0 %v1093
      %1138 = vmatprep.subr.mxu0 0.0
      %1139 = vmatpush1.msra.mxu0 %v1094
      %1140 = vmatprep.subr.mxu0 0.0
      %1141 = vmatpush1.msra.mxu0 %v1095
      %1142 = vmatprep.subr.mxu0 0.0
      %1143 = vmatpush1.msra.mxu0 %v1096
      %1144 = vmatprep.subr.mxu0 0.0
      %1145 = vmatpush1.msra.mxu0 %v1097
      %1146 = vmatprep.subr.mxu0 0.0
      %1147 = vmatpush1.msra.mxu0 %v1098
      %1148 = vmatprep.subr.mxu0 0.0
      %1149 = vmatpush1.msra.mxu0 %v1099
      %1150 = vmatprep.subr.mxu0 0.0
      %1151 = vmatpush1.msra.mxu0 %v1100
      %1152 = vmatprep.subr.mxu0 0.0
      %1153 = vmatpush1.msra.mxu0 %v1101
      %1154 = vmatprep.subr.mxu0 0.0
      %1155 = vmatpush1.msra.mxu0 %v1102
      %1156 = vmatprep.subr.mxu0 0.0
      %1157 = vmatpush1.msra.mxu0 %v1103
      %1158 = vmatprep.subr.mxu0 0.0
      %1159 = vmatpush1.msra.mxu0 %v1104
      %1160 = vmatprep.subr.mxu0 0.0
      %1161 = vmatpush1.msra.mxu0 %v1105
      %1162 = vmatprep.subr.mxu0 0.0
      %1163 = vmatpush1.msra.mxu0 %v1106
      %1164 = vmatprep.subr.mxu0 0.0
      %1165 = vmatpush1.msra.mxu0 %v1107
      %1166 = vmatprep.subr.mxu0 0.0
      %1167 = vmatpush1.msra.mxu0 %v1108
      %1168 = vmatprep.subr.mxu0 0.0
      %1169 = vmatpush1.msra.mxu0 %v1109
      %1170 = vmatprep.subr.mxu0 0.0
      %1171 = vmatpush1.msra.mxu0 %v1110
      %1172 = vmatprep.subr.mxu0 0.0
      %1173 = vmatpush1.msra.mxu0 %v1111
      %1174 = vmatprep.subr.mxu0 0.0
      %1175 = vmatpush1.msra.mxu0 %v1112
      %1176 = vmatprep.subr.mxu0 0.0
      %1177 = vmatpush1.msra.mxu0 %v1113
      %1178 = vmatprep.mubr.f32.mxu0 %v1066
      %1179 = vmatmul.mubr.f32.gmra.mrb[0].mxu0 %v908
      %v1180 = vpop.f32.mrb[0].mxu0
      %v1181 = vadd.f32 0.0, %v1180
      %v1182 = vpop.f32.mrb[0].mxu0
      %1183 = vmatprep.mubr.f32.mxu0 %v1067
      %1184 = vmatmul.mubr.f32.gmra.mrb[0].mxu0 %v909
      %v1185 = vpop.f32.mrb[0].mxu0
      %v1186 = vadd.f32 0.0, %v1185
      %v1187 = vpop.f32.mrb[0].mxu0
      %1188 = vmatprep.mubr.f32.mxu0 %v1068
      %1189 = vmatmul.mubr.f32.gmra.mrb[0].mxu0 %v910
      %v1190 = vpop.f32.mrb[0].mxu0
      %v1191 = vadd.f32 0.0, %v1190
      %v1192 = vpop.f32.mrb[0].mxu0
      %1193 = vmatprep.mubr.f32.mxu0 %v1069
      %1194 = vmatmul.mubr.f32.gmra.mrb[0].mxu0 %v911
      %v1195 = vpop.f32.mrb[0].mxu0
      %v1196 = vadd.f32 0.0, %v1195
      %v1197 = vpop.f32.mrb[0].mxu0
      %1198 = vmatprep.mubr.f32.mxu0 %v1070
      %1199 = vmatmul.mubr.f32.gmra.mrb[0].mxu0 %v912
      %v1200 = vpop.f32.mrb[0].mxu0
      %v1201 = vadd.f32 0.0, %v1200
      %v1202 = vpop.f32.mrb[0].mxu0
      %1203 = vmatprep.mubr.f32.mxu0 %v1071
      %1204 = vmatmul.mubr.f32.gmra.mrb[0].mxu0 %v913
      %v1205 = vpop.f32.mrb[0].mxu0
      %v1206 = vadd.f32 0.0, %v1205
      %v1207 = vpop.f32.mrb[0].mxu0
      %1208 = vmatprep.mubr.f32.mxu0 %v1072
      %1209 = vmatmul.mubr.f32.gmra.mrb[0].mxu0 %v914
      %v1210 = vpop.f32.mrb[0].mxu0
      %v1211 = vadd.f32 0.0, %v1210
      %v1212 = vpop.f32.mrb[0].mxu0
      %1213 = vmatprep.mubr.f32.mxu0 %v1073
      %1214 = vmatmul.mubr.f32.gmra.mrb[0].mxu0 %v915
      %v1215 = vpop.f32.mrb[0].mxu0
      %v1216 = vadd.f32 0.0, %v1215
      %v1217 = vpop.f32.mrb[0].mxu0
      %1218 = vmatprep.mubr.f32.mxu0 %v1074
      %1219 = vmatmul.mubr.f32.gmra.mrb[0].mxu0 %v916
      %v1220 = vpop.f32.mrb[0].mxu0
      %v1221 = vadd.f32 0.0, %v1220
      %v1222 = vpop.f32.mrb[0].mxu0
      %1223 = vmatprep.mubr.f32.mxu0 %v1075
      %1224 = vmatmul.mubr.f32.gmra.mrb[0].mxu0 %v917
      %v1225 = vpop.f32.mrb[0].mxu0
      %v1226 = vadd.f32 0.0, %v1225
      %v1227 = vpop.f32.mrb[0].mxu0
      %1228 = vmatprep.mubr.f32.mxu0 %v1076
      %1229 = vmatmul.mubr.f32.gmra.mrb[0].mxu0 %v918
      %v1230 = vpop.f32.mrb[0].mxu0
      %v1231 = vadd.f32 0.0, %v1230
      %v1232 = vpop.f32.mrb[0].mxu0
      %1233 = vmatprep.mubr.f32.mxu0 %v1077
      %1234 = vmatmul.mubr.f32.gmra.mrb[0].mxu0 %v919
      %v1235 = vpop.f32.mrb[0].mxu0
      %v1236 = vadd.f32 0.0, %v1235
      %v1237 = vpop.f32.mrb[0].mxu0
      %1238 = vmatprep.mubr.f32.mxu0 %v1078
      %1239 = vmatmul.mubr.f32.gmra.mrb[0].mxu0 %v920
      %v1240 = vpop.f32.mrb[0].mxu0
      %v1241 = vadd.f32 0.0, %v1240
      %v1242 = vpop.f32.mrb[0].mxu0
      %1243 = vmatprep.mubr.f32.mxu0 %v1079
      %1244 = vmatmul.mubr.f32.gmra.mrb[0].mxu0 %v921
      %v1245 = vpop.f32.mrb[0].mxu0
      %v1246 = vadd.f32 0.0, %v1245
      %v1247 = vpop.f32.mrb[0].mxu0
      %1248 = vmatprep.mubr.f32.mxu0 %v1080
      %1249 = vmatmul.mubr.f32.gmra.mrb[0].mxu0 %v922
      %v1250 = vpop.f32.mrb[0].mxu0
      %v1251 = vadd.f32 0.0, %v1250
      %v1252 = vpop.f32.mrb[0].mxu0
      %1253 = vmatprep.mubr.f32.mxu0 %v1081
      %1254 = vmatmul.mubr.f32.gmra.mrb[0].mxu0 %v923
      %v1255 = vpop.f32.mrb[0].mxu0
      %v1256 = vadd.f32 0.0, %v1255
      %v1257 = vpop.f32.mrb[0].mxu0
      %1258 = vdwg.mxu0
      %v1259 = vld [vmem:[%s9] sm:$0x1]
      %v1261 = vlaneseq
      %v1262 = vshrl.u32 %v1261, 7
      %v1263 = vsub.s32 0, %v1262
      %v1264 = vrot.slane %v1259, %v1263
      %v1266 = vmul.f32 %v1181, %v1264
      %v1267 = vmul.f32 %v1186, %v1264
      %v1268 = vmul.f32 %v1191, %v1264
      %v1269 = vmul.f32 %v1196, %v1264
      %v1270 = vmul.f32 %v1201, %v1264
      %v1271 = vmul.f32 %v1206, %v1264
      %v1272 = vmul.f32 %v1211, %v1264
      %v1273 = vmul.f32 %v1216, %v1264
      %v1274 = vmul.f32 %v1221, %v1264
      %v1275 = vmul.f32 %v1226, %v1264
      %v1276 = vmul.f32 %v1231, %v1264
      %v1277 = vmul.f32 %v1236, %v1264
      %v1278 = vmul.f32 %v1241, %v1264
      %v1279 = vmul.f32 %v1246, %v1264
      %v1280 = vmul.f32 %v1251, %v1264
      %v1281 = vmul.f32 %v1256, %v1264
      %v1282 = vld [vmem:[%s10] sm:$0x1]
      %v1284 = vlaneseq
      %v1285 = vshrl.u32 %v1284, 7
      %v1286 = vsub.s32 0, %v1285
      %v1287 = vrot.slane %v1282, %v1286
      %v1289 = vadd.f32 %v1266, %v1287
      %v1290 = vadd.f32 %v1267, %v1287
      %v1291 = vadd.f32 %v1268, %v1287
      %v1292 = vadd.f32 %v1269, %v1287
      %v1293 = vadd.f32 %v1270, %v1287
      %v1294 = vadd.f32 %v1271, %v1287
      %v1295 = vadd.f32 %v1272, %v1287
      %v1296 = vadd.f32 %v1273, %v1287
      %v1297 = vadd.f32 %v1274, %v1287
      %v1298 = vadd.f32 %v1275, %v1287
      %v1299 = vadd.f32 %v1276, %v1287
      %v1300 = vadd.f32 %v1277, %v1287
      %v1301 = vadd.f32 %v1278, %v1287
      %v1302 = vadd.f32 %v1279, %v1287
      %v1303 = vadd.f32 %v1280, %v1287
      %v1304 = vadd.f32 %v1281, %v1287
      %v1305 = vxor.u32 %v1289, 2147483648
      %v1306 = vxor.u32 %v1290, 2147483648
      %v1307 = vxor.u32 %v1291, 2147483648
      %v1308 = vxor.u32 %v1292, 2147483648
      %v1309 = vxor.u32 %v1293, 2147483648
      %v1310 = vxor.u32 %v1294, 2147483648
      %v1311 = vxor.u32 %v1295, 2147483648
      %v1312 = vxor.u32 %v1296, 2147483648
      %v1313 = vxor.u32 %v1297, 2147483648
      %v1314 = vxor.u32 %v1298, 2147483648
      %v1315 = vxor.u32 %v1299, 2147483648
      %v1316 = vxor.u32 %v1300, 2147483648
      %v1317 = vxor.u32 %v1301, 2147483648
      %v1318 = vxor.u32 %v1302, 2147483648
      %v1319 = vxor.u32 %v1303, 2147483648
      %v1320 = vxor.u32 %v1304, 2147483648
      %v1321 = vmul.f32 %v1305, 1.442695
      %v1322 = vpow.pop %v1321
      %v1323 = vmul.f32 %v1306, 1.442695
      %v1324 = vpow.pop %v1323
      %v1325 = vmul.f32 %v1307, 1.442695
      %v1326 = vpow.pop %v1325
      %v1327 = vmul.f32 %v1308, 1.442695
      %v1328 = vpow.pop %v1327
      %v1329 = vmul.f32 %v1309, 1.442695
      %v1330 = vpow.pop %v1329
      %v1331 = vmul.f32 %v1310, 1.442695
      %v1332 = vpow.pop %v1331
      %v1333 = vmul.f32 %v1311, 1.442695
      %v1334 = vpow.pop %v1333
      %v1335 = vmul.f32 %v1312, 1.442695
      %v1336 = vpow.pop %v1335
      %v1337 = vmul.f32 %v1313, 1.442695
      %v1338 = vpow.pop %v1337
      %v1339 = vmul.f32 %v1314, 1.442695
      %v1340 = vpow.pop %v1339
      %v1341 = vmul.f32 %v1315, 1.442695
      %v1342 = vpow.pop %v1341
      %v1343 = vmul.f32 %v1316, 1.442695
      %v1344 = vpow.pop %v1343
      %v1345 = vmul.f32 %v1317, 1.442695
      %v1346 = vpow.pop %v1345
      %v1347 = vmul.f32 %v1318, 1.442695
      %v1348 = vpow.pop %v1347
      %v1349 = vmul.f32 %v1319, 1.442695
      %v1350 = vpow.pop %v1349
      %v1351 = vmul.f32 %v1320, 1.442695
      %v1352 = vpow.pop %v1351
      %v1353 = vadd.f32 %v1322, 1.0
      %v1354 = vadd.f32 %v1324, 1.0
      %v1355 = vadd.f32 %v1326, 1.0
      %v1356 = vadd.f32 %v1328, 1.0
      %v1357 = vadd.f32 %v1330, 1.0
      %v1358 = vadd.f32 %v1332, 1.0
      %v1359 = vadd.f32 %v1334, 1.0
      %v1360 = vadd.f32 %v1336, 1.0
      %v1361 = vadd.f32 %v1338, 1.0
      %v1362 = vadd.f32 %v1340, 1.0
      %v1363 = vadd.f32 %v1342, 1.0
      %v1364 = vadd.f32 %v1344, 1.0
      %v1365 = vadd.f32 %v1346, 1.0
      %v1366 = vadd.f32 %v1348, 1.0
      %v1367 = vadd.f32 %v1350, 1.0
      %v1368 = vadd.f32 %v1352, 1.0
      %v1369 = vrcp.pop %v1353
      %v1370 = vmul.f32 1.0, %v1369
      %v1371 = vrcp.pop %v1354
      %v1372 = vmul.f32 1.0, %v1371
      %v1373 = vrcp.pop %v1355
      %v1374 = vmul.f32 1.0, %v1373
      %v1375 = vrcp.pop %v1356
      %v1376 = vmul.f32 1.0, %v1375
      %v1377 = vrcp.pop %v1357
      %v1378 = vmul.f32 1.0, %v1377
      %v1379 = vrcp.pop %v1358
      %v1380 = vmul.f32 1.0, %v1379
      %v1381 = vrcp.pop %v1359
      %v1382 = vmul.f32 1.0, %v1381
      %v1383 = vrcp.pop %v1360
      %v1384 = vmul.f32 1.0, %v1383
      %v1385 = vrcp.pop %v1361
      %v1386 = vmul.f32 1.0, %v1385
      %v1387 = vrcp.pop %v1362
      %v1388 = vmul.f32 1.0, %v1387
      %v1389 = vrcp.pop %v1363
      %v1390 = vmul.f32 1.0, %v1389
      %v1391 = vrcp.pop %v1364
      %v1392 = vmul.f32 1.0, %v1391
      %v1393 = vrcp.pop %v1365
      %v1394 = vmul.f32 1.0, %v1393
      %v1395 = vrcp.pop %v1366
      %v1396 = vmul.f32 1.0, %v1395
      %v1397 = vrcp.pop %v1367
      %v1398 = vmul.f32 1.0, %v1397
      %v1399 = vrcp.pop %v1368
      %v1400 = vmul.f32 1.0, %v1399
      %v1401 = vmul.f32 %v1289, %v1370
      %v1402 = vmul.f32 %v1290, %v1372
      %v1403 = vmul.f32 %v1291, %v1374
      %v1404 = vmul.f32 %v1292, %v1376
      %v1405 = vmul.f32 %v1293, %v1378
      %v1406 = vmul.f32 %v1294, %v1380
      %v1407 = vmul.f32 %v1295, %v1382
      %v1408 = vmul.f32 %v1296, %v1384
      %v1409 = vmul.f32 %v1297, %v1386
      %v1410 = vmul.f32 %v1298, %v1388
      %v1411 = vmul.f32 %v1299, %v1390
      %v1412 = vmul.f32 %v1300, %v1392
      %v1413 = vmul.f32 %v1301, %v1394
      %v1414 = vmul.f32 %v1302, %v1396
      %v1415 = vmul.f32 %v1303, %v1398
      %v1416 = vmul.f32 %v1304, %v1400
      %1417 = vst [vmem:[%s410] sm:$0xff] %v1401
      %1418 = vst [vmem:[%s410 + $0x8] sm:$0xff] %v1402
      %1419 = vst [vmem:[%s410 + $0x10] sm:$0xff] %v1403
      %1420 = vst [vmem:[%s410 + $0x18] sm:$0xff] %v1404
      %1421 = vst [vmem:[%s410 + $0x20] sm:$0xff] %v1405
      %1422 = vst [vmem:[%s410 + $0x28] sm:$0xff] %v1406
      %1423 = vst [vmem:[%s410 + $0x30] sm:$0xff] %v1407
      %1424 = vst [vmem:[%s410 + $0x38] sm:$0xff] %v1408
      %1425 = vst [vmem:[%s410 + $0x40] sm:$0xff] %v1409
      %1426 = vst [vmem:[%s410 + $0x48] sm:$0xff] %v1410
      %1427 = vst [vmem:[%s410 + $0x50] sm:$0xff] %v1411
      %1428 = vst [vmem:[%s410 + $0x58] sm:$0xff] %v1412
      %1429 = vst [vmem:[%s410 + $0x60] sm:$0xff] %v1413
      %1430 = vst [vmem:[%s410 + $0x68] sm:$0xff] %v1414
      %1431 = vst [vmem:[%s410 + $0x70] sm:$0xff] %v1415
      %1432 = vst [vmem:[%s410 + $0x78] sm:$0xff] %v1416
      %s1433 = smul.u32 16, %s22
      %p1434 = scmp.lt.s32.totalorder %s1433, 63
      %s1435 = scalar_select %p1434, %s1433, 63
      %s1436 = smul.addr %s1435, 8
      %s1437 = scalar_lea.vmem %s11, %s1436
      // Predicated region
      $region65: #{bottleneck_csp_forward.7} parent=63 // pred_check
        %p1438 = pneg %p281
      $region66: #{bottleneck_csp_forward.7} parent=63 // pred_check_branch
        %1440 = sbr.rel (%p1438) target = $region68
      $region67: #{bottleneck_csp_forward.7} parent=63 // pred_region
        %s1441 = smul.u32 16, %s22
      $region68: #{bottleneck_csp_forward.7} parent=63 // pred_fallthru
        _
    $region64: #{bottleneck_csp_forward.7} parent=5 // pred_fallthru
      _
    %p1442 = scmp.le.s32.totalorder 2, %s17
    // Predicated region
    $region69: #{bottleneck_csp_forward.7} parent=5 // pred_check
      %p1443 = pneg %p1442
    $region70: #{bottleneck_csp_forward.7} parent=5 // pred_check_branch
      %1445 = sbr.rel (%p1443) target = $region72
    $region71: #{bottleneck_csp_forward.7} parent=5 // pred_region
      %s1446 = ssub.s32 %s17, 2
      // Predicated region
      $region73: #{bottleneck_csp_forward.7} parent=71 // pred_check
        %p1447 = pneg %p287
      $region74: #{bottleneck_csp_forward.7} parent=71 // pred_check_branch
        %1449 = sbr.rel (%p1447) target = $region76
      $region75: #{bottleneck_csp_forward.7} parent=71 // pred_region
        %s1450 = smul.u32 16, %s23
        %p1451 = scmp.lt.s32.totalorder %s1450, 63
        %s1452 = scalar_select %p1451, %s1450, 63
        %s1453 = smul.addr %s1452, 8
        %s1454 = scalar_lea.vmem %s11, %s1453
      $region76: #{bottleneck_csp_forward.7} parent=71 // pred_fallthru
        _
    $region72: #{bottleneck_csp_forward.7} parent=5 // pred_fallthru
      _
  $region6: #{bottleneck_csp_forward.7} parent=0 // loop_footer
    %s21 = sadd.s32 1, %s17
  $region7: #{bottleneck_csp_forward.7} parent=0 // loop_footer_branch
    %16 = sbr.rel target = $region3
  $region8: #{bottleneck_csp_forward.7} parent=0 // loop_exit
    _

// kernel: bottleneck_csp_forward.5
$region0: #{bottleneck_csp_forward.5}
  #allocation0 [shape = 'u32[]', space=smem, size = 0x4, offset = 0x4, fixed_abs, tag = 'smem constant byte address 0x4 - core index']
  #allocation1 [shape = 'u32[144,128]{1,0:T(1,128)}', space=vmem, size = 0x12000, scoped, tag = 'internal scratch']
  #allocation2 [shape = 'f32[10,16,128]{2,1,0:T(8,128)}', space=vmem, size = 0x14000, scoped, tag = 'scratch operand']
  #allocation3 [shape = 'f32[192,128]{1,0:T(8,128)}', space=vmem, size = 0x18000, scoped, tag = 'scratch operand']
  #allocation5 [shape = 's32[]', space=sflag, size = 0x4, offset = 0, fixed_abs, tag = 'sflag constant byte address 0x0 - dummy sync flag']
  #allocation7 [shape = 's32[]', space=sflag, size = 0x4, offset = 0, fixed_abs, tag = 'sflag constant byte address 0x0 - dummy sync flag']
  #allocation9 [shape = 's32[]', space=sflag, size = 0x4, offset = 0, fixed_abs, tag = 'sflag constant byte address 0x0 - dummy sync flag']
  %s0 = inlined_call_operand.vmem [shape: f32[2,16,16,128], index: 0, kind: input, shape index: {}]
  %s1 = inlined_call_operand.vmem [shape: f32[128,128], index: 1, kind: input, shape index: {}]
  %s2 = inlined_call_operand.vmem [shape: f32[1,128], index: 2, kind: input, shape index: {}]
  %s3 = inlined_call_operand.vmem [shape: f32[1,128], index: 3, kind: input, shape index: {}]
  %s4 = inlined_call_operand.vmem [shape: f32[3,3,128,128], index: 4, kind: input, shape index: {}]
  %s5 = inlined_call_operand.vmem [shape: f32[1,128], index: 5, kind: input, shape index: {}]
  %s6 = inlined_call_operand.vmem [shape: f32[1,128], index: 6, kind: input, shape index: {}]
  %s7 = inlined_call_operand.vmem [shape: f32[2,16,16,128], index: 7, kind: output, shape index: {}]
  %s8 = sld [smem:[#allocation0]]
  $region170: #{bottleneck_csp_forward.5} parent=0
    _
  %s10 = ssub.s32 1, %s8
  %s11 = scalar_select 0, %s10, %s8
  loop: start=0, step=1, limit=6
  $region2: #{bottleneck_csp_forward.5} parent=0 // loop_pre_header
    _
  $region3: #{bottleneck_csp_forward.5} parent=0 // loop_header
    %s13 = sphi 0, %s17
    %p14 = scmp.ge.s32.totalorder %s13, 6
    %s20 = sphi 0, %s32
    %s21 = sphi 0, %s28
    %s22 = sphi 0, %s20
    %s23 = sphi 0, %s21
    %s24 = sphi 0, %s22
    %s25 = sphi 0, %s23
    %s33 = sphi 0, %s33
    %s35 = sphi 0, %s33
    %s36 = sphi 0, %s35
    %s50 = sphi 0, %s36
    %s54 = sphi 0, %s54
    %s56 = sphi 0, %s54
    %s57 = sphi 0, %s56
    %s71 = sphi 0, %s57
    %s75 = sphi 0, %s75
    %s77 = sphi 0, %s75
    %s78 = sphi 0, %s77
    %s92 = sphi 0, %s78
    %s96 = sphi 0, %s96
    %s98 = sphi 0, %s96
    %s99 = sphi 0, %s98
    %s113 = sphi 0, %s99
    %s117 = sphi 0, %s117
    %s119 = sphi 0, %s117
    %s120 = sphi 0, %s119
    %s134 = sphi 0, %s120
    %s138 = sphi 0, %s138
    %s140 = sphi 0, %s138
    %s141 = sphi 0, %s140
    %s155 = sphi 0, %s141
    %s163 = sphi 0, %s165
    %s166 = sphi 0, %s163
    %s167 = sphi 0, %s166
    %s183 = sphi 0, %s167
  $region4: #{bottleneck_csp_forward.5} parent=0 // loop_header_branch
    %16 = sbr.rel (%p14) target = $region8
  $region5: #{bottleneck_csp_forward.5} parent=0 // loop_body
    %s18 = ssub.s32 %s13, 1
    %s19 = ssub.s32 %s13, 2
    %s26 = sadd.s32 1, %s21
    %p27 = scmp.ge.s32.totalorder %s26, 2
    %s28 = scalar_select %p27, 0, %s26
    %s29 = sadd.s32 1, %s20
    %s30 = scalar_select %p27, %s29, %s20
    %p31 = scmp.ge.s32.totalorder %s30, 2
    %s32 = scalar_select %p31, 0, %s30
    %s34 = sadd.s32 %s33, 1
    %p37 = scmp.eq.s32.totalorder %s13, 3
    %p38 = scmp.ne.s32.totalorder %s33, %s35
    %p39 = scmp.eq.s32.totalorder %s13, 0
    %p40 = por %p38, %p39
    %p41 = scmp.ne.s32.totalorder %s33, %s35
    %p42 = scmp.eq.s32.totalorder %s18, 3
    %p43 = por %p41, %p42
    %p44 = scmp.ne.s32.totalorder %s35, %s36
    %p45 = scmp.eq.s32.totalorder %s18, 0
    %p46 = por %p44, %p45
    %p47 = scmp.ne.s32.totalorder %s35, %s36
    %p48 = scmp.eq.s32.totalorder %s19, 3
    %p49 = por %p47, %p48
    %p51 = scmp.ne.s32.totalorder %s36, %s50
    %p52 = scmp.eq.s32.totalorder %s19, 0
    %p53 = por %p51, %p52
    %s55 = sadd.s32 %s54, 1
    %p58 = scmp.eq.s32.totalorder %s13, 3
    %p59 = scmp.ne.s32.totalorder %s54, %s56
    %p60 = scmp.eq.s32.totalorder %s13, 0
    %p61 = por %p59, %p60
    %p62 = scmp.ne.s32.totalorder %s54, %s56
    %p63 = scmp.eq.s32.totalorder %s18, 3
    %p64 = por %p62, %p63
    %p65 = scmp.ne.s32.totalorder %s56, %s57
    %p66 = scmp.eq.s32.totalorder %s18, 0
    %p67 = por %p65, %p66
    %p68 = scmp.ne.s32.totalorder %s56, %s57
    %p69 = scmp.eq.s32.totalorder %s19, 3
    %p70 = por %p68, %p69
    %p72 = scmp.ne.s32.totalorder %s57, %s71
    %p73 = scmp.eq.s32.totalorder %s19, 0
    %p74 = por %p72, %p73
    %s76 = sadd.s32 %s75, 1
    %p79 = scmp.eq.s32.totalorder %s13, 3
    %p80 = scmp.ne.s32.totalorder %s75, %s77
    %p81 = scmp.eq.s32.totalorder %s13, 0
    %p82 = por %p80, %p81
    %p83 = scmp.ne.s32.totalorder %s75, %s77
    %p84 = scmp.eq.s32.totalorder %s18, 3
    %p85 = por %p83, %p84
    %p86 = scmp.ne.s32.totalorder %s77, %s78
    %p87 = scmp.eq.s32.totalorder %s18, 0
    %p88 = por %p86, %p87
    %p89 = scmp.ne.s32.totalorder %s77, %s78
    %p90 = scmp.eq.s32.totalorder %s19, 3
    %p91 = por %p89, %p90
    %p93 = scmp.ne.s32.totalorder %s78, %s92
    %p94 = scmp.eq.s32.totalorder %s19, 0
    %p95 = por %p93, %p94
    %s97 = sadd.s32 %s96, 1
    %p100 = scmp.eq.s32.totalorder %s13, 3
    %p101 = scmp.ne.s32.totalorder %s96, %s98
    %p102 = scmp.eq.s32.totalorder %s13, 0
    %p103 = por %p101, %p102
    %p104 = scmp.ne.s32.totalorder %s96, %s98
    %p105 = scmp.eq.s32.totalorder %s18, 3
    %p106 = por %p104, %p105
    %p107 = scmp.ne.s32.totalorder %s98, %s99
    %p108 = scmp.eq.s32.totalorder %s18, 0
    %p109 = por %p107, %p108
    %p110 = scmp.ne.s32.totalorder %s98, %s99
    %p111 = scmp.eq.s32.totalorder %s19, 3
    %p112 = por %p110, %p111
    %p114 = scmp.ne.s32.totalorder %s99, %s113
    %p115 = scmp.eq.s32.totalorder %s19, 0
    %p116 = por %p114, %p115
    %s118 = sadd.s32 %s117, 1
    %p121 = scmp.eq.s32.totalorder %s13, 3
    %p122 = scmp.ne.s32.totalorder %s117, %s119
    %p123 = scmp.eq.s32.totalorder %s13, 0
    %p124 = por %p122, %p123
    %p125 = scmp.ne.s32.totalorder %s117, %s119
    %p126 = scmp.eq.s32.totalorder %s18, 3
    %p127 = por %p125, %p126
    %p128 = scmp.ne.s32.totalorder %s119, %s120
    %p129 = scmp.eq.s32.totalorder %s18, 0
    %p130 = por %p128, %p129
    %p131 = scmp.ne.s32.totalorder %s119, %s120
    %p132 = scmp.eq.s32.totalorder %s19, 3
    %p133 = por %p131, %p132
    %p135 = scmp.ne.s32.totalorder %s120, %s134
    %p136 = scmp.eq.s32.totalorder %s19, 0
    %p137 = por %p135, %p136
    %s139 = sadd.s32 %s138, 1
    %p142 = scmp.eq.s32.totalorder %s13, 3
    %p143 = scmp.ne.s32.totalorder %s138, %s140
    %p144 = scmp.eq.s32.totalorder %s13, 0
    %p145 = por %p143, %p144
    %p146 = scmp.ne.s32.totalorder %s138, %s140
    %p147 = scmp.eq.s32.totalorder %s18, 3
    %p148 = por %p146, %p147
    %p149 = scmp.ne.s32.totalorder %s140, %s141
    %p150 = scmp.eq.s32.totalorder %s18, 0
    %p151 = por %p149, %p150
    %p152 = scmp.ne.s32.totalorder %s140, %s141
    %p153 = scmp.eq.s32.totalorder %s19, 3
    %p154 = por %p152, %p153
    %p156 = scmp.ne.s32.totalorder %s141, %s155
    %p157 = scmp.eq.s32.totalorder %s19, 0
    %p158 = por %p156, %p157
    %s159 = ssub.s32 %s20, %s32
    %s160 = ssub.s32 %s21, %s28
    %s161 = sor.u32 %s159, %s160
    %p162 = scmp.eq.s32.totalorder %s161, 0
    %s164 = sadd.s32 %s163, 1
    %s165 = scalar_select %p162, %s163, %s164
    %p168 = pneg %p162
    %p169 = scmp.eq.s32.totalorder %s13, 3
    %p170 = por %p168, %p169
    %p171 = scmp.ne.s32.totalorder %s163, %s166
    %p172 = scmp.eq.s32.totalorder %s13, 0
    %p173 = por %p171, %p172
    %p174 = scmp.ne.s32.totalorder %s163, %s166
    %p175 = scmp.eq.s32.totalorder %s18, 3
    %p176 = por %p174, %p175
    %p177 = scmp.ne.s32.totalorder %s166, %s167
    %p178 = scmp.eq.s32.totalorder %s18, 0
    %p179 = por %p177, %p178
    %p180 = scmp.ne.s32.totalorder %s166, %s167
    %p181 = scmp.eq.s32.totalorder %s19, 3
    %p182 = por %p180, %p181
    %p184 = scmp.ne.s32.totalorder %s167, %s183
    %p185 = scmp.eq.s32.totalorder %s19, 0
    %p186 = por %p184, %p185
    %p187 = scmp.le.s32.totalorder 1, %s13
    %p188 = scmp.lt.s32.totalorder %s13, 5
    %p189 = pnand %p187, %p188
    %p190 = pneg %p189
    // Predicated region
    $region9: #{bottleneck_csp_forward.5} parent=5 // pred_check
      _
    $region10: #{bottleneck_csp_forward.5} parent=5 // pred_check_branch
      %192 = sbr.rel (%p189) target = $region12
    $region11: #{bottleneck_csp_forward.5} parent=5 // pred_region
      %s193 = ssub.s32 %s13, 1
      // Predicated region
      $region13: #{bottleneck_csp_forward.5} parent=11 // pred_check
        %p194 = pneg %p46
      $region14: #{bottleneck_csp_forward.5} parent=11 // pred_check_branch
        %196 = sbr.rel (%p194) target = $region16
      $region15: #{bottleneck_csp_forward.5} parent=11 // pred_region
        _
      $region16: #{bottleneck_csp_forward.5} parent=11 // pred_fallthru
        _
      // Predicated region
      $region17: #{bottleneck_csp_forward.5} parent=11 // pred_check
        %p197 = pneg %p67
      $region18: #{bottleneck_csp_forward.5} parent=11 // pred_check_branch
        %199 = sbr.rel (%p197) target = $region20
      $region19: #{bottleneck_csp_forward.5} parent=11 // pred_region
        _
      $region20: #{bottleneck_csp_forward.5} parent=11 // pred_fallthru
        _
      // Predicated region
      $region21: #{bottleneck_csp_forward.5} parent=11 // pred_check
        %p200 = pneg %p88
      $region22: #{bottleneck_csp_forward.5} parent=11 // pred_check_branch
        %202 = sbr.rel (%p200) target = $region24
      $region23: #{bottleneck_csp_forward.5} parent=11 // pred_region
        _
      $region24: #{bottleneck_csp_forward.5} parent=11 // pred_fallthru
        _
      // Predicated region
      $region25: #{bottleneck_csp_forward.5} parent=11 // pred_check
        %p203 = pneg %p109
      $region26: #{bottleneck_csp_forward.5} parent=11 // pred_check_branch
        %205 = sbr.rel (%p203) target = $region28
      $region27: #{bottleneck_csp_forward.5} parent=11 // pred_region
        _
      $region28: #{bottleneck_csp_forward.5} parent=11 // pred_fallthru
        _
      // Predicated region
      $region29: #{bottleneck_csp_forward.5} parent=11 // pred_check
        %p206 = pneg %p130
      $region30: #{bottleneck_csp_forward.5} parent=11 // pred_check_branch
        %208 = sbr.rel (%p206) target = $region32
      $region31: #{bottleneck_csp_forward.5} parent=11 // pred_region
        _
      $region32: #{bottleneck_csp_forward.5} parent=11 // pred_fallthru
        _
      // Predicated region
      $region33: #{bottleneck_csp_forward.5} parent=11 // pred_check
        %p209 = pneg %p151
      $region34: #{bottleneck_csp_forward.5} parent=11 // pred_check_branch
        %211 = sbr.rel (%p209) target = $region36
      $region35: #{bottleneck_csp_forward.5} parent=11 // pred_region
        _
      $region36: #{bottleneck_csp_forward.5} parent=11 // pred_fallthru
        _
    $region12: #{bottleneck_csp_forward.5} parent=5 // pred_fallthru
      _
    %p212 = scmp.lt.s32.totalorder %s13, 4
    // Predicated region
    $region37: #{bottleneck_csp_forward.5} parent=5 // pred_check
      %p213 = pneg %p212
    $region38: #{bottleneck_csp_forward.5} parent=5 // pred_check_branch
      %215 = sbr.rel (%p213) target = $region40
    $region39: #{bottleneck_csp_forward.5} parent=5 // pred_region
      _
    $region40: #{bottleneck_csp_forward.5} parent=5 // pred_fallthru
      _
    %p216 = scmp.le.s32.totalorder 1, %s13
    %p217 = scmp.lt.s32.totalorder %s13, 5
    %p218 = pnand %p216, %p217
    %p219 = pneg %p218
    // Predicated region
    $region41: #{bottleneck_csp_forward.5} parent=5 // pred_check
      _
    $region42: #{bottleneck_csp_forward.5} parent=5 // pred_check_branch
      %221 = sbr.rel (%p218) target = $region44
    $region43: #{bottleneck_csp_forward.5} parent=5 // pred_region
      %s222 = ssub.s32 %s13, 1
      %p223 = pneg %p46
      %p224 = pneg %p43
      %p225 = pneg %p67
      %p226 = pneg %p64
      %p227 = pneg %p88
      %p228 = pneg %p85
      %p229 = pneg %p109
      %p230 = pneg %p106
      %p231 = pneg %p130
      %p232 = pneg %p127
      %p233 = pneg %p151
      %p234 = pneg %p148
      %p235 = pneg %p179
      %p236 = pneg %p176
      %s237 = smul.u32 8, %s23
      %p238 = scmp.lt.s32.totalorder %s22, 1
      %s239 = scalar_select %p238, %s22, 1
      %p240 = scmp.lt.s32.totalorder %s237, 15
      %s241 = scalar_select %p240, %s237, 15
      %s242 = smul.addr %s241, 2
      %s243 = smul.addr %s239, 32
      %s244 = sadd.s32 %s242, %s243
      %s245 = smul.addr %s244, 8
      %s246 = scalar_lea.vmem %s7, %s245
      %s247 = smul.u32 8, %s23
      %p248 = scmp.lt.s32.totalorder %s22, 1
      %s249 = scalar_select %p248, %s22, 1
      %p250 = scmp.lt.s32.totalorder %s247, 15
      %s251 = scalar_select %p250, %s247, 15
      %s252 = smul.addr %s251, 2
      %s253 = smul.addr %s249, 32
      %s254 = sadd.s32 %s252, %s253
      %s255 = smul.addr %s254, 8
      %s256 = scalar_lea.vmem %s7, %s255
      %s257 = smul.u32 8, %s23
      %s258 = smul.u32 %s23, 8
      $region45: #{bottleneck_csp_forward.5} parent=43
        #allocation4 [shape = 's32[1]{0}', space=sflag, size = 0x4, scoped, tag = 'scoped memory for bottleneck_csp_forward.5']
        %s259 = smul.u32 %s258, 16
        %s260 = smul.u32 %s22, 256
        %s261 = sadd.s32 %s259, %s260
        %s262 = scalar_lea.vmem %s0, %s261
        %s263 = scalar_lea.vmem [#allocation2], 16
        %p265 = scmp.lt.u32.totalorder 128, 8
        %p266 = pneg %p265
        // Predicated region
        $region46: #{bottleneck_csp_forward.5} parent=45 // pred_check
          _
        $region47: #{bottleneck_csp_forward.5} parent=45 // pred_check_branch
          %268 = sbr.rel (%p265) target = $region49
        $region48: #{bottleneck_csp_forward.5} parent=45 // pred_region
          %s283 = sand.u32 128, 7
          %p284 = scmp.eq.s32.totalorder %s283, 0
          // Predicated region
          $region61: #{bottleneck_csp_forward.5} parent=48 // pred_check
            %p285 = pneg %p284
          $region62: #{bottleneck_csp_forward.5} parent=48 // pred_check_branch
            %287 = sbr.rel (%p285) target = $region64
          $region63: #{bottleneck_csp_forward.5} parent=48 // pred_region
            loop: start=0, step=1, limit=1
            $region65: #{bottleneck_csp_forward.5} parent=63 // loop_pre_header
              _
            $region66: #{bottleneck_csp_forward.5} parent=63 // loop_header
              %s289 = sphi 0, %s293
              %p290 = scmp.ge.s32.totalorder %s289, 1
              %s294 = sphi %s262, %s262
              %s295 = sphi %s263, %s263
            $region67: #{bottleneck_csp_forward.5} parent=63 // loop_header_branch
              %292 = sbr.rel (%p290) target = $region71
            $region68: #{bottleneck_csp_forward.5} parent=63 // loop_body
              %v296 = vld [vmem:[%s294] sm:$0xff]
              %297 = vst [vmem:[%s295] sm:$0xff] %v296
              %v298 = vld [vmem:[%s294 + $0x8] sm:$0xff]
              %299 = vst [vmem:[%s295 + $0x8] sm:$0xff] %v298
              %v300 = vld [vmem:[%s294 + $0x10] sm:$0xff]
              %301 = vst [vmem:[%s295 + $0x10] sm:$0xff] %v300
              %v302 = vld [vmem:[%s294 + $0x18] sm:$0xff]
              %303 = vst [vmem:[%s295 + $0x18] sm:$0xff] %v302
              %v304 = vld [vmem:[%s294 + $0x20] sm:$0xff]
              %305 = vst [vmem:[%s295 + $0x20] sm:$0xff] %v304
              %v306 = vld [vmem:[%s294 + $0x28] sm:$0xff]
              %307 = vst [vmem:[%s295 + $0x28] sm:$0xff] %v306
              %v308 = vld [vmem:[%s294 + $0x30] sm:$0xff]
              %309 = vst [vmem:[%s295 + $0x30] sm:$0xff] %v308
              %v310 = vld [vmem:[%s294 + $0x38] sm:$0xff]
              %311 = vst [vmem:[%s295 + $0x38] sm:$0xff] %v310
              %v312 = vld [vmem:[%s294 + $0x40] sm:$0xff]
              %313 = vst [vmem:[%s295 + $0x40] sm:$0xff] %v312
              %v314 = vld [vmem:[%s294 + $0x48] sm:$0xff]
              %315 = vst [vmem:[%s295 + $0x48] sm:$0xff] %v314
              %v316 = vld [vmem:[%s294 + $0x50] sm:$0xff]
              %317 = vst [vmem:[%s295 + $0x50] sm:$0xff] %v316
              %v318 = vld [vmem:[%s294 + $0x58] sm:$0xff]
              %319 = vst [vmem:[%s295 + $0x58] sm:$0xff] %v318
              %v320 = vld [vmem:[%s294 + $0x60] sm:$0xff]
              %321 = vst [vmem:[%s295 + $0x60] sm:$0xff] %v320
              %v322 = vld [vmem:[%s294 + $0x68] sm:$0xff]
              %323 = vst [vmem:[%s295 + $0x68] sm:$0xff] %v322
              %v324 = vld [vmem:[%s294 + $0x70] sm:$0xff]
              %325 = vst [vmem:[%s295 + $0x70] sm:$0xff] %v324
              %v326 = vld [vmem:[%s294 + $0x78] sm:$0xff]
              %327 = vst [vmem:[%s295 + $0x78] sm:$0xff] %v326
            $region69: #{bottleneck_csp_forward.5} parent=63 // loop_footer
              %s293 = sadd.s32 1, %s289
            $region70: #{bottleneck_csp_forward.5} parent=63 // loop_footer_branch
              %288 = sbr.rel target = $region66
            $region71: #{bottleneck_csp_forward.5} parent=63 // loop_exit
              _
          $region64: #{bottleneck_csp_forward.5} parent=48 // pred_fallthru
            _
          %p328 = pneg %p284
          // Predicated region
          $region72: #{bottleneck_csp_forward.5} parent=48 // pred_check
            _
          $region73: #{bottleneck_csp_forward.5} parent=48 // pred_check_branch
            %330 = sbr.rel (%p284) target = $region75
          $region74: #{bottleneck_csp_forward.5} parent=48 // pred_region
            %s331 = sand.u32 128, 7
          $region75: #{bottleneck_csp_forward.5} parent=48 // pred_fallthru
            _
        $region49: #{bottleneck_csp_forward.5} parent=45 // pred_fallthru
          _
        // Predicated region
        $region50: #{bottleneck_csp_forward.5} parent=45 // pred_check
          %p269 = pneg %p265
        $region51: #{bottleneck_csp_forward.5} parent=45 // pred_check_branch
          %271 = sbr.rel (%p269) target = $region53
        $region52: #{bottleneck_csp_forward.5} parent=45 // pred_region
          %s272 = sshllo.u32 0, 128
          loop: start=0, step=1, limit=1
          $region54: #{bottleneck_csp_forward.5} parent=52 // loop_pre_header
            _
          $region55: #{bottleneck_csp_forward.5} parent=52 // loop_header
            %s274 = sphi 0, %s278
            %p275 = scmp.ge.s32.totalorder %s274, 1
            %s279 = sphi %s262, %s262
            %s280 = sphi %s263, %s263
          $region56: #{bottleneck_csp_forward.5} parent=52 // loop_header_branch
            %277 = sbr.rel (%p275) target = $region60
          $region57: #{bottleneck_csp_forward.5} parent=52 // loop_body
            %v281 = vld [vmem:[%s279] sm:%s272]
            %282 = vst [vmem:[%s280] sm:%s272] %v281
          $region58: #{bottleneck_csp_forward.5} parent=52 // loop_footer
            %s278 = sadd.s32 1, %s274
          $region59: #{bottleneck_csp_forward.5} parent=52 // loop_footer_branch
            %273 = sbr.rel target = $region55
          $region60: #{bottleneck_csp_forward.5} parent=52 // loop_exit
            _
        $region53: #{bottleneck_csp_forward.5} parent=45 // pred_fallthru
          _
        // Predicated region
        $region76: #{bottleneck_csp_forward.5} parent=45 // pred_check
          _
        $region77: #{bottleneck_csp_forward.5} parent=45 // pred_check_branch
          %334 = sbr.rel (0) target = $region79
        $region78: #{bottleneck_csp_forward.5} parent=45 // pred_region
          %335 = vsyncadd [#allocation4], 2048
        $region79: #{bottleneck_csp_forward.5} parent=45 // pred_fallthru
          _
        %s336 = smul.u32 8, 16
        %s337 = smul.u32 %s336, 1
        %s338 = sshll.u32 %s337, 4
        %339 = dma.done [#allocation4], %s338
      %p340 = scmp.gt.s32.totalorder %s23, 0
      // Predicated region
      $region80: #{bottleneck_csp_forward.5} parent=43 // pred_check
        %p341 = pneg %p340
      $region81: #{bottleneck_csp_forward.5} parent=43 // pred_check_branch
        %343 = sbr.rel (%p341) target = $region83
      $region82: #{bottleneck_csp_forward.5} parent=43 // pred_region
        %s344 = ssub.s32 %s258, 1
        $region84: #{bottleneck_csp_forward.5} parent=82
          #allocation6 [shape = 's32[1]{0}', space=sflag, size = 0x4, scoped, tag = 'scoped memory for bottleneck_csp_forward.5']
          %s345 = smul.u32 %s344, 16
          %s346 = smul.u32 %s22, 256
          %s347 = sadd.s32 %s345, %s346
          %s348 = scalar_lea.vmem %s0, %s347
          %p350 = scmp.lt.u32.totalorder 16, 8
          %p351 = pneg %p350
          // Predicated region
          $region85: #{bottleneck_csp_forward.5} parent=84 // pred_check
            _
          $region86: #{bottleneck_csp_forward.5} parent=84 // pred_check_branch
            %353 = sbr.rel (%p350) target = $region88
          $region87: #{bottleneck_csp_forward.5} parent=84 // pred_region
            %s368 = sand.u32 16, 7
            %p369 = scmp.eq.s32.totalorder %s368, 0
            // Predicated region
            $region100: #{bottleneck_csp_forward.5} parent=87 // pred_check
              %p370 = pneg %p369
            $region101: #{bottleneck_csp_forward.5} parent=87 // pred_check_branch
              %372 = sbr.rel (%p370) target = $region103
            $region102: #{bottleneck_csp_forward.5} parent=87 // pred_region
              loop: start=0, step=1, limit=1
              $region104: #{bottleneck_csp_forward.5} parent=102 // loop_pre_header
                _
              $region105: #{bottleneck_csp_forward.5} parent=102 // loop_header
                %s374 = sphi 0, %s378
                %p375 = scmp.ge.s32.totalorder %s374, 1
                %s379 = sphi %s348, %s348
                %s380 = sphi [#allocation2], [#allocation2]
              $region106: #{bottleneck_csp_forward.5} parent=102 // loop_header_branch
                %377 = sbr.rel (%p375) target = $region110
              $region107: #{bottleneck_csp_forward.5} parent=102 // loop_body
                %v381 = vld [vmem:[%s379] sm:$0xff]
                %382 = vst [vmem:[%s380] sm:$0xff] %v381
                %v383 = vld [vmem:[%s379 + $0x8] sm:$0xff]
                %384 = vst [vmem:[%s380 + $0x8] sm:$0xff] %v383
              $region108: #{bottleneck_csp_forward.5} parent=102 // loop_footer
                %s378 = sadd.s32 1, %s374
              $region109: #{bottleneck_csp_forward.5} parent=102 // loop_footer_branch
                %373 = sbr.rel target = $region105
              $region110: #{bottleneck_csp_forward.5} parent=102 // loop_exit
                _
            $region103: #{bottleneck_csp_forward.5} parent=87 // pred_fallthru
              _
            %p385 = pneg %p369
            // Predicated region
            $region111: #{bottleneck_csp_forward.5} parent=87 // pred_check
              _
            $region112: #{bottleneck_csp_forward.5} parent=87 // pred_check_branch
              %387 = sbr.rel (%p369) target = $region114
            $region113: #{bottleneck_csp_forward.5} parent=87 // pred_region
              %s388 = sand.u32 16, 7
            $region114: #{bottleneck_csp_forward.5} parent=87 // pred_fallthru
              _
          $region88: #{bottleneck_csp_forward.5} parent=84 // pred_fallthru
            _
          // Predicated region
          $region89: #{bottleneck_csp_forward.5} parent=84 // pred_check
            %p354 = pneg %p350
          $region90: #{bottleneck_csp_forward.5} parent=84 // pred_check_branch
            %356 = sbr.rel (%p354) target = $region92
          $region91: #{bottleneck_csp_forward.5} parent=84 // pred_region
            %s357 = sshllo.u32 0, 16
            loop: start=0, step=1, limit=1
            $region93: #{bottleneck_csp_forward.5} parent=91 // loop_pre_header
              _
            $region94: #{bottleneck_csp_forward.5} parent=91 // loop_header
              %s359 = sphi 0, %s363
              %p360 = scmp.ge.s32.totalorder %s359, 1
              %s364 = sphi %s348, %s348
              %s365 = sphi [#allocation2], [#allocation2]
            $region95: #{bottleneck_csp_forward.5} parent=91 // loop_header_branch
              %362 = sbr.rel (%p360) target = $region99
            $region96: #{bottleneck_csp_forward.5} parent=91 // loop_body
              %v366 = vld [vmem:[%s364] sm:%s357]
              %367 = vst [vmem:[%s365] sm:%s357] %v366
            $region97: #{bottleneck_csp_forward.5} parent=91 // loop_footer
              %s363 = sadd.s32 1, %s359
            $region98: #{bottleneck_csp_forward.5} parent=91 // loop_footer_branch
              %358 = sbr.rel target = $region94
            $region99: #{bottleneck_csp_forward.5} parent=91 // loop_exit
              _
          $region92: #{bottleneck_csp_forward.5} parent=84 // pred_fallthru
            _
          // Predicated region
          $region115: #{bottleneck_csp_forward.5} parent=84 // pred_check
            _
          $region116: #{bottleneck_csp_forward.5} parent=84 // pred_check_branch
            %391 = sbr.rel (0) target = $region118
          $region117: #{bottleneck_csp_forward.5} parent=84 // pred_region
            %392 = vsyncadd [#allocation6], 256
          $region118: #{bottleneck_csp_forward.5} parent=84 // pred_fallthru
            _
          %s393 = smul.u32 1, 16
          %s394 = smul.u32 %s393, 1
          %s395 = sshll.u32 %s394, 4
          %396 = dma.done [#allocation6], %s395
      $region83: #{bottleneck_csp_forward.5} parent=43 // pred_fallthru
        _
      %p397 = scmp.lt.s32.totalorder %s23, 1
      // Predicated region
      $region119: #{bottleneck_csp_forward.5} parent=43 // pred_check
        %p398 = pneg %p397
      $region120: #{bottleneck_csp_forward.5} parent=43 // pred_check_branch
        %400 = sbr.rel (%p398) target = $region122
      $region121: #{bottleneck_csp_forward.5} parent=43 // pred_region
        %s401 = sadd.s32 %s258, 8
        $region123: #{bottleneck_csp_forward.5} parent=121
          #allocation8 [shape = 's32[1]{0}', space=sflag, size = 0x4, scoped, tag = 'scoped memory for bottleneck_csp_forward.5']
          %s402 = smul.u32 %s401, 16
          %s403 = smul.u32 %s22, 256
          %s404 = sadd.s32 %s402, %s403
          %s405 = scalar_lea.vmem %s0, %s404
          %s406 = scalar_lea.vmem [#allocation2], 144
          %p408 = scmp.lt.u32.totalorder 16, 8
          %p409 = pneg %p408
          // Predicated region
          $region124: #{bottleneck_csp_forward.5} parent=123 // pred_check
            _
          $region125: #{bottleneck_csp_forward.5} parent=123 // pred_check_branch
            %411 = sbr.rel (%p408) target = $region127
          $region126: #{bottleneck_csp_forward.5} parent=123 // pred_region
            %s426 = sand.u32 16, 7
            %p427 = scmp.eq.s32.totalorder %s426, 0
            // Predicated region
            $region139: #{bottleneck_csp_forward.5} parent=126 // pred_check
              %p428 = pneg %p427
            $region140: #{bottleneck_csp_forward.5} parent=126 // pred_check_branch
              %430 = sbr.rel (%p428) target = $region142
            $region141: #{bottleneck_csp_forward.5} parent=126 // pred_region
              loop: start=0, step=1, limit=1
              $region143: #{bottleneck_csp_forward.5} parent=141 // loop_pre_header
                _
              $region144: #{bottleneck_csp_forward.5} parent=141 // loop_header
                %s432 = sphi 0, %s436
                %p433 = scmp.ge.s32.totalorder %s432, 1
                %s437 = sphi %s405, %s405
                %s438 = sphi %s406, %s406
              $region145: #{bottleneck_csp_forward.5} parent=141 // loop_header_branch
                %435 = sbr.rel (%p433) target = $region149
              $region146: #{bottleneck_csp_forward.5} parent=141 // loop_body
                %v439 = vld [vmem:[%s437] sm:$0xff]
                %440 = vst [vmem:[%s438] sm:$0xff] %v439
                %v441 = vld [vmem:[%s437 + $0x8] sm:$0xff]
                %442 = vst [vmem:[%s438 + $0x8] sm:$0xff] %v441
              $region147: #{bottleneck_csp_forward.5} parent=141 // loop_footer
                %s436 = sadd.s32 1, %s432
              $region148: #{bottleneck_csp_forward.5} parent=141 // loop_footer_branch
                %431 = sbr.rel target = $region144
              $region149: #{bottleneck_csp_forward.5} parent=141 // loop_exit
                _
            $region142: #{bottleneck_csp_forward.5} parent=126 // pred_fallthru
              _
            %p443 = pneg %p427
            // Predicated region
            $region150: #{bottleneck_csp_forward.5} parent=126 // pred_check
              _
            $region151: #{bottleneck_csp_forward.5} parent=126 // pred_check_branch
              %445 = sbr.rel (%p427) target = $region153
            $region152: #{bottleneck_csp_forward.5} parent=126 // pred_region
              %s446 = sand.u32 16, 7
            $region153: #{bottleneck_csp_forward.5} parent=126 // pred_fallthru
              _
          $region127: #{bottleneck_csp_forward.5} parent=123 // pred_fallthru
            _
          // Predicated region
          $region128: #{bottleneck_csp_forward.5} parent=123 // pred_check
            %p412 = pneg %p408
          $region129: #{bottleneck_csp_forward.5} parent=123 // pred_check_branch
            %414 = sbr.rel (%p412) target = $region131
          $region130: #{bottleneck_csp_forward.5} parent=123 // pred_region
            %s415 = sshllo.u32 0, 16
            loop: start=0, step=1, limit=1
            $region132: #{bottleneck_csp_forward.5} parent=130 // loop_pre_header
              _
            $region133: #{bottleneck_csp_forward.5} parent=130 // loop_header
              %s417 = sphi 0, %s421
              %p418 = scmp.ge.s32.totalorder %s417, 1
              %s422 = sphi %s405, %s405
              %s423 = sphi %s406, %s406
            $region134: #{bottleneck_csp_forward.5} parent=130 // loop_header_branch
              %420 = sbr.rel (%p418) target = $region138
            $region135: #{bottleneck_csp_forward.5} parent=130 // loop_body
              %v424 = vld [vmem:[%s422] sm:%s415]
              %425 = vst [vmem:[%s423] sm:%s415] %v424
            $region136: #{bottleneck_csp_forward.5} parent=130 // loop_footer
              %s421 = sadd.s32 1, %s417
            $region137: #{bottleneck_csp_forward.5} parent=130 // loop_footer_branch
              %416 = sbr.rel target = $region133
            $region138: #{bottleneck_csp_forward.5} parent=130 // loop_exit
              _
          $region131: #{bottleneck_csp_forward.5} parent=123 // pred_fallthru
            _
          // Predicated region
          $region154: #{bottleneck_csp_forward.5} parent=123 // pred_check
            _
          $region155: #{bottleneck_csp_forward.5} parent=123 // pred_check_branch
            %449 = sbr.rel (0) target = $region157
          $region156: #{bottleneck_csp_forward.5} parent=123 // pred_region
            %450 = vsyncadd [#allocation8], 256
          $region157: #{bottleneck_csp_forward.5} parent=123 // pred_fallthru
            _
          %s451 = smul.u32 1, 16
          %s452 = smul.u32 %s451, 1
          %s453 = sshll.u32 %s452, 4
          %454 = dma.done [#allocation8], %s453
      $region122: #{bottleneck_csp_forward.5} parent=43 // pred_fallthru
        _
      %v455 = vld [vmem:[#allocation2] sm:$0xff]
      %v456 = vld [vmem:[#allocation2 + $0x8] sm:$0xff]
      %v457 = vld [vmem:[#allocation2 + $0x10] sm:$0xff]
      %v458 = vld [vmem:[#allocation2 + $0x18] sm:$0xff]
      %v459 = vld [vmem:[#allocation2 + $0x20] sm:$0xff]
      %v460 = vld [vmem:[#allocation2 + $0x28] sm:$0xff]
      %v461 = vld [vmem:[#allocation2 + $0x30] sm:$0xff]
      %v462 = vld [vmem:[#allocation2 + $0x38] sm:$0xff]
      %v463 = vld [vmem:[#allocation2 + $0x40] sm:$0xff]
      %v464 = vld [vmem:[#allocation2 + $0x48] sm:$0xff]
      %v465 = vld [vmem:[#allocation2 + $0x50] sm:$0xff]
      %v466 = vld [vmem:[#allocation2 + $0x58] sm:$0xff]
      %v467 = vld [vmem:[#allocation2 + $0x60] sm:$0xff]
      %v468 = vld [vmem:[#allocation2 + $0x68] sm:$0xff]
      %v469 = vld [vmem:[#allocation2 + $0x70] sm:$0xff]
      %v470 = vld [vmem:[#allocation2 + $0x78] sm:$0xff]
      %v471 = vld [vmem:[#allocation2 + $0x80] sm:$0xff]
      %v472 = vld [vmem:[#allocation2 + $0x88] sm:$0xff]
      %v473 = vld [vmem:[#allocation2 + $0x90] sm:$0xff]
      %v474 = vld [vmem:[#allocation2 + $0x98] sm:$0xff]
      %v475 = vld [vmem:[%s1] sm:$0xff]
      %v476 = vld [vmem:[%s1 + $0x8] sm:$0xff]
      %v477 = vld [vmem:[%s1 + $0x10] sm:$0xff]
      %v478 = vld [vmem:[%s1 + $0x18] sm:$0xff]
      %v479 = vld [vmem:[%s1 + $0x20] sm:$0xff]
      %v480 = vld [vmem:[%s1 + $0x28] sm:$0xff]
      %v481 = vld [vmem:[%s1 + $0x30] sm:$0xff]
      %v482 = vld [vmem:[%s1 + $0x38] sm:$0xff]
      %v483 = vld [vmem:[%s1 + $0x40] sm:$0xff]
      %v484 = vld [vmem:[%s1 + $0x48] sm:$0xff]
      %v485 = vld [vmem:[%s1 + $0x50] sm:$0xff]
      %v486 = vld [vmem:[%s1 + $0x58] sm:$0xff]
      %v487 = vld [vmem:[%s1 + $0x60] sm:$0xff]
      %v488 = vld [vmem:[%s1 + $0x68] sm:$0xff]
      %v489 = vld [vmem:[%s1 + $0x70] sm:$0xff]
      %v490 = vld [vmem:[%s1 + $0x78] sm:$0xff]
      %491 = vmatprep.subr.mxu0 0.0
      %492 = vmatpush1.msra.mxu0 %v475
      %493 = vmatprep.subr.mxu0 0.0
      %494 = vmatpush1.msra.mxu0 %v476
      %495 = vmatprep.subr.mxu0 0.0
      %496 = vmatpush1.msra.mxu0 %v477
      %497 = vmatprep.subr.mxu0 0.0
      %498 = vmatpush1.msra.mxu0 %v478
      %499 = vmatprep.subr.mxu0 0.0
      %500 = vmatpush1.msra.mxu0 %v479
      %501 = vmatprep.subr.mxu0 0.0
      %502 = vmatpush1.msra.mxu0 %v480
      %503 = vmatprep.subr.mxu0 0.0
      %504 = vmatpush1.msra.mxu0 %v481
      %505 = vmatprep.subr.mxu0 0.0
      %506 = vmatpush1.msra.mxu0 %v482
      %507 = vmatprep.subr.mxu0 0.0
      %508 = vmatpush1.msra.mxu0 %v483
      %509 = vmatprep.subr.mxu0 0.0
      %510 = vmatpush1.msra.mxu0 %v484
      %511 = vmatprep.subr.mxu0 0.0
      %512 = vmatpush1.msra.mxu0 %v485
      %513 = vmatprep.subr.mxu0 0.0
      %514 = vmatpush1.msra.mxu0 %v486
      %515 = vmatprep.subr.mxu0 0.0
      %516 = vmatpush1.msra.mxu0 %v487
      %517 = vmatprep.subr.mxu0 0.0
      %518 = vmatpush1.msra.mxu0 %v488
      %519 = vmatprep.subr.mxu0 0.0
      %520 = vmatpush1.msra.mxu0 %v489
      %521 = vmatprep.subr.mxu0 0.0
      %522 = vmatpush1.msra.mxu0 %v490
      %523 = vmatprep.subr.mxu0 0.0
      %524 = vmatpush1.msra.mxu0 0.0
      %525 = vmatprep.subr.mxu0 0.0
      %526 = vmatpush1.msra.mxu0 0.0
      %527 = vmatprep.subr.mxu0 0.0
      %528 = vmatpush1.msra.mxu0 0.0
      %529 = vmatprep.subr.mxu0 0.0
      %530 = vmatpush1.msra.mxu0 0.0
      %531 = vmatprep.subr.mxu0 0.0
      %532 = vmatpush1.msra.mxu0 0.0
      %533 = vmatprep.subr.mxu0 0.0
      %534 = vmatpush1.msra.mxu0 0.0
      %535 = vmatprep.subr.mxu0 0.0
      %536 = vmatpush1.msra.mxu0 0.0
      %537 = vmatprep.subr.mxu0 0.0
      %538 = vmatpush1.msra.mxu0 0.0
      %539 = vmatprep.subr.mxu0 0.0
      %540 = vmatpush1.msra.mxu0 0.0
      %541 = vmatprep.subr.mxu0 0.0
      %542 = vmatpush1.msra.mxu0 0.0
      %543 = vmatprep.subr.mxu0 0.0
      %544 = vmatpush1.msra.mxu0 0.0
      %545 = vmatprep.subr.mxu0 0.0
      %546 = vmatpush1.msra.mxu0 0.0
      %547 = vmatprep.subr.mxu0 0.0
      %548 = vmatpush1.msra.mxu0 0.0
      %549 = vmatprep.subr.mxu0 0.0
      %550 = vmatpush1.msra.mxu0 0.0
      %551 = vmatprep.subr.mxu0 0.0
      %552 = vmatpush1.msra.mxu0 0.0
      %553 = vmatprep.subr.mxu0 0.0
      %554 = vmatpush1.msra.mxu0 0.0
      %555 = vmatprep.mubr.f32.mxu0 0.0
      %556 = vmatmul.mubr.f32.gmra.mrb[0].mxu0 %v455
      %v557 = vpop.f32.mrb[0].mxu0
      %v558 = vadd.f32 0.0, %v557
      %v559 = vpop.f32.mrb[0].mxu0
      %560 = vmatprep.mubr.f32.mxu0 0.0
      %561 = vmatmul.mubr.f32.gmra.mrb[0].mxu0 %v456
      %v562 = vpop.f32.mrb[0].mxu0
      %v563 = vadd.f32 0.0, %v562
      %v564 = vpop.f32.mrb[0].mxu0
      %565 = vmatprep.mubr.f32.mxu0 0.0
      %566 = vmatmul.mubr.f32.gmra.mrb[0].mxu0 %v457
      %v567 = vpop.f32.mrb[0].mxu0
      %v568 = vadd.f32 0.0, %v567
      %v569 = vpop.f32.mrb[0].mxu0
      %570 = vmatprep.mubr.f32.mxu0 0.0
      %571 = vmatmul.mubr.f32.gmra.mrb[0].mxu0 %v458
      %v572 = vpop.f32.mrb[0].mxu0
      %v573 = vadd.f32 0.0, %v572
      %v574 = vpop.f32.mrb[0].mxu0
      %575 = vmatprep.mubr.f32.mxu0 0.0
      %576 = vmatmul.mubr.f32.gmra.mrb[0].mxu0 %v459
      %v577 = vpop.f32.mrb[0].mxu0
      %v578 = vadd.f32 0.0, %v577
      %v579 = vpop.f32.mrb[0].mxu0
      %580 = vmatprep.mubr.f32.mxu0 0.0
      %581 = vmatmul.mubr.f32.gmra.mrb[0].mxu0 %v460
      %v582 = vpop.f32.mrb[0].mxu0
      %v583 = vadd.f32 0.0, %v582
      %v584 = vpop.f32.mrb[0].mxu0
      %585 = vmatprep.mubr.f32.mxu0 0.0
      %586 = vmatmul.mubr.f32.gmra.mrb[0].mxu0 %v461
      %v587 = vpop.f32.mrb[0].mxu0
      %v588 = vadd.f32 0.0, %v587
      %v589 = vpop.f32.mrb[0].mxu0
      %590 = vmatprep.mubr.f32.mxu0 0.0
      %591 = vmatmul.mubr.f32.gmra.mrb[0].mxu0 %v462
      %v592 = vpop.f32.mrb[0].mxu0
      %v593 = vadd.f32 0.0, %v592
      %v594 = vpop.f32.mrb[0].mxu0
      %595 = vmatprep.mubr.f32.mxu0 0.0
      %596 = vmatmul.mubr.f32.gmra.mrb[0].mxu0 %v463
      %v597 = vpop.f32.mrb[0].mxu0
      %v598 = vadd.f32 0.0, %v597
      %v599 = vpop.f32.mrb[0].mxu0
      %600 = vmatprep.mubr.f32.mxu0 0.0
      %601 = vmatmul.mubr.f32.gmra.mrb[0].mxu0 %v464
      %v602 = vpop.f32.mrb[0].mxu0
      %v603 = vadd.f32 0.0, %v602
      %v604 = vpop.f32.mrb[0].mxu0
      %605 = vmatprep.mubr.f32.mxu0 0.0
      %606 = vmatmul.mubr.f32.gmra.mrb[0].mxu0 %v465
      %v607 = vpop.f32.mrb[0].mxu0
      %v608 = vadd.f32 0.0, %v607
      %v609 = vpop.f32.mrb[0].mxu0
      %610 = vmatprep.mubr.f32.mxu0 0.0
      %611 = vmatmul.mubr.f32.gmra.mrb[0].mxu0 %v466
      %v612 = vpop.f32.mrb[0].mxu0
      %v613 = vadd.f32 0.0, %v612
      %v614 = vpop.f32.mrb[0].mxu0
      %615 = vmatprep.mubr.f32.mxu0 0.0
      %616 = vmatmul.mubr.f32.gmra.mrb[0].mxu0 %v467
      %v617 = vpop.f32.mrb[0].mxu0
      %v618 = vadd.f32 0.0, %v617
      %v619 = vpop.f32.mrb[0].mxu0
      %620 = vmatprep.mubr.f32.mxu0 0.0
      %621 = vmatmul.mubr.f32.gmra.mrb[0].mxu0 %v468
      %v622 = vpop.f32.mrb[0].mxu0
      %v623 = vadd.f32 0.0, %v622
      %v624 = vpop.f32.mrb[0].mxu0
      %625 = vmatprep.mubr.f32.mxu0 0.0
      %626 = vmatmul.mubr.f32.gmra.mrb[0].mxu0 %v469
      %v627 = vpop.f32.mrb[0].mxu0
      %v628 = vadd.f32 0.0, %v627
      %v629 = vpop.f32.mrb[0].mxu0
      %630 = vmatprep.mubr.f32.mxu0 0.0
      %631 = vmatmul.mubr.f32.gmra.mrb[0].mxu0 %v470
      %v632 = vpop.f32.mrb[0].mxu0
      %v633 = vadd.f32 0.0, %v632
      %v634 = vpop.f32.mrb[0].mxu0
      %635 = vmatprep.mubr.f32.mxu0 0.0
      %636 = vmatmul.mubr.f32.gmra.mrb[0].mxu0 %v471
      %v637 = vpop.f32.mrb[0].mxu0
      %v638 = vadd.f32 0.0, %v637
      %v639 = vpop.f32.mrb[0].mxu0
      %640 = vmatprep.mubr.f32.mxu0 0.0
      %641 = vmatmul.mubr.f32.gmra.mrb[0].mxu0 %v472
      %v642 = vpop.f32.mrb[0].mxu0
      %v643 = vadd.f32 0.0, %v642
      %v644 = vpop.f32.mrb[0].mxu0
      %645 = vmatprep.mubr.f32.mxu0 0.0
      %646 = vmatmul.mubr.f32.gmra.mrb[0].mxu0 %v473
      %v647 = vpop.f32.mrb[0].mxu0
      %v648 = vadd.f32 0.0, %v647
      %v649 = vpop.f32.mrb[0].mxu0
      %650 = vmatprep.mubr.f32.mxu0 0.0
      %651 = vmatmul.mubr.f32.gmra.mrb[0].mxu0 %v474
      %v652 = vpop.f32.mrb[0].mxu0
      %v653 = vadd.f32 0.0, %v652
      %v654 = vpop.f32.mrb[0].mxu0
      %655 = vdwg.mxu0
      %v656 = vld [vmem:[%s2] sm:$0x1]
      %v658 = vlaneseq
      %v659 = vshrl.u32 %v658, 7
      %v660 = vsub.s32 0, %v659
      %v661 = vrot.slane %v656, %v660
      %v663 = vmul.f32 %v558, %v661
      %v664 = vmul.f32 %v563, %v661
      %v665 = vmul.f32 %v568, %v661
      %v666 = vmul.f32 %v573, %v661
      %v667 = vmul.f32 %v578, %v661
      %v668 = vmul.f32 %v583, %v661
      %v669 = vmul.f32 %v588, %v661
      %v670 = vmul.f32 %v593, %v661
      %v671 = vmul.f32 %v598, %v661
      %v672 = vmul.f32 %v603, %v661
      %v673 = vmul.f32 %v608, %v661
      %v674 = vmul.f32 %v613, %v661
      %v675 = vmul.f32 %v618, %v661
      %v676 = vmul.f32 %v623, %v661
      %v677 = vmul.f32 %v628, %v661
      %v678 = vmul.f32 %v633, %v661
      %v679 = vmul.f32 %v638, %v661
      %v680 = vmul.f32 %v643, %v661
      %v681 = vmul.f32 %v648, %v661
      %v682 = vmul.f32 %v653, %v661
      %v683 = vld [vmem:[%s3] sm:$0x1]
      %v685 = vlaneseq
      %v686 = vshrl.u32 %v685, 7
      %v687 = vsub.s32 0, %v686
      %v688 = vrot.slane %v683, %v687
      %v690 = vadd.f32 %v663, %v688
      %v691 = vadd.f32 %v664, %v688
      %v692 = vadd.f32 %v665, %v688
      %v693 = vadd.f32 %v666, %v688
      %v694 = vadd.f32 %v667, %v688
      %v695 = vadd.f32 %v668, %v688
      %v696 = vadd.f32 %v669, %v688
      %v697 = vadd.f32 %v670, %v688
      %v698 = vadd.f32 %v671, %v688
      %v699 = vadd.f32 %v672, %v688
      %v700 = vadd.f32 %v673, %v688
      %v701 = vadd.f32 %v674, %v688
      %v702 = vadd.f32 %v675, %v688
      %v703 = vadd.f32 %v676, %v688
      %v704 = vadd.f32 %v677, %v688
      %v705 = vadd.f32 %v678, %v688
      %v706 = vadd.f32 %v679, %v688
      %v707 = vadd.f32 %v680, %v688
      %v708 = vadd.f32 %v681, %v688
      %v709 = vadd.f32 %v682, %v688
      %v710 = vxor.u32 %v690, 2147483648
      %v711 = vxor.u32 %v691, 2147483648
      %v712 = vxor.u32 %v692, 2147483648
      %v713 = vxor.u32 %v693, 2147483648
      %v714 = vxor.u32 %v694, 2147483648
      %v715 = vxor.u32 %v695, 2147483648
      %v716 = vxor.u32 %v696, 2147483648
      %v717 = vxor.u32 %v697, 2147483648
      %v718 = vxor.u32 %v698, 2147483648
      %v719 = vxor.u32 %v699, 2147483648
      %v720 = vxor.u32 %v700, 2147483648
      %v721 = vxor.u32 %v701, 2147483648
      %v722 = vxor.u32 %v702, 2147483648
      %v723 = vxor.u32 %v703, 2147483648
      %v724 = vxor.u32 %v704, 2147483648
      %v725 = vxor.u32 %v705, 2147483648
      %v726 = vxor.u32 %v706, 2147483648
      %v727 = vxor.u32 %v707, 2147483648
      %v728 = vxor.u32 %v708, 2147483648
      %v729 = vxor.u32 %v709, 2147483648
      %v730 = vmul.f32 %v710, 1.442695
      %v731 = vpow.pop %v730
      %v732 = vmul.f32 %v711, 1.442695
      %v733 = vpow.pop %v732
      %v734 = vmul.f32 %v712, 1.442695
      %v735 = vpow.pop %v734
      %v736 = vmul.f32 %v713, 1.442695
      %v737 = vpow.pop %v736
      %v738 = vmul.f32 %v714, 1.442695
      %v739 = vpow.pop %v738
      %v740 = vmul.f32 %v715, 1.442695
      %v741 = vpow.pop %v740
      %v742 = vmul.f32 %v716, 1.442695
      %v743 = vpow.pop %v742
      %v744 = vmul.f32 %v717, 1.442695
      %v745 = vpow.pop %v744
      %v746 = vmul.f32 %v718, 1.442695
      %v747 = vpow.pop %v746
      %v748 = vmul.f32 %v719, 1.442695
      %v749 = vpow.pop %v748
      %v750 = vmul.f32 %v720, 1.442695
      %v751 = vpow.pop %v750
      %v752 = vmul.f32 %v721, 1.442695
      %v753 = vpow.pop %v752
      %v754 = vmul.f32 %v722, 1.442695
      %v755 = vpow.pop %v754
      %v756 = vmul.f32 %v723, 1.442695
      %v757 = vpow.pop %v756
      %v758 = vmul.f32 %v724, 1.442695
      %v759 = vpow.pop %v758
      %v760 = vmul.f32 %v725, 1.442695
      %v761 = vpow.pop %v760
      %v762 = vmul.f32 %v726, 1.442695
      %v763 = vpow.pop %v762
      %v764 = vmul.f32 %v727, 1.442695
      %v765 = vpow.pop %v764
      %v766 = vmul.f32 %v728, 1.442695
      %v767 = vpow.pop %v766
      %v768 = vmul.f32 %v729, 1.442695
      %v769 = vpow.pop %v768
      %v770 = vadd.f32 %v731, 1.0
      %v771 = vadd.f32 %v733, 1.0
      %v772 = vadd.f32 %v735, 1.0
      %v773 = vadd.f32 %v737, 1.0
      %v774 = vadd.f32 %v739, 1.0
      %v775 = vadd.f32 %v741, 1.0
      %v776 = vadd.f32 %v743, 1.0
      %v777 = vadd.f32 %v745, 1.0
      %v778 = vadd.f32 %v747, 1.0
      %v779 = vadd.f32 %v749, 1.0
      %v780 = vadd.f32 %v751, 1.0
      %v781 = vadd.f32 %v753, 1.0
      %v782 = vadd.f32 %v755, 1.0
      %v783 = vadd.f32 %v757, 1.0
      %v784 = vadd.f32 %v759, 1.0
      %v785 = vadd.f32 %v761, 1.0
      %v786 = vadd.f32 %v763, 1.0
      %v787 = vadd.f32 %v765, 1.0
      %v788 = vadd.f32 %v767, 1.0
      %v789 = vadd.f32 %v769, 1.0
      %v790 = vrcp.pop %v770
      %v791 = vmul.f32 1.0, %v790
      %v792 = vrcp.pop %v771
      %v793 = vmul.f32 1.0, %v792
      %v794 = vrcp.pop %v772
      %v795 = vmul.f32 1.0, %v794
      %v796 = vrcp.pop %v773
      %v797 = vmul.f32 1.0, %v796
      %v798 = vrcp.pop %v774
      %v799 = vmul.f32 1.0, %v798
      %v800 = vrcp.pop %v775
      %v801 = vmul.f32 1.0, %v800
      %v802 = vrcp.pop %v776
      %v803 = vmul.f32 1.0, %v802
      %v804 = vrcp.pop %v777
      %v805 = vmul.f32 1.0, %v804
      %v806 = vrcp.pop %v778
      %v807 = vmul.f32 1.0, %v806
      %v808 = vrcp.pop %v779
      %v809 = vmul.f32 1.0, %v808
      %v810 = vrcp.pop %v780
      %v811 = vmul.f32 1.0, %v810
      %v812 = vrcp.pop %v781
      %v813 = vmul.f32 1.0, %v812
      %v814 = vrcp.pop %v782
      %v815 = vmul.f32 1.0, %v814
      %v816 = vrcp.pop %v783
      %v817 = vmul.f32 1.0, %v816
      %v818 = vrcp.pop %v784
      %v819 = vmul.f32 1.0, %v818
      %v820 = vrcp.pop %v785
      %v821 = vmul.f32 1.0, %v820
      %v822 = vrcp.pop %v786
      %v823 = vmul.f32 1.0, %v822
      %v824 = vrcp.pop %v787
      %v825 = vmul.f32 1.0, %v824
      %v826 = vrcp.pop %v788
      %v827 = vmul.f32 1.0, %v826
      %v828 = vrcp.pop %v789
      %v829 = vmul.f32 1.0, %v828
      %v830 = vmul.f32 %v690, %v791
      %v831 = vmul.f32 %v691, %v793
      %v832 = vmul.f32 %v692, %v795
      %v833 = vmul.f32 %v693, %v797
      %v834 = vmul.f32 %v694, %v799
      %v835 = vmul.f32 %v695, %v801
      %v836 = vmul.f32 %v696, %v803
      %v837 = vmul.f32 %v697, %v805
      %v838 = vmul.f32 %v698, %v807
      %v839 = vmul.f32 %v699, %v809
      %v840 = vmul.f32 %v700, %v811
      %v841 = vmul.f32 %v701, %v813
      %v842 = vmul.f32 %v702, %v815
      %v843 = vmul.f32 %v703, %v817
      %v844 = vmul.f32 %v704, %v819
      %v845 = vmul.f32 %v705, %v821
      %v846 = vmul.f32 %v706, %v823
      %v847 = vmul.f32 %v707, %v825
      %v848 = vmul.f32 %v708, %v827
      %v849 = vmul.f32 %v709, %v829
      %s850 = scalar_select %p340, 1, 0
      %v851 = vstv %s850
      %vm852 = vcmp.eq.s32.totalorder %v851, 1
      %v853 = vsel %vm852, %v830, 0.0
      %v854 = vsel %vm852, %v831, 0.0
      %s855 = scalar_select %p397, 1, 0
      %v856 = vstv %s855
      %vm857 = vcmp.eq.s32.totalorder %v856, 1
      %v858 = vsel %vm857, %v848, 0.0
      %v859 = vsel %vm857, %v849, 0.0
      %vm880 = vcmask 1040384
      %v881 = vrot.slane %v853, 7
      %v882 = vrot.slane %v854, 7
      %v883 = vsel %vm880, %v881, %v882
      %v884 = vrot.slane %v832, 7
      %v885 = vrot.slane %v833, 7
      %v886 = vsel %vm880, %v884, %v885
      %v887 = vrot.slane %v834, 7
      %v888 = vrot.slane %v835, 7
      %v889 = vsel %vm880, %v887, %v888
      %v890 = vrot.slane %v836, 7
      %v891 = vrot.slane %v837, 7
      %v892 = vsel %vm880, %v890, %v891
      %v893 = vrot.slane %v838, 7
      %v894 = vrot.slane %v839, 7
      %v895 = vsel %vm880, %v893, %v894
      %v896 = vrot.slane %v840, 7
      %v897 = vrot.slane %v841, 7
      %v898 = vsel %vm880, %v896, %v897
      %v899 = vrot.slane %v842, 7
      %v900 = vrot.slane %v843, 7
      %v901 = vsel %vm880, %v899, %v900
      %v902 = vrot.slane %v844, 7
      %v903 = vrot.slane %v845, 7
      %v904 = vsel %vm880, %v902, %v903
      %v905 = vrot.slane %v846, 7
      %v906 = vrot.slane %v847, 7
      %v907 = vsel %vm880, %v905, %v906
      %v908 = vrot.slane %v858, 7
      %v909 = vrot.slane %v859, 7
      %v910 = vsel %vm880, %v908, %v909
      %v941 = vsel %vm880, 0.0, %v881
      %v942 = vsel %vm880, 0.0, %v884
      %v943 = vsel %vm880, 0.0, %v887
      %v944 = vsel %vm880, 0.0, %v890
      %v945 = vsel %vm880, 0.0, %v893
      %v946 = vsel %vm880, 0.0, %v896
      %v947 = vsel %vm880, 0.0, %v899
      %v948 = vsel %vm880, 0.0, %v902
      %v949 = vsel %vm880, 0.0, %v905
      %v950 = vsel %vm880, 0.0, %v908
      %v951 = vsel %vm880, %v882, 0.0
      %v952 = vsel %vm880, %v885, 0.0
      %v953 = vsel %vm880, %v888, 0.0
      %v954 = vsel %vm880, %v891, 0.0
      %v955 = vsel %vm880, %v894, 0.0
      %v956 = vsel %vm880, %v897, 0.0
      %v957 = vsel %vm880, %v900, 0.0
      %v958 = vsel %vm880, %v903, 0.0
      %v959 = vsel %vm880, %v906, 0.0
      %v960 = vsel %vm880, %v909, 0.0
      %v961 = vld [vmem:[%s4] sm:$0xff]
      %v962 = vld [vmem:[%s4 + $0x8] sm:$0xff]
      %v963 = vld [vmem:[%s4 + $0x10] sm:$0xff]
      %v964 = vld [vmem:[%s4 + $0x18] sm:$0xff]
      %v965 = vld [vmem:[%s4 + $0x20] sm:$0xff]
      %v966 = vld [vmem:[%s4 + $0x28] sm:$0xff]
      %v967 = vld [vmem:[%s4 + $0x30] sm:$0xff]
      %v968 = vld [vmem:[%s4 + $0x38] sm:$0xff]
      %v969 = vld [vmem:[%s4 + $0x40] sm:$0xff]
      %v970 = vld [vmem:[%s4 + $0x48] sm:$0xff]
      %v971 = vld [vmem:[%s4 + $0x50] sm:$0xff]
      %v972 = vld [vmem:[%s4 + $0x58] sm:$0xff]
      %v973 = vld [vmem:[%s4 + $0x60] sm:$0xff]
      %v974 = vld [vmem:[%s4 + $0x68] sm:$0xff]
      %v975 = vld [vmem:[%s4 + $0x70] sm:$0xff]
      %v976 = vld [vmem:[%s4 + $0x78] sm:$0xff]
      %977 = vmatprep.subr.mxu0 0.0
      %978 = vmatpush1.msra.mxu0 %v961
      %979 = vmatprep.subr.mxu0 0.0
      %980 = vmatpush1.msra.mxu0 %v962
      %981 = vmatprep.subr.mxu0 0.0
      %982 = vmatpush1.msra.mxu0 %v963
      %983 = vmatprep.subr.mxu0 0.0
      %984 = vmatpush1.msra.mxu0 %v964
      %985 = vmatprep.subr.mxu0 0.0
      %986 = vmatpush1.msra.mxu0 %v965
      %987 = vmatprep.subr.mxu0 0.0
      %988 = vmatpush1.msra.mxu0 %v966
      %989 = vmatprep.subr.mxu0 0.0
      %990 = vmatpush1.msra.mxu0 %v967
      %991 = vmatprep.subr.mxu0 0.0
      %992 = vmatpush1.msra.mxu0 %v968
      %993 = vmatprep.subr.mxu0 0.0
      %994 = vmatpush1.msra.mxu0 %v969
      %995 = vmatprep.subr.mxu0 0.0
      %996 = vmatpush1.msra.mxu0 %v970
      %997 = vmatprep.subr.mxu0 0.0
      %998 = vmatpush1.msra.mxu0 %v971
      %999 = vmatprep.subr.mxu0 0.0
      %1000 = vmatpush1.msra.mxu0 %v972
      %1001 = vmatprep.subr.mxu0 0.0
      %1002 = vmatpush1.msra.mxu0 %v973
      %1003 = vmatprep.subr.mxu0 0.0
      %1004 = vmatpush1.msra.mxu0 %v974
      %1005 = vmatprep.subr.mxu0 0.0
      %1006 = vmatpush1.msra.mxu0 %v975
      %1007 = vmatprep.subr.mxu0 0.0
      %1008 = vmatpush1.msra.mxu0 %v976
      %1009 = vmatprep.subr.mxu0 0.0
      %1010 = vmatpush1.msra.mxu0 0.0
      %1011 = vmatprep.subr.mxu0 0.0
      %1012 = vmatpush1.msra.mxu0 0.0
      %1013 = vmatprep.subr.mxu0 0.0
      %1014 = vmatpush1.msra.mxu0 0.0
      %1015 = vmatprep.subr.mxu0 0.0
      %1016 = vmatpush1.msra.mxu0 0.0
      %1017 = vmatprep.subr.mxu0 0.0
      %1018 = vmatpush1.msra.mxu0 0.0
      %1019 = vmatprep.subr.mxu0 0.0
      %1020 = vmatpush1.msra.mxu0 0.0
      %1021 = vmatprep.subr.mxu0 0.0
      %1022 = vmatpush1.msra.mxu0 0.0
      %1023 = vmatprep.subr.mxu0 0.0
      %1024 = vmatpush1.msra.mxu0 0.0
      %1025 = vmatprep.subr.mxu0 0.0
      %1026 = vmatpush1.msra.mxu0 0.0
      %1027 = vmatprep.subr.mxu0 0.0
      %1028 = vmatpush1.msra.mxu0 0.0
      %1029 = vmatprep.subr.mxu0 0.0
      %1030 = vmatpush1.msra.mxu0 0.0
      %1031 = vmatprep.subr.mxu0 0.0
      %1032 = vmatpush1.msra.mxu0 0.0
      %1033 = vmatprep.subr.mxu0 0.0
      %1034 = vmatpush1.msra.mxu0 0.0
      %1035 = vmatprep.subr.mxu0 0.0
      %1036 = vmatpush1.msra.mxu0 0.0
      %1037 = vmatprep.subr.mxu0 0.0
      %1038 = vmatpush1.msra.mxu0 0.0
      %1039 = vmatprep.subr.mxu0 0.0
      %1040 = vmatpush1.msra.mxu0 0.0
      %1041 = vmatprep.mubr.f32.mxu0 0.0
      %1042 = vmatmul.mubr.f32.gmra.mrb[0].mxu0 %v941
      %v1043 = vpop.f32.mrb[0].mxu0
      %v1044 = vadd.f32 0.0, %v1043
      %v1045 = vpop.f32.mrb[0].mxu0
      %1046 = vmatprep.mubr.f32.mxu0 0.0
      %1047 = vmatmul.mubr.f32.gmra.mrb[0].mxu0 %v883
      %v1048 = vpop.f32.mrb[0].mxu0
      %v1049 = vadd.f32 0.0, %v1048
      %v1050 = vpop.f32.mrb[0].mxu0
      %1051 = vmatprep.mubr.f32.mxu0 0.0
      %1052 = vmatmul.mubr.f32.gmra.mrb[0].mxu0 %v951
      %v1053 = vpop.f32.mrb[0].mxu0
      %v1054 = vadd.f32 0.0, %v1053
      %v1055 = vpop.f32.mrb[0].mxu0
      %1056 = vmatprep.mubr.f32.mxu0 0.0
      %1057 = vmatmul.mubr.f32.gmra.mrb[0].mxu0 %v942
      %v1058 = vpop.f32.mrb[0].mxu0
      %v1059 = vadd.f32 0.0, %v1058
      %v1060 = vpop.f32.mrb[0].mxu0
      %1061 = vmatprep.mubr.f32.mxu0 0.0
      %1062 = vmatmul.mubr.f32.gmra.mrb[0].mxu0 %v886
      %v1063 = vpop.f32.mrb[0].mxu0
      %v1064 = vadd.f32 0.0, %v1063
      %v1065 = vpop.f32.mrb[0].mxu0
      %1066 = vmatprep.mubr.f32.mxu0 0.0
      %1067 = vmatmul.mubr.f32.gmra.mrb[0].mxu0 %v952
      %v1068 = vpop.f32.mrb[0].mxu0
      %v1069 = vadd.f32 0.0, %v1068
      %v1070 = vpop.f32.mrb[0].mxu0
      %1071 = vmatprep.mubr.f32.mxu0 0.0
      %1072 = vmatmul.mubr.f32.gmra.mrb[0].mxu0 %v943
      %v1073 = vpop.f32.mrb[0].mxu0
      %v1074 = vadd.f32 0.0, %v1073
      %v1075 = vpop.f32.mrb[0].mxu0
      %1076 = vmatprep.mubr.f32.mxu0 0.0
      %1077 = vmatmul.mubr.f32.gmra.mrb[0].mxu0 %v889
      %v1078 = vpop.f32.mrb[0].mxu0
      %v1079 = vadd.f32 0.0, %v1078
      %v1080 = vpop.f32.mrb[0].mxu0
      %1081 = vmatprep.mubr.f32.mxu0 0.0
      %1082 = vmatmul.mubr.f32.gmra.mrb[0].mxu0 %v953
      %v1083 = vpop.f32.mrb[0].mxu0
      %v1084 = vadd.f32 0.0, %v1083
      %v1085 = vpop.f32.mrb[0].mxu0
      %1086 = vmatprep.mubr.f32.mxu0 0.0
      %1087 = vmatmul.mubr.f32.gmra.mrb[0].mxu0 %v944
      %v1088 = vpop.f32.mrb[0].mxu0
      %v1089 = vadd.f32 0.0, %v1088
      %v1090 = vpop.f32.mrb[0].mxu0
      %1091 = vmatprep.mubr.f32.mxu0 0.0
      %1092 = vmatmul.mubr.f32.gmra.mrb[0].mxu0 %v892
      %v1093 = vpop.f32.mrb[0].mxu0
      %v1094 = vadd.f32 0.0, %v1093
      %v1095 = vpop.f32.mrb[0].mxu0
      %1096 = vmatprep.mubr.f32.mxu0 0.0
      %1097 = vmatmul.mubr.f32.gmra.mrb[0].mxu0 %v954
      %v1098 = vpop.f32.mrb[0].mxu0
      %v1099 = vadd.f32 0.0, %v1098
      %v1100 = vpop.f32.mrb[0].mxu0
      %1101 = vmatprep.mubr.f32.mxu0 0.0
      %1102 = vmatmul.mubr.f32.gmra.mrb[0].mxu0 %v945
      %v1103 = vpop.f32.mrb[0].mxu0
      %v1104 = vadd.f32 0.0, %v1103
      %v1105 = vpop.f32.mrb[0].mxu0
      %1106 = vmatprep.mubr.f32.mxu0 0.0
      %1107 = vmatmul.mubr.f32.gmra.mrb[0].mxu0 %v895
      %v1108 = vpop.f32.mrb[0].mxu0
      %v1109 = vadd.f32 0.0, %v1108
      %v1110 = vpop.f32.mrb[0].mxu0
      %1111 = vmatprep.mubr.f32.mxu0 0.0
      %1112 = vmatmul.mubr.f32.gmra.mrb[0].mxu0 %v955
      %v1113 = vpop.f32.mrb[0].mxu0
      %v1114 = vadd.f32 0.0, %v1113
      %v1115 = vpop.f32.mrb[0].mxu0
      %1116 = vmatprep.mubr.f32.mxu0 0.0
      %1117 = vmatmul.mubr.f32.gmra.mrb[0].mxu0 %v946
      %v1118 = vpop.f32.mrb[0].mxu0
      %v1119 = vadd.f32 0.0, %v1118
      %v1120 = vpop.f32.mrb[0].mxu0
      %1121 = vmatprep.mubr.f32.mxu0 0.0
      %1122 = vmatmul.mubr.f32.gmra.mrb[0].mxu0 %v898
      %v1123 = vpop.f32.mrb[0].mxu0
      %v1124 = vadd.f32 0.0, %v1123
      %v1125 = vpop.f32.mrb[0].mxu0
      %1126 = vmatprep.mubr.f32.mxu0 0.0
      %1127 = vmatmul.mubr.f32.gmra.mrb[0].mxu0 %v956
      %v1128 = vpop.f32.mrb[0].mxu0
      %v1129 = vadd.f32 0.0, %v1128
      %v1130 = vpop.f32.mrb[0].mxu0
      %1131 = vmatprep.mubr.f32.mxu0 0.0
      %1132 = vmatmul.mubr.f32.gmra.mrb[0].mxu0 %v947
      %v1133 = vpop.f32.mrb[0].mxu0
      %v1134 = vadd.f32 0.0, %v1133
      %v1135 = vpop.f32.mrb[0].mxu0
      %1136 = vmatprep.mubr.f32.mxu0 0.0
      %1137 = vmatmul.mubr.f32.gmra.mrb[0].mxu0 %v901
      %v1138 = vpop.f32.mrb[0].mxu0
      %v1139 = vadd.f32 0.0, %v1138
      %v1140 = vpop.f32.mrb[0].mxu0
      %1141 = vmatprep.mubr.f32.mxu0 0.0
      %1142 = vmatmul.mubr.f32.gmra.mrb[0].mxu0 %v957
      %v1143 = vpop.f32.mrb[0].mxu0
      %v1144 = vadd.f32 0.0, %v1143
      %v1145 = vpop.f32.mrb[0].mxu0
      %1146 = vmatprep.mubr.f32.mxu0 0.0
      %1147 = vmatmul.mubr.f32.gmra.mrb[0].mxu0 %v948
      %v1148 = vpop.f32.mrb[0].mxu0
      %v1149 = vadd.f32 0.0, %v1148
      %v1150 = vpop.f32.mrb[0].mxu0
      %1151 = vmatprep.mubr.f32.mxu0 0.0
      %1152 = vmatmul.mubr.f32.gmra.mrb[0].mxu0 %v904
      %v1153 = vpop.f32.mrb[0].mxu0
      %v1154 = vadd.f32 0.0, %v1153
      %v1155 = vpop.f32.mrb[0].mxu0
      %1156 = vmatprep.mubr.f32.mxu0 0.0
      %1157 = vmatmul.mubr.f32.gmra.mrb[0].mxu0 %v958
      %v1158 = vpop.f32.mrb[0].mxu0
      %v1159 = vadd.f32 0.0, %v1158
      %v1160 = vpop.f32.mrb[0].mxu0
      %1161 = vdwg.mxu0
      %1162 = vst [vmem:[#allocation3] sm:$0xff] %v1044
      %1163 = vst [vmem:[#allocation3 + $0x8] sm:$0xff] %v1049
      %1164 = vst [vmem:[#allocation3 + $0x10] sm:$0xff] %v1054
      %1165 = vst [vmem:[#allocation3 + $0x18] sm:$0xff] %v1059
      %1166 = vst [vmem:[#allocation3 + $0x20] sm:$0xff] %v1064
      %1167 = vst [vmem:[#allocation3 + $0x28] sm:$0xff] %v1069
      %1168 = vst [vmem:[#allocation3 + $0x30] sm:$0xff] %v1074
      %1169 = vst [vmem:[#allocation3 + $0x38] sm:$0xff] %v1079
      %1170 = vst [vmem:[#allocation3 + $0x40] sm:$0xff] %v1084
      %1171 = vst [vmem:[#allocation3 + $0x48] sm:$0xff] %v1089
      %1172 = vst [vmem:[#allocation3 + $0x50] sm:$0xff] %v1094
      %1173 = vst [vmem:[#allocation3 + $0x58] sm:$0xff] %v1099
      %1174 = vst [vmem:[#allocation3 + $0x60] sm:$0xff] %v1104
      %1175 = vst [vmem:[#allocation3 + $0x68] sm:$0xff] %v1109
      %1176 = vst [vmem:[#allocation3 + $0x70] sm:$0xff] %v1114
      %1177 = vst [vmem:[#allocation3 + $0x78] sm:$0xff] %v1119
      %1178 = vst [vmem:[#allocation3 + $0x80] sm:$0xff] %v1124
      %1179 = vst [vmem:[#allocation3 + $0x88] sm:$0xff] %v1129
      %1180 = vst [vmem:[#allocation3 + $0x90] sm:$0xff] %v1134
      %1181 = vst [vmem:[#allocation3 + $0x98] sm:$0xff] %v1139
      %1182 = vst [vmem:[#allocation3 + $0xa0] sm:$0xff] %v1144
      %1183 = vst [vmem:[#allocation3 + $0xa8] sm:$0xff] %v1149
      %1184 = vst [vmem:[#allocation3 + $0xb0] sm:$0xff] %v1154
      %1185 = vst [vmem:[#allocation3 + $0xb8] sm:$0xff] %v1159
      %s1186 = scalar_lea.vmem %s4, 128
      %v1187 = vld [vmem:[%s1186] sm:$0xff]
      %v1188 = vld [vmem:[%s1186 + $0x8] sm:$0xff]
      %v1189 = vld [vmem:[%s1186 + $0x10] sm:$0xff]
      %v1190 = vld [vmem:[%s1186 + $0x18] sm:$0xff]
      %v1191 = vld [vmem:[%s1186 + $0x20] sm:$0xff]
      %v1192 = vld [vmem:[%s1186 + $0x28] sm:$0xff]
      %v1193 = vld [vmem:[%s1186 + $0x30] sm:$0xff]
      %v1194 = vld [vmem:[%s1186 + $0x38] sm:$0xff]
      %v1195 = vld [vmem:[%s1186 + $0x40] sm:$0xff]
      %v1196 = vld [vmem:[%s1186 + $0x48] sm:$0xff]
      %v1197 = vld [vmem:[%s1186 + $0x50] sm:$0xff]
      %v1198 = vld [vmem:[%s1186 + $0x58] sm:$0xff]
      %v1199 = vld [vmem:[%s1186 + $0x60] sm:$0xff]
      %v1200 = vld [vmem:[%s1186 + $0x68] sm:$0xff]
      %v1201 = vld [vmem:[%s1186 + $0x70] sm:$0xff]
      %v1202 = vld [vmem:[%s1186 + $0x78] sm:$0xff]
      %vm1220 = vcmask 1046528
      %v1221 = vrot.slane %v941, 1
      %v1222 = vrot.slane %v883, 1
      %v1223 = vsel %vm1220, %v1221, %v1222
      %v1224 = vrot.slane %v951, 1
      %v1225 = vsel %vm1220, %v1222, %v1224
      %v1226 = vrot.slane %v942, 1
      %v1227 = vsel %vm1220, %v1224, %v1226
      %v1228 = vrot.slane %v886, 1
      %v1229 = vsel %vm1220, %v1226, %v1228
      %v1230 = vrot.slane %v952, 1
      %v1231 = vsel %vm1220, %v1228, %v1230
      %v1232 = vrot.slane %v943, 1
      %v1233 = vsel %vm1220, %v1230, %v1232
      %v1234 = vrot.slane %v889, 1
      %v1235 = vsel %vm1220, %v1232, %v1234
      %v1236 = vrot.slane %v953, 1
      %v1237 = vsel %vm1220, %v1234, %v1236
      %v1238 = vrot.slane %v944, 1
      %v1239 = vsel %vm1220, %v1236, %v1238
      %v1240 = vrot.slane %v892, 1
      %v1241 = vsel %vm1220, %v1238, %v1240
      %v1242 = vrot.slane %v954, 1
      %v1243 = vsel %vm1220, %v1240, %v1242
      %v1244 = vrot.slane %v945, 1
      %v1245 = vsel %vm1220, %v1242, %v1244
      %v1246 = vrot.slane %v895, 1
      %v1247 = vsel %vm1220, %v1244, %v1246
      %v1248 = vrot.slane %v955, 1
      %v1249 = vsel %vm1220, %v1246, %v1248
      %v1250 = vrot.slane %v946, 1
      %v1251 = vsel %vm1220, %v1248, %v1250
      %v1252 = vrot.slane %v898, 1
      %v1253 = vsel %vm1220, %v1250, %v1252
      %v1254 = vrot.slane %v956, 1
      %v1255 = vsel %vm1220, %v1252, %v1254
      %v1256 = vrot.slane %v947, 1
      %v1257 = vsel %vm1220, %v1254, %v1256
      %v1258 = vrot.slane %v901, 1
      %v1259 = vsel %vm1220, %v1256, %v1258
      %v1260 = vrot.slane %v957, 1
      %v1261 = vsel %vm1220, %v1258, %v1260
      %v1262 = vrot.slane %v948, 1
      %v1263 = vsel %vm1220, %v1260, %v1262
      %v1264 = vrot.slane %v904, 1
      %v1265 = vsel %vm1220, %v1262, %v1264
      %v1266 = vrot.slane %v958, 1
      %v1267 = vsel %vm1220, %v1264, %v1266
      %v1268 = vrot.slane %v949, 1
      %v1269 = vsel %vm1220, %v1266, %v1268
      %1294 = vmatprep.subr.mxu0 0.0
      %1295 = vmatpush1.msra.mxu0 %v1187
      %1296 = vmatprep.subr.mxu0 0.0
      %1297 = vmatpush1.msra.mxu0 %v1188
      %1298 = vmatprep.subr.mxu0 0.0
      %1299 = vmatpush1.msra.mxu0 %v1189
      %1300 = vmatprep.subr.mxu0 0.0
      %1301 = vmatpush1.msra.mxu0 %v1190
      %1302 = vmatprep.subr.mxu0 0.0
      %1303 = vmatpush1.msra.mxu0 %v1191
      %1304 = vmatprep.subr.mxu0 0.0
      %1305 = vmatpush1.msra.mxu0 %v1192
      %1306 = vmatprep.subr.mxu0 0.0
      %1307 = vmatpush1.msra.mxu0 %v1193
      %1308 = vmatprep.subr.mxu0 0.0
      %1309 = vmatpush1.msra.mxu0 %v1194
      %1310 = vmatprep.subr.mxu0 0.0
      %1311 = vmatpush1.msra.mxu0 %v1195
      %1312 = vmatprep.subr.mxu0 0.0
      %1313 = vmatpush1.msra.mxu0 %v1196
      %1314 = vmatprep.subr.mxu0 0.0
      %1315 = vmatpush1.msra.mxu0 %v1197
      %1316 = vmatprep.subr.mxu0 0.0
      %1317 = vmatpush1.msra.mxu0 %v1198
      %1318 = vmatprep.subr.mxu0 0.0
      %1319 = vmatpush1.msra.mxu0 %v1199
      %1320 = vmatprep.subr.mxu0 0.0
      %1321 = vmatpush1.msra.mxu0 %v1200
      %1322 = vmatprep.subr.mxu0 0.0
      %1323 = vmatpush1.msra.mxu0 %v1201
      %1324 = vmatprep.subr.mxu0 0.0
      %1325 = vmatpush1.msra.mxu0 %v1202
      %1326 = vmatprep.subr.mxu0 0.0
      %1327 = vmatpush1.msra.mxu0 0.0
      %1328 = vmatprep.subr.mxu0 0.0
      %1329 = vmatpush1.msra.mxu0 0.0
      %1330 = vmatprep.subr.mxu0 0.0
      %1331 = vmatpush1.msra.mxu0 0.0
      %1332 = vmatprep.subr.mxu0 0.0
      %1333 = vmatpush1.msra.mxu0 0.0
      %1334 = vmatprep.subr.mxu0 0.0
      %1335 = vmatpush1.msra.mxu0 0.0
      %1336 = vmatprep.subr.mxu0 0.0
      %1337 = vmatpush1.msra.mxu0 0.0
      %1338 = vmatprep.subr.mxu0 0.0
      %1339 = vmatpush1.msra.mxu0 0.0
      %1340 = vmatprep.subr.mxu0 0.0
      %1341 = vmatpush1.msra.mxu0 0.0
      %1342 = vmatprep.subr.mxu0 0.0
      %1343 = vmatpush1.msra.mxu0 0.0
      %1344 = vmatprep.subr.mxu0 0.0
      %1345 = vmatpush1.msra.mxu0 0.0
      %1346 = vmatprep.subr.mxu0 0.0
      %1347 = vmatpush1.msra.mxu0 0.0
      %1348 = vmatprep.subr.mxu0 0.0
      %1349 = vmatpush1.msra.mxu0 0.0
      %1350 = vmatprep.subr.mxu0 0.0
      %1351 = vmatpush1.msra.mxu0 0.0
      %1352 = vmatprep.subr.mxu0 0.0
      %1353 = vmatpush1.msra.mxu0 0.0
      %1354 = vmatprep.subr.mxu0 0.0
      %1355 = vmatpush1.msra.mxu0 0.0
      %1356 = vmatprep.subr.mxu0 0.0
      %1357 = vmatpush1.msra.mxu0 0.0
      %1358 = vmatprep.mubr.f32.mxu0 0.0
      %1359 = vmatmul.mubr.f32.gmra.mrb[0].mxu0 %v1223
      %v1360 = vpop.f32.mrb[0].mxu0
      %v1361 = vadd.f32 0.0, %v1360
      %v1362 = vpop.f32.mrb[0].mxu0
      %1363 = vmatprep.mubr.f32.mxu0 0.0
      %1364 = vmatmul.mubr.f32.gmra.mrb[0].mxu0 %v1225
      %v1365 = vpop.f32.mrb[0].mxu0
      %v1366 = vadd.f32 0.0, %v1365
      %v1367 = vpop.f32.mrb[0].mxu0
      %1368 = vmatprep.mubr.f32.mxu0 0.0
      %1369 = vmatmul.mubr.f32.gmra.mrb[0].mxu0 %v1227
      %v1370 = vpop.f32.mrb[0].mxu0
      %v1371 = vadd.f32 0.0, %v1370
      %v1372 = vpop.f32.mrb[0].mxu0
      %1373 = vmatprep.mubr.f32.mxu0 0.0
      %1374 = vmatmul.mubr.f32.gmra.mrb[0].mxu0 %v1229
      %v1375 = vpop.f32.mrb[0].mxu0
      %v1376 = vadd.f32 0.0, %v1375
      %v1377 = vpop.f32.mrb[0].mxu0
      %1378 = vmatprep.mubr.f32.mxu0 0.0
      %1379 = vmatmul.mubr.f32.gmra.mrb[0].mxu0 %v1231
      %v1380 = vpop.f32.mrb[0].mxu0
      %v1381 = vadd.f32 0.0, %v1380
      %v1382 = vpop.f32.mrb[0].mxu0
      %1383 = vmatprep.mubr.f32.mxu0 0.0
      %1384 = vmatmul.mubr.f32.gmra.mrb[0].mxu0 %v1233
      %v1385 = vpop.f32.mrb[0].mxu0
      %v1386 = vadd.f32 0.0, %v1385
      %v1387 = vpop.f32.mrb[0].mxu0
      %1388 = vmatprep.mubr.f32.mxu0 0.0
      %1389 = vmatmul.mubr.f32.gmra.mrb[0].mxu0 %v1235
      %v1390 = vpop.f32.mrb[0].mxu0
      %v1391 = vadd.f32 0.0, %v1390
      %v1392 = vpop.f32.mrb[0].mxu0
      %1393 = vmatprep.mubr.f32.mxu0 0.0
      %1394 = vmatmul.mubr.f32.gmra.mrb[0].mxu0 %v1237
      %v1395 = vpop.f32.mrb[0].mxu0
      %v1396 = vadd.f32 0.0, %v1395
      %v1397 = vpop.f32.mrb[0].mxu0
      %1398 = vmatprep.mubr.f32.mxu0 0.0
      %1399 = vmatmul.mubr.f32.gmra.mrb[0].mxu0 %v1239
      %v1400 = vpop.f32.mrb[0].mxu0
      %v1401 = vadd.f32 0.0, %v1400
      %v1402 = vpop.f32.mrb[0].mxu0
      %1403 = vmatprep.mubr.f32.mxu0 0.0
      %1404 = vmatmul.mubr.f32.gmra.mrb[0].mxu0 %v1241
      %v1405 = vpop.f32.mrb[0].mxu0
      %v1406 = vadd.f32 0.0, %v1405
      %v1407 = vpop.f32.mrb[0].mxu0
      %1408 = vmatprep.mubr.f32.mxu0 0.0
      %1409 = vmatmul.mubr.f32.gmra.mrb[0].mxu0 %v1243
      %v1410 = vpop.f32.mrb[0].mxu0
      %v1411 = vadd.f32 0.0, %v1410
      %v1412 = vpop.f32.mrb[0].mxu0
      %1413 = vmatprep.mubr.f32.mxu0 0.0
      %1414 = vmatmul.mubr.f32.gmra.mrb[0].mxu0 %v1245
      %v1415 = vpop.f32.mrb[0].mxu0
      %v1416 = vadd.f32 0.0, %v1415
      %v1417 = vpop.f32.mrb[0].mxu0
      %1418 = vmatprep.mubr.f32.mxu0 0.0
      %1419 = vmatmul.mubr.f32.gmra.mrb[0].mxu0 %v1247
      %v1420 = vpop.f32.mrb[0].mxu0
      %v1421 = vadd.f32 0.0, %v1420
      %v1422 = vpop.f32.mrb[0].mxu0
      %1423 = vmatprep.mubr.f32.mxu0 0.0
      %1424 = vmatmul.mubr.f32.gmra.mrb[0].mxu0 %v1249
      %v1425 = vpop.f32.mrb[0].mxu0
      %v1426 = vadd.f32 0.0, %v1425
      %v1427 = vpop.f32.mrb[0].mxu0
      %1428 = vmatprep.mubr.f32.mxu0 0.0
      %1429 = vmatmul.mubr.f32.gmra.mrb[0].mxu0 %v1251
      %v1430 = vpop.f32.mrb[0].mxu0
      %v1431 = vadd.f32 0.0, %v1430
      %v1432 = vpop.f32.mrb[0].mxu0
      %1433 = vmatprep.mubr.f32.mxu0 0.0
      %1434 = vmatmul.mubr.f32.gmra.mrb[0].mxu0 %v1253
      %v1435 = vpop.f32.mrb[0].mxu0
      %v1436 = vadd.f32 0.0, %v1435
      %v1437 = vpop.f32.mrb[0].mxu0
      %1438 = vmatprep.mubr.f32.mxu0 0.0
      %1439 = vmatmul.mubr.f32.gmra.mrb[0].mxu0 %v1255
      %v1440 = vpop.f32.mrb[0].mxu0
      %v1441 = vadd.f32 0.0, %v1440
      %v1442 = vpop.f32.mrb[0].mxu0
      %1443 = vmatprep.mubr.f32.mxu0 0.0
      %1444 = vmatmul.mubr.f32.gmra.mrb[0].mxu0 %v1257
      %v1445 = vpop.f32.mrb[0].mxu0
      %v1446 = vadd.f32 0.0, %v1445
      %v1447 = vpop.f32.mrb[0].mxu0
      %1448 = vmatprep.mubr.f32.mxu0 0.0
      %1449 = vmatmul.mubr.f32.gmra.mrb[0].mxu0 %v1259
      %v1450 = vpop.f32.mrb[0].mxu0
      %v1451 = vadd.f32 0.0, %v1450
      %v1452 = vpop.f32.mrb[0].mxu0
      %1453 = vmatprep.mubr.f32.mxu0 0.0
      %1454 = vmatmul.mubr.f32.gmra.mrb[0].mxu0 %v1261
      %v1455 = vpop.f32.mrb[0].mxu0
      %v1456 = vadd.f32 0.0, %v1455
      %v1457 = vpop.f32.mrb[0].mxu0
      %1458 = vmatprep.mubr.f32.mxu0 0.0
      %1459 = vmatmul.mubr.f32.gmra.mrb[0].mxu0 %v1263
      %v1460 = vpop.f32.mrb[0].mxu0
      %v1461 = vadd.f32 0.0, %v1460
      %v1462 = vpop.f32.mrb[0].mxu0
      %1463 = vmatprep.mubr.f32.mxu0 0.0
      %1464 = vmatmul.mubr.f32.gmra.mrb[0].mxu0 %v1265
      %v1465 = vpop.f32.mrb[0].mxu0
      %v1466 = vadd.f32 0.0, %v1465
      %v1467 = vpop.f32.mrb[0].mxu0
      %1468 = vmatprep.mubr.f32.mxu0 0.0
      %1469 = vmatmul.mubr.f32.gmra.mrb[0].mxu0 %v1267
      %v1470 = vpop.f32.mrb[0].mxu0
      %v1471 = vadd.f32 0.0, %v1470
      %v1472 = vpop.f32.mrb[0].mxu0
      %1473 = vmatprep.mubr.f32.mxu0 0.0
      %1474 = vmatmul.mubr.f32.gmra.mrb[0].mxu0 %v1269
      %v1475 = vpop.f32.mrb[0].mxu0
      %v1476 = vadd.f32 0.0, %v1475
      %v1477 = vpop.f32.mrb[0].mxu0
      %1478 = vdwg.mxu0
      %v1479 = vld [vmem:[#allocation3] sm:$0xff]
      %v1480 = vld [vmem:[#allocation3 + $0x8] sm:$0xff]
      %v1481 = vld [vmem:[#allocation3 + $0x10] sm:$0xff]
      %v1482 = vld [vmem:[#allocation3 + $0x18] sm:$0xff]
      %v1483 = vld [vmem:[#allocation3 + $0x20] sm:$0xff]
      %v1484 = vld [vmem:[#allocation3 + $0x28] sm:$0xff]
      %v1485 = vld [vmem:[#allocation3 + $0x30] sm:$0xff]
      %v1486 = vld [vmem:[#allocation3 + $0x38] sm:$0xff]
      %v1487 = vld [vmem:[#allocation3 + $0x40] sm:$0xff]
      %v1488 = vld [vmem:[#allocation3 + $0x48] sm:$0xff]
      %v1489 = vld [vmem:[#allocation3 + $0x50] sm:$0xff]
      %v1490 = vld [vmem:[#allocation3 + $0x58] sm:$0xff]
      %v1491 = vld [vmem:[#allocation3 + $0x60] sm:$0xff]
      %v1492 = vld [vmem:[#allocation3 + $0x68] sm:$0xff]
      %v1493 = vld [vmem:[#allocation3 + $0x70] sm:$0xff]
      %v1494 = vld [vmem:[#allocation3 + $0x78] sm:$0xff]
      %v1495 = vld [vmem:[#allocation3 + $0x80] sm:$0xff]
      %v1496 = vld [vmem:[#allocation3 + $0x88] sm:$0xff]
      %v1497 = vld [vmem:[#allocation3 + $0x90] sm:$0xff]
      %v1498 = vld [vmem:[#allocation3 + $0x98] sm:$0xff]
      %v1499 = vld [vmem:[#allocation3 + $0xa0] sm:$0xff]
      %v1500 = vld [vmem:[#allocation3 + $0xa8] sm:$0xff]
      %v1501 = vld [vmem:[#allocation3 + $0xb0] sm:$0xff]
      %v1502 = vld [vmem:[#allocation3 + $0xb8] sm:$0xff]
      %v1503 = vadd.f32 %v1479, %v1361
      %v1504 = vadd.f32 %v1480, %v1366
      %v1505 = vadd.f32 %v1481, %v1371
      %v1506 = vadd.f32 %v1482, %v1376
      %v1507 = vadd.f32 %v1483, %v1381
      %v1508 = vadd.f32 %v1484, %v1386
      %v1509 = vadd.f32 %v1485, %v1391
      %v1510 = vadd.f32 %v1486, %v1396
      %v1511 = vadd.f32 %v1487, %v1401
      %v1512 = vadd.f32 %v1488, %v1406
      %v1513 = vadd.f32 %v1489, %v1411
      %v1514 = vadd.f32 %v1490, %v1416
      %v1515 = vadd.f32 %v1491, %v1421
      %v1516 = vadd.f32 %v1492, %v1426
      %v1517 = vadd.f32 %v1493, %v1431
      %v1518 = vadd.f32 %v1494, %v1436
      %v1519 = vadd.f32 %v1495, %v1441
      %v1520 = vadd.f32 %v1496, %v1446
      %v1521 = vadd.f32 %v1497, %v1451
      %v1522 = vadd.f32 %v1498, %v1456
      %v1523 = vadd.f32 %v1499, %v1461
      %v1524 = vadd.f32 %v1500, %v1466
      %v1525 = vadd.f32 %v1501, %v1471
      %v1526 = vadd.f32 %v1502, %v1476
      %1527 = vst [vmem:[#allocation3] sm:$0xff] %v1503
      %1528 = vst [vmem:[#allocation3 + $0x8] sm:$0xff] %v1504
      %1529 = vst [vmem:[#allocation3 + $0x10] sm:$0xff] %v1505
      %1530 = vst [vmem:[#allocation3 + $0x18] sm:$0xff] %v1506
      %1531 = vst [vmem:[#allocation3 + $0x20] sm:$0xff] %v1507
      %1532 = vst [vmem:[#allocation3 + $0x28] sm:$0xff] %v1508
      %1533 = vst [vmem:[#allocation3 + $0x30] sm:$0xff] %v1509
      %1534 = vst [vmem:[#allocation3 + $0x38] sm:$0xff] %v1510
      %1535 = vst [vmem:[#allocation3 + $0x40] sm:$0xff] %v1511
      %1536 = vst [vmem:[#allocation3 + $0x48] sm:$0xff] %v1512
      %1537 = vst [vmem:[#allocation3 + $0x50] sm:$0xff] %v1513
      %1538 = vst [vmem:[#allocation3 + $0x58] sm:$0xff] %v1514
      %1539 = vst [vmem:[#allocation3 + $0x60] sm:$0xff] %v1515
      %1540 = vst [vmem:[#allocation3 + $0x68] sm:$0xff] %v1516
      %1541 = vst [vmem:[#allocation3 + $0x70] sm:$0xff] %v1517
      %1542 = vst [vmem:[#allocation3 + $0x78] sm:$0xff] %v1518
      %1543 = vst [vmem:[#allocation3 + $0x80] sm:$0xff] %v1519
      %1544 = vst [vmem:[#allocation3 + $0x88] sm:$0xff] %v1520
      %1545 = vst [vmem:[#allocation3 + $0x90] sm:$0xff] %v1521
      %1546 = vst [vmem:[#allocation3 + $0x98] sm:$0xff] %v1522
      %1547 = vst [vmem:[#allocation3 + $0xa0] sm:$0xff] %v1523
      %1548 = vst [vmem:[#allocation3 + $0xa8] sm:$0xff] %v1524
      %1549 = vst [vmem:[#allocation3 + $0xb0] sm:$0xff] %v1525
      %1550 = vst [vmem:[#allocation3 + $0xb8] sm:$0xff] %v1526
      %s1551 = scalar_lea.vmem %s4, 256
      %v1552 = vld [vmem:[%s1551] sm:$0xff]
      %v1553 = vld [vmem:[%s1551 + $0x8] sm:$0xff]
      %v1554 = vld [vmem:[%s1551 + $0x10] sm:$0xff]
      %v1555 = vld [vmem:[%s1551 + $0x18] sm:$0xff]
      %v1556 = vld [vmem:[%s1551 + $0x20] sm:$0xff]
      %v1557 = vld [vmem:[%s1551 + $0x28] sm:$0xff]
      %v1558 = vld [vmem:[%s1551 + $0x30] sm:$0xff]
      %v1559 = vld [vmem:[%s1551 + $0x38] sm:$0xff]
      %v1560 = vld [vmem:[%s1551 + $0x40] sm:$0xff]
      %v1561 = vld [vmem:[%s1551 + $0x48] sm:$0xff]
      %v1562 = vld [vmem:[%s1551 + $0x50] sm:$0xff]
      %v1563 = vld [vmem:[%s1551 + $0x58] sm:$0xff]
      %v1564 = vld [vmem:[%s1551 + $0x60] sm:$0xff]
      %v1565 = vld [vmem:[%s1551 + $0x68] sm:$0xff]
      %v1566 = vld [vmem:[%s1551 + $0x70] sm:$0xff]
      %v1567 = vld [vmem:[%s1551 + $0x78] sm:$0xff]
      %vm1568 = vcmask 1045504
      %v1569 = vrot.slane %v941, 2
      %v1570 = vrot.slane %v883, 2
      %v1571 = vsel %vm1568, %v1569, %v1570
      %v1572 = vrot.slane %v951, 2
      %v1573 = vsel %vm1568, %v1570, %v1572
      %v1574 = vrot.slane %v942, 2
      %v1575 = vsel %vm1568, %v1572, %v1574
      %v1576 = vrot.slane %v886, 2
      %v1577 = vsel %vm1568, %v1574, %v1576
      %v1578 = vrot.slane %v952, 2
      %v1579 = vsel %vm1568, %v1576, %v1578
      %v1580 = vrot.slane %v943, 2
      %v1581 = vsel %vm1568, %v1578, %v1580
      %v1582 = vrot.slane %v889, 2
      %v1583 = vsel %vm1568, %v1580, %v1582
      %v1584 = vrot.slane %v953, 2
      %v1585 = vsel %vm1568, %v1582, %v1584
      %v1586 = vrot.slane %v944, 2
      %v1587 = vsel %vm1568, %v1584, %v1586
      %v1588 = vrot.slane %v892, 2
      %v1589 = vsel %vm1568, %v1586, %v1588
      %v1590 = vrot.slane %v954, 2
      %v1591 = vsel %vm1568, %v1588, %v1590
      %v1592 = vrot.slane %v945, 2
      %v1593 = vsel %vm1568, %v1590, %v1592
      %v1594 = vrot.slane %v895, 2
      %v1595 = vsel %vm1568, %v1592, %v1594
      %v1596 = vrot.slane %v955, 2
      %v1597 = vsel %vm1568, %v1594, %v1596
      %v1598 = vrot.slane %v946, 2
      %v1599 = vsel %vm1568, %v1596, %v1598
      %v1600 = vrot.slane %v898, 2
      %v1601 = vsel %vm1568, %v1598, %v1600
      %v1602 = vrot.slane %v956, 2
      %v1603 = vsel %vm1568, %v1600, %v1602
      %v1604 = vrot.slane %v947, 2
      %v1605 = vsel %vm1568, %v1602, %v1604
      %v1606 = vrot.slane %v901, 2
      %v1607 = vsel %vm1568, %v1604, %v1606
      %v1608 = vrot.slane %v957, 2
      %v1609 = vsel %vm1568, %v1606, %v1608
      %v1610 = vrot.slane %v948, 2
      %v1611 = vsel %vm1568, %v1608, %v1610
      %v1612 = vrot.slane %v904, 2
      %v1613 = vsel %vm1568, %v1610, %v1612
      %v1614 = vrot.slane %v958, 2
      %v1615 = vsel %vm1568, %v1612, %v1614
      %v1616 = vrot.slane %v949, 2
      %v1617 = vsel %vm1568, %v1614, %v1616
      %1642 = vmatprep.subr.mxu0 0.0
      %1643 = vmatpush1.msra.mxu0 %v1552
      %1644 = vmatprep.subr.mxu0 0.0
      %1645 = vmatpush1.msra.mxu0 %v1553
      %1646 = vmatprep.subr.mxu0 0.0
      %1647 = vmatpush1.msra.mxu0 %v1554
      %1648 = vmatprep.subr.mxu0 0.0
      %1649 = vmatpush1.msra.mxu0 %v1555
      %1650 = vmatprep.subr.mxu0 0.0
      %1651 = vmatpush1.msra.mxu0 %v1556
      %1652 = vmatprep.subr.mxu0 0.0
      %1653 = vmatpush1.msra.mxu0 %v1557
      %1654 = vmatprep.subr.mxu0 0.0
      %1655 = vmatpush1.msra.mxu0 %v1558
      %1656 = vmatprep.subr.mxu0 0.0
      %1657 = vmatpush1.msra.mxu0 %v1559
      %1658 = vmatprep.subr.mxu0 0.0
      %1659 = vmatpush1.msra.mxu0 %v1560
      %1660 = vmatprep.subr.mxu0 0.0
      %1661 = vmatpush1.msra.mxu0 %v1561
      %1662 = vmatprep.subr.mxu0 0.0
      %1663 = vmatpush1.msra.mxu0 %v1562
      %1664 = vmatprep.subr.mxu0 0.0
      %1665 = vmatpush1.msra.mxu0 %v1563
      %1666 = vmatprep.subr.mxu0 0.0
      %1667 = vmatpush1.msra.mxu0 %v1564
      %1668 = vmatprep.subr.mxu0 0.0
      %1669 = vmatpush1.msra.mxu0 %v1565
      %1670 = vmatprep.subr.mxu0 0.0
      %1671 = vmatpush1.msra.mxu0 %v1566
      %1672 = vmatprep.subr.mxu0 0.0
      %1673 = vmatpush1.msra.mxu0 %v1567
      %1674 = vmatprep.subr.mxu0 0.0
      %1675 = vmatpush1.msra.mxu0 0.0
      %1676 = vmatprep.subr.mxu0 0.0
      %1677 = vmatpush1.msra.mxu0 0.0
      %1678 = vmatprep.subr.mxu0 0.0
      %1679 = vmatpush1.msra.mxu0 0.0
      %1680 = vmatprep.subr.mxu0 0.0
      %1681 = vmatpush1.msra.mxu0 0.0
      %1682 = vmatprep.subr.mxu0 0.0
      %1683 = vmatpush1.msra.mxu0 0.0
      %1684 = vmatprep.subr.mxu0 0.0
      %1685 = vmatpush1.msra.mxu0 0.0
      %1686 = vmatprep.subr.mxu0 0.0
      %1687 = vmatpush1.msra.mxu0 0.0
      %1688 = vmatprep.subr.mxu0 0.0
      %1689 = vmatpush1.msra.mxu0 0.0
      %1690 = vmatprep.subr.mxu0 0.0
      %1691 = vmatpush1.msra.mxu0 0.0
      %1692 = vmatprep.subr.mxu0 0.0
      %1693 = vmatpush1.msra.mxu0 0.0
      %1694 = vmatprep.subr.mxu0 0.0
      %1695 = vmatpush1.msra.mxu0 0.0
      %1696 = vmatprep.subr.mxu0 0.0
      %1697 = vmatpush1.msra.mxu0 0.0
      %1698 = vmatprep.subr.mxu0 0.0
      %1699 = vmatpush1.msra.mxu0 0.0
      %1700 = vmatprep.subr.mxu0 0.0
      %1701 = vmatpush1.msra.mxu0 0.0
      %1702 = vmatprep.subr.mxu0 0.0
      %1703 = vmatpush1.msra.mxu0 0.0
      %1704 = vmatprep.subr.mxu0 0.0
      %1705 = vmatpush1.msra.mxu0 0.0
      %1706 = vmatprep.mubr.f32.mxu0 0.0
      %1707 = vmatmul.mubr.f32.gmra.mrb[0].mxu0 %v1571
      %v1708 = vpop.f32.mrb[0].mxu0
      %v1709 = vadd.f32 0.0, %v1708
      %v1710 = vpop.f32.mrb[0].mxu0
      %1711 = vmatprep.mubr.f32.mxu0 0.0
      %1712 = vmatmul.mubr.f32.gmra.mrb[0].mxu0 %v1573
      %v1713 = vpop.f32.mrb[0].mxu0
      %v1714 = vadd.f32 0.0, %v1713
      %v1715 = vpop.f32.mrb[0].mxu0
      %1716 = vmatprep.mubr.f32.mxu0 0.0
      %1717 = vmatmul.mubr.f32.gmra.mrb[0].mxu0 %v1575
      %v1718 = vpop.f32.mrb[0].mxu0
      %v1719 = vadd.f32 0.0, %v1718
      %v1720 = vpop.f32.mrb[0].mxu0
      %1721 = vmatprep.mubr.f32.mxu0 0.0
      %1722 = vmatmul.mubr.f32.gmra.mrb[0].mxu0 %v1577
      %v1723 = vpop.f32.mrb[0].mxu0
      %v1724 = vadd.f32 0.0, %v1723
      %v1725 = vpop.f32.mrb[0].mxu0
      %1726 = vmatprep.mubr.f32.mxu0 0.0
      %1727 = vmatmul.mubr.f32.gmra.mrb[0].mxu0 %v1579
      %v1728 = vpop.f32.mrb[0].mxu0
      %v1729 = vadd.f32 0.0, %v1728
      %v1730 = vpop.f32.mrb[0].mxu0
      %1731 = vmatprep.mubr.f32.mxu0 0.0
      %1732 = vmatmul.mubr.f32.gmra.mrb[0].mxu0 %v1581
      %v1733 = vpop.f32.mrb[0].mxu0
      %v1734 = vadd.f32 0.0, %v1733
      %v1735 = vpop.f32.mrb[0].mxu0
      %1736 = vmatprep.mubr.f32.mxu0 0.0
      %1737 = vmatmul.mubr.f32.gmra.mrb[0].mxu0 %v1583
      %v1738 = vpop.f32.mrb[0].mxu0
      %v1739 = vadd.f32 0.0, %v1738
      %v1740 = vpop.f32.mrb[0].mxu0
      %1741 = vmatprep.mubr.f32.mxu0 0.0
      %1742 = vmatmul.mubr.f32.gmra.mrb[0].mxu0 %v1585
      %v1743 = vpop.f32.mrb[0].mxu0
      %v1744 = vadd.f32 0.0, %v1743
      %v1745 = vpop.f32.mrb[0].mxu0
      %1746 = vmatprep.mubr.f32.mxu0 0.0
      %1747 = vmatmul.mubr.f32.gmra.mrb[0].mxu0 %v1587
      %v1748 = vpop.f32.mrb[0].mxu0
      %v1749 = vadd.f32 0.0, %v1748
      %v1750 = vpop.f32.mrb[0].mxu0
      %1751 = vmatprep.mubr.f32.mxu0 0.0
      %1752 = vmatmul.mubr.f32.gmra.mrb[0].mxu0 %v1589
      %v1753 = vpop.f32.mrb[0].mxu0
      %v1754 = vadd.f32 0.0, %v1753
      %v1755 = vpop.f32.mrb[0].mxu0
      %1756 = vmatprep.mubr.f32.mxu0 0.0
      %1757 = vmatmul.mubr.f32.gmra.mrb[0].mxu0 %v1591
      %v1758 = vpop.f32.mrb[0].mxu0
      %v1759 = vadd.f32 0.0, %v1758
      %v1760 = vpop.f32.mrb[0].mxu0
      %1761 = vmatprep.mubr.f32.mxu0 0.0
      %1762 = vmatmul.mubr.f32.gmra.mrb[0].mxu0 %v1593
      %v1763 = vpop.f32.mrb[0].mxu0
      %v1764 = vadd.f32 0.0, %v1763
      %v1765 = vpop.f32.mrb[0].mxu0
      %1766 = vmatprep.mubr.f32.mxu0 0.0
      %1767 = vmatmul.mubr.f32.gmra.mrb[0].mxu0 %v1595
      %v1768 = vpop.f32.mrb[0].mxu0
      %v1769 = vadd.f32 0.0, %v1768
      %v1770 = vpop.f32.mrb[0].mxu0
      %1771 = vmatprep.mubr.f32.mxu0 0.0
      %1772 = vmatmul.mubr.f32.gmra.mrb[0].mxu0 %v1597
      %v1773 = vpop.f32.mrb[0].mxu0
      %v1774 = vadd.f32 0.0, %v1773
      %v1775 = vpop.f32.mrb[0].mxu0
      %1776 = vmatprep.mubr.f32.mxu0 0.0
      %1777 = vmatmul.mubr.f32.gmra.mrb[0].mxu0 %v1599
      %v1778 = vpop.f32.mrb[0].mxu0
      %v1779 = vadd.f32 0.0, %v1778
      %v1780 = vpop.f32.mrb[0].mxu0
      %1781 = vmatprep.mubr.f32.mxu0 0.0
      %1782 = vmatmul.mubr.f32.gmra.mrb[0].mxu0 %v1601
      %v1783 = vpop.f32.mrb[0].mxu0
      %v1784 = vadd.f32 0.0, %v1783
      %v1785 = vpop.f32.mrb[0].mxu0
      %1786 = vmatprep.mubr.f32.mxu0 0.0
      %1787 = vmatmul.mubr.f32.gmra.mrb[0].mxu0 %v1603
      %v1788 = vpop.f32.mrb[0].mxu0
      %v1789 = vadd.f32 0.0, %v1788
      %v1790 = vpop.f32.mrb[0].mxu0
      %1791 = vmatprep.mubr.f32.mxu0 0.0
      %1792 = vmatmul.mubr.f32.gmra.mrb[0].mxu0 %v1605
      %v1793 = vpop.f32.mrb[0].mxu0
      %v1794 = vadd.f32 0.0, %v1793
      %v1795 = vpop.f32.mrb[0].mxu0
      %1796 = vmatprep.mubr.f32.mxu0 0.0
      %1797 = vmatmul.mubr.f32.gmra.mrb[0].mxu0 %v1607
      %v1798 = vpop.f32.mrb[0].mxu0
      %v1799 = vadd.f32 0.0, %v1798
      %v1800 = vpop.f32.mrb[0].mxu0
      %1801 = vmatprep.mubr.f32.mxu0 0.0
      %1802 = vmatmul.mubr.f32.gmra.mrb[0].mxu0 %v1609
      %v1803 = vpop.f32.mrb[0].mxu0
      %v1804 = vadd.f32 0.0, %v1803
      %v1805 = vpop.f32.mrb[0].mxu0
      %1806 = vmatprep.mubr.f32.mxu0 0.0
      %1807 = vmatmul.mubr.f32.gmra.mrb[0].mxu0 %v1611
      %v1808 = vpop.f32.mrb[0].mxu0
      %v1809 = vadd.f32 0.0, %v1808
      %v1810 = vpop.f32.mrb[0].mxu0
      %1811 = vmatprep.mubr.f32.mxu0 0.0
      %1812 = vmatmul.mubr.f32.gmra.mrb[0].mxu0 %v1613
      %v1813 = vpop.f32.mrb[0].mxu0
      %v1814 = vadd.f32 0.0, %v1813
      %v1815 = vpop.f32.mrb[0].mxu0
      %1816 = vmatprep.mubr.f32.mxu0 0.0
      %1817 = vmatmul.mubr.f32.gmra.mrb[0].mxu0 %v1615
      %v1818 = vpop.f32.mrb[0].mxu0
      %v1819 = vadd.f32 0.0, %v1818
      %v1820 = vpop.f32.mrb[0].mxu0
      %1821 = vmatprep.mubr.f32.mxu0 0.0
      %1822 = vmatmul.mubr.f32.gmra.mrb[0].mxu0 %v1617
      %v1823 = vpop.f32.mrb[0].mxu0
      %v1824 = vadd.f32 0.0, %v1823
      %v1825 = vpop.f32.mrb[0].mxu0
      %1826 = vdwg.mxu0
      %v1827 = vld [vmem:[#allocation3] sm:$0xff]
      %v1828 = vld [vmem:[#allocation3 + $0x8] sm:$0xff]
      %v1829 = vld [vmem:[#allocation3 + $0x10] sm:$0xff]
      %v1830 = vld [vmem:[#allocation3 + $0x18] sm:$0xff]
      %v1831 = vld [vmem:[#allocation3 + $0x20] sm:$0xff]
      %v1832 = vld [vmem:[#allocation3 + $0x28] sm:$0xff]
      %v1833 = vld [vmem:[#allocation3 + $0x30] sm:$0xff]
      %v1834 = vld [vmem:[#allocation3 + $0x38] sm:$0xff]
      %v1835 = vld [vmem:[#allocation3 + $0x40] sm:$0xff]
      %v1836 = vld [vmem:[#allocation3 + $0x48] sm:$0xff]
      %v1837 = vld [vmem:[#allocation3 + $0x50] sm:$0xff]
      %v1838 = vld [vmem:[#allocation3 + $0x58] sm:$0xff]
      %v1839 = vld [vmem:[#allocation3 + $0x60] sm:$0xff]
      %v1840 = vld [vmem:[#allocation3 + $0x68] sm:$0xff]
      %v1841 = vld [vmem:[#allocation3 + $0x70] sm:$0xff]
      %v1842 = vld [vmem:[#allocation3 + $0x78] sm:$0xff]
      %v1843 = vld [vmem:[#allocation3 + $0x80] sm:$0xff]
      %v1844 = vld [vmem:[#allocation3 + $0x88] sm:$0xff]
      %v1845 = vld [vmem:[#allocation3 + $0x90] sm:$0xff]
      %v1846 = vld [vmem:[#allocation3 + $0x98] sm:$0xff]
      %v1847 = vld [vmem:[#allocation3 + $0xa0] sm:$0xff]
      %v1848 = vld [vmem:[#allocation3 + $0xa8] sm:$0xff]
      %v1849 = vld [vmem:[#allocation3 + $0xb0] sm:$0xff]
      %v1850 = vld [vmem:[#allocation3 + $0xb8] sm:$0xff]
      %v1851 = vadd.f32 %v1827, %v1709
      %v1852 = vadd.f32 %v1828, %v1714
      %v1853 = vadd.f32 %v1829, %v1719
      %v1854 = vadd.f32 %v1830, %v1724
      %v1855 = vadd.f32 %v1831, %v1729
      %v1856 = vadd.f32 %v1832, %v1734
      %v1857 = vadd.f32 %v1833, %v1739
      %v1858 = vadd.f32 %v1834, %v1744
      %v1859 = vadd.f32 %v1835, %v1749
      %v1860 = vadd.f32 %v1836, %v1754
      %v1861 = vadd.f32 %v1837, %v1759
      %v1862 = vadd.f32 %v1838, %v1764
      %v1863 = vadd.f32 %v1839, %v1769
      %v1864 = vadd.f32 %v1840, %v1774
      %v1865 = vadd.f32 %v1841, %v1779
      %v1866 = vadd.f32 %v1842, %v1784
      %v1867 = vadd.f32 %v1843, %v1789
      %v1868 = vadd.f32 %v1844, %v1794
      %v1869 = vadd.f32 %v1845, %v1799
      %v1870 = vadd.f32 %v1846, %v1804
      %v1871 = vadd.f32 %v1847, %v1809
      %v1872 = vadd.f32 %v1848, %v1814
      %v1873 = vadd.f32 %v1849, %v1819
      %v1874 = vadd.f32 %v1850, %v1824
      %1875 = vst [vmem:[#allocation3] sm:$0xff] %v1851
      %1876 = vst [vmem:[#allocation3 + $0x8] sm:$0xff] %v1852
      %1877 = vst [vmem:[#allocation3 + $0x10] sm:$0xff] %v1853
      %1878 = vst [vmem:[#allocation3 + $0x18] sm:$0xff] %v1854
      %1879 = vst [vmem:[#allocation3 + $0x20] sm:$0xff] %v1855
      %1880 = vst [vmem:[#allocation3 + $0x28] sm:$0xff] %v1856
      %1881 = vst [vmem:[#allocation3 + $0x30] sm:$0xff] %v1857
      %1882 = vst [vmem:[#allocation3 + $0x38] sm:$0xff] %v1858
      %1883 = vst [vmem:[#allocation3 + $0x40] sm:$0xff] %v1859
      %1884 = vst [vmem:[#allocation3 + $0x48] sm:$0xff] %v1860
      %1885 = vst [vmem:[#allocation3 + $0x50] sm:$0xff] %v1861
      %1886 = vst [vmem:[#allocation3 + $0x58] sm:$0xff] %v1862
      %1887 = vst [vmem:[#allocation3 + $0x60] sm:$0xff] %v1863
      %1888 = vst [vmem:[#allocation3 + $0x68] sm:$0xff] %v1864
      %1889 = vst [vmem:[#allocation3 + $0x70] sm:$0xff] %v1865
      %1890 = vst [vmem:[#allocation3 + $0x78] sm:$0xff] %v1866
      %1891 = vst [vmem:[#allocation3 + $0x80] sm:$0xff] %v1867
      %1892 = vst [vmem:[#allocation3 + $0x88] sm:$0xff] %v1868
      %1893 = vst [vmem:[#allocation3 + $0x90] sm:$0xff] %v1869
      %1894 = vst [vmem:[#allocation3 + $0x98] sm:$0xff] %v1870
      %1895 = vst [vmem:[#allocation3 + $0xa0] sm:$0xff] %v1871
      %1896 = vst [vmem:[#allocation3 + $0xa8] sm:$0xff] %v1872
      %1897 = vst [vmem:[#allocation3 + $0xb0] sm:$0xff] %v1873
      %1898 = vst [vmem:[#allocation3 + $0xb8] sm:$0xff] %v1874
      %s1899 = scalar_lea.vmem %s4, 384
      %v1900 = vld [vmem:[%s1899] sm:$0xff]
      %v1901 = vld [vmem:[%s1899 + $0x8] sm:$0xff]
      %v1902 = vld [vmem:[%s1899 + $0x10] sm:$0xff]
      %v1903 = vld [vmem:[%s1899 + $0x18] sm:$0xff]
      %v1904 = vld [vmem:[%s1899 + $0x20] sm:$0xff]
      %v1905 = vld [vmem:[%s1899 + $0x28] sm:$0xff]
      %v1906 = vld [vmem:[%s1899 + $0x30] sm:$0xff]
      %v1907 = vld [vmem:[%s1899 + $0x38] sm:$0xff]
      %v1908 = vld [vmem:[%s1899 + $0x40] sm:$0xff]
      %v1909 = vld [vmem:[%s1899 + $0x48] sm:$0xff]
      %v1910 = vld [vmem:[%s1899 + $0x50] sm:$0xff]
      %v1911 = vld [vmem:[%s1899 + $0x58] sm:$0xff]
      %v1912 = vld [vmem:[%s1899 + $0x60] sm:$0xff]
      %v1913 = vld [vmem:[%s1899 + $0x68] sm:$0xff]
      %v1914 = vld [vmem:[%s1899 + $0x70] sm:$0xff]
      %v1915 = vld [vmem:[%s1899 + $0x78] sm:$0xff]
      %1916 = vmatprep.subr.mxu0 0.0
      %1917 = vmatpush1.msra.mxu0 %v1900
      %1918 = vmatprep.subr.mxu0 0.0
      %1919 = vmatpush1.msra.mxu0 %v1901
      %1920 = vmatprep.subr.mxu0 0.0
      %1921 = vmatpush1.msra.mxu0 %v1902
      %1922 = vmatprep.subr.mxu0 0.0
      %1923 = vmatpush1.msra.mxu0 %v1903
      %1924 = vmatprep.subr.mxu0 0.0
      %1925 = vmatpush1.msra.mxu0 %v1904
      %1926 = vmatprep.subr.mxu0 0.0
      %1927 = vmatpush1.msra.mxu0 %v1905
      %1928 = vmatprep.subr.mxu0 0.0
      %1929 = vmatpush1.msra.mxu0 %v1906
      %1930 = vmatprep.subr.mxu0 0.0
      %1931 = vmatpush1.msra.mxu0 %v1907
      %1932 = vmatprep.subr.mxu0 0.0
      %1933 = vmatpush1.msra.mxu0 %v1908
      %1934 = vmatprep.subr.mxu0 0.0
      %1935 = vmatpush1.msra.mxu0 %v1909
      %1936 = vmatprep.subr.mxu0 0.0
      %1937 = vmatpush1.msra.mxu0 %v1910
      %1938 = vmatprep.subr.mxu0 0.0
      %1939 = vmatpush1.msra.mxu0 %v1911
      %1940 = vmatprep.subr.mxu0 0.0
      %1941 = vmatpush1.msra.mxu0 %v1912
      %1942 = vmatprep.subr.mxu0 0.0
      %1943 = vmatpush1.msra.mxu0 %v1913
      %1944 = vmatprep.subr.mxu0 0.0
      %1945 = vmatpush1.msra.mxu0 %v1914
      %1946 = vmatprep.subr.mxu0 0.0
      %1947 = vmatpush1.msra.mxu0 %v1915
      %1948 = vmatprep.subr.mxu0 0.0
      %1949 = vmatpush1.msra.mxu0 0.0
      %1950 = vmatprep.subr.mxu0 0.0
      %1951 = vmatpush1.msra.mxu0 0.0
      %1952 = vmatprep.subr.mxu0 0.0
      %1953 = vmatpush1.msra.mxu0 0.0
      %1954 = vmatprep.subr.mxu0 0.0
      %1955 = vmatpush1.msra.mxu0 0.0
      %1956 = vmatprep.subr.mxu0 0.0
      %1957 = vmatpush1.msra.mxu0 0.0
      %1958 = vmatprep.subr.mxu0 0.0
      %1959 = vmatpush1.msra.mxu0 0.0
      %1960 = vmatprep.subr.mxu0 0.0
      %1961 = vmatpush1.msra.mxu0 0.0
      %1962 = vmatprep.subr.mxu0 0.0
      %1963 = vmatpush1.msra.mxu0 0.0
      %1964 = vmatprep.subr.mxu0 0.0
      %1965 = vmatpush1.msra.mxu0 0.0
      %1966 = vmatprep.subr.mxu0 0.0
      %1967 = vmatpush1.msra.mxu0 0.0
      %1968 = vmatprep.subr.mxu0 0.0
      %1969 = vmatpush1.msra.mxu0 0.0
      %1970 = vmatprep.subr.mxu0 0.0
      %1971 = vmatpush1.msra.mxu0 0.0
      %1972 = vmatprep.subr.mxu0 0.0
      %1973 = vmatpush1.msra.mxu0 0.0
      %1974 = vmatprep.subr.mxu0 0.0
      %1975 = vmatpush1.msra.mxu0 0.0
      %1976 = vmatprep.subr.mxu0 0.0
      %1977 = vmatpush1.msra.mxu0 0.0
      %1978 = vmatprep.subr.mxu0 0.0
      %1979 = vmatpush1.msra.mxu0 0.0
      %1980 = vmatprep.mubr.f32.mxu0 0.0
      %1981 = vmatmul.mubr.f32.gmra.mrb[0].mxu0 %v942
      %v1982 = vpop.f32.mrb[0].mxu0
      %v1983 = vadd.f32 0.0, %v1982
      %v1984 = vpop.f32.mrb[0].mxu0
      %1985 = vmatprep.mubr.f32.mxu0 0.0
      %1986 = vmatmul.mubr.f32.gmra.mrb[0].mxu0 %v886
      %v1987 = vpop.f32.mrb[0].mxu0
      %v1988 = vadd.f32 0.0, %v1987
      %v1989 = vpop.f32.mrb[0].mxu0
      %1990 = vmatprep.mubr.f32.mxu0 0.0
      %1991 = vmatmul.mubr.f32.gmra.mrb[0].mxu0 %v952
      %v1992 = vpop.f32.mrb[0].mxu0
      %v1993 = vadd.f32 0.0, %v1992
      %v1994 = vpop.f32.mrb[0].mxu0
      %1995 = vmatprep.mubr.f32.mxu0 0.0
      %1996 = vmatmul.mubr.f32.gmra.mrb[0].mxu0 %v943
      %v1997 = vpop.f32.mrb[0].mxu0
      %v1998 = vadd.f32 0.0, %v1997
      %v1999 = vpop.f32.mrb[0].mxu0
      %2000 = vmatprep.mubr.f32.mxu0 0.0
      %2001 = vmatmul.mubr.f32.gmra.mrb[0].mxu0 %v889
      %v2002 = vpop.f32.mrb[0].mxu0
      %v2003 = vadd.f32 0.0, %v2002
      %v2004 = vpop.f32.mrb[0].mxu0
      %2005 = vmatprep.mubr.f32.mxu0 0.0
      %2006 = vmatmul.mubr.f32.gmra.mrb[0].mxu0 %v953
      %v2007 = vpop.f32.mrb[0].mxu0
      %v2008 = vadd.f32 0.0, %v2007
      %v2009 = vpop.f32.mrb[0].mxu0
      %2010 = vmatprep.mubr.f32.mxu0 0.0
      %2011 = vmatmul.mubr.f32.gmra.mrb[0].mxu0 %v944
      %v2012 = vpop.f32.mrb[0].mxu0
      %v2013 = vadd.f32 0.0, %v2012
      %v2014 = vpop.f32.mrb[0].mxu0
      %2015 = vmatprep.mubr.f32.mxu0 0.0
      %2016 = vmatmul.mubr.f32.gmra.mrb[0].mxu0 %v892
      %v2017 = vpop.f32.mrb[0].mxu0
      %v2018 = vadd.f32 0.0, %v2017
      %v2019 = vpop.f32.mrb[0].mxu0
      %2020 = vmatprep.mubr.f32.mxu0 0.0
      %2021 = vmatmul.mubr.f32.gmra.mrb[0].mxu0 %v954
      %v2022 = vpop.f32.mrb[0].mxu0
      %v2023 = vadd.f32 0.0, %v2022
      %v2024 = vpop.f32.mrb[0].mxu0
      %2025 = vmatprep.mubr.f32.mxu0 0.0
      %2026 = vmatmul.mubr.f32.gmra.mrb[0].mxu0 %v945
      %v2027 = vpop.f32.mrb[0].mxu0
      %v2028 = vadd.f32 0.0, %v2027
      %v2029 = vpop.f32.mrb[0].mxu0
      %2030 = vmatprep.mubr.f32.mxu0 0.0
      %2031 = vmatmul.mubr.f32.gmra.mrb[0].mxu0 %v895
      %v2032 = vpop.f32.mrb[0].mxu0
      %v2033 = vadd.f32 0.0, %v2032
      %v2034 = vpop.f32.mrb[0].mxu0
      %2035 = vmatprep.mubr.f32.mxu0 0.0
      %2036 = vmatmul.mubr.f32.gmra.mrb[0].mxu0 %v955
      %v2037 = vpop.f32.mrb[0].mxu0
      %v2038 = vadd.f32 0.0, %v2037
      %v2039 = vpop.f32.mrb[0].mxu0
      %2040 = vmatprep.mubr.f32.mxu0 0.0
      %2041 = vmatmul.mubr.f32.gmra.mrb[0].mxu0 %v946
      %v2042 = vpop.f32.mrb[0].mxu0
      %v2043 = vadd.f32 0.0, %v2042
      %v2044 = vpop.f32.mrb[0].mxu0
      %2045 = vmatprep.mubr.f32.mxu0 0.0
      %2046 = vmatmul.mubr.f32.gmra.mrb[0].mxu0 %v898
      %v2047 = vpop.f32.mrb[0].mxu0
      %v2048 = vadd.f32 0.0, %v2047
      %v2049 = vpop.f32.mrb[0].mxu0
      %2050 = vmatprep.mubr.f32.mxu0 0.0
      %2051 = vmatmul.mubr.f32.gmra.mrb[0].mxu0 %v956
      %v2052 = vpop.f32.mrb[0].mxu0
      %v2053 = vadd.f32 0.0, %v2052
      %v2054 = vpop.f32.mrb[0].mxu0
      %2055 = vmatprep.mubr.f32.mxu0 0.0
      %2056 = vmatmul.mubr.f32.gmra.mrb[0].mxu0 %v947
      %v2057 = vpop.f32.mrb[0].mxu0
      %v2058 = vadd.f32 0.0, %v2057
      %v2059 = vpop.f32.mrb[0].mxu0
      %2060 = vmatprep.mubr.f32.mxu0 0.0
      %2061 = vmatmul.mubr.f32.gmra.mrb[0].mxu0 %v901
      %v2062 = vpop.f32.mrb[0].mxu0
      %v2063 = vadd.f32 0.0, %v2062
      %v2064 = vpop.f32.mrb[0].mxu0
      %2065 = vmatprep.mubr.f32.mxu0 0.0
      %2066 = vmatmul.mubr.f32.gmra.mrb[0].mxu0 %v957
      %v2067 = vpop.f32.mrb[0].mxu0
      %v2068 = vadd.f32 0.0, %v2067
      %v2069 = vpop.f32.mrb[0].mxu0
      %2070 = vmatprep.mubr.f32.mxu0 0.0
      %2071 = vmatmul.mubr.f32.gmra.mrb[0].mxu0 %v948
      %v2072 = vpop.f32.mrb[0].mxu0
      %v2073 = vadd.f32 0.0, %v2072
      %v2074 = vpop.f32.mrb[0].mxu0
      %2075 = vmatprep.mubr.f32.mxu0 0.0
      %2076 = vmatmul.mubr.f32.gmra.mrb[0].mxu0 %v904
      %v2077 = vpop.f32.mrb[0].mxu0
      %v2078 = vadd.f32 0.0, %v2077
      %v2079 = vpop.f32.mrb[0].mxu0
      %2080 = vmatprep.mubr.f32.mxu0 0.0
      %2081 = vmatmul.mubr.f32.gmra.mrb[0].mxu0 %v958
      %v2082 = vpop.f32.mrb[0].mxu0
      %v2083 = vadd.f32 0.0, %v2082
      %v2084 = vpop.f32.mrb[0].mxu0
      %2085 = vmatprep.mubr.f32.mxu0 0.0
      %2086 = vmatmul.mubr.f32.gmra.mrb[0].mxu0 %v949
      %v2087 = vpop.f32.mrb[0].mxu0
      %v2088 = vadd.f32 0.0, %v2087
      %v2089 = vpop.f32.mrb[0].mxu0
      %2090 = vmatprep.mubr.f32.mxu0 0.0
      %2091 = vmatmul.mubr.f32.gmra.mrb[0].mxu0 %v907
      %v2092 = vpop.f32.mrb[0].mxu0
      %v2093 = vadd.f32 0.0, %v2092
      %v2094 = vpop.f32.mrb[0].mxu0
      %2095 = vmatprep.mubr.f32.mxu0 0.0
      %2096 = vmatmul.mubr.f32.gmra.mrb[0].mxu0 %v959
      %v2097 = vpop.f32.mrb[0].mxu0
      %v2098 = vadd.f32 0.0, %v2097
      %v2099 = vpop.f32.mrb[0].mxu0
      %2100 = vdwg.mxu0
      %v2101 = vld [vmem:[#allocation3] sm:$0xff]
      %v2102 = vld [vmem:[#allocation3 + $0x8] sm:$0xff]
      %v2103 = vld [vmem:[#allocation3 + $0x10] sm:$0xff]
      %v2104 = vld [vmem:[#allocation3 + $0x18] sm:$0xff]
      %v2105 = vld [vmem:[#allocation3 + $0x20] sm:$0xff]
      %v2106 = vld [vmem:[#allocation3 + $0x28] sm:$0xff]
      %v2107 = vld [vmem:[#allocation3 + $0x30] sm:$0xff]
      %v2108 = vld [vmem:[#allocation3 + $0x38] sm:$0xff]
      %v2109 = vld [vmem:[#allocation3 + $0x40] sm:$0xff]
      %v2110 = vld [vmem:[#allocation3 + $0x48] sm:$0xff]
      %v2111 = vld [vmem:[#allocation3 + $0x50] sm:$0xff]
      %v2112 = vld [vmem:[#allocation3 + $0x58] sm:$0xff]
      %v2113 = vld [vmem:[#allocation3 + $0x60] sm:$0xff]
      %v2114 = vld [vmem:[#allocation3 + $0x68] sm:$0xff]
      %v2115 = vld [vmem:[#allocation3 + $0x70] sm:$0xff]
      %v2116 = vld [vmem:[#allocation3 + $0x78] sm:$0xff]
      %v2117 = vld [vmem:[#allocation3 + $0x80] sm:$0xff]
      %v2118 = vld [vmem:[#allocation3 + $0x88] sm:$0xff]
      %v2119 = vld [vmem:[#allocation3 + $0x90] sm:$0xff]
      %v2120 = vld [vmem:[#allocation3 + $0x98] sm:$0xff]
      %v2121 = vld [vmem:[#allocation3 + $0xa0] sm:$0xff]
      %v2122 = vld [vmem:[#allocation3 + $0xa8] sm:$0xff]
      %v2123 = vld [vmem:[#allocation3 + $0xb0] sm:$0xff]
      %v2124 = vld [vmem:[#allocation3 + $0xb8] sm:$0xff]
      %v2125 = vadd.f32 %v2101, %v1983
      %v2126 = vadd.f32 %v2102, %v1988
      %v2127 = vadd.f32 %v2103, %v1993
      %v2128 = vadd.f32 %v2104, %v1998
      %v2129 = vadd.f32 %v2105, %v2003
      %v2130 = vadd.f32 %v2106, %v2008
      %v2131 = vadd.f32 %v2107, %v2013
      %v2132 = vadd.f32 %v2108, %v2018
      %v2133 = vadd.f32 %v2109, %v2023
      %v2134 = vadd.f32 %v2110, %v2028
      %v2135 = vadd.f32 %v2111, %v2033
      %v2136 = vadd.f32 %v2112, %v2038
      %v2137 = vadd.f32 %v2113, %v2043
      %v2138 = vadd.f32 %v2114, %v2048
      %v2139 = vadd.f32 %v2115, %v2053
      %v2140 = vadd.f32 %v2116, %v2058
      %v2141 = vadd.f32 %v2117, %v2063
      %v2142 = vadd.f32 %v2118, %v2068
      %v2143 = vadd.f32 %v2119, %v2073
      %v2144 = vadd.f32 %v2120, %v2078
      %v2145 = vadd.f32 %v2121, %v2083
      %v2146 = vadd.f32 %v2122, %v2088
      %v2147 = vadd.f32 %v2123, %v2093
      %v2148 = vadd.f32 %v2124, %v2098
      %2149 = vst [vmem:[#allocation3] sm:$0xff] %v2125
      %2150 = vst [vmem:[#allocation3 + $0x8] sm:$0xff] %v2126
      %2151 = vst [vmem:[#allocation3 + $0x10] sm:$0xff] %v2127
      %2152 = vst [vmem:[#allocation3 + $0x18] sm:$0xff] %v2128
      %2153 = vst [vmem:[#allocation3 + $0x20] sm:$0xff] %v2129
      %2154 = vst [vmem:[#allocation3 + $0x28] sm:$0xff] %v2130
      %2155 = vst [vmem:[#allocation3 + $0x30] sm:$0xff] %v2131
      %2156 = vst [vmem:[#allocation3 + $0x38] sm:$0xff] %v2132
      %2157 = vst [vmem:[#allocation3 + $0x40] sm:$0xff] %v2133
      %2158 = vst [vmem:[#allocation3 + $0x48] sm:$0xff] %v2134
      %2159 = vst [vmem:[#allocation3 + $0x50] sm:$0xff] %v2135
      %2160 = vst [vmem:[#allocation3 + $0x58] sm:$0xff] %v2136
      %2161 = vst [vmem:[#allocation3 + $0x60] sm:$0xff] %v2137
      %2162 = vst [vmem:[#allocation3 + $0x68] sm:$0xff] %v2138
      %2163 = vst [vmem:[#allocation3 + $0x70] sm:$0xff] %v2139
      %2164 = vst [vmem:[#allocation3 + $0x78] sm:$0xff] %v2140
      %2165 = vst [vmem:[#allocation3 + $0x80] sm:$0xff] %v2141
      %2166 = vst [vmem:[#allocation3 + $0x88] sm:$0xff] %v2142
      %2167 = vst [vmem:[#allocation3 + $0x90] sm:$0xff] %v2143
      %2168 = vst [vmem:[#allocation3 + $0x98] sm:$0xff] %v2144
      %2169 = vst [vmem:[#allocation3 + $0xa0] sm:$0xff] %v2145
      %2170 = vst [vmem:[#allocation3 + $0xa8] sm:$0xff] %v2146
      %2171 = vst [vmem:[#allocation3 + $0xb0] sm:$0xff] %v2147
      %2172 = vst [vmem:[#allocation3 + $0xb8] sm:$0xff] %v2148
      %s2173 = scalar_lea.vmem %s4, 512
      %v2174 = vld [vmem:[%s2173] sm:$0xff]
      %v2175 = vld [vmem:[%s2173 + $0x8] sm:$0xff]
      %v2176 = vld [vmem:[%s2173 + $0x10] sm:$0xff]
      %v2177 = vld [vmem:[%s2173 + $0x18] sm:$0xff]
      %v2178 = vld [vmem:[%s2173 + $0x20] sm:$0xff]
      %v2179 = vld [vmem:[%s2173 + $0x28] sm:$0xff]
      %v2180 = vld [vmem:[%s2173 + $0x30] sm:$0xff]
      %v2181 = vld [vmem:[%s2173 + $0x38] sm:$0xff]
      %v2182 = vld [vmem:[%s2173 + $0x40] sm:$0xff]
      %v2183 = vld [vmem:[%s2173 + $0x48] sm:$0xff]
      %v2184 = vld [vmem:[%s2173 + $0x50] sm:$0xff]
      %v2185 = vld [vmem:[%s2173 + $0x58] sm:$0xff]
      %v2186 = vld [vmem:[%s2173 + $0x60] sm:$0xff]
      %v2187 = vld [vmem:[%s2173 + $0x68] sm:$0xff]
      %v2188 = vld [vmem:[%s2173 + $0x70] sm:$0xff]
      %v2189 = vld [vmem:[%s2173 + $0x78] sm:$0xff]
      %v2192 = vrot.slane %v907, 1
      %v2193 = vsel %vm1220, %v1268, %v2192
      %v2194 = vrot.slane %v959, 1
      %v2195 = vsel %vm1220, %v2192, %v2194
      %v2196 = vrot.slane %v950, 1
      %v2197 = vsel %vm1220, %v2194, %v2196
      %2201 = vmatprep.subr.mxu0 0.0
      %2202 = vmatpush1.msra.mxu0 %v2174
      %2203 = vmatprep.subr.mxu0 0.0
      %2204 = vmatpush1.msra.mxu0 %v2175
      %2205 = vmatprep.subr.mxu0 0.0
      %2206 = vmatpush1.msra.mxu0 %v2176
      %2207 = vmatprep.subr.mxu0 0.0
      %2208 = vmatpush1.msra.mxu0 %v2177
      %2209 = vmatprep.subr.mxu0 0.0
      %2210 = vmatpush1.msra.mxu0 %v2178
      %2211 = vmatprep.subr.mxu0 0.0
      %2212 = vmatpush1.msra.mxu0 %v2179
      %2213 = vmatprep.subr.mxu0 0.0
      %2214 = vmatpush1.msra.mxu0 %v2180
      %2215 = vmatprep.subr.mxu0 0.0
      %2216 = vmatpush1.msra.mxu0 %v2181
      %2217 = vmatprep.subr.mxu0 0.0
      %2218 = vmatpush1.msra.mxu0 %v2182
      %2219 = vmatprep.subr.mxu0 0.0
      %2220 = vmatpush1.msra.mxu0 %v2183
      %2221 = vmatprep.subr.mxu0 0.0
      %2222 = vmatpush1.msra.mxu0 %v2184
      %2223 = vmatprep.subr.mxu0 0.0
      %2224 = vmatpush1.msra.mxu0 %v2185
      %2225 = vmatprep.subr.mxu0 0.0
      %2226 = vmatpush1.msra.mxu0 %v2186
      %2227 = vmatprep.subr.mxu0 0.0
      %2228 = vmatpush1.msra.mxu0 %v2187
      %2229 = vmatprep.subr.mxu0 0.0
      %2230 = vmatpush1.msra.mxu0 %v2188
      %2231 = vmatprep.subr.mxu0 0.0
      %2232 = vmatpush1.msra.mxu0 %v2189
      %2233 = vmatprep.subr.mxu0 0.0
      %2234 = vmatpush1.msra.mxu0 0.0
      %2235 = vmatprep.subr.mxu0 0.0
      %2236 = vmatpush1.msra.mxu0 0.0
      %2237 = vmatprep.subr.mxu0 0.0
      %2238 = vmatpush1.msra.mxu0 0.0
      %2239 = vmatprep.subr.mxu0 0.0
      %2240 = vmatpush1.msra.mxu0 0.0
      %2241 = vmatprep.subr.mxu0 0.0
      %2242 = vmatpush1.msra.mxu0 0.0
      %2243 = vmatprep.subr.mxu0 0.0
      %2244 = vmatpush1.msra.mxu0 0.0
      %2245 = vmatprep.subr.mxu0 0.0
      %2246 = vmatpush1.msra.mxu0 0.0
      %2247 = vmatprep.subr.mxu0 0.0
      %2248 = vmatpush1.msra.mxu0 0.0
      %2249 = vmatprep.subr.mxu0 0.0
      %2250 = vmatpush1.msra.mxu0 0.0
      %2251 = vmatprep.subr.mxu0 0.0
      %2252 = vmatpush1.msra.mxu0 0.0
      %2253 = vmatprep.subr.mxu0 0.0
      %2254 = vmatpush1.msra.mxu0 0.0
      %2255 = vmatprep.subr.mxu0 0.0
      %2256 = vmatpush1.msra.mxu0 0.0
      %2257 = vmatprep.subr.mxu0 0.0
      %2258 = vmatpush1.msra.mxu0 0.0
      %2259 = vmatprep.subr.mxu0 0.0
      %2260 = vmatpush1.msra.mxu0 0.0
      %2261 = vmatprep.subr.mxu0 0.0
      %2262 = vmatpush1.msra.mxu0 0.0
      %2263 = vmatprep.subr.mxu0 0.0
      %2264 = vmatpush1.msra.mxu0 0.0
      %2265 = vmatprep.mubr.f32.mxu0 0.0
      %2266 = vmatmul.mubr.f32.gmra.mrb[0].mxu0 %v1229
      %v2267 = vpop.f32.mrb[0].mxu0
      %v2268 = vadd.f32 0.0, %v2267
      %v2269 = vpop.f32.mrb[0].mxu0
      %2270 = vmatprep.mubr.f32.mxu0 0.0
      %2271 = vmatmul.mubr.f32.gmra.mrb[0].mxu0 %v1231
      %v2272 = vpop.f32.mrb[0].mxu0
      %v2273 = vadd.f32 0.0, %v2272
      %v2274 = vpop.f32.mrb[0].mxu0
      %2275 = vmatprep.mubr.f32.mxu0 0.0
      %2276 = vmatmul.mubr.f32.gmra.mrb[0].mxu0 %v1233
      %v2277 = vpop.f32.mrb[0].mxu0
      %v2278 = vadd.f32 0.0, %v2277
      %v2279 = vpop.f32.mrb[0].mxu0
      %2280 = vmatprep.mubr.f32.mxu0 0.0
      %2281 = vmatmul.mubr.f32.gmra.mrb[0].mxu0 %v1235
      %v2282 = vpop.f32.mrb[0].mxu0
      %v2283 = vadd.f32 0.0, %v2282
      %v2284 = vpop.f32.mrb[0].mxu0
      %2285 = vmatprep.mubr.f32.mxu0 0.0
      %2286 = vmatmul.mubr.f32.gmra.mrb[0].mxu0 %v1237
      %v2287 = vpop.f32.mrb[0].mxu0
      %v2288 = vadd.f32 0.0, %v2287
      %v2289 = vpop.f32.mrb[0].mxu0
      %2290 = vmatprep.mubr.f32.mxu0 0.0
      %2291 = vmatmul.mubr.f32.gmra.mrb[0].mxu0 %v1239
      %v2292 = vpop.f32.mrb[0].mxu0
      %v2293 = vadd.f32 0.0, %v2292
      %v2294 = vpop.f32.mrb[0].mxu0
      %2295 = vmatprep.mubr.f32.mxu0 0.0
      %2296 = vmatmul.mubr.f32.gmra.mrb[0].mxu0 %v1241
      %v2297 = vpop.f32.mrb[0].mxu0
      %v2298 = vadd.f32 0.0, %v2297
      %v2299 = vpop.f32.mrb[0].mxu0
      %2300 = vmatprep.mubr.f32.mxu0 0.0
      %2301 = vmatmul.mubr.f32.gmra.mrb[0].mxu0 %v1243
      %v2302 = vpop.f32.mrb[0].mxu0
      %v2303 = vadd.f32 0.0, %v2302
      %v2304 = vpop.f32.mrb[0].mxu0
      %2305 = vmatprep.mubr.f32.mxu0 0.0
      %2306 = vmatmul.mubr.f32.gmra.mrb[0].mxu0 %v1245
      %v2307 = vpop.f32.mrb[0].mxu0
      %v2308 = vadd.f32 0.0, %v2307
      %v2309 = vpop.f32.mrb[0].mxu0
      %2310 = vmatprep.mubr.f32.mxu0 0.0
      %2311 = vmatmul.mubr.f32.gmra.mrb[0].mxu0 %v1247
      %v2312 = vpop.f32.mrb[0].mxu0
      %v2313 = vadd.f32 0.0, %v2312
      %v2314 = vpop.f32.mrb[0].mxu0
      %2315 = vmatprep.mubr.f32.mxu0 0.0
      %2316 = vmatmul.mubr.f32.gmra.mrb[0].mxu0 %v1249
      %v2317 = vpop.f32.mrb[0].mxu0
      %v2318 = vadd.f32 0.0, %v2317
      %v2319 = vpop.f32.mrb[0].mxu0
      %2320 = vmatprep.mubr.f32.mxu0 0.0
      %2321 = vmatmul.mubr.f32.gmra.mrb[0].mxu0 %v1251
      %v2322 = vpop.f32.mrb[0].mxu0
      %v2323 = vadd.f32 0.0, %v2322
      %v2324 = vpop.f32.mrb[0].mxu0
      %2325 = vmatprep.mubr.f32.mxu0 0.0
      %2326 = vmatmul.mubr.f32.gmra.mrb[0].mxu0 %v1253
      %v2327 = vpop.f32.mrb[0].mxu0
      %v2328 = vadd.f32 0.0, %v2327
      %v2329 = vpop.f32.mrb[0].mxu0
      %2330 = vmatprep.mubr.f32.mxu0 0.0
      %2331 = vmatmul.mubr.f32.gmra.mrb[0].mxu0 %v1255
      %v2332 = vpop.f32.mrb[0].mxu0
      %v2333 = vadd.f32 0.0, %v2332
      %v2334 = vpop.f32.mrb[0].mxu0
      %2335 = vmatprep.mubr.f32.mxu0 0.0
      %2336 = vmatmul.mubr.f32.gmra.mrb[0].mxu0 %v1257
      %v2337 = vpop.f32.mrb[0].mxu0
      %v2338 = vadd.f32 0.0, %v2337
      %v2339 = vpop.f32.mrb[0].mxu0
      %2340 = vmatprep.mubr.f32.mxu0 0.0
      %2341 = vmatmul.mubr.f32.gmra.mrb[0].mxu0 %v1259
      %v2342 = vpop.f32.mrb[0].mxu0
      %v2343 = vadd.f32 0.0, %v2342
      %v2344 = vpop.f32.mrb[0].mxu0
      %2345 = vmatprep.mubr.f32.mxu0 0.0
      %2346 = vmatmul.mubr.f32.gmra.mrb[0].mxu0 %v1261
      %v2347 = vpop.f32.mrb[0].mxu0
      %v2348 = vadd.f32 0.0, %v2347
      %v2349 = vpop.f32.mrb[0].mxu0
      %2350 = vmatprep.mubr.f32.mxu0 0.0
      %2351 = vmatmul.mubr.f32.gmra.mrb[0].mxu0 %v1263
      %v2352 = vpop.f32.mrb[0].mxu0
      %v2353 = vadd.f32 0.0, %v2352
      %v2354 = vpop.f32.mrb[0].mxu0
      %2355 = vmatprep.mubr.f32.mxu0 0.0
      %2356 = vmatmul.mubr.f32.gmra.mrb[0].mxu0 %v1265
      %v2357 = vpop.f32.mrb[0].mxu0
      %v2358 = vadd.f32 0.0, %v2357
      %v2359 = vpop.f32.mrb[0].mxu0
      %2360 = vmatprep.mubr.f32.mxu0 0.0
      %2361 = vmatmul.mubr.f32.gmra.mrb[0].mxu0 %v1267
      %v2362 = vpop.f32.mrb[0].mxu0
      %v2363 = vadd.f32 0.0, %v2362
      %v2364 = vpop.f32.mrb[0].mxu0
      %2365 = vmatprep.mubr.f32.mxu0 0.0
      %2366 = vmatmul.mubr.f32.gmra.mrb[0].mxu0 %v1269
      %v2367 = vpop.f32.mrb[0].mxu0
      %v2368 = vadd.f32 0.0, %v2367
      %v2369 = vpop.f32.mrb[0].mxu0
      %2370 = vmatprep.mubr.f32.mxu0 0.0
      %2371 = vmatmul.mubr.f32.gmra.mrb[0].mxu0 %v2193
      %v2372 = vpop.f32.mrb[0].mxu0
      %v2373 = vadd.f32 0.0, %v2372
      %v2374 = vpop.f32.mrb[0].mxu0
      %2375 = vmatprep.mubr.f32.mxu0 0.0
      %2376 = vmatmul.mubr.f32.gmra.mrb[0].mxu0 %v2195
      %v2377 = vpop.f32.mrb[0].mxu0
      %v2378 = vadd.f32 0.0, %v2377
      %v2379 = vpop.f32.mrb[0].mxu0
      %2380 = vmatprep.mubr.f32.mxu0 0.0
      %2381 = vmatmul.mubr.f32.gmra.mrb[0].mxu0 %v2197
      %v2382 = vpop.f32.mrb[0].mxu0
      %v2383 = vadd.f32 0.0, %v2382
      %v2384 = vpop.f32.mrb[0].mxu0
      %2385 = vdwg.mxu0
      %v2386 = vld [vmem:[#allocation3] sm:$0xff]
      %v2387 = vld [vmem:[#allocation3 + $0x8] sm:$0xff]
      %v2388 = vld [vmem:[#allocation3 + $0x10] sm:$0xff]
      %v2389 = vld [vmem:[#allocation3 + $0x18] sm:$0xff]
      %v2390 = vld [vmem:[#allocation3 + $0x20] sm:$0xff]
      %v2391 = vld [vmem:[#allocation3 + $0x28] sm:$0xff]
      %v2392 = vld [vmem:[#allocation3 + $0x30] sm:$0xff]
      %v2393 = vld [vmem:[#allocation3 + $0x38] sm:$0xff]
      %v2394 = vld [vmem:[#allocation3 + $0x40] sm:$0xff]
      %v2395 = vld [vmem:[#allocation3 + $0x48] sm:$0xff]
      %v2396 = vld [vmem:[#allocation3 + $0x50] sm:$0xff]
      %v2397 = vld [vmem:[#allocation3 + $0x58] sm:$0xff]
      %v2398 = vld [vmem:[#allocation3 + $0x60] sm:$0xff]
      %v2399 = vld [vmem:[#allocation3 + $0x68] sm:$0xff]
      %v2400 = vld [vmem:[#allocation3 + $0x70] sm:$0xff]
      %v2401 = vld [vmem:[#allocation3 + $0x78] sm:$0xff]
      %v2402 = vld [vmem:[#allocation3 + $0x80] sm:$0xff]
      %v2403 = vld [vmem:[#allocation3 + $0x88] sm:$0xff]
      %v2404 = vld [vmem:[#allocation3 + $0x90] sm:$0xff]
      %v2405 = vld [vmem:[#allocation3 + $0x98] sm:$0xff]
      %v2406 = vld [vmem:[#allocation3 + $0xa0] sm:$0xff]
      %v2407 = vld [vmem:[#allocation3 + $0xa8] sm:$0xff]
      %v2408 = vld [vmem:[#allocation3 + $0xb0] sm:$0xff]
      %v2409 = vld [vmem:[#allocation3 + $0xb8] sm:$0xff]
      %v2410 = vadd.f32 %v2386, %v2268
      %v2411 = vadd.f32 %v2387, %v2273
      %v2412 = vadd.f32 %v2388, %v2278
      %v2413 = vadd.f32 %v2389, %v2283
      %v2414 = vadd.f32 %v2390, %v2288
      %v2415 = vadd.f32 %v2391, %v2293
      %v2416 = vadd.f32 %v2392, %v2298
      %v2417 = vadd.f32 %v2393, %v2303
      %v2418 = vadd.f32 %v2394, %v2308
      %v2419 = vadd.f32 %v2395, %v2313
      %v2420 = vadd.f32 %v2396, %v2318
      %v2421 = vadd.f32 %v2397, %v2323
      %v2422 = vadd.f32 %v2398, %v2328
      %v2423 = vadd.f32 %v2399, %v2333
      %v2424 = vadd.f32 %v2400, %v2338
      %v2425 = vadd.f32 %v2401, %v2343
      %v2426 = vadd.f32 %v2402, %v2348
      %v2427 = vadd.f32 %v2403, %v2353
      %v2428 = vadd.f32 %v2404, %v2358
      %v2429 = vadd.f32 %v2405, %v2363
      %v2430 = vadd.f32 %v2406, %v2368
      %v2431 = vadd.f32 %v2407, %v2373
      %v2432 = vadd.f32 %v2408, %v2378
      %v2433 = vadd.f32 %v2409, %v2383
      %2434 = vst [vmem:[#allocation3] sm:$0xff] %v2410
      %2435 = vst [vmem:[#allocation3 + $0x8] sm:$0xff] %v2411
      %2436 = vst [vmem:[#allocation3 + $0x10] sm:$0xff] %v2412
      %2437 = vst [vmem:[#allocation3 + $0x18] sm:$0xff] %v2413
      %2438 = vst [vmem:[#allocation3 + $0x20] sm:$0xff] %v2414
      %2439 = vst [vmem:[#allocation3 + $0x28] sm:$0xff] %v2415
      %2440 = vst [vmem:[#allocation3 + $0x30] sm:$0xff] %v2416
      %2441 = vst [vmem:[#allocation3 + $0x38] sm:$0xff] %v2417
      %2442 = vst [vmem:[#allocation3 + $0x40] sm:$0xff] %v2418
      %2443 = vst [vmem:[#allocation3 + $0x48] sm:$0xff] %v2419
      %2444 = vst [vmem:[#allocation3 + $0x50] sm:$0xff] %v2420
      %2445 = vst [vmem:[#allocation3 + $0x58] sm:$0xff] %v2421
      %2446 = vst [vmem:[#allocation3 + $0x60] sm:$0xff] %v2422
      %2447 = vst [vmem:[#allocation3 + $0x68] sm:$0xff] %v2423
      %2448 = vst [vmem:[#allocation3 + $0x70] sm:$0xff] %v2424
      %2449 = vst [vmem:[#allocation3 + $0x78] sm:$0xff] %v2425
      %2450 = vst [vmem:[#allocation3 + $0x80] sm:$0xff] %v2426
      %2451 = vst [vmem:[#allocation3 + $0x88] sm:$0xff] %v2427
      %2452 = vst [vmem:[#allocation3 + $0x90] sm:$0xff] %v2428
      %2453 = vst [vmem:[#allocation3 + $0x98] sm:$0xff] %v2429
      %2454 = vst [vmem:[#allocation3 + $0xa0] sm:$0xff] %v2430
      %2455 = vst [vmem:[#allocation3 + $0xa8] sm:$0xff] %v2431
      %2456 = vst [vmem:[#allocation3 + $0xb0] sm:$0xff] %v2432
      %2457 = vst [vmem:[#allocation3 + $0xb8] sm:$0xff] %v2433
      %s2458 = scalar_lea.vmem %s4, 640
      %v2459 = vld [vmem:[%s2458] sm:$0xff]
      %v2460 = vld [vmem:[%s2458 + $0x8] sm:$0xff]
      %v2461 = vld [vmem:[%s2458 + $0x10] sm:$0xff]
      %v2462 = vld [vmem:[%s2458 + $0x18] sm:$0xff]
      %v2463 = vld [vmem:[%s2458 + $0x20] sm:$0xff]
      %v2464 = vld [vmem:[%s2458 + $0x28] sm:$0xff]
      %v2465 = vld [vmem:[%s2458 + $0x30] sm:$0xff]
      %v2466 = vld [vmem:[%s2458 + $0x38] sm:$0xff]
      %v2467 = vld [vmem:[%s2458 + $0x40] sm:$0xff]
      %v2468 = vld [vmem:[%s2458 + $0x48] sm:$0xff]
      %v2469 = vld [vmem:[%s2458 + $0x50] sm:$0xff]
      %v2470 = vld [vmem:[%s2458 + $0x58] sm:$0xff]
      %v2471 = vld [vmem:[%s2458 + $0x60] sm:$0xff]
      %v2472 = vld [vmem:[%s2458 + $0x68] sm:$0xff]
      %v2473 = vld [vmem:[%s2458 + $0x70] sm:$0xff]
      %v2474 = vld [vmem:[%s2458 + $0x78] sm:$0xff]
      %v2475 = vrot.slane %v907, 2
      %v2476 = vsel %vm1568, %v1616, %v2475
      %v2477 = vrot.slane %v959, 2
      %v2478 = vsel %vm1568, %v2475, %v2477
      %v2479 = vrot.slane %v950, 2
      %v2480 = vsel %vm1568, %v2477, %v2479
      %2484 = vmatprep.subr.mxu0 0.0
      %2485 = vmatpush1.msra.mxu0 %v2459
      %2486 = vmatprep.subr.mxu0 0.0
      %2487 = vmatpush1.msra.mxu0 %v2460
      %2488 = vmatprep.subr.mxu0 0.0
      %2489 = vmatpush1.msra.mxu0 %v2461
      %2490 = vmatprep.subr.mxu0 0.0
      %2491 = vmatpush1.msra.mxu0 %v2462
      %2492 = vmatprep.subr.mxu0 0.0
      %2493 = vmatpush1.msra.mxu0 %v2463
      %2494 = vmatprep.subr.mxu0 0.0
      %2495 = vmatpush1.msra.mxu0 %v2464
      %2496 = vmatprep.subr.mxu0 0.0
      %2497 = vmatpush1.msra.mxu0 %v2465
      %2498 = vmatprep.subr.mxu0 0.0
      %2499 = vmatpush1.msra.mxu0 %v2466
      %2500 = vmatprep.subr.mxu0 0.0
      %2501 = vmatpush1.msra.mxu0 %v2467
      %2502 = vmatprep.subr.mxu0 0.0
      %2503 = vmatpush1.msra.mxu0 %v2468
      %2504 = vmatprep.subr.mxu0 0.0
      %2505 = vmatpush1.msra.mxu0 %v2469
      %2506 = vmatprep.subr.mxu0 0.0
      %2507 = vmatpush1.msra.mxu0 %v2470
      %2508 = vmatprep.subr.mxu0 0.0
      %2509 = vmatpush1.msra.mxu0 %v2471
      %2510 = vmatprep.subr.mxu0 0.0
      %2511 = vmatpush1.msra.mxu0 %v2472
      %2512 = vmatprep.subr.mxu0 0.0
      %2513 = vmatpush1.msra.mxu0 %v2473
      %2514 = vmatprep.subr.mxu0 0.0
      %2515 = vmatpush1.msra.mxu0 %v2474
      %2516 = vmatprep.subr.mxu0 0.0
      %2517 = vmatpush1.msra.mxu0 0.0
      %2518 = vmatprep.subr.mxu0 0.0
      %2519 = vmatpush1.msra.mxu0 0.0
      %2520 = vmatprep.subr.mxu0 0.0
      %2521 = vmatpush1.msra.mxu0 0.0
      %2522 = vmatprep.subr.mxu0 0.0
      %2523 = vmatpush1.msra.mxu0 0.0
      %2524 = vmatprep.subr.mxu0 0.0
      %2525 = vmatpush1.msra.mxu0 0.0
      %2526 = vmatprep.subr.mxu0 0.0
      %2527 = vmatpush1.msra.mxu0 0.0
      %2528 = vmatprep.subr.mxu0 0.0
      %2529 = vmatpush1.msra.mxu0 0.0
      %2530 = vmatprep.subr.mxu0 0.0
      %2531 = vmatpush1.msra.mxu0 0.0
      %2532 = vmatprep.subr.mxu0 0.0
      %2533 = vmatpush1.msra.mxu0 0.0
      %2534 = vmatprep.subr.mxu0 0.0
      %2535 = vmatpush1.msra.mxu0 0.0
      %2536 = vmatprep.subr.mxu0 0.0
      %2537 = vmatpush1.msra.mxu0 0.0
      %2538 = vmatprep.subr.mxu0 0.0
      %2539 = vmatpush1.msra.mxu0 0.0
      %2540 = vmatprep.subr.mxu0 0.0
      %2541 = vmatpush1.msra.mxu0 0.0
      %2542 = vmatprep.subr.mxu0 0.0
      %2543 = vmatpush1.msra.mxu0 0.0
      %2544 = vmatprep.subr.mxu0 0.0
      %2545 = vmatpush1.msra.mxu0 0.0
      %2546 = vmatprep.subr.mxu0 0.0
      %2547 = vmatpush1.msra.mxu0 0.0
      %2548 = vmatprep.mubr.f32.mxu0 0.0
      %2549 = vmatmul.mubr.f32.gmra.mrb[0].mxu0 %v1577
      %v2550 = vpop.f32.mrb[0].mxu0
      %v2551 = vadd.f32 0.0, %v2550
      %v2552 = vpop.f32.mrb[0].mxu0
      %2553 = vmatprep.mubr.f32.mxu0 0.0
      %2554 = vmatmul.mubr.f32.gmra.mrb[0].mxu0 %v1579
      %v2555 = vpop.f32.mrb[0].mxu0
      %v2556 = vadd.f32 0.0, %v2555
      %v2557 = vpop.f32.mrb[0].mxu0
      %2558 = vmatprep.mubr.f32.mxu0 0.0
      %2559 = vmatmul.mubr.f32.gmra.mrb[0].mxu0 %v1581
      %v2560 = vpop.f32.mrb[0].mxu0
      %v2561 = vadd.f32 0.0, %v2560
      %v2562 = vpop.f32.mrb[0].mxu0
      %2563 = vmatprep.mubr.f32.mxu0 0.0
      %2564 = vmatmul.mubr.f32.gmra.mrb[0].mxu0 %v1583
      %v2565 = vpop.f32.mrb[0].mxu0
      %v2566 = vadd.f32 0.0, %v2565
      %v2567 = vpop.f32.mrb[0].mxu0
      %2568 = vmatprep.mubr.f32.mxu0 0.0
      %2569 = vmatmul.mubr.f32.gmra.mrb[0].mxu0 %v1585
      %v2570 = vpop.f32.mrb[0].mxu0
      %v2571 = vadd.f32 0.0, %v2570
      %v2572 = vpop.f32.mrb[0].mxu0
      %2573 = vmatprep.mubr.f32.mxu0 0.0
      %2574 = vmatmul.mubr.f32.gmra.mrb[0].mxu0 %v1587
      %v2575 = vpop.f32.mrb[0].mxu0
      %v2576 = vadd.f32 0.0, %v2575
      %v2577 = vpop.f32.mrb[0].mxu0
      %2578 = vmatprep.mubr.f32.mxu0 0.0
      %2579 = vmatmul.mubr.f32.gmra.mrb[0].mxu0 %v1589
      %v2580 = vpop.f32.mrb[0].mxu0
      %v2581 = vadd.f32 0.0, %v2580
      %v2582 = vpop.f32.mrb[0].mxu0
      %2583 = vmatprep.mubr.f32.mxu0 0.0
      %2584 = vmatmul.mubr.f32.gmra.mrb[0].mxu0 %v1591
      %v2585 = vpop.f32.mrb[0].mxu0
      %v2586 = vadd.f32 0.0, %v2585
      %v2587 = vpop.f32.mrb[0].mxu0
      %2588 = vmatprep.mubr.f32.mxu0 0.0
      %2589 = vmatmul.mubr.f32.gmra.mrb[0].mxu0 %v1593
      %v2590 = vpop.f32.mrb[0].mxu0
      %v2591 = vadd.f32 0.0, %v2590
      %v2592 = vpop.f32.mrb[0].mxu0
      %2593 = vmatprep.mubr.f32.mxu0 0.0
      %2594 = vmatmul.mubr.f32.gmra.mrb[0].mxu0 %v1595
      %v2595 = vpop.f32.mrb[0].mxu0
      %v2596 = vadd.f32 0.0, %v2595
      %v2597 = vpop.f32.mrb[0].mxu0
      %2598 = vmatprep.mubr.f32.mxu0 0.0
      %2599 = vmatmul.mubr.f32.gmra.mrb[0].mxu0 %v1597
      %v2600 = vpop.f32.mrb[0].mxu0
      %v2601 = vadd.f32 0.0, %v2600
      %v2602 = vpop.f32.mrb[0].mxu0
      %2603 = vmatprep.mubr.f32.mxu0 0.0
      %2604 = vmatmul.mubr.f32.gmra.mrb[0].mxu0 %v1599
      %v2605 = vpop.f32.mrb[0].mxu0
      %v2606 = vadd.f32 0.0, %v2605
      %v2607 = vpop.f32.mrb[0].mxu0
      %2608 = vmatprep.mubr.f32.mxu0 0.0
      %2609 = vmatmul.mubr.f32.gmra.mrb[0].mxu0 %v1601
      %v2610 = vpop.f32.mrb[0].mxu0
      %v2611 = vadd.f32 0.0, %v2610
      %v2612 = vpop.f32.mrb[0].mxu0
      %2613 = vmatprep.mubr.f32.mxu0 0.0
      %2614 = vmatmul.mubr.f32.gmra.mrb[0].mxu0 %v1603
      %v2615 = vpop.f32.mrb[0].mxu0
      %v2616 = vadd.f32 0.0, %v2615
      %v2617 = vpop.f32.mrb[0].mxu0
      %2618 = vmatprep.mubr.f32.mxu0 0.0
      %2619 = vmatmul.mubr.f32.gmra.mrb[0].mxu0 %v1605
      %v2620 = vpop.f32.mrb[0].mxu0
      %v2621 = vadd.f32 0.0, %v2620
      %v2622 = vpop.f32.mrb[0].mxu0
      %2623 = vmatprep.mubr.f32.mxu0 0.0
      %2624 = vmatmul.mubr.f32.gmra.mrb[0].mxu0 %v1607
      %v2625 = vpop.f32.mrb[0].mxu0
      %v2626 = vadd.f32 0.0, %v2625
      %v2627 = vpop.f32.mrb[0].mxu0
      %2628 = vmatprep.mubr.f32.mxu0 0.0
      %2629 = vmatmul.mubr.f32.gmra.mrb[0].mxu0 %v1609
      %v2630 = vpop.f32.mrb[0].mxu0
      %v2631 = vadd.f32 0.0, %v2630
      %v2632 = vpop.f32.mrb[0].mxu0
      %2633 = vmatprep.mubr.f32.mxu0 0.0
      %2634 = vmatmul.mubr.f32.gmra.mrb[0].mxu0 %v1611
      %v2635 = vpop.f32.mrb[0].mxu0
      %v2636 = vadd.f32 0.0, %v2635
      %v2637 = vpop.f32.mrb[0].mxu0
      %2638 = vmatprep.mubr.f32.mxu0 0.0
      %2639 = vmatmul.mubr.f32.gmra.mrb[0].mxu0 %v1613
      %v2640 = vpop.f32.mrb[0].mxu0
      %v2641 = vadd.f32 0.0, %v2640
      %v2642 = vpop.f32.mrb[0].mxu0
      %2643 = vmatprep.mubr.f32.mxu0 0.0
      %2644 = vmatmul.mubr.f32.gmra.mrb[0].mxu0 %v1615
      %v2645 = vpop.f32.mrb[0].mxu0
      %v2646 = vadd.f32 0.0, %v2645
      %v2647 = vpop.f32.mrb[0].mxu0
      %2648 = vmatprep.mubr.f32.mxu0 0.0
      %2649 = vmatmul.mubr.f32.gmra.mrb[0].mxu0 %v1617
      %v2650 = vpop.f32.mrb[0].mxu0
      %v2651 = vadd.f32 0.0, %v2650
      %v2652 = vpop.f32.mrb[0].mxu0
      %2653 = vmatprep.mubr.f32.mxu0 0.0
      %2654 = vmatmul.mubr.f32.gmra.mrb[0].mxu0 %v2476
      %v2655 = vpop.f32.mrb[0].mxu0
      %v2656 = vadd.f32 0.0, %v2655
      %v2657 = vpop.f32.mrb[0].mxu0
      %2658 = vmatprep.mubr.f32.mxu0 0.0
      %2659 = vmatmul.mubr.f32.gmra.mrb[0].mxu0 %v2478
      %v2660 = vpop.f32.mrb[0].mxu0
      %v2661 = vadd.f32 0.0, %v2660
      %v2662 = vpop.f32.mrb[0].mxu0
      %2663 = vmatprep.mubr.f32.mxu0 0.0
      %2664 = vmatmul.mubr.f32.gmra.mrb[0].mxu0 %v2480
      %v2665 = vpop.f32.mrb[0].mxu0
      %v2666 = vadd.f32 0.0, %v2665
      %v2667 = vpop.f32.mrb[0].mxu0
      %2668 = vdwg.mxu0
      %v2669 = vld [vmem:[#allocation3] sm:$0xff]
      %v2670 = vld [vmem:[#allocation3 + $0x8] sm:$0xff]
      %v2671 = vld [vmem:[#allocation3 + $0x10] sm:$0xff]
      %v2672 = vld [vmem:[#allocation3 + $0x18] sm:$0xff]
      %v2673 = vld [vmem:[#allocation3 + $0x20] sm:$0xff]
      %v2674 = vld [vmem:[#allocation3 + $0x28] sm:$0xff]
      %v2675 = vld [vmem:[#allocation3 + $0x30] sm:$0xff]
      %v2676 = vld [vmem:[#allocation3 + $0x38] sm:$0xff]
      %v2677 = vld [vmem:[#allocation3 + $0x40] sm:$0xff]
      %v2678 = vld [vmem:[#allocation3 + $0x48] sm:$0xff]
      %v2679 = vld [vmem:[#allocation3 + $0x50] sm:$0xff]
      %v2680 = vld [vmem:[#allocation3 + $0x58] sm:$0xff]
      %v2681 = vld [vmem:[#allocation3 + $0x60] sm:$0xff]
      %v2682 = vld [vmem:[#allocation3 + $0x68] sm:$0xff]
      %v2683 = vld [vmem:[#allocation3 + $0x70] sm:$0xff]
      %v2684 = vld [vmem:[#allocation3 + $0x78] sm:$0xff]
      %v2685 = vld [vmem:[#allocation3 + $0x80] sm:$0xff]
      %v2686 = vld [vmem:[#allocation3 + $0x88] sm:$0xff]
      %v2687 = vld [vmem:[#allocation3 + $0x90] sm:$0xff]
      %v2688 = vld [vmem:[#allocation3 + $0x98] sm:$0xff]
      %v2689 = vld [vmem:[#allocation3 + $0xa0] sm:$0xff]
      %v2690 = vld [vmem:[#allocation3 + $0xa8] sm:$0xff]
      %v2691 = vld [vmem:[#allocation3 + $0xb0] sm:$0xff]
      %v2692 = vld [vmem:[#allocation3 + $0xb8] sm:$0xff]
      %v2693 = vadd.f32 %v2669, %v2551
      %v2694 = vadd.f32 %v2670, %v2556
      %v2695 = vadd.f32 %v2671, %v2561
      %v2696 = vadd.f32 %v2672, %v2566
      %v2697 = vadd.f32 %v2673, %v2571
      %v2698 = vadd.f32 %v2674, %v2576
      %v2699 = vadd.f32 %v2675, %v2581
      %v2700 = vadd.f32 %v2676, %v2586
      %v2701 = vadd.f32 %v2677, %v2591
      %v2702 = vadd.f32 %v2678, %v2596
      %v2703 = vadd.f32 %v2679, %v2601
      %v2704 = vadd.f32 %v2680, %v2606
      %v2705 = vadd.f32 %v2681, %v2611
      %v2706 = vadd.f32 %v2682, %v2616
      %v2707 = vadd.f32 %v2683, %v2621
      %v2708 = vadd.f32 %v2684, %v2626
      %v2709 = vadd.f32 %v2685, %v2631
      %v2710 = vadd.f32 %v2686, %v2636
      %v2711 = vadd.f32 %v2687, %v2641
      %v2712 = vadd.f32 %v2688, %v2646
      %v2713 = vadd.f32 %v2689, %v2651
      %v2714 = vadd.f32 %v2690, %v2656
      %v2715 = vadd.f32 %v2691, %v2661
      %v2716 = vadd.f32 %v2692, %v2666
      %2717 = vst [vmem:[#allocation3] sm:$0xff] %v2693
      %2718 = vst [vmem:[#allocation3 + $0x8] sm:$0xff] %v2694
      %2719 = vst [vmem:[#allocation3 + $0x10] sm:$0xff] %v2695
      %2720 = vst [vmem:[#allocation3 + $0x18] sm:$0xff] %v2696
      %2721 = vst [vmem:[#allocation3 + $0x20] sm:$0xff] %v2697
      %2722 = vst [vmem:[#allocation3 + $0x28] sm:$0xff] %v2698
      %2723 = vst [vmem:[#allocation3 + $0x30] sm:$0xff] %v2699
      %2724 = vst [vmem:[#allocation3 + $0x38] sm:$0xff] %v2700
      %2725 = vst [vmem:[#allocation3 + $0x40] sm:$0xff] %v2701
      %2726 = vst [vmem:[#allocation3 + $0x48] sm:$0xff] %v2702
      %2727 = vst [vmem:[#allocation3 + $0x50] sm:$0xff] %v2703
      %2728 = vst [vmem:[#allocation3 + $0x58] sm:$0xff] %v2704
      %2729 = vst [vmem:[#allocation3 + $0x60] sm:$0xff] %v2705
      %2730 = vst [vmem:[#allocation3 + $0x68] sm:$0xff] %v2706
      %2731 = vst [vmem:[#allocation3 + $0x70] sm:$0xff] %v2707
      %2732 = vst [vmem:[#allocation3 + $0x78] sm:$0xff] %v2708
      %2733 = vst [vmem:[#allocation3 + $0x80] sm:$0xff] %v2709
      %2734 = vst [vmem:[#allocation3 + $0x88] sm:$0xff] %v2710
      %2735 = vst [vmem:[#allocation3 + $0x90] sm:$0xff] %v2711
      %2736 = vst [vmem:[#allocation3 + $0x98] sm:$0xff] %v2712
      %2737 = vst [vmem:[#allocation3 + $0xa0] sm:$0xff] %v2713
      %2738 = vst [vmem:[#allocation3 + $0xa8] sm:$0xff] %v2714
      %2739 = vst [vmem:[#allocation3 + $0xb0] sm:$0xff] %v2715
      %2740 = vst [vmem:[#allocation3 + $0xb8] sm:$0xff] %v2716
      %s2741 = scalar_lea.vmem %s4, 768
      %v2742 = vld [vmem:[%s2741] sm:$0xff]
      %v2743 = vld [vmem:[%s2741 + $0x8] sm:$0xff]
      %v2744 = vld [vmem:[%s2741 + $0x10] sm:$0xff]
      %v2745 = vld [vmem:[%s2741 + $0x18] sm:$0xff]
      %v2746 = vld [vmem:[%s2741 + $0x20] sm:$0xff]
      %v2747 = vld [vmem:[%s2741 + $0x28] sm:$0xff]
      %v2748 = vld [vmem:[%s2741 + $0x30] sm:$0xff]
      %v2749 = vld [vmem:[%s2741 + $0x38] sm:$0xff]
      %v2750 = vld [vmem:[%s2741 + $0x40] sm:$0xff]
      %v2751 = vld [vmem:[%s2741 + $0x48] sm:$0xff]
      %v2752 = vld [vmem:[%s2741 + $0x50] sm:$0xff]
      %v2753 = vld [vmem:[%s2741 + $0x58] sm:$0xff]
      %v2754 = vld [vmem:[%s2741 + $0x60] sm:$0xff]
      %v2755 = vld [vmem:[%s2741 + $0x68] sm:$0xff]
      %v2756 = vld [vmem:[%s2741 + $0x70] sm:$0xff]
      %v2757 = vld [vmem:[%s2741 + $0x78] sm:$0xff]
      %2758 = vmatprep.subr.mxu0 0.0
      %2759 = vmatpush1.msra.mxu0 %v2742
      %2760 = vmatprep.subr.mxu0 0.0
      %2761 = vmatpush1.msra.mxu0 %v2743
      %2762 = vmatprep.subr.mxu0 0.0
      %2763 = vmatpush1.msra.mxu0 %v2744
      %2764 = vmatprep.subr.mxu0 0.0
      %2765 = vmatpush1.msra.mxu0 %v2745
      %2766 = vmatprep.subr.mxu0 0.0
      %2767 = vmatpush1.msra.mxu0 %v2746
      %2768 = vmatprep.subr.mxu0 0.0
      %2769 = vmatpush1.msra.mxu0 %v2747
      %2770 = vmatprep.subr.mxu0 0.0
      %2771 = vmatpush1.msra.mxu0 %v2748
      %2772 = vmatprep.subr.mxu0 0.0
      %2773 = vmatpush1.msra.mxu0 %v2749
      %2774 = vmatprep.subr.mxu0 0.0
      %2775 = vmatpush1.msra.mxu0 %v2750
      %2776 = vmatprep.subr.mxu0 0.0
      %2777 = vmatpush1.msra.mxu0 %v2751
      %2778 = vmatprep.subr.mxu0 0.0
      %2779 = vmatpush1.msra.mxu0 %v2752
      %2780 = vmatprep.subr.mxu0 0.0
      %2781 = vmatpush1.msra.mxu0 %v2753
      %2782 = vmatprep.subr.mxu0 0.0
      %2783 = vmatpush1.msra.mxu0 %v2754
      %2784 = vmatprep.subr.mxu0 0.0
      %2785 = vmatpush1.msra.mxu0 %v2755
      %2786 = vmatprep.subr.mxu0 0.0
      %2787 = vmatpush1.msra.mxu0 %v2756
      %2788 = vmatprep.subr.mxu0 0.0
      %2789 = vmatpush1.msra.mxu0 %v2757
      %2790 = vmatprep.subr.mxu0 0.0
      %2791 = vmatpush1.msra.mxu0 0.0
      %2792 = vmatprep.subr.mxu0 0.0
      %2793 = vmatpush1.msra.mxu0 0.0
      %2794 = vmatprep.subr.mxu0 0.0
      %2795 = vmatpush1.msra.mxu0 0.0
      %2796 = vmatprep.subr.mxu0 0.0
      %2797 = vmatpush1.msra.mxu0 0.0
      %2798 = vmatprep.subr.mxu0 0.0
      %2799 = vmatpush1.msra.mxu0 0.0
      %2800 = vmatprep.subr.mxu0 0.0
      %2801 = vmatpush1.msra.mxu0 0.0
      %2802 = vmatprep.subr.mxu0 0.0
      %2803 = vmatpush1.msra.mxu0 0.0
      %2804 = vmatprep.subr.mxu0 0.0
      %2805 = vmatpush1.msra.mxu0 0.0
      %2806 = vmatprep.subr.mxu0 0.0
      %2807 = vmatpush1.msra.mxu0 0.0
      %2808 = vmatprep.subr.mxu0 0.0
      %2809 = vmatpush1.msra.mxu0 0.0
      %2810 = vmatprep.subr.mxu0 0.0
      %2811 = vmatpush1.msra.mxu0 0.0
      %2812 = vmatprep.subr.mxu0 0.0
      %2813 = vmatpush1.msra.mxu0 0.0
      %2814 = vmatprep.subr.mxu0 0.0
      %2815 = vmatpush1.msra.mxu0 0.0
      %2816 = vmatprep.subr.mxu0 0.0
      %2817 = vmatpush1.msra.mxu0 0.0
      %2818 = vmatprep.subr.mxu0 0.0
      %2819 = vmatpush1.msra.mxu0 0.0
      %2820 = vmatprep.subr.mxu0 0.0
      %2821 = vmatpush1.msra.mxu0 0.0
      %2822 = vmatprep.mubr.f32.mxu0 0.0
      %2823 = vmatmul.mubr.f32.gmra.mrb[0].mxu0 %v943
      %v2824 = vpop.f32.mrb[0].mxu0
      %v2825 = vadd.f32 0.0, %v2824
      %v2826 = vpop.f32.mrb[0].mxu0
      %2827 = vmatprep.mubr.f32.mxu0 0.0
      %2828 = vmatmul.mubr.f32.gmra.mrb[0].mxu0 %v889
      %v2829 = vpop.f32.mrb[0].mxu0
      %v2830 = vadd.f32 0.0, %v2829
      %v2831 = vpop.f32.mrb[0].mxu0
      %2832 = vmatprep.mubr.f32.mxu0 0.0
      %2833 = vmatmul.mubr.f32.gmra.mrb[0].mxu0 %v953
      %v2834 = vpop.f32.mrb[0].mxu0
      %v2835 = vadd.f32 0.0, %v2834
      %v2836 = vpop.f32.mrb[0].mxu0
      %2837 = vmatprep.mubr.f32.mxu0 0.0
      %2838 = vmatmul.mubr.f32.gmra.mrb[0].mxu0 %v944
      %v2839 = vpop.f32.mrb[0].mxu0
      %v2840 = vadd.f32 0.0, %v2839
      %v2841 = vpop.f32.mrb[0].mxu0
      %2842 = vmatprep.mubr.f32.mxu0 0.0
      %2843 = vmatmul.mubr.f32.gmra.mrb[0].mxu0 %v892
      %v2844 = vpop.f32.mrb[0].mxu0
      %v2845 = vadd.f32 0.0, %v2844
      %v2846 = vpop.f32.mrb[0].mxu0
      %2847 = vmatprep.mubr.f32.mxu0 0.0
      %2848 = vmatmul.mubr.f32.gmra.mrb[0].mxu0 %v954
      %v2849 = vpop.f32.mrb[0].mxu0
      %v2850 = vadd.f32 0.0, %v2849
      %v2851 = vpop.f32.mrb[0].mxu0
      %2852 = vmatprep.mubr.f32.mxu0 0.0
      %2853 = vmatmul.mubr.f32.gmra.mrb[0].mxu0 %v945
      %v2854 = vpop.f32.mrb[0].mxu0
      %v2855 = vadd.f32 0.0, %v2854
      %v2856 = vpop.f32.mrb[0].mxu0
      %2857 = vmatprep.mubr.f32.mxu0 0.0
      %2858 = vmatmul.mubr.f32.gmra.mrb[0].mxu0 %v895
      %v2859 = vpop.f32.mrb[0].mxu0
      %v2860 = vadd.f32 0.0, %v2859
      %v2861 = vpop.f32.mrb[0].mxu0
      %2862 = vmatprep.mubr.f32.mxu0 0.0
      %2863 = vmatmul.mubr.f32.gmra.mrb[0].mxu0 %v955
      %v2864 = vpop.f32.mrb[0].mxu0
      %v2865 = vadd.f32 0.0, %v2864
      %v2866 = vpop.f32.mrb[0].mxu0
      %2867 = vmatprep.mubr.f32.mxu0 0.0
      %2868 = vmatmul.mubr.f32.gmra.mrb[0].mxu0 %v946
      %v2869 = vpop.f32.mrb[0].mxu0
      %v2870 = vadd.f32 0.0, %v2869
      %v2871 = vpop.f32.mrb[0].mxu0
      %2872 = vmatprep.mubr.f32.mxu0 0.0
      %2873 = vmatmul.mubr.f32.gmra.mrb[0].mxu0 %v898
      %v2874 = vpop.f32.mrb[0].mxu0
      %v2875 = vadd.f32 0.0, %v2874
      %v2876 = vpop.f32.mrb[0].mxu0
      %2877 = vmatprep.mubr.f32.mxu0 0.0
      %2878 = vmatmul.mubr.f32.gmra.mrb[0].mxu0 %v956
      %v2879 = vpop.f32.mrb[0].mxu0
      %v2880 = vadd.f32 0.0, %v2879
      %v2881 = vpop.f32.mrb[0].mxu0
      %2882 = vmatprep.mubr.f32.mxu0 0.0
      %2883 = vmatmul.mubr.f32.gmra.mrb[0].mxu0 %v947
      %v2884 = vpop.f32.mrb[0].mxu0
      %v2885 = vadd.f32 0.0, %v2884
      %v2886 = vpop.f32.mrb[0].mxu0
      %2887 = vmatprep.mubr.f32.mxu0 0.0
      %2888 = vmatmul.mubr.f32.gmra.mrb[0].mxu0 %v901
      %v2889 = vpop.f32.mrb[0].mxu0
      %v2890 = vadd.f32 0.0, %v2889
      %v2891 = vpop.f32.mrb[0].mxu0
      %2892 = vmatprep.mubr.f32.mxu0 0.0
      %2893 = vmatmul.mubr.f32.gmra.mrb[0].mxu0 %v957
      %v2894 = vpop.f32.mrb[0].mxu0
      %v2895 = vadd.f32 0.0, %v2894
      %v2896 = vpop.f32.mrb[0].mxu0
      %2897 = vmatprep.mubr.f32.mxu0 0.0
      %2898 = vmatmul.mubr.f32.gmra.mrb[0].mxu0 %v948
      %v2899 = vpop.f32.mrb[0].mxu0
      %v2900 = vadd.f32 0.0, %v2899
      %v2901 = vpop.f32.mrb[0].mxu0
      %2902 = vmatprep.mubr.f32.mxu0 0.0
      %2903 = vmatmul.mubr.f32.gmra.mrb[0].mxu0 %v904
      %v2904 = vpop.f32.mrb[0].mxu0
      %v2905 = vadd.f32 0.0, %v2904
      %v2906 = vpop.f32.mrb[0].mxu0
      %2907 = vmatprep.mubr.f32.mxu0 0.0
      %2908 = vmatmul.mubr.f32.gmra.mrb[0].mxu0 %v958
      %v2909 = vpop.f32.mrb[0].mxu0
      %v2910 = vadd.f32 0.0, %v2909
      %v2911 = vpop.f32.mrb[0].mxu0
      %2912 = vmatprep.mubr.f32.mxu0 0.0
      %2913 = vmatmul.mubr.f32.gmra.mrb[0].mxu0 %v949
      %v2914 = vpop.f32.mrb[0].mxu0
      %v2915 = vadd.f32 0.0, %v2914
      %v2916 = vpop.f32.mrb[0].mxu0
      %2917 = vmatprep.mubr.f32.mxu0 0.0
      %2918 = vmatmul.mubr.f32.gmra.mrb[0].mxu0 %v907
      %v2919 = vpop.f32.mrb[0].mxu0
      %v2920 = vadd.f32 0.0, %v2919
      %v2921 = vpop.f32.mrb[0].mxu0
      %2922 = vmatprep.mubr.f32.mxu0 0.0
      %2923 = vmatmul.mubr.f32.gmra.mrb[0].mxu0 %v959
      %v2924 = vpop.f32.mrb[0].mxu0
      %v2925 = vadd.f32 0.0, %v2924
      %v2926 = vpop.f32.mrb[0].mxu0
      %2927 = vmatprep.mubr.f32.mxu0 0.0
      %2928 = vmatmul.mubr.f32.gmra.mrb[0].mxu0 %v950
      %v2929 = vpop.f32.mrb[0].mxu0
      %v2930 = vadd.f32 0.0, %v2929
      %v2931 = vpop.f32.mrb[0].mxu0
      %2932 = vmatprep.mubr.f32.mxu0 0.0
      %2933 = vmatmul.mubr.f32.gmra.mrb[0].mxu0 %v910
      %v2934 = vpop.f32.mrb[0].mxu0
      %v2935 = vadd.f32 0.0, %v2934
      %v2936 = vpop.f32.mrb[0].mxu0
      %2937 = vmatprep.mubr.f32.mxu0 0.0
      %2938 = vmatmul.mubr.f32.gmra.mrb[0].mxu0 %v960
      %v2939 = vpop.f32.mrb[0].mxu0
      %v2940 = vadd.f32 0.0, %v2939
      %v2941 = vpop.f32.mrb[0].mxu0
      %2942 = vdwg.mxu0
      %v2943 = vld [vmem:[#allocation3] sm:$0xff]
      %v2944 = vld [vmem:[#allocation3 + $0x8] sm:$0xff]
      %v2945 = vld [vmem:[#allocation3 + $0x10] sm:$0xff]
      %v2946 = vld [vmem:[#allocation3 + $0x18] sm:$0xff]
      %v2947 = vld [vmem:[#allocation3 + $0x20] sm:$0xff]
      %v2948 = vld [vmem:[#allocation3 + $0x28] sm:$0xff]
      %v2949 = vld [vmem:[#allocation3 + $0x30] sm:$0xff]
      %v2950 = vld [vmem:[#allocation3 + $0x38] sm:$0xff]
      %v2951 = vld [vmem:[#allocation3 + $0x40] sm:$0xff]
      %v2952 = vld [vmem:[#allocation3 + $0x48] sm:$0xff]
      %v2953 = vld [vmem:[#allocation3 + $0x50] sm:$0xff]
      %v2954 = vld [vmem:[#allocation3 + $0x58] sm:$0xff]
      %v2955 = vld [vmem:[#allocation3 + $0x60] sm:$0xff]
      %v2956 = vld [vmem:[#allocation3 + $0x68] sm:$0xff]
      %v2957 = vld [vmem:[#allocation3 + $0x70] sm:$0xff]
      %v2958 = vld [vmem:[#allocation3 + $0x78] sm:$0xff]
      %v2959 = vld [vmem:[#allocation3 + $0x80] sm:$0xff]
      %v2960 = vld [vmem:[#allocation3 + $0x88] sm:$0xff]
      %v2961 = vld [vmem:[#allocation3 + $0x90] sm:$0xff]
      %v2962 = vld [vmem:[#allocation3 + $0x98] sm:$0xff]
      %v2963 = vld [vmem:[#allocation3 + $0xa0] sm:$0xff]
      %v2964 = vld [vmem:[#allocation3 + $0xa8] sm:$0xff]
      %v2965 = vld [vmem:[#allocation3 + $0xb0] sm:$0xff]
      %v2966 = vld [vmem:[#allocation3 + $0xb8] sm:$0xff]
      %v2967 = vadd.f32 %v2943, %v2825
      %v2968 = vadd.f32 %v2944, %v2830
      %v2969 = vadd.f32 %v2945, %v2835
      %v2970 = vadd.f32 %v2946, %v2840
      %v2971 = vadd.f32 %v2947, %v2845
      %v2972 = vadd.f32 %v2948, %v2850
      %v2973 = vadd.f32 %v2949, %v2855
      %v2974 = vadd.f32 %v2950, %v2860
      %v2975 = vadd.f32 %v2951, %v2865
      %v2976 = vadd.f32 %v2952, %v2870
      %v2977 = vadd.f32 %v2953, %v2875
      %v2978 = vadd.f32 %v2954, %v2880
      %v2979 = vadd.f32 %v2955, %v2885
      %v2980 = vadd.f32 %v2956, %v2890
      %v2981 = vadd.f32 %v2957, %v2895
      %v2982 = vadd.f32 %v2958, %v2900
      %v2983 = vadd.f32 %v2959, %v2905
      %v2984 = vadd.f32 %v2960, %v2910
      %v2985 = vadd.f32 %v2961, %v2915
      %v2986 = vadd.f32 %v2962, %v2920
      %v2987 = vadd.f32 %v2963, %v2925
      %v2988 = vadd.f32 %v2964, %v2930
      %v2989 = vadd.f32 %v2965, %v2935
      %v2990 = vadd.f32 %v2966, %v2940
      %2991 = vst [vmem:[#allocation3] sm:$0xff] %v2967
      %2992 = vst [vmem:[#allocation3 + $0x8] sm:$0xff] %v2968
      %2993 = vst [vmem:[#allocation3 + $0x10] sm:$0xff] %v2969
      %2994 = vst [vmem:[#allocation3 + $0x18] sm:$0xff] %v2970
      %2995 = vst [vmem:[#allocation3 + $0x20] sm:$0xff] %v2971
      %2996 = vst [vmem:[#allocation3 + $0x28] sm:$0xff] %v2972
      %2997 = vst [vmem:[#allocation3 + $0x30] sm:$0xff] %v2973
      %2998 = vst [vmem:[#allocation3 + $0x38] sm:$0xff] %v2974
      %2999 = vst [vmem:[#allocation3 + $0x40] sm:$0xff] %v2975
      %3000 = vst [vmem:[#allocation3 + $0x48] sm:$0xff] %v2976
      %3001 = vst [vmem:[#allocation3 + $0x50] sm:$0xff] %v2977
      %3002 = vst [vmem:[#allocation3 + $0x58] sm:$0xff] %v2978
      %3003 = vst [vmem:[#allocation3 + $0x60] sm:$0xff] %v2979
      %3004 = vst [vmem:[#allocation3 + $0x68] sm:$0xff] %v2980
      %3005 = vst [vmem:[#allocation3 + $0x70] sm:$0xff] %v2981
      %3006 = vst [vmem:[#allocation3 + $0x78] sm:$0xff] %v2982
      %3007 = vst [vmem:[#allocation3 + $0x80] sm:$0xff] %v2983
      %3008 = vst [vmem:[#allocation3 + $0x88] sm:$0xff] %v2984
      %3009 = vst [vmem:[#allocation3 + $0x90] sm:$0xff] %v2985
      %3010 = vst [vmem:[#allocation3 + $0x98] sm:$0xff] %v2986
      %3011 = vst [vmem:[#allocation3 + $0xa0] sm:$0xff] %v2987
      %3012 = vst [vmem:[#allocation3 + $0xa8] sm:$0xff] %v2988
      %3013 = vst [vmem:[#allocation3 + $0xb0] sm:$0xff] %v2989
      %3014 = vst [vmem:[#allocation3 + $0xb8] sm:$0xff] %v2990
      %s3015 = scalar_lea.vmem %s4, 896
      %v3016 = vld [vmem:[%s3015] sm:$0xff]
      %v3017 = vld [vmem:[%s3015 + $0x8] sm:$0xff]
      %v3018 = vld [vmem:[%s3015 + $0x10] sm:$0xff]
      %v3019 = vld [vmem:[%s3015 + $0x18] sm:$0xff]
      %v3020 = vld [vmem:[%s3015 + $0x20] sm:$0xff]
      %v3021 = vld [vmem:[%s3015 + $0x28] sm:$0xff]
      %v3022 = vld [vmem:[%s3015 + $0x30] sm:$0xff]
      %v3023 = vld [vmem:[%s3015 + $0x38] sm:$0xff]
      %v3024 = vld [vmem:[%s3015 + $0x40] sm:$0xff]
      %v3025 = vld [vmem:[%s3015 + $0x48] sm:$0xff]
      %v3026 = vld [vmem:[%s3015 + $0x50] sm:$0xff]
      %v3027 = vld [vmem:[%s3015 + $0x58] sm:$0xff]
      %v3028 = vld [vmem:[%s3015 + $0x60] sm:$0xff]
      %v3029 = vld [vmem:[%s3015 + $0x68] sm:$0xff]
      %v3030 = vld [vmem:[%s3015 + $0x70] sm:$0xff]
      %v3031 = vld [vmem:[%s3015 + $0x78] sm:$0xff]
      %v3034 = vrot.slane %v910, 1
      %v3035 = vsel %vm1220, %v2196, %v3034
      %v3036 = vrot.slane %v960, 1
      %v3037 = vsel %vm1220, %v3034, %v3036
      %v3038 = vrot.slane 0.0, 1
      %v3039 = vsel %vm1220, %v3036, %v3038
      %3043 = vmatprep.subr.mxu0 0.0
      %3044 = vmatpush1.msra.mxu0 %v3016
      %3045 = vmatprep.subr.mxu0 0.0
      %3046 = vmatpush1.msra.mxu0 %v3017
      %3047 = vmatprep.subr.mxu0 0.0
      %3048 = vmatpush1.msra.mxu0 %v3018
      %3049 = vmatprep.subr.mxu0 0.0
      %3050 = vmatpush1.msra.mxu0 %v3019
      %3051 = vmatprep.subr.mxu0 0.0
      %3052 = vmatpush1.msra.mxu0 %v3020
      %3053 = vmatprep.subr.mxu0 0.0
      %3054 = vmatpush1.msra.mxu0 %v3021
      %3055 = vmatprep.subr.mxu0 0.0
      %3056 = vmatpush1.msra.mxu0 %v3022
      %3057 = vmatprep.subr.mxu0 0.0
      %3058 = vmatpush1.msra.mxu0 %v3023
      %3059 = vmatprep.subr.mxu0 0.0
      %3060 = vmatpush1.msra.mxu0 %v3024
      %3061 = vmatprep.subr.mxu0 0.0
      %3062 = vmatpush1.msra.mxu0 %v3025
      %3063 = vmatprep.subr.mxu0 0.0
      %3064 = vmatpush1.msra.mxu0 %v3026
      %3065 = vmatprep.subr.mxu0 0.0
      %3066 = vmatpush1.msra.mxu0 %v3027
      %3067 = vmatprep.subr.mxu0 0.0
      %3068 = vmatpush1.msra.mxu0 %v3028
      %3069 = vmatprep.subr.mxu0 0.0
      %3070 = vmatpush1.msra.mxu0 %v3029
      %3071 = vmatprep.subr.mxu0 0.0
      %3072 = vmatpush1.msra.mxu0 %v3030
      %3073 = vmatprep.subr.mxu0 0.0
      %3074 = vmatpush1.msra.mxu0 %v3031
      %3075 = vmatprep.subr.mxu0 0.0
      %3076 = vmatpush1.msra.mxu0 0.0
      %3077 = vmatprep.subr.mxu0 0.0
      %3078 = vmatpush1.msra.mxu0 0.0
      %3079 = vmatprep.subr.mxu0 0.0
      %3080 = vmatpush1.msra.mxu0 0.0
      %3081 = vmatprep.subr.mxu0 0.0
      %3082 = vmatpush1.msra.mxu0 0.0
      %3083 = vmatprep.subr.mxu0 0.0
      %3084 = vmatpush1.msra.mxu0 0.0
      %3085 = vmatprep.subr.mxu0 0.0
      %3086 = vmatpush1.msra.mxu0 0.0
      %3087 = vmatprep.subr.mxu0 0.0
      %3088 = vmatpush1.msra.mxu0 0.0
      %3089 = vmatprep.subr.mxu0 0.0
      %3090 = vmatpush1.msra.mxu0 0.0
      %3091 = vmatprep.subr.mxu0 0.0
      %3092 = vmatpush1.msra.mxu0 0.0
      %3093 = vmatprep.subr.mxu0 0.0
      %3094 = vmatpush1.msra.mxu0 0.0
      %3095 = vmatprep.subr.mxu0 0.0
      %3096 = vmatpush1.msra.mxu0 0.0
      %3097 = vmatprep.subr.mxu0 0.0
      %3098 = vmatpush1.msra.mxu0 0.0
      %3099 = vmatprep.subr.mxu0 0.0
      %3100 = vmatpush1.msra.mxu0 0.0
      %3101 = vmatprep.subr.mxu0 0.0
      %3102 = vmatpush1.msra.mxu0 0.0
      %3103 = vmatprep.subr.mxu0 0.0
      %3104 = vmatpush1.msra.mxu0 0.0
      %3105 = vmatprep.subr.mxu0 0.0
      %3106 = vmatpush1.msra.mxu0 0.0
      %3107 = vmatprep.mubr.f32.mxu0 0.0
      %3108 = vmatmul.mubr.f32.gmra.mrb[0].mxu0 %v1235
      %v3109 = vpop.f32.mrb[0].mxu0
      %v3110 = vadd.f32 0.0, %v3109
      %v3111 = vpop.f32.mrb[0].mxu0
      %3112 = vmatprep.mubr.f32.mxu0 0.0
      %3113 = vmatmul.mubr.f32.gmra.mrb[0].mxu0 %v1237
      %v3114 = vpop.f32.mrb[0].mxu0
      %v3115 = vadd.f32 0.0, %v3114
      %v3116 = vpop.f32.mrb[0].mxu0
      %3117 = vmatprep.mubr.f32.mxu0 0.0
      %3118 = vmatmul.mubr.f32.gmra.mrb[0].mxu0 %v1239
      %v3119 = vpop.f32.mrb[0].mxu0
      %v3120 = vadd.f32 0.0, %v3119
      %v3121 = vpop.f32.mrb[0].mxu0
      %3122 = vmatprep.mubr.f32.mxu0 0.0
      %3123 = vmatmul.mubr.f32.gmra.mrb[0].mxu0 %v1241
      %v3124 = vpop.f32.mrb[0].mxu0
      %v3125 = vadd.f32 0.0, %v3124
      %v3126 = vpop.f32.mrb[0].mxu0
      %3127 = vmatprep.mubr.f32.mxu0 0.0
      %3128 = vmatmul.mubr.f32.gmra.mrb[0].mxu0 %v1243
      %v3129 = vpop.f32.mrb[0].mxu0
      %v3130 = vadd.f32 0.0, %v3129
      %v3131 = vpop.f32.mrb[0].mxu0
      %3132 = vmatprep.mubr.f32.mxu0 0.0
      %3133 = vmatmul.mubr.f32.gmra.mrb[0].mxu0 %v1245
      %v3134 = vpop.f32.mrb[0].mxu0
      %v3135 = vadd.f32 0.0, %v3134
      %v3136 = vpop.f32.mrb[0].mxu0
      %3137 = vmatprep.mubr.f32.mxu0 0.0
      %3138 = vmatmul.mubr.f32.gmra.mrb[0].mxu0 %v1247
      %v3139 = vpop.f32.mrb[0].mxu0
      %v3140 = vadd.f32 0.0, %v3139
      %v3141 = vpop.f32.mrb[0].mxu0
      %3142 = vmatprep.mubr.f32.mxu0 0.0
      %3143 = vmatmul.mubr.f32.gmra.mrb[0].mxu0 %v1249
      %v3144 = vpop.f32.mrb[0].mxu0
      %v3145 = vadd.f32 0.0, %v3144
      %v3146 = vpop.f32.mrb[0].mxu0
      %3147 = vmatprep.mubr.f32.mxu0 0.0
      %3148 = vmatmul.mubr.f32.gmra.mrb[0].mxu0 %v1251
      %v3149 = vpop.f32.mrb[0].mxu0
      %v3150 = vadd.f32 0.0, %v3149
      %v3151 = vpop.f32.mrb[0].mxu0
      %3152 = vmatprep.mubr.f32.mxu0 0.0
      %3153 = vmatmul.mubr.f32.gmra.mrb[0].mxu0 %v1253
      %v3154 = vpop.f32.mrb[0].mxu0
      %v3155 = vadd.f32 0.0, %v3154
      %v3156 = vpop.f32.mrb[0].mxu0
      %3157 = vmatprep.mubr.f32.mxu0 0.0
      %3158 = vmatmul.mubr.f32.gmra.mrb[0].mxu0 %v1255
      %v3159 = vpop.f32.mrb[0].mxu0
      %v3160 = vadd.f32 0.0, %v3159
      %v3161 = vpop.f32.mrb[0].mxu0
      %3162 = vmatprep.mubr.f32.mxu0 0.0
      %3163 = vmatmul.mubr.f32.gmra.mrb[0].mxu0 %v1257
      %v3164 = vpop.f32.mrb[0].mxu0
      %v3165 = vadd.f32 0.0, %v3164
      %v3166 = vpop.f32.mrb[0].mxu0
      %3167 = vmatprep.mubr.f32.mxu0 0.0
      %3168 = vmatmul.mubr.f32.gmra.mrb[0].mxu0 %v1259
      %v3169 = vpop.f32.mrb[0].mxu0
      %v3170 = vadd.f32 0.0, %v3169
      %v3171 = vpop.f32.mrb[0].mxu0
      %3172 = vmatprep.mubr.f32.mxu0 0.0
      %3173 = vmatmul.mubr.f32.gmra.mrb[0].mxu0 %v1261
      %v3174 = vpop.f32.mrb[0].mxu0
      %v3175 = vadd.f32 0.0, %v3174
      %v3176 = vpop.f32.mrb[0].mxu0
      %3177 = vmatprep.mubr.f32.mxu0 0.0
      %3178 = vmatmul.mubr.f32.gmra.mrb[0].mxu0 %v1263
      %v3179 = vpop.f32.mrb[0].mxu0
      %v3180 = vadd.f32 0.0, %v3179
      %v3181 = vpop.f32.mrb[0].mxu0
      %3182 = vmatprep.mubr.f32.mxu0 0.0
      %3183 = vmatmul.mubr.f32.gmra.mrb[0].mxu0 %v1265
      %v3184 = vpop.f32.mrb[0].mxu0
      %v3185 = vadd.f32 0.0, %v3184
      %v3186 = vpop.f32.mrb[0].mxu0
      %3187 = vmatprep.mubr.f32.mxu0 0.0
      %3188 = vmatmul.mubr.f32.gmra.mrb[0].mxu0 %v1267
      %v3189 = vpop.f32.mrb[0].mxu0
      %v3190 = vadd.f32 0.0, %v3189
      %v3191 = vpop.f32.mrb[0].mxu0
      %3192 = vmatprep.mubr.f32.mxu0 0.0
      %3193 = vmatmul.mubr.f32.gmra.mrb[0].mxu0 %v1269
      %v3194 = vpop.f32.mrb[0].mxu0
      %v3195 = vadd.f32 0.0, %v3194
      %v3196 = vpop.f32.mrb[0].mxu0
      %3197 = vmatprep.mubr.f32.mxu0 0.0
      %3198 = vmatmul.mubr.f32.gmra.mrb[0].mxu0 %v2193
      %v3199 = vpop.f32.mrb[0].mxu0
      %v3200 = vadd.f32 0.0, %v3199
      %v3201 = vpop.f32.mrb[0].mxu0
      %3202 = vmatprep.mubr.f32.mxu0 0.0
      %3203 = vmatmul.mubr.f32.gmra.mrb[0].mxu0 %v2195
      %v3204 = vpop.f32.mrb[0].mxu0
      %v3205 = vadd.f32 0.0, %v3204
      %v3206 = vpop.f32.mrb[0].mxu0
      %3207 = vmatprep.mubr.f32.mxu0 0.0
      %3208 = vmatmul.mubr.f32.gmra.mrb[0].mxu0 %v2197
      %v3209 = vpop.f32.mrb[0].mxu0
      %v3210 = vadd.f32 0.0, %v3209
      %v3211 = vpop.f32.mrb[0].mxu0
      %3212 = vmatprep.mubr.f32.mxu0 0.0
      %3213 = vmatmul.mubr.f32.gmra.mrb[0].mxu0 %v3035
      %v3214 = vpop.f32.mrb[0].mxu0
      %v3215 = vadd.f32 0.0, %v3214
      %v3216 = vpop.f32.mrb[0].mxu0
      %3217 = vmatprep.mubr.f32.mxu0 0.0
      %3218 = vmatmul.mubr.f32.gmra.mrb[0].mxu0 %v3037
      %v3219 = vpop.f32.mrb[0].mxu0
      %v3220 = vadd.f32 0.0, %v3219
      %v3221 = vpop.f32.mrb[0].mxu0
      %3222 = vmatprep.mubr.f32.mxu0 0.0
      %3223 = vmatmul.mubr.f32.gmra.mrb[0].mxu0 %v3039
      %v3224 = vpop.f32.mrb[0].mxu0
      %v3225 = vadd.f32 0.0, %v3224
      %v3226 = vpop.f32.mrb[0].mxu0
      %3227 = vdwg.mxu0
      %v3228 = vld [vmem:[#allocation3] sm:$0xff]
      %v3229 = vld [vmem:[#allocation3 + $0x8] sm:$0xff]
      %v3230 = vld [vmem:[#allocation3 + $0x10] sm:$0xff]
      %v3231 = vld [vmem:[#allocation3 + $0x18] sm:$0xff]
      %v3232 = vld [vmem:[#allocation3 + $0x20] sm:$0xff]
      %v3233 = vld [vmem:[#allocation3 + $0x28] sm:$0xff]
      %v3234 = vld [vmem:[#allocation3 + $0x30] sm:$0xff]
      %v3235 = vld [vmem:[#allocation3 + $0x38] sm:$0xff]
      %v3236 = vld [vmem:[#allocation3 + $0x40] sm:$0xff]
      %v3237 = vld [vmem:[#allocation3 + $0x48] sm:$0xff]
      %v3238 = vld [vmem:[#allocation3 + $0x50] sm:$0xff]
      %v3239 = vld [vmem:[#allocation3 + $0x58] sm:$0xff]
      %v3240 = vld [vmem:[#allocation3 + $0x60] sm:$0xff]
      %v3241 = vld [vmem:[#allocation3 + $0x68] sm:$0xff]
      %v3242 = vld [vmem:[#allocation3 + $0x70] sm:$0xff]
      %v3243 = vld [vmem:[#allocation3 + $0x78] sm:$0xff]
      %v3244 = vld [vmem:[#allocation3 + $0x80] sm:$0xff]
      %v3245 = vld [vmem:[#allocation3 + $0x88] sm:$0xff]
      %v3246 = vld [vmem:[#allocation3 + $0x90] sm:$0xff]
      %v3247 = vld [vmem:[#allocation3 + $0x98] sm:$0xff]
      %v3248 = vld [vmem:[#allocation3 + $0xa0] sm:$0xff]
      %v3249 = vld [vmem:[#allocation3 + $0xa8] sm:$0xff]
      %v3250 = vld [vmem:[#allocation3 + $0xb0] sm:$0xff]
      %v3251 = vld [vmem:[#allocation3 + $0xb8] sm:$0xff]
      %v3252 = vadd.f32 %v3228, %v3110
      %v3253 = vadd.f32 %v3229, %v3115
      %v3254 = vadd.f32 %v3230, %v3120
      %v3255 = vadd.f32 %v3231, %v3125
      %v3256 = vadd.f32 %v3232, %v3130
      %v3257 = vadd.f32 %v3233, %v3135
      %v3258 = vadd.f32 %v3234, %v3140
      %v3259 = vadd.f32 %v3235, %v3145
      %v3260 = vadd.f32 %v3236, %v3150
      %v3261 = vadd.f32 %v3237, %v3155
      %v3262 = vadd.f32 %v3238, %v3160
      %v3263 = vadd.f32 %v3239, %v3165
      %v3264 = vadd.f32 %v3240, %v3170
      %v3265 = vadd.f32 %v3241, %v3175
      %v3266 = vadd.f32 %v3242, %v3180
      %v3267 = vadd.f32 %v3243, %v3185
      %v3268 = vadd.f32 %v3244, %v3190
      %v3269 = vadd.f32 %v3245, %v3195
      %v3270 = vadd.f32 %v3246, %v3200
      %v3271 = vadd.f32 %v3247, %v3205
      %v3272 = vadd.f32 %v3248, %v3210
      %v3273 = vadd.f32 %v3249, %v3215
      %v3274 = vadd.f32 %v3250, %v3220
      %v3275 = vadd.f32 %v3251, %v3225
      %3276 = vst [vmem:[#allocation3] sm:$0xff] %v3252
      %3277 = vst [vmem:[#allocation3 + $0x8] sm:$0xff] %v3253
      %3278 = vst [vmem:[#allocation3 + $0x10] sm:$0xff] %v3254
      %3279 = vst [vmem:[#allocation3 + $0x18] sm:$0xff] %v3255
      %3280 = vst [vmem:[#allocation3 + $0x20] sm:$0xff] %v3256
      %3281 = vst [vmem:[#allocation3 + $0x28] sm:$0xff] %v3257
      %3282 = vst [vmem:[#allocation3 + $0x30] sm:$0xff] %v3258
      %3283 = vst [vmem:[#allocation3 + $0x38] sm:$0xff] %v3259
      %3284 = vst [vmem:[#allocation3 + $0x40] sm:$0xff] %v3260
      %3285 = vst [vmem:[#allocation3 + $0x48] sm:$0xff] %v3261
      %3286 = vst [vmem:[#allocation3 + $0x50] sm:$0xff] %v3262
      %3287 = vst [vmem:[#allocation3 + $0x58] sm:$0xff] %v3263
      %3288 = vst [vmem:[#allocation3 + $0x60] sm:$0xff] %v3264
      %3289 = vst [vmem:[#allocation3 + $0x68] sm:$0xff] %v3265
      %3290 = vst [vmem:[#allocation3 + $0x70] sm:$0xff] %v3266
      %3291 = vst [vmem:[#allocation3 + $0x78] sm:$0xff] %v3267
      %3292 = vst [vmem:[#allocation3 + $0x80] sm:$0xff] %v3268
      %3293 = vst [vmem:[#allocation3 + $0x88] sm:$0xff] %v3269
      %3294 = vst [vmem:[#allocation3 + $0x90] sm:$0xff] %v3270
      %3295 = vst [vmem:[#allocation3 + $0x98] sm:$0xff] %v3271
      %3296 = vst [vmem:[#allocation3 + $0xa0] sm:$0xff] %v3272
      %3297 = vst [vmem:[#allocation3 + $0xa8] sm:$0xff] %v3273
      %3298 = vst [vmem:[#allocation3 + $0xb0] sm:$0xff] %v3274
      %3299 = vst [vmem:[#allocation3 + $0xb8] sm:$0xff] %v3275
      %s3300 = scalar_lea.vmem %s4, 1024
      %v3301 = vld [vmem:[%s3300] sm:$0xff]
      %v3302 = vld [vmem:[%s3300 + $0x8] sm:$0xff]
      %v3303 = vld [vmem:[%s3300 + $0x10] sm:$0xff]
      %v3304 = vld [vmem:[%s3300 + $0x18] sm:$0xff]
      %v3305 = vld [vmem:[%s3300 + $0x20] sm:$0xff]
      %v3306 = vld [vmem:[%s3300 + $0x28] sm:$0xff]
      %v3307 = vld [vmem:[%s3300 + $0x30] sm:$0xff]
      %v3308 = vld [vmem:[%s3300 + $0x38] sm:$0xff]
      %v3309 = vld [vmem:[%s3300 + $0x40] sm:$0xff]
      %v3310 = vld [vmem:[%s3300 + $0x48] sm:$0xff]
      %v3311 = vld [vmem:[%s3300 + $0x50] sm:$0xff]
      %v3312 = vld [vmem:[%s3300 + $0x58] sm:$0xff]
      %v3313 = vld [vmem:[%s3300 + $0x60] sm:$0xff]
      %v3314 = vld [vmem:[%s3300 + $0x68] sm:$0xff]
      %v3315 = vld [vmem:[%s3300 + $0x70] sm:$0xff]
      %v3316 = vld [vmem:[%s3300 + $0x78] sm:$0xff]
      %v3317 = vrot.slane %v910, 2
      %v3318 = vsel %vm1568, %v2479, %v3317
      %v3319 = vrot.slane %v960, 2
      %v3320 = vsel %vm1568, %v3317, %v3319
      %v3321 = vrot.slane 0.0, 2
      %v3322 = vsel %vm1568, %v3319, %v3321
      %3326 = vmatprep.subr.mxu0 0.0
      %3327 = vmatpush1.msra.mxu0 %v3301
      %3328 = vmatprep.subr.mxu0 0.0
      %3329 = vmatpush1.msra.mxu0 %v3302
      %3330 = vmatprep.subr.mxu0 0.0
      %3331 = vmatpush1.msra.mxu0 %v3303
      %3332 = vmatprep.subr.mxu0 0.0
      %3333 = vmatpush1.msra.mxu0 %v3304
      %3334 = vmatprep.subr.mxu0 0.0
      %3335 = vmatpush1.msra.mxu0 %v3305
      %3336 = vmatprep.subr.mxu0 0.0
      %3337 = vmatpush1.msra.mxu0 %v3306
      %3338 = vmatprep.subr.mxu0 0.0
      %3339 = vmatpush1.msra.mxu0 %v3307
      %3340 = vmatprep.subr.mxu0 0.0
      %3341 = vmatpush1.msra.mxu0 %v3308
      %3342 = vmatprep.subr.mxu0 0.0
      %3343 = vmatpush1.msra.mxu0 %v3309
      %3344 = vmatprep.subr.mxu0 0.0
      %3345 = vmatpush1.msra.mxu0 %v3310
      %3346 = vmatprep.subr.mxu0 0.0
      %3347 = vmatpush1.msra.mxu0 %v3311
      %3348 = vmatprep.subr.mxu0 0.0
      %3349 = vmatpush1.msra.mxu0 %v3312
      %3350 = vmatprep.subr.mxu0 0.0
      %3351 = vmatpush1.msra.mxu0 %v3313
      %3352 = vmatprep.subr.mxu0 0.0
      %3353 = vmatpush1.msra.mxu0 %v3314
      %3354 = vmatprep.subr.mxu0 0.0
      %3355 = vmatpush1.msra.mxu0 %v3315
      %3356 = vmatprep.subr.mxu0 0.0
      %3357 = vmatpush1.msra.mxu0 %v3316
      %3358 = vmatprep.subr.mxu0 0.0
      %3359 = vmatpush1.msra.mxu0 0.0
      %3360 = vmatprep.subr.mxu0 0.0
      %3361 = vmatpush1.msra.mxu0 0.0
      %3362 = vmatprep.subr.mxu0 0.0
      %3363 = vmatpush1.msra.mxu0 0.0
      %3364 = vmatprep.subr.mxu0 0.0
      %3365 = vmatpush1.msra.mxu0 0.0
      %3366 = vmatprep.subr.mxu0 0.0
      %3367 = vmatpush1.msra.mxu0 0.0
      %3368 = vmatprep.subr.mxu0 0.0
      %3369 = vmatpush1.msra.mxu0 0.0
      %3370 = vmatprep.subr.mxu0 0.0
      %3371 = vmatpush1.msra.mxu0 0.0
      %3372 = vmatprep.subr.mxu0 0.0
      %3373 = vmatpush1.msra.mxu0 0.0
      %3374 = vmatprep.subr.mxu0 0.0
      %3375 = vmatpush1.msra.mxu0 0.0
      %3376 = vmatprep.subr.mxu0 0.0
      %3377 = vmatpush1.msra.mxu0 0.0
      %3378 = vmatprep.subr.mxu0 0.0
      %3379 = vmatpush1.msra.mxu0 0.0
      %3380 = vmatprep.subr.mxu0 0.0
      %3381 = vmatpush1.msra.mxu0 0.0
      %3382 = vmatprep.subr.mxu0 0.0
      %3383 = vmatpush1.msra.mxu0 0.0
      %3384 = vmatprep.subr.mxu0 0.0
      %3385 = vmatpush1.msra.mxu0 0.0
      %3386 = vmatprep.subr.mxu0 0.0
      %3387 = vmatpush1.msra.mxu0 0.0
      %3388 = vmatprep.subr.mxu0 0.0
      %3389 = vmatpush1.msra.mxu0 0.0
      %3390 = vmatprep.mubr.f32.mxu0 0.0
      %3391 = vmatmul.mubr.f32.gmra.mrb[0].mxu0 %v1583
      %v3392 = vpop.f32.mrb[0].mxu0
      %v3393 = vadd.f32 0.0, %v3392
      %v3394 = vpop.f32.mrb[0].mxu0
      %3395 = vmatprep.mubr.f32.mxu0 0.0
      %3396 = vmatmul.mubr.f32.gmra.mrb[0].mxu0 %v1585
      %v3397 = vpop.f32.mrb[0].mxu0
      %v3398 = vadd.f32 0.0, %v3397
      %v3399 = vpop.f32.mrb[0].mxu0
      %3400 = vmatprep.mubr.f32.mxu0 0.0
      %3401 = vmatmul.mubr.f32.gmra.mrb[0].mxu0 %v1587
      %v3402 = vpop.f32.mrb[0].mxu0
      %v3403 = vadd.f32 0.0, %v3402
      %v3404 = vpop.f32.mrb[0].mxu0
      %3405 = vmatprep.mubr.f32.mxu0 0.0
      %3406 = vmatmul.mubr.f32.gmra.mrb[0].mxu0 %v1589
      %v3407 = vpop.f32.mrb[0].mxu0
      %v3408 = vadd.f32 0.0, %v3407
      %v3409 = vpop.f32.mrb[0].mxu0
      %3410 = vmatprep.mubr.f32.mxu0 0.0
      %3411 = vmatmul.mubr.f32.gmra.mrb[0].mxu0 %v1591
      %v3412 = vpop.f32.mrb[0].mxu0
      %v3413 = vadd.f32 0.0, %v3412
      %v3414 = vpop.f32.mrb[0].mxu0
      %3415 = vmatprep.mubr.f32.mxu0 0.0
      %3416 = vmatmul.mubr.f32.gmra.mrb[0].mxu0 %v1593
      %v3417 = vpop.f32.mrb[0].mxu0
      %v3418 = vadd.f32 0.0, %v3417
      %v3419 = vpop.f32.mrb[0].mxu0
      %3420 = vmatprep.mubr.f32.mxu0 0.0
      %3421 = vmatmul.mubr.f32.gmra.mrb[0].mxu0 %v1595
      %v3422 = vpop.f32.mrb[0].mxu0
      %v3423 = vadd.f32 0.0, %v3422
      %v3424 = vpop.f32.mrb[0].mxu0
      %3425 = vmatprep.mubr.f32.mxu0 0.0
      %3426 = vmatmul.mubr.f32.gmra.mrb[0].mxu0 %v1597
      %v3427 = vpop.f32.mrb[0].mxu0
      %v3428 = vadd.f32 0.0, %v3427
      %v3429 = vpop.f32.mrb[0].mxu0
      %3430 = vmatprep.mubr.f32.mxu0 0.0
      %3431 = vmatmul.mubr.f32.gmra.mrb[0].mxu0 %v1599
      %v3432 = vpop.f32.mrb[0].mxu0
      %v3433 = vadd.f32 0.0, %v3432
      %v3434 = vpop.f32.mrb[0].mxu0
      %3435 = vmatprep.mubr.f32.mxu0 0.0
      %3436 = vmatmul.mubr.f32.gmra.mrb[0].mxu0 %v1601
      %v3437 = vpop.f32.mrb[0].mxu0
      %v3438 = vadd.f32 0.0, %v3437
      %v3439 = vpop.f32.mrb[0].mxu0
      %3440 = vmatprep.mubr.f32.mxu0 0.0
      %3441 = vmatmul.mubr.f32.gmra.mrb[0].mxu0 %v1603
      %v3442 = vpop.f32.mrb[0].mxu0
      %v3443 = vadd.f32 0.0, %v3442
      %v3444 = vpop.f32.mrb[0].mxu0
      %3445 = vmatprep.mubr.f32.mxu0 0.0
      %3446 = vmatmul.mubr.f32.gmra.mrb[0].mxu0 %v1605
      %v3447 = vpop.f32.mrb[0].mxu0
      %v3448 = vadd.f32 0.0, %v3447
      %v3449 = vpop.f32.mrb[0].mxu0
      %3450 = vmatprep.mubr.f32.mxu0 0.0
      %3451 = vmatmul.mubr.f32.gmra.mrb[0].mxu0 %v1607
      %v3452 = vpop.f32.mrb[0].mxu0
      %v3453 = vadd.f32 0.0, %v3452
      %v3454 = vpop.f32.mrb[0].mxu0
      %3455 = vmatprep.mubr.f32.mxu0 0.0
      %3456 = vmatmul.mubr.f32.gmra.mrb[0].mxu0 %v1609
      %v3457 = vpop.f32.mrb[0].mxu0
      %v3458 = vadd.f32 0.0, %v3457
      %v3459 = vpop.f32.mrb[0].mxu0
      %3460 = vmatprep.mubr.f32.mxu0 0.0
      %3461 = vmatmul.mubr.f32.gmra.mrb[0].mxu0 %v1611
      %v3462 = vpop.f32.mrb[0].mxu0
      %v3463 = vadd.f32 0.0, %v3462
      %v3464 = vpop.f32.mrb[0].mxu0
      %3465 = vmatprep.mubr.f32.mxu0 0.0
      %3466 = vmatmul.mubr.f32.gmra.mrb[0].mxu0 %v1613
      %v3467 = vpop.f32.mrb[0].mxu0
      %v3468 = vadd.f32 0.0, %v3467
      %v3469 = vpop.f32.mrb[0].mxu0
      %3470 = vmatprep.mubr.f32.mxu0 0.0
      %3471 = vmatmul.mubr.f32.gmra.mrb[0].mxu0 %v1615
      %v3472 = vpop.f32.mrb[0].mxu0
      %v3473 = vadd.f32 0.0, %v3472
      %v3474 = vpop.f32.mrb[0].mxu0
      %3475 = vmatprep.mubr.f32.mxu0 0.0
      %3476 = vmatmul.mubr.f32.gmra.mrb[0].mxu0 %v1617
      %v3477 = vpop.f32.mrb[0].mxu0
      %v3478 = vadd.f32 0.0, %v3477
      %v3479 = vpop.f32.mrb[0].mxu0
      %3480 = vmatprep.mubr.f32.mxu0 0.0
      %3481 = vmatmul.mubr.f32.gmra.mrb[0].mxu0 %v2476
      %v3482 = vpop.f32.mrb[0].mxu0
      %v3483 = vadd.f32 0.0, %v3482
      %v3484 = vpop.f32.mrb[0].mxu0
      %3485 = vmatprep.mubr.f32.mxu0 0.0
      %3486 = vmatmul.mubr.f32.gmra.mrb[0].mxu0 %v2478
      %v3487 = vpop.f32.mrb[0].mxu0
      %v3488 = vadd.f32 0.0, %v3487
      %v3489 = vpop.f32.mrb[0].mxu0
      %3490 = vmatprep.mubr.f32.mxu0 0.0
      %3491 = vmatmul.mubr.f32.gmra.mrb[0].mxu0 %v2480
      %v3492 = vpop.f32.mrb[0].mxu0
      %v3493 = vadd.f32 0.0, %v3492
      %v3494 = vpop.f32.mrb[0].mxu0
      %3495 = vmatprep.mubr.f32.mxu0 0.0
      %3496 = vmatmul.mubr.f32.gmra.mrb[0].mxu0 %v3318
      %v3497 = vpop.f32.mrb[0].mxu0
      %v3498 = vadd.f32 0.0, %v3497
      %v3499 = vpop.f32.mrb[0].mxu0
      %3500 = vmatprep.mubr.f32.mxu0 0.0
      %3501 = vmatmul.mubr.f32.gmra.mrb[0].mxu0 %v3320
      %v3502 = vpop.f32.mrb[0].mxu0
      %v3503 = vadd.f32 0.0, %v3502
      %v3504 = vpop.f32.mrb[0].mxu0
      %3505 = vmatprep.mubr.f32.mxu0 0.0
      %3506 = vmatmul.mubr.f32.gmra.mrb[0].mxu0 %v3322
      %v3507 = vpop.f32.mrb[0].mxu0
      %v3508 = vadd.f32 0.0, %v3507
      %v3509 = vpop.f32.mrb[0].mxu0
      %3510 = vdwg.mxu0
      %v3511 = vld [vmem:[#allocation3] sm:$0xff]
      %v3512 = vld [vmem:[#allocation3 + $0x8] sm:$0xff]
      %v3513 = vld [vmem:[#allocation3 + $0x10] sm:$0xff]
      %v3514 = vld [vmem:[#allocation3 + $0x18] sm:$0xff]
      %v3515 = vld [vmem:[#allocation3 + $0x20] sm:$0xff]
      %v3516 = vld [vmem:[#allocation3 + $0x28] sm:$0xff]
      %v3517 = vld [vmem:[#allocation3 + $0x30] sm:$0xff]
      %v3518 = vld [vmem:[#allocation3 + $0x38] sm:$0xff]
      %v3519 = vld [vmem:[#allocation3 + $0x40] sm:$0xff]
      %v3520 = vld [vmem:[#allocation3 + $0x48] sm:$0xff]
      %v3521 = vld [vmem:[#allocation3 + $0x50] sm:$0xff]
      %v3522 = vld [vmem:[#allocation3 + $0x58] sm:$0xff]
      %v3523 = vld [vmem:[#allocation3 + $0x60] sm:$0xff]
      %v3524 = vld [vmem:[#allocation3 + $0x68] sm:$0xff]
      %v3525 = vld [vmem:[#allocation3 + $0x70] sm:$0xff]
      %v3526 = vld [vmem:[#allocation3 + $0x78] sm:$0xff]
      %v3527 = vld [vmem:[#allocation3 + $0x80] sm:$0xff]
      %v3528 = vld [vmem:[#allocation3 + $0x88] sm:$0xff]
      %v3529 = vld [vmem:[#allocation3 + $0x90] sm:$0xff]
      %v3530 = vld [vmem:[#allocation3 + $0x98] sm:$0xff]
      %v3531 = vld [vmem:[#allocation3 + $0xa0] sm:$0xff]
      %v3532 = vld [vmem:[#allocation3 + $0xa8] sm:$0xff]
      %v3533 = vld [vmem:[#allocation3 + $0xb0] sm:$0xff]
      %v3534 = vld [vmem:[#allocation3 + $0xb8] sm:$0xff]
      %v3535 = vadd.f32 %v3511, %v3393
      %v3536 = vadd.f32 %v3512, %v3398
      %v3537 = vadd.f32 %v3513, %v3403
      %v3538 = vadd.f32 %v3514, %v3408
      %v3539 = vadd.f32 %v3515, %v3413
      %v3540 = vadd.f32 %v3516, %v3418
      %v3541 = vadd.f32 %v3517, %v3423
      %v3542 = vadd.f32 %v3518, %v3428
      %v3543 = vadd.f32 %v3519, %v3433
      %v3544 = vadd.f32 %v3520, %v3438
      %v3545 = vadd.f32 %v3521, %v3443
      %v3546 = vadd.f32 %v3522, %v3448
      %v3547 = vadd.f32 %v3523, %v3453
      %v3548 = vadd.f32 %v3524, %v3458
      %v3549 = vadd.f32 %v3525, %v3463
      %v3550 = vadd.f32 %v3526, %v3468
      %v3551 = vadd.f32 %v3527, %v3473
      %v3552 = vadd.f32 %v3528, %v3478
      %v3553 = vadd.f32 %v3529, %v3483
      %v3554 = vadd.f32 %v3530, %v3488
      %v3555 = vadd.f32 %v3531, %v3493
      %v3556 = vadd.f32 %v3532, %v3498
      %v3557 = vadd.f32 %v3533, %v3503
      %v3558 = vadd.f32 %v3534, %v3508
      %3559 = vst [vmem:[#allocation3] sm:$0xff] %v3535
      %3560 = vst [vmem:[#allocation3 + $0x8] sm:$0xff] %v3536
      %3561 = vst [vmem:[#allocation3 + $0x10] sm:$0xff] %v3537
      %3562 = vst [vmem:[#allocation3 + $0x18] sm:$0xff] %v3538
      %3563 = vst [vmem:[#allocation3 + $0x20] sm:$0xff] %v3539
      %3564 = vst [vmem:[#allocation3 + $0x28] sm:$0xff] %v3540
      %3565 = vst [vmem:[#allocation3 + $0x30] sm:$0xff] %v3541
      %3566 = vst [vmem:[#allocation3 + $0x38] sm:$0xff] %v3542
      %3567 = vst [vmem:[#allocation3 + $0x40] sm:$0xff] %v3543
      %3568 = vst [vmem:[#allocation3 + $0x48] sm:$0xff] %v3544
      %3569 = vst [vmem:[#allocation3 + $0x50] sm:$0xff] %v3545
      %3570 = vst [vmem:[#allocation3 + $0x58] sm:$0xff] %v3546
      %3571 = vst [vmem:[#allocation3 + $0x60] sm:$0xff] %v3547
      %3572 = vst [vmem:[#allocation3 + $0x68] sm:$0xff] %v3548
      %3573 = vst [vmem:[#allocation3 + $0x70] sm:$0xff] %v3549
      %3574 = vst [vmem:[#allocation3 + $0x78] sm:$0xff] %v3550
      %3575 = vst [vmem:[#allocation3 + $0x80] sm:$0xff] %v3551
      %3576 = vst [vmem:[#allocation3 + $0x88] sm:$0xff] %v3552
      %3577 = vst [vmem:[#allocation3 + $0x90] sm:$0xff] %v3553
      %3578 = vst [vmem:[#allocation3 + $0x98] sm:$0xff] %v3554
      %3579 = vst [vmem:[#allocation3 + $0xa0] sm:$0xff] %v3555
      %3580 = vst [vmem:[#allocation3 + $0xa8] sm:$0xff] %v3556
      %3581 = vst [vmem:[#allocation3 + $0xb0] sm:$0xff] %v3557
      %3582 = vst [vmem:[#allocation3 + $0xb8] sm:$0xff] %v3558
      %v3583 = vld [vmem:[#allocation3] sm:$0xff]
      %v3584 = vld [vmem:[#allocation3 + $0x8] sm:$0xff]
      %v3585 = vld [vmem:[#allocation3 + $0x18] sm:$0xff]
      %v3586 = vld [vmem:[#allocation3 + $0x20] sm:$0xff]
      %v3587 = vld [vmem:[#allocation3 + $0x30] sm:$0xff]
      %v3588 = vld [vmem:[#allocation3 + $0x38] sm:$0xff]
      %v3589 = vld [vmem:[#allocation3 + $0x48] sm:$0xff]
      %v3590 = vld [vmem:[#allocation3 + $0x50] sm:$0xff]
      %v3591 = vld [vmem:[#allocation3 + $0x60] sm:$0xff]
      %v3592 = vld [vmem:[#allocation3 + $0x68] sm:$0xff]
      %v3593 = vld [vmem:[#allocation3 + $0x78] sm:$0xff]
      %v3594 = vld [vmem:[#allocation3 + $0x80] sm:$0xff]
      %v3595 = vld [vmem:[#allocation3 + $0x90] sm:$0xff]
      %v3596 = vld [vmem:[#allocation3 + $0x98] sm:$0xff]
      %v3597 = vld [vmem:[#allocation3 + $0xa8] sm:$0xff]
      %v3598 = vld [vmem:[#allocation3 + $0xb0] sm:$0xff]
      %v3599 = vld [vmem:[%s5] sm:$0x1]
      %v3601 = vlaneseq
      %v3602 = vshrl.u32 %v3601, 7
      %v3603 = vsub.s32 0, %v3602
      %v3604 = vrot.slane %v3599, %v3603
      %v3606 = vmul.f32 %v3583, %v3604
      %v3607 = vmul.f32 %v3584, %v3604
      %v3608 = vmul.f32 %v3585, %v3604
      %v3609 = vmul.f32 %v3586, %v3604
      %v3610 = vmul.f32 %v3587, %v3604
      %v3611 = vmul.f32 %v3588, %v3604
      %v3612 = vmul.f32 %v3589, %v3604
      %v3613 = vmul.f32 %v3590, %v3604
      %v3614 = vmul.f32 %v3591, %v3604
      %v3615 = vmul.f32 %v3592, %v3604
      %v3616 = vmul.f32 %v3593, %v3604
      %v3617 = vmul.f32 %v3594, %v3604
      %v3618 = vmul.f32 %v3595, %v3604
      %v3619 = vmul.f32 %v3596, %v3604
      %v3620 = vmul.f32 %v3597, %v3604
      %v3621 = vmul.f32 %v3598, %v3604
      %v3622 = vld [vmem:[%s6] sm:$0x1]
      %v3624 = vlaneseq
      %v3625 = vshrl.u32 %v3624, 7
      %v3626 = vsub.s32 0, %v3625
      %v3627 = vrot.slane %v3622, %v3626
      %v3629 = vadd.f32 %v3606, %v3627
      %v3630 = vadd.f32 %v3607, %v3627
      %v3631 = vadd.f32 %v3608, %v3627
      %v3632 = vadd.f32 %v3609, %v3627
      %v3633 = vadd.f32 %v3610, %v3627
      %v3634 = vadd.f32 %v3611, %v3627
      %v3635 = vadd.f32 %v3612, %v3627
      %v3636 = vadd.f32 %v3613, %v3627
      %v3637 = vadd.f32 %v3614, %v3627
      %v3638 = vadd.f32 %v3615, %v3627
      %v3639 = vadd.f32 %v3616, %v3627
      %v3640 = vadd.f32 %v3617, %v3627
      %v3641 = vadd.f32 %v3618, %v3627
      %v3642 = vadd.f32 %v3619, %v3627
      %v3643 = vadd.f32 %v3620, %v3627
      %v3644 = vadd.f32 %v3621, %v3627
      %v3645 = vxor.u32 %v3629, 2147483648
      %v3646 = vxor.u32 %v3630, 2147483648
      %v3647 = vxor.u32 %v3631, 2147483648
      %v3648 = vxor.u32 %v3632, 2147483648
      %v3649 = vxor.u32 %v3633, 2147483648
      %v3650 = vxor.u32 %v3634, 2147483648
      %v3651 = vxor.u32 %v3635, 2147483648
      %v3652 = vxor.u32 %v3636, 2147483648
      %v3653 = vxor.u32 %v3637, 2147483648
      %v3654 = vxor.u32 %v3638, 2147483648
      %v3655 = vxor.u32 %v3639, 2147483648
      %v3656 = vxor.u32 %v3640, 2147483648
      %v3657 = vxor.u32 %v3641, 2147483648
      %v3658 = vxor.u32 %v3642, 2147483648
      %v3659 = vxor.u32 %v3643, 2147483648
      %v3660 = vxor.u32 %v3644, 2147483648
      %v3661 = vmul.f32 %v3645, 1.442695
      %v3662 = vpow.pop %v3661
      %v3663 = vmul.f32 %v3646, 1.442695
      %v3664 = vpow.pop %v3663
      %v3665 = vmul.f32 %v3647, 1.442695
      %v3666 = vpow.pop %v3665
      %v3667 = vmul.f32 %v3648, 1.442695
      %v3668 = vpow.pop %v3667
      %v3669 = vmul.f32 %v3649, 1.442695
      %v3670 = vpow.pop %v3669
      %v3671 = vmul.f32 %v3650, 1.442695
      %v3672 = vpow.pop %v3671
      %v3673 = vmul.f32 %v3651, 1.442695
      %v3674 = vpow.pop %v3673
      %v3675 = vmul.f32 %v3652, 1.442695
      %v3676 = vpow.pop %v3675
      %v3677 = vmul.f32 %v3653, 1.442695
      %v3678 = vpow.pop %v3677
      %v3679 = vmul.f32 %v3654, 1.442695
      %v3680 = vpow.pop %v3679
      %v3681 = vmul.f32 %v3655, 1.442695
      %v3682 = vpow.pop %v3681
      %v3683 = vmul.f32 %v3656, 1.442695
      %v3684 = vpow.pop %v3683
      %v3685 = vmul.f32 %v3657, 1.442695
      %v3686 = vpow.pop %v3685
      %v3687 = vmul.f32 %v3658, 1.442695
      %v3688 = vpow.pop %v3687
      %v3689 = vmul.f32 %v3659, 1.442695
      %v3690 = vpow.pop %v3689
      %v3691 = vmul.f32 %v3660, 1.442695
      %v3692 = vpow.pop %v3691
      %v3693 = vadd.f32 %v3662, 1.0
      %v3694 = vadd.f32 %v3664, 1.0
      %v3695 = vadd.f32 %v3666, 1.0
      %v3696 = vadd.f32 %v3668, 1.0
      %v3697 = vadd.f32 %v3670, 1.0
      %v3698 = vadd.f32 %v3672, 1.0
      %v3699 = vadd.f32 %v3674, 1.0
      %v3700 = vadd.f32 %v3676, 1.0
      %v3701 = vadd.f32 %v3678, 1.0
      %v3702 = vadd.f32 %v3680, 1.0
      %v3703 = vadd.f32 %v3682, 1.0
      %v3704 = vadd.f32 %v3684, 1.0
      %v3705 = vadd.f32 %v3686, 1.0
      %v3706 = vadd.f32 %v3688, 1.0
      %v3707 = vadd.f32 %v3690, 1.0
      %v3708 = vadd.f32 %v3692, 1.0
      %v3709 = vrcp.pop %v3693
      %v3710 = vmul.f32 1.0, %v3709
      %v3711 = vrcp.pop %v3694
      %v3712 = vmul.f32 1.0, %v3711
      %v3713 = vrcp.pop %v3695
      %v3714 = vmul.f32 1.0, %v3713
      %v3715 = vrcp.pop %v3696
      %v3716 = vmul.f32 1.0, %v3715
      %v3717 = vrcp.pop %v3697
      %v3718 = vmul.f32 1.0, %v3717
      %v3719 = vrcp.pop %v3698
      %v3720 = vmul.f32 1.0, %v3719
      %v3721 = vrcp.pop %v3699
      %v3722 = vmul.f32 1.0, %v3721
      %v3723 = vrcp.pop %v3700
      %v3724 = vmul.f32 1.0, %v3723
      %v3725 = vrcp.pop %v3701
      %v3726 = vmul.f32 1.0, %v3725
      %v3727 = vrcp.pop %v3702
      %v3728 = vmul.f32 1.0, %v3727
      %v3729 = vrcp.pop %v3703
      %v3730 = vmul.f32 1.0, %v3729
      %v3731 = vrcp.pop %v3704
      %v3732 = vmul.f32 1.0, %v3731
      %v3733 = vrcp.pop %v3705
      %v3734 = vmul.f32 1.0, %v3733
      %v3735 = vrcp.pop %v3706
      %v3736 = vmul.f32 1.0, %v3735
      %v3737 = vrcp.pop %v3707
      %v3738 = vmul.f32 1.0, %v3737
      %v3739 = vrcp.pop %v3708
      %v3740 = vmul.f32 1.0, %v3739
      %v3741 = vmul.f32 %v3629, %v3710
      %v3742 = vmul.f32 %v3630, %v3712
      %v3743 = vmul.f32 %v3631, %v3714
      %v3744 = vmul.f32 %v3632, %v3716
      %v3745 = vmul.f32 %v3633, %v3718
      %v3746 = vmul.f32 %v3634, %v3720
      %v3747 = vmul.f32 %v3635, %v3722
      %v3748 = vmul.f32 %v3636, %v3724
      %v3749 = vmul.f32 %v3637, %v3726
      %v3750 = vmul.f32 %v3638, %v3728
      %v3751 = vmul.f32 %v3639, %v3730
      %v3752 = vmul.f32 %v3640, %v3732
      %v3753 = vmul.f32 %v3641, %v3734
      %v3754 = vmul.f32 %v3642, %v3736
      %v3755 = vmul.f32 %v3643, %v3738
      %v3756 = vmul.f32 %v3644, %v3740
      %v3757 = vadd.f32 %v3741, %v457
      %v3758 = vadd.f32 %v3742, %v458
      %v3759 = vadd.f32 %v3743, %v459
      %v3760 = vadd.f32 %v3744, %v460
      %v3761 = vadd.f32 %v3745, %v461
      %v3762 = vadd.f32 %v3746, %v462
      %v3763 = vadd.f32 %v3747, %v463
      %v3764 = vadd.f32 %v3748, %v464
      %v3765 = vadd.f32 %v3749, %v465
      %v3766 = vadd.f32 %v3750, %v466
      %v3767 = vadd.f32 %v3751, %v467
      %v3768 = vadd.f32 %v3752, %v468
      %v3769 = vadd.f32 %v3753, %v469
      %v3770 = vadd.f32 %v3754, %v470
      %v3771 = vadd.f32 %v3755, %v471
      %v3772 = vadd.f32 %v3756, %v472
      %3773 = vst [vmem:[%s256] sm:$0xff] %v3757
      %3774 = vst [vmem:[%s256 + $0x8] sm:$0xff] %v3758
      %3775 = vst [vmem:[%s256 + $0x10] sm:$0xff] %v3759
      %3776 = vst [vmem:[%s256 + $0x18] sm:$0xff] %v3760
      %3777 = vst [vmem:[%s256 + $0x20] sm:$0xff] %v3761
      %3778 = vst [vmem:[%s256 + $0x28] sm:$0xff] %v3762
      %3779 = vst [vmem:[%s256 + $0x30] sm:$0xff] %v3763
      %3780 = vst [vmem:[%s256 + $0x38] sm:$0xff] %v3764
      %3781 = vst [vmem:[%s256 + $0x40] sm:$0xff] %v3765
      %3782 = vst [vmem:[%s256 + $0x48] sm:$0xff] %v3766
      %3783 = vst [vmem:[%s256 + $0x50] sm:$0xff] %v3767
      %3784 = vst [vmem:[%s256 + $0x58] sm:$0xff] %v3768
      %3785 = vst [vmem:[%s256 + $0x60] sm:$0xff] %v3769
      %3786 = vst [vmem:[%s256 + $0x68] sm:$0xff] %v3770
      %3787 = vst [vmem:[%s256 + $0x70] sm:$0xff] %v3771
      %3788 = vst [vmem:[%s256 + $0x78] sm:$0xff] %v3772
      %s3789 = smul.u32 8, %s23
      %p3790 = scmp.lt.s32.totalorder %s22, 1
      %s3791 = scalar_select %p3790, %s22, 1
      %p3792 = scmp.lt.s32.totalorder %s3789, 15
      %s3793 = scalar_select %p3792, %s3789, 15
      %s3794 = smul.addr %s3793, 2
      %s3795 = smul.addr %s3791, 32
      %s3796 = sadd.s32 %s3794, %s3795
      %s3797 = smul.addr %s3796, 8
      %s3798 = scalar_lea.vmem %s7, %s3797
      // Predicated region
      $region158: #{bottleneck_csp_forward.5} parent=43 // pred_check
        %p3799 = pneg %p176
      $region159: #{bottleneck_csp_forward.5} parent=43 // pred_check_branch
        %3801 = sbr.rel (%p3799) target = $region161
      $region160: #{bottleneck_csp_forward.5} parent=43 // pred_region
        %s3802 = smul.u32 8, %s23
      $region161: #{bottleneck_csp_forward.5} parent=43 // pred_fallthru
        _
    $region44: #{bottleneck_csp_forward.5} parent=5 // pred_fallthru
      _
    %p3803 = scmp.le.s32.totalorder 2, %s13
    // Predicated region
    $region162: #{bottleneck_csp_forward.5} parent=5 // pred_check
      %p3804 = pneg %p3803
    $region163: #{bottleneck_csp_forward.5} parent=5 // pred_check_branch
      %3806 = sbr.rel (%p3804) target = $region165
    $region164: #{bottleneck_csp_forward.5} parent=5 // pred_region
      %s3807 = ssub.s32 %s13, 2
      // Predicated region
      $region166: #{bottleneck_csp_forward.5} parent=164 // pred_check
        %p3808 = pneg %p182
      $region167: #{bottleneck_csp_forward.5} parent=164 // pred_check_branch
        %3810 = sbr.rel (%p3808) target = $region169
      $region168: #{bottleneck_csp_forward.5} parent=164 // pred_region
        %s3811 = smul.u32 8, %s25
        %p3812 = scmp.lt.s32.totalorder %s24, 1
        %s3813 = scalar_select %p3812, %s24, 1
        %p3814 = scmp.lt.s32.totalorder %s3811, 15
        %s3815 = scalar_select %p3814, %s3811, 15
        %s3816 = smul.addr %s3815, 2
        %s3817 = smul.addr %s3813, 32
        %s3818 = sadd.s32 %s3816, %s3817
        %s3819 = smul.addr %s3818, 8
        %s3820 = scalar_lea.vmem %s7, %s3819
      $region169: #{bottleneck_csp_forward.5} parent=164 // pred_fallthru
        _
    $region165: #{bottleneck_csp_forward.5} parent=5 // pred_fallthru
      _
  $region6: #{bottleneck_csp_forward.5} parent=0 // loop_footer
    %s17 = sadd.s32 1, %s13
  $region7: #{bottleneck_csp_forward.5} parent=0 // loop_footer_branch
    %12 = sbr.rel target = $region3
  $region8: #{bottleneck_csp_forward.5} parent=0 // loop_exit
    _

</llo_original>
